<compile_context>
chip_gen: v7x
topology: tpu7x:2x2x1
jax: 0.10.0
libtpu: 0.0.40
codegen_flags: <defaults>
</compile_context>

<pallas_src>
import jax
import jax.numpy as jnp
from jax.experimental import pallas as pl
from jax.experimental.pallas import tpu as pltpu


# ------------------------------ Pallas kernels ------------------------------

def _mm_bias_relu_kernel(x_ref, w_ref, bias_ref, o_ref):
    # 1x1 conv as matmul; BN scale already folded into w.
    acc = jnp.dot(x_ref[...], w_ref[...], preferred_element_type=jnp.float32)
    o_ref[...] = jnp.maximum(acc + bias_ref[...], 0.0).astype(o_ref.dtype)


def mm_bias_relu(x, w, bias, out_dtype=jnp.bfloat16):
    """(M,K)@(K,N) + bias + ReLU.  One full-width grid step (overhead-minimal)."""
    M, K = x.shape
    K2, N = w.shape
    assert K == K2
    bias2 = bias.reshape(1, N).astype(jnp.float32)
    return pl.pallas_call(
        _mm_bias_relu_kernel,
        out_shape=jax.ShapeDtypeStruct((M, N), out_dtype),
        grid_spec=pltpu.PrefetchScalarGridSpec(
            num_scalar_prefetch=0,
            grid=(1,),
            in_specs=[
                pl.BlockSpec((M, K), lambda j: (0, 0)),
                pl.BlockSpec((K, N), lambda j: (0, 0)),
                pl.BlockSpec((1, N), lambda j: (0, 0)),
            ],
            out_specs=pl.BlockSpec((M, N), lambda j: (0, 0)),
        ),
        compiler_params=pltpu.CompilerParams(
            dimension_semantics=("arbitrary",)),
    )(x, w, bias2)


def _tapconv_kernel(win_ref, w_ref, bias_ref, o_ref, acc_ref):
    t = pl.program_id(0)

    @pl.when(t == 0)
    def _():
        acc_ref[...] = jnp.zeros_like(acc_ref)

    acc_ref[...] += jnp.dot(win_ref[...], w_ref[...],
                            preferred_element_type=jnp.float32)

    @pl.when(t == pl.num_programs(0) - 1)
    def _():
        o_ref[...] = jnp.maximum(acc_ref[...] + bias_ref[...],
                                 0.0).astype(o_ref.dtype)


def tap_conv_bias_relu(windows, w_taps, bias, out_dtype=jnp.bfloat16):
    """Accumulate sum_t windows[t] @ w_taps[t] in VMEM, then bias + ReLU.

    windows: (T, M, Cin) shifted views; w_taps: (T, Cin, Cout), BN-scale folded.
    """
    T, M, Cin = windows.shape
    T2, Cin2, Cout = w_taps.shape
    assert T == T2 and Cin == Cin2
    bias2 = bias.reshape(1, Cout).astype(jnp.float32)
    return pl.pallas_call(
        _tapconv_kernel,
        out_shape=jax.ShapeDtypeStruct((M, Cout), out_dtype),
        grid_spec=pltpu.PrefetchScalarGridSpec(
            num_scalar_prefetch=0,
            grid=(T,),
            in_specs=[
                pl.BlockSpec((None, M, Cin), lambda t: (t, 0, 0)),
                pl.BlockSpec((None, Cin, Cout), lambda t: (t, 0, 0)),
                pl.BlockSpec((1, Cout), lambda t: (0, 0)),
            ],
            out_specs=pl.BlockSpec((M, Cout), lambda t: (0, 0)),
            scratch_shapes=[pltpu.VMEM((M, Cout), jnp.float32)],
        ),
        compiler_params=pltpu.CompilerParams(
            dimension_semantics=("arbitrary",)),
    )(windows, w_taps, bias2)


def _fin_residual_kernel(a_ref, b_ref, wa_ref, wb_ref, bias_ref, r_ref, o_ref):
    # cat(a,b) @ W_fin  ==  a @ W_fin[:Ka] + b @ W_fin[Ka:]
    acc = jnp.dot(a_ref[...], wa_ref[...], preferred_element_type=jnp.float32)
    acc = acc + jnp.dot(b_ref[...], wb_ref[...],
                        preferred_element_type=jnp.float32)
    y = jnp.maximum(acc + bias_ref[...], 0.0)          # conv_fin's BN + ReLU
    o_ref[...] = jnp.maximum(y + r_ref[...], 0.0).astype(o_ref.dtype)  # resid + ReLU


def fin_residual(a, b, wa, wb, bias, resid, tn=384):
    """Fused conv_fin(cat(a,b)) + BN + ReLU + residual-add + ReLU, tiled over N."""
    M, Ka = a.shape
    _, Kb = b.shape
    N = wa.shape[1]
    assert wb.shape == (Kb, N) and resid.shape == (M, N) and N % tn == 0
    bias2 = bias.reshape(1, N).astype(jnp.float32)
    return pl.pallas_call(
        _fin_residual_kernel,
        out_shape=jax.ShapeDtypeStruct((M, N), jnp.float32),
        grid_spec=pltpu.PrefetchScalarGridSpec(
            num_scalar_prefetch=0,
            grid=(N // tn,),
            in_specs=[
                pl.BlockSpec((M, Ka), lambda j: (0, 0)),
                pl.BlockSpec((M, Kb), lambda j: (0, 0)),
                pl.BlockSpec((Ka, tn), lambda j: (0, j)),
                pl.BlockSpec((Kb, tn), lambda j: (0, j)),
                pl.BlockSpec((1, tn), lambda j: (0, j)),
                pl.BlockSpec((M, tn), lambda j: (0, j)),
            ],
            out_specs=pl.BlockSpec((M, tn), lambda j: (0, j)),
        ),
        compiler_params=pltpu.CompilerParams(
            dimension_semantics=("parallel",)),
    )(a, b, wa, wb, bias2, resid)


# ------------------------------ forward (JAX glue) ------------------------------

def inception_b_res2_forward(x_nchw, p):
    Nb, C, H, W = x_nchw.shape
    x = jnp.transpose(x_nchw, (0, 2, 3, 1))          # NCHW -> NHWC (f32 residual)
    M = Nb * H * W
    x2d = x.reshape(M, C)
    x2d_bf = x2d.astype(jnp.bfloat16)

    # conv_a (192) + conv_b1 (128): same input, one fused matmul (M,1152)@(1152,320)
    y = mm_bias_relu(x2d_bf, p["w_ab1"], p["bias_ab1"])          # (M, 320) bf16
    a = y[:, :192]
    b1 = y[:, 192:]

    # conv_b2: kernel [1,5], padding 'same' -> 5 taps along W
    b1_4d = b1.reshape(Nb, H, W, 128)
    b1_pad = jnp.pad(b1_4d, ((0, 0), (0, 0), (2, 2), (0, 0)))
    wins_w = jnp.stack([b1_pad[:, :, j:j + W, :].reshape(M, 128)
                        for j in range(5)], axis=0)              # (5, M, 128)
    b2 = tap_conv_bias_relu(wins_w, p["w_b2"], p["bias_b2"])     # (M, 160) bf16

    # conv_b3: kernel [5,1], padding 'same' -> 5 taps along H
    b2_4d = b2.reshape(Nb, H, W, 160)
    b2_pad = jnp.pad(b2_4d, ((0, 0), (2, 2), (0, 0), (0, 0)))
    wins_h = jnp.stack([b2_pad[:, i:i + H, :, :].reshape(M, 160)
                        for i in range(5)], axis=0)              # (5, M, 160)
    b3 = tap_conv_bias_relu(wins_h, p["w_b3"], p["bias_b3"])     # (M, 192) bf16

    # conv_fin on cat(a, b3) (split matmul, concat never materialized)
    # + residual add + final ReLU, all fused in one kernel.
    out2d = fin_residual(a, b3, p["w_fin_a"], p["w_fin_b"],
                         p["bias_fin"], x2d)                     # (M, 1152) f32
    return jnp.transpose(out2d.reshape(Nb, H, W, C), (0, 3, 1, 2))


# ------------------------------ deterministic params ------------------------------

def _bn_fold(key, c, eps=1e-3):
    # Inference-mode BatchNorm folded to per-channel scale/bias.
    k1, k2, k3, k4 = jax.random.split(key, 4)
    gamma = 1.0 + 0.1 * jax.random.normal(k1, (c,), jnp.float32)
    beta = 0.1 * jax.random.normal(k2, (c,), jnp.float32)
    mean = 0.1 * jax.random.normal(k3, (c,), jnp.float32)
    var = 0.5 + jax.random.uniform(k4, (c,), jnp.float32)
    scale = gamma / jnp.sqrt(var + eps)
    bias = beta - mean * scale
    return scale, bias


def init_params(key):
    keys = jax.random.split(key, 10)

    def w(kk, o, i, kh, kw):
        return 0.05 * jax.random.normal(kk, (o, i, kh, kw), jnp.float32)

    wa = w(keys[0], 192, 1152, 1, 1); sa, ba = _bn_fold(keys[1], 192)
    wb1 = w(keys[2], 128, 1152, 1, 1); sb1, bb1 = _bn_fold(keys[3], 128)
    wb2 = w(keys[4], 160, 128, 1, 5); sb2, bb2 = _bn_fold(keys[5], 160)
    wb3 = w(keys[6], 192, 160, 5, 1); sb3, bb3 = _bn_fold(keys[7], 192)
    wf = w(keys[8], 1152, 384, 1, 1); sf, bfin = _bn_fold(keys[9], 1152)

    def conv1x1_mat(w_oihw, scale):
        # (O,I,1,1) -> (I,O) with BN scale folded into output columns.
        m = jnp.transpose(w_oihw[:, :, 0, 0], (1, 0))
        return (m * scale[None, :]).astype(jnp.bfloat16)

    p = {}
    # conv_a + conv_b1 fused weight (cat order: a then b1)
    p["w_ab1"] = jnp.concatenate(
        [conv1x1_mat(wa, sa), conv1x1_mat(wb1, sb1)], axis=1)    # (1152, 320)
    p["bias_ab1"] = jnp.concatenate([ba, bb1])                   # (320,)

    # [1,5] conv -> taps along W: (5, Cin=128, Cout=160), scale folded
    t = jnp.transpose(wb2[:, :, 0, :], (2, 1, 0))
    p["w_b2"] = (t * sb2[None, None, :]).astype(jnp.bfloat16)
    p["bias_b2"] = bb2

    # [5,1] conv -> taps along H: (5, Cin=160, Cout=192), scale folded
    t = jnp.transpose(wb3[:, :, :, 0], (2, 1, 0))
    p["w_b3"] = (t * sb3[None, None, :]).astype(jnp.bfloat16)
    p["bias_b3"] = bb3

    # conv_fin: (384, 1152) split into the a-rows and b-rows (cat order a, b)
    wf2d = jnp.transpose(wf[:, :, 0, 0], (1, 0)) * sf[None, :]
    p["w_fin_a"] = wf2d[:192, :].astype(jnp.bfloat16)
    p["w_fin_b"] = wf2d[192:, :].astype(jnp.bfloat16)
    p["bias_fin"] = bfin
    return p


# ------------------------------ main ------------------------------

if __name__ == "__main__":
    key = jax.random.PRNGKey(0)
    kx, kp = jax.random.split(key)
    # channels fixed at 1152 by the module; small batch/spatial (M = 2*8*8 = 128).
    x = jax.random.normal(kx, (2, 1152, 8, 8), jnp.float32)
    params = init_params(kp)

    out = jax.jit(inception_b_res2_forward)(x, params)
    out = jax.block_until_ready(out)

    assert out.shape == (2, 1152, 8, 8), out.shape
    assert jnp.all(jnp.isfinite(out))
    print("KERNEL_OK")
</pallas_src>

<mosaic_0001>
module attributes {stable_mosaic.version = 11 : i64} {
  func.func @_mm_bias_relu_kernel(%arg0: i32, %arg1: memref<128x1152xbf16, #tpu.memory_space<vmem>>, %arg2: memref<1152x320xbf16, #tpu.memory_space<vmem>>, %arg3: memref<1x320xf32, #tpu.memory_space<vmem>>, %arg4: memref<128x320xbf16, #tpu.memory_space<vmem>>) attributes {dimension_semantics = [#tpu.dimension_semantics<arbitrary>], iteration_bounds = array<i64: 1>, scalar_prefetch = 0 : i64, scratch_operands = 0 : i64, tpu.core_type = #tpu.core_type<tc>, window_params = [{pipeline_mode = #tpu.pipeline_mode<synchronous>, transform_indices = @transform_0, window_bounds = array<i64: 128, 1152>}, {pipeline_mode = #tpu.pipeline_mode<synchronous>, transform_indices = @transform_1, window_bounds = array<i64: 1152, 320>}, {pipeline_mode = #tpu.pipeline_mode<synchronous>, transform_indices = @transform_2, window_bounds = array<i64: 1, 320>}, {pipeline_mode = #tpu.pipeline_mode<synchronous>, transform_indices = @transform_3, window_bounds = array<i64: 128, 320>}]} {
    %c0 = arith.constant 0 : index
    %c0_0 = arith.constant 0 : index
    %0 = vector.load %arg1[%c0, %c0_0] : memref<128x1152xbf16, #tpu.memory_space<vmem>>, vector<128x1152xbf16>
    %c0_1 = arith.constant 0 : index
    %c0_2 = arith.constant 0 : index
    %1 = vector.load %arg2[%c0_1, %c0_2] : memref<1152x320xbf16, #tpu.memory_space<vmem>>, vector<1152x320xbf16>
    %cst = arith.constant dense<0.000000e+00> : vector<128x320xf32>
    %2 = tpu.matmul %0, %1, %cst {dimension_numbers = #tpu.dot_dimension_numbers<[1], [0], [0], [1], [0, 0, 1, 1], [], []>} : vector<128x1152xbf16>, vector<1152x320xbf16>, vector<128x320xf32> -> vector<128x320xf32>
    %c0_3 = arith.constant 0 : index
    %c0_4 = arith.constant 0 : index
    %3 = vector.load %arg3[%c0_3, %c0_4] : memref<1x320xf32, #tpu.memory_space<vmem>>, vector<1x320xf32>
    %4 = vector.broadcast %3 : vector<1x320xf32> to vector<128x320xf32>
    %5 = arith.addf %2, %4 : vector<128x320xf32>
    %cst_5 = arith.constant 0.000000e+00 : f32
    %6 = vector.broadcast %cst_5 : f32 to vector<128x320xf32>
    %7 = arith.maximumf %5, %6 : vector<128x320xf32>
    %8 = arith.truncf %7 : vector<128x320xf32> to vector<128x320xbf16>
    %c0_6 = arith.constant 0 : index
    %c0_7 = arith.constant 0 : index
    %9 = vector.load %arg4[%c0_6, %c0_7] : memref<128x320xbf16, #tpu.memory_space<vmem>>, vector<128x320xbf16>
    tpu.vector_store %arg4[%c0_6, %c0_7], %8 {strides = array<i32>} : memref<128x320xbf16, #tpu.memory_space<vmem>>, vector<128x320xbf16>,
    return
  }
  func.func @transform_0(%arg0: i32) -> (i32, i32) {
    %c0_i32 = arith.constant 0 : i32
    %c0_i32_0 = arith.constant 0 : i32
    %c0_i32_1 = arith.constant 0 : i32
    return %c0_i32, %c0_i32_0 : i32, i32
  }
  func.func @transform_1(%arg0: i32) -> (i32, i32) {
    %c0_i32 = arith.constant 0 : i32
    %c0_i32_0 = arith.constant 0 : i32
    %c0_i32_1 = arith.constant 0 : i32
    return %c0_i32, %c0_i32_0 : i32, i32
  }
  func.func @transform_2(%arg0: i32) -> (i32, i32) {
    %c0_i32 = arith.constant 0 : i32
    %c0_i32_0 = arith.constant 0 : i32
    %c0_i32_1 = arith.constant 0 : i32
    return %c0_i32, %c0_i32_0 : i32, i32
  }
  func.func @transform_3(%arg0: i32) -> (i32, i32) {
    %c0_i32 = arith.constant 0 : i32
    %c0_i32_0 = arith.constant 0 : i32
    %c0_i32_1 = arith.constant 0 : i32
    return %c0_i32, %c0_i32_0 : i32, i32
  }
}

module attributes {stable_mosaic.version = 11 : i64} {
  func.func @_tapconv_kernel(%arg0: i32, %arg1: memref<1x128x160xbf16, #tpu.memory_space<vmem>>, %arg2: memref<1x160x192xbf16, #tpu.memory_space<vmem>>, %arg3: memref<1x192xf32, #tpu.memory_space<vmem>>, %arg4: memref<128x192xbf16, #tpu.memory_space<vmem>>, %arg5: memref<128x192xf32, #tpu.memory_space<vmem>>) attributes {dimension_semantics = [#tpu.dimension_semantics<arbitrary>], iteration_bounds = array<i64: 5>, scalar_prefetch = 0 : i64, scratch_operands = 1 : i64, tpu.core_type = #tpu.core_type<tc>, window_params = [{transform_indices = @transform_0, window_bounds = array<i64: 1, 128, 160>}, {transform_indices = @transform_1, window_bounds = array<i64: 1, 160, 192>}, {pipeline_mode = #tpu.pipeline_mode<synchronous>, transform_indices = @transform_2, window_bounds = array<i64: 1, 192>}, {pipeline_mode = #tpu.pipeline_mode<synchronous>, transform_indices = @transform_3, window_bounds = array<i64: 128, 192>}]} {
    %c0_i32 = arith.constant 0 : i32
    %0 = arith.cmpi eq, %arg0, %c0_i32 : i32
    %1 = arith.extui %0 : i1 to i32
    %c0_i32_0 = arith.constant 0 : i32
    %2 = arith.cmpi ne, %1, %c0_i32_0 : i32
    scf.if %2 {
      %cst_11 = arith.constant 0.000000e+00 : f32
      %14 = vector.broadcast %cst_11 : f32 to vector<128x192xf32>
      %c0_12 = arith.constant 0 : index
      %c0_13 = arith.constant 0 : index
      %15 = vector.load %arg5[%c0_12, %c0_13] : memref<128x192xf32, #tpu.memory_space<vmem>>, vector<128x192xf32>
      tpu.vector_store %arg5[%c0_12, %c0_13], %14 {strides = array<i32>} : memref<128x192xf32, #tpu.memory_space<vmem>>, vector<128x192xf32>,
    } else {
    }
    %c0 = arith.constant 0 : index
    %c0_1 = arith.constant 0 : index
    %3 = vector.load %arg5[%c0, %c0_1] : memref<128x192xf32, #tpu.memory_space<vmem>>, vector<128x192xf32>
    %c0_2 = arith.constant 0 : index
    %c0_3 = arith.constant 0 : index
    %c0_4 = arith.constant 0 : index
    %4 = vector.load %arg1[%c0_2, %c0_3, %c0_4] : memref<1x128x160xbf16, #tpu.memory_space<vmem>>, vector<1x128x160xbf16>
    %5 = vector.shape_cast %4 : vector<1x128x160xbf16> to vector<128x160xbf16>
    %c0_5 = arith.constant 0 : index
    %c0_6 = arith.constant 0 : index
    %c0_7 = arith.constant 0 : index
    %6 = vector.load %arg2[%c0_5, %c0_6, %c0_7] : memref<1x160x192xbf16, #tpu.memory_space<vmem>>, vector<1x160x192xbf16>
    %7 = vector.shape_cast %6 : vector<1x160x192xbf16> to vector<160x192xbf16>
    %cst = arith.constant dense<0.000000e+00> : vector<128x192xf32>
    %8 = tpu.matmul %5, %7, %cst {dimension_numbers = #tpu.dot_dimension_numbers<[1], [0], [0], [1], [0, 0, 1, 1], [], []>} : vector<128x160xbf16>, vector<160x192xbf16>, vector<128x192xf32> -> vector<128x192xf32>
    %9 = arith.addf %3, %8 : vector<128x192xf32>
    %c0_8 = arith.constant 0 : index
    %c0_9 = arith.constant 0 : index
    %10 = vector.load %arg5[%c0_8, %c0_9] : memref<128x192xf32, #tpu.memory_space<vmem>>, vector<128x192xf32>
    tpu.vector_store %arg5[%c0_8, %c0_9], %9 {strides = array<i32>} : memref<128x192xf32, #tpu.memory_space<vmem>>, vector<128x192xf32>,
    %c4_i32 = arith.constant 4 : i32
    %11 = arith.cmpi eq, %arg0, %c4_i32 : i32
    %12 = arith.extui %11 : i1 to i32
    %c0_i32_10 = arith.constant 0 : i32
    %13 = arith.cmpi ne, %12, %c0_i32_10 : i32
    scf.if %13 {
      %c0_11 = arith.constant 0 : index
      %c0_12 = arith.constant 0 : index
      %14 = vector.load %arg5[%c0_11, %c0_12] : memref<128x192xf32, #tpu.memory_space<vmem>>, vector<128x192xf32>
      %c0_13 = arith.constant 0 : index
      %c0_14 = arith.constant 0 : index
      %15 = vector.load %arg3[%c0_13, %c0_14] : memref<1x192xf32, #tpu.memory_space<vmem>>, vector<1x192xf32>
      %16 = vector.broadcast %15 : vector<1x192xf32> to vector<128x192xf32>
      %17 = arith.addf %14, %16 : vector<128x192xf32>
      %cst_15 = arith.constant 0.000000e+00 : f32
      %18 = vector.broadcast %cst_15 : f32 to vector<128x192xf32>
      %19 = arith.maximumf %17, %18 : vector<128x192xf32>
      %20 = arith.truncf %19 : vector<128x192xf32> to vector<128x192xbf16>
      %c0_16 = arith.constant 0 : index
      %c0_17 = arith.constant 0 : index
      %21 = vector.load %arg4[%c0_16, %c0_17] : memref<128x192xbf16, #tpu.memory_space<vmem>>, vector<128x192xbf16>
      tpu.vector_store %arg4[%c0_16, %c0_17], %20 {strides = array<i32>} : memref<128x192xbf16, #tpu.memory_space<vmem>>, vector<128x192xbf16>,
    } else {
    }
    return
  }
  func.func @transform_0(%arg0: i32) -> (i32, i32, i32) {
    %c0_i32 = arith.constant 0 : i32
    %c0_i32_0 = arith.constant 0 : i32
    %c0_i32_1 = arith.constant 0 : i32
    return %arg0, %c0_i32, %c0_i32_0 : i32, i32, i32
  }
  func.func @transform_1(%arg0: i32) -> (i32, i32, i32) {
    %c0_i32 = arith.constant 0 : i32
    %c0_i32_0 = arith.constant 0 : i32
    %c0_i32_1 = arith.constant 0 : i32
    return %arg0, %c0_i32, %c0_i32_0 : i32, i32, i32
  }
  func.func @transform_2(%arg0: i32) -> (i32, i32) {
    %c0_i32 = arith.constant 0 : i32
    %c0_i32_0 = arith.constant 0 : i32
    %c0_i32_1 = arith.constant 0 : i32
    return %c0_i32, %c0_i32_0 : i32, i32
  }
  func.func @transform_3(%arg0: i32) -> (i32, i32) {
    %c0_i32 = arith.constant 0 : i32
    %c0_i32_0 = arith.constant 0 : i32
    %c0_i32_1 = arith.constant 0 : i32
    return %c0_i32, %c0_i32_0 : i32, i32
  }
}

module attributes {stable_mosaic.version = 11 : i64} {
  func.func @_tapconv_kernel(%arg0: i32, %arg1: memref<1x128x128xbf16, #tpu.memory_space<vmem>>, %arg2: memref<1x128x160xbf16, #tpu.memory_space<vmem>>, %arg3: memref<1x160xf32, #tpu.memory_space<vmem>>, %arg4: memref<128x160xbf16, #tpu.memory_space<vmem>>, %arg5: memref<128x160xf32, #tpu.memory_space<vmem>>) attributes {dimension_semantics = [#tpu.dimension_semantics<arbitrary>], iteration_bounds = array<i64: 5>, scalar_prefetch = 0 : i64, scratch_operands = 1 : i64, tpu.core_type = #tpu.core_type<tc>, window_params = [{transform_indices = @transform_0, window_bounds = array<i64: 1, 128, 128>}, {transform_indices = @transform_1, window_bounds = array<i64: 1, 128, 160>}, {pipeline_mode = #tpu.pipeline_mode<synchronous>, transform_indices = @transform_2, window_bounds = array<i64: 1, 160>}, {pipeline_mode = #tpu.pipeline_mode<synchronous>, transform_indices = @transform_3, window_bounds = array<i64: 128, 160>}]} {
    %c0_i32 = arith.constant 0 : i32
    %0 = arith.cmpi eq, %arg0, %c0_i32 : i32
    %1 = arith.extui %0 : i1 to i32
    %c0_i32_0 = arith.constant 0 : i32
    %2 = arith.cmpi ne, %1, %c0_i32_0 : i32
    scf.if %2 {
      %cst_11 = arith.constant 0.000000e+00 : f32
      %14 = vector.broadcast %cst_11 : f32 to vector<128x160xf32>
      %c0_12 = arith.constant 0 : index
      %c0_13 = arith.constant 0 : index
      %15 = vector.load %arg5[%c0_12, %c0_13] : memref<128x160xf32, #tpu.memory_space<vmem>>, vector<128x160xf32>
      tpu.vector_store %arg5[%c0_12, %c0_13], %14 {strides = array<i32>} : memref<128x160xf32, #tpu.memory_space<vmem>>, vector<128x160xf32>,
    } else {
    }
    %c0 = arith.constant 0 : index
    %c0_1 = arith.constant 0 : index
    %3 = vector.load %arg5[%c0, %c0_1] : memref<128x160xf32, #tpu.memory_space<vmem>>, vector<128x160xf32>
    %c0_2 = arith.constant 0 : index
    %c0_3 = arith.constant 0 : index
    %c0_4 = arith.constant 0 : index
    %4 = vector.load %arg1[%c0_2, %c0_3, %c0_4] : memref<1x128x128xbf16, #tpu.memory_space<vmem>>, vector<1x128x128xbf16>
    %5 = vector.shape_cast %4 : vector<1x128x128xbf16> to vector<128x128xbf16>
    %c0_5 = arith.constant 0 : index
    %c0_6 = arith.constant 0 : index
    %c0_7 = arith.constant 0 : index
    %6 = vector.load %arg2[%c0_5, %c0_6, %c0_7] : memref<1x128x160xbf16, #tpu.memory_space<vmem>>, vector<1x128x160xbf16>
    %7 = vector.shape_cast %6 : vector<1x128x160xbf16> to vector<128x160xbf16>
    %cst = arith.constant dense<0.000000e+00> : vector<128x160xf32>
    %8 = tpu.matmul %5, %7, %cst {dimension_numbers = #tpu.dot_dimension_numbers<[1], [0], [0], [1], [0, 0, 1, 1], [], []>} : vector<128x128xbf16>, vector<128x160xbf16>, vector<128x160xf32> -> vector<128x160xf32>
    %9 = arith.addf %3, %8 : vector<128x160xf32>
    %c0_8 = arith.constant 0 : index
    %c0_9 = arith.constant 0 : index
    %10 = vector.load %arg5[%c0_8, %c0_9] : memref<128x160xf32, #tpu.memory_space<vmem>>, vector<128x160xf32>
    tpu.vector_store %arg5[%c0_8, %c0_9], %9 {strides = array<i32>} : memref<128x160xf32, #tpu.memory_space<vmem>>, vector<128x160xf32>,
    %c4_i32 = arith.constant 4 : i32
    %11 = arith.cmpi eq, %arg0, %c4_i32 : i32
    %12 = arith.extui %11 : i1 to i32
    %c0_i32_10 = arith.constant 0 : i32
    %13 = arith.cmpi ne, %12, %c0_i32_10 : i32
    scf.if %13 {
      %c0_11 = arith.constant 0 : index
      %c0_12 = arith.constant 0 : index
      %14 = vector.load %arg5[%c0_11, %c0_12] : memref<128x160xf32, #tpu.memory_space<vmem>>, vector<128x160xf32>
      %c0_13 = arith.constant 0 : index
      %c0_14 = arith.constant 0 : index
      %15 = vector.load %arg3[%c0_13, %c0_14] : memref<1x160xf32, #tpu.memory_space<vmem>>, vector<1x160xf32>
      %16 = vector.broadcast %15 : vector<1x160xf32> to vector<128x160xf32>
      %17 = arith.addf %14, %16 : vector<128x160xf32>
      %cst_15 = arith.constant 0.000000e+00 : f32
      %18 = vector.broadcast %cst_15 : f32 to vector<128x160xf32>
      %19 = arith.maximumf %17, %18 : vector<128x160xf32>
      %20 = arith.truncf %19 : vector<128x160xf32> to vector<128x160xbf16>
      %c0_16 = arith.constant 0 : index
      %c0_17 = arith.constant 0 : index
      %21 = vector.load %arg4[%c0_16, %c0_17] : memref<128x160xbf16, #tpu.memory_space<vmem>>, vector<128x160xbf16>
      tpu.vector_store %arg4[%c0_16, %c0_17], %20 {strides = array<i32>} : memref<128x160xbf16, #tpu.memory_space<vmem>>, vector<128x160xbf16>,
    } else {
    }
    return
  }
  func.func @transform_0(%arg0: i32) -> (i32, i32, i32) {
    %c0_i32 = arith.constant 0 : i32
    %c0_i32_0 = arith.constant 0 : i32
    %c0_i32_1 = arith.constant 0 : i32
    return %arg0, %c0_i32, %c0_i32_0 : i32, i32, i32
  }
  func.func @transform_1(%arg0: i32) -> (i32, i32, i32) {
    %c0_i32 = arith.constant 0 : i32
    %c0_i32_0 = arith.constant 0 : i32
    %c0_i32_1 = arith.constant 0 : i32
    return %arg0, %c0_i32, %c0_i32_0 : i32, i32, i32
  }
  func.func @transform_2(%arg0: i32) -> (i32, i32) {
    %c0_i32 = arith.constant 0 : i32
    %c0_i32_0 = arith.constant 0 : i32
    %c0_i32_1 = arith.constant 0 : i32
    return %c0_i32, %c0_i32_0 : i32, i32
  }
  func.func @transform_3(%arg0: i32) -> (i32, i32) {
    %c0_i32 = arith.constant 0 : i32
    %c0_i32_0 = arith.constant 0 : i32
    %c0_i32_1 = arith.constant 0 : i32
    return %c0_i32, %c0_i32_0 : i32, i32
  }
}

module attributes {stable_mosaic.version = 11 : i64} {
  func.func @_fin_residual_kernel(%arg0: i32, %arg1: memref<128x192xbf16, #tpu.memory_space<vmem>>, %arg2: memref<128x192xbf16, #tpu.memory_space<vmem>>, %arg3: memref<192x384xbf16, #tpu.memory_space<vmem>>, %arg4: memref<192x384xbf16, #tpu.memory_space<vmem>>, %arg5: memref<1x384xf32, #tpu.memory_space<vmem>>, %arg6: memref<128x384xf32, #tpu.memory_space<vmem>>, %arg7: memref<128x384xf32, #tpu.memory_space<vmem>>) attributes {dimension_semantics = [#tpu.dimension_semantics<parallel>], iteration_bounds = array<i64: 3>, scalar_prefetch = 0 : i64, scratch_operands = 0 : i64, tpu.core_type = #tpu.core_type<tc>, window_params = [{pipeline_mode = #tpu.pipeline_mode<synchronous>, transform_indices = @transform_0, window_bounds = array<i64: 128, 192>}, {pipeline_mode = #tpu.pipeline_mode<synchronous>, transform_indices = @transform_1, window_bounds = array<i64: 128, 192>}, {transform_indices = @transform_2, window_bounds = array<i64: 192, 384>}, {transform_indices = @transform_3, window_bounds = array<i64: 192, 384>}, {transform_indices = @transform_4, window_bounds = array<i64: 1, 384>}, {transform_indices = @transform_5, window_bounds = array<i64: 128, 384>}, {transform_indices = @transform_6, window_bounds = array<i64: 128, 384>}]} {
    %c0 = arith.constant 0 : index
    %c0_0 = arith.constant 0 : index
    %0 = vector.load %arg1[%c0, %c0_0] : memref<128x192xbf16, #tpu.memory_space<vmem>>, vector<128x192xbf16>
    %c0_1 = arith.constant 0 : index
    %c0_2 = arith.constant 0 : index
    %1 = vector.load %arg3[%c0_1, %c0_2] : memref<192x384xbf16, #tpu.memory_space<vmem>>, vector<192x384xbf16>
    %cst = arith.constant dense<0.000000e+00> : vector<128x384xf32>
    %2 = tpu.matmul %0, %1, %cst {dimension_numbers = #tpu.dot_dimension_numbers<[1], [0], [0], [1], [0, 0, 1, 1], [], []>} : vector<128x192xbf16>, vector<192x384xbf16>, vector<128x384xf32> -> vector<128x384xf32>
    %c0_3 = arith.constant 0 : index
    %c0_4 = arith.constant 0 : index
    %3 = vector.load %arg2[%c0_3, %c0_4] : memref<128x192xbf16, #tpu.memory_space<vmem>>, vector<128x192xbf16>
    %c0_5 = arith.constant 0 : index
    %c0_6 = arith.constant 0 : index
    %4 = vector.load %arg4[%c0_5, %c0_6] : memref<192x384xbf16, #tpu.memory_space<vmem>>, vector<192x384xbf16>
    %cst_7 = arith.constant dense<0.000000e+00> : vector<128x384xf32>
    %5 = tpu.matmul %3, %4, %cst_7 {dimension_numbers = #tpu.dot_dimension_numbers<[1], [0], [0], [1], [0, 0, 1, 1], [], []>} : vector<128x192xbf16>, vector<192x384xbf16>, vector<128x384xf32> -> vector<128x384xf32>
    %6 = arith.addf %2, %5 : vector<128x384xf32>
    %c0_8 = arith.constant 0 : index
    %c0_9 = arith.constant 0 : index
    %7 = vector.load %arg5[%c0_8, %c0_9] : memref<1x384xf32, #tpu.memory_space<vmem>>, vector<1x384xf32>
    %8 = vector.broadcast %7 : vector<1x384xf32> to vector<128x384xf32>
    %9 = arith.addf %6, %8 : vector<128x384xf32>
    %cst_10 = arith.constant 0.000000e+00 : f32
    %10 = vector.broadcast %cst_10 : f32 to vector<128x384xf32>
    %11 = arith.maximumf %9, %10 : vector<128x384xf32>
    %c0_11 = arith.constant 0 : index
    %c0_12 = arith.constant 0 : index
    %12 = vector.load %arg6[%c0_11, %c0_12] : memref<128x384xf32, #tpu.memory_space<vmem>>, vector<128x384xf32>
    %13 = arith.addf %11, %12 : vector<128x384xf32>
    %cst_13 = arith.constant 0.000000e+00 : f32
    %14 = vector.broadcast %cst_13 : f32 to vector<128x384xf32>
    %15 = arith.maximumf %13, %14 : vector<128x384xf32>
    %c0_14 = arith.constant 0 : index
    %c0_15 = arith.constant 0 : index
    %16 = vector.load %arg7[%c0_14, %c0_15] : memref<128x384xf32, #tpu.memory_space<vmem>>, vector<128x384xf32>
    tpu.vector_store %arg7[%c0_14, %c0_15], %15 {strides = array<i32>} : memref<128x384xf32, #tpu.memory_space<vmem>>, vector<128x384xf32>,
    return
  }
  func.func @transform_0(%arg0: i32) -> (i32, i32) {
    %c0_i32 = arith.constant 0 : i32
    %c0_i32_0 = arith.constant 0 : i32
    %c0_i32_1 = arith.constant 0 : i32
    return %c0_i32, %c0_i32_0 : i32, i32
  }
  func.func @transform_1(%arg0: i32) -> (i32, i32) {
    %c0_i32 = arith.constant 0 : i32
    %c0_i32_0 = arith.constant 0 : i32
    %c0_i32_1 = arith.constant 0 : i32
    return %c0_i32, %c0_i32_0 : i32, i32
  }
  func.func @transform_2(%arg0: i32) -> (i32, i32) {
    %c0_i32 = arith.constant 0 : i32
    %c0_i32_0 = arith.constant 0 : i32
    return %c0_i32, %arg0 : i32, i32
  }
  func.func @transform_3(%arg0: i32) -> (i32, i32) {
    %c0_i32 = arith.constant 0 : i32
    %c0_i32_0 = arith.constant 0 : i32
    return %c0_i32, %arg0 : i32, i32
  }
  func.func @transform_4(%arg0: i32) -> (i32, i32) {
    %c0_i32 = arith.constant 0 : i32
    %c0_i32_0 = arith.constant 0 : i32
    return %c0_i32, %arg0 : i32, i32
  }
  func.func @transform_5(%arg0: i32) -> (i32, i32) {
    %c0_i32 = arith.constant 0 : i32
    %c0_i32_0 = arith.constant 0 : i32
    return %c0_i32, %arg0 : i32, i32
  }
  func.func @transform_6(%arg0: i32) -> (i32, i32) {
    %c0_i32 = arith.constant 0 : i32
    %c0_i32_0 = arith.constant 0 : i32
    return %c0_i32, %arg0 : i32, i32
  }
}

</mosaic_0001>

<llo_original>
// kernel: inception_b_res2_forward.6
$region0: #{inception_b_res2_forward.6}
  #allocation0 [shape = 'u32[]', space=smem, size = 0x4, offset = 0x4, fixed_abs, tag = 'smem constant byte address 0x4 - core index']
  #allocation1 [shape = 'u32[144,128]{1,0:T(1,128)}', space=vmem, size = 0x12000, scoped, tag = 'internal scratch']
  #allocation2 [shape = 'f32[128,192]{1,0:T(8,128)}', space=vmem, size = 0x20000, scoped, tag = 'scratch operand']
  %s0 = inlined_call_operand.vmem [shape: bf16[5,128,160], index: 0, kind: input, shape index: {}]
  %s1 = inlined_call_operand.vmem [shape: bf16[5,160,192], index: 1, kind: input, shape index: {}]
  %s2 = inlined_call_operand.vmem [shape: f32[1,192], index: 2, kind: input, shape index: {}]
  %s3 = inlined_call_operand.vmem [shape: bf16[128,192], index: 3, kind: output, shape index: {}]
  %s4 = sld [smem:[#allocation0]]
  $region53: #{inception_b_res2_forward.6} parent=0
    _
  %s6 = ssub.s32 1, %s4
  %s7 = scalar_select 0, %s6, %s4
  loop: start=0, step=1, limit=7
  $region2: #{inception_b_res2_forward.6} parent=0 // loop_pre_header
    _
  $region3: #{inception_b_res2_forward.6} parent=0 // loop_header
    %s9 = sphi 0, %s13
    %p10 = scmp.ge.s32.totalorder %s9, 7
    %s19 = sphi 0, %s21
    %s22 = sphi 0, %s19
    %s23 = sphi 0, %s22
    %s39 = sphi 0, %s23
    %s45 = sphi 0, %s47
    %s48 = sphi 0, %s45
    %s49 = sphi 0, %s48
    %s65 = sphi 0, %s49
    %s69 = sphi 0, %s69
    %s71 = sphi 0, %s69
    %s72 = sphi 0, %s71
    %s86 = sphi 0, %s72
    %s90 = sphi 0, %s90
    %s92 = sphi 0, %s90
    %s93 = sphi 0, %s92
    %s107 = sphi 0, %s93
  $region4: #{inception_b_res2_forward.6} parent=0 // loop_header_branch
    %12 = sbr.rel (%p10) target = $region8
  $region5: #{inception_b_res2_forward.6} parent=0 // loop_body
    %s14 = ssub.s32 %s9, 1
    %s15 = ssub.s32 %s9, 2
    %s16 = sadd.s32 %s9, 1
    %s17 = ssub.s32 %s9, %s16
    %p18 = scmp.eq.s32.totalorder %s17, 0
    %s20 = sadd.s32 %s19, 1
    %s21 = scalar_select %p18, %s19, %s20
    %p24 = pneg %p18
    %p25 = scmp.eq.s32.totalorder %s9, 4
    %p26 = por %p24, %p25
    %p27 = scmp.ne.s32.totalorder %s19, %s22
    %p28 = scmp.eq.s32.totalorder %s9, 0
    %p29 = por %p27, %p28
    %p30 = scmp.ne.s32.totalorder %s19, %s22
    %p31 = scmp.eq.s32.totalorder %s14, 4
    %p32 = por %p30, %p31
    %p33 = scmp.ne.s32.totalorder %s22, %s23
    %p34 = scmp.eq.s32.totalorder %s14, 0
    %p35 = por %p33, %p34
    %p36 = scmp.ne.s32.totalorder %s22, %s23
    %p37 = scmp.eq.s32.totalorder %s15, 4
    %p38 = por %p36, %p37
    %p40 = scmp.ne.s32.totalorder %s23, %s39
    %p41 = scmp.eq.s32.totalorder %s15, 0
    %p42 = por %p40, %p41
    %s43 = ssub.s32 %s9, %s16
    %p44 = scmp.eq.s32.totalorder %s43, 0
    %s46 = sadd.s32 %s45, 1
    %s47 = scalar_select %p44, %s45, %s46
    %p50 = pneg %p44
    %p51 = scmp.eq.s32.totalorder %s9, 4
    %p52 = por %p50, %p51
    %p53 = scmp.ne.s32.totalorder %s45, %s48
    %p54 = scmp.eq.s32.totalorder %s9, 0
    %p55 = por %p53, %p54
    %p56 = scmp.ne.s32.totalorder %s45, %s48
    %p57 = scmp.eq.s32.totalorder %s14, 4
    %p58 = por %p56, %p57
    %p59 = scmp.ne.s32.totalorder %s48, %s49
    %p60 = scmp.eq.s32.totalorder %s14, 0
    %p61 = por %p59, %p60
    %p62 = scmp.ne.s32.totalorder %s48, %s49
    %p63 = scmp.eq.s32.totalorder %s15, 4
    %p64 = por %p62, %p63
    %p66 = scmp.ne.s32.totalorder %s49, %s65
    %p67 = scmp.eq.s32.totalorder %s15, 0
    %p68 = por %p66, %p67
    %s70 = sadd.s32 %s69, 1
    %p73 = scmp.eq.s32.totalorder %s9, 4
    %p74 = scmp.ne.s32.totalorder %s69, %s71
    %p75 = scmp.eq.s32.totalorder %s9, 0
    %p76 = por %p74, %p75
    %p77 = scmp.ne.s32.totalorder %s69, %s71
    %p78 = scmp.eq.s32.totalorder %s14, 4
    %p79 = por %p77, %p78
    %p80 = scmp.ne.s32.totalorder %s71, %s72
    %p81 = scmp.eq.s32.totalorder %s14, 0
    %p82 = por %p80, %p81
    %p83 = scmp.ne.s32.totalorder %s71, %s72
    %p84 = scmp.eq.s32.totalorder %s15, 4
    %p85 = por %p83, %p84
    %p87 = scmp.ne.s32.totalorder %s72, %s86
    %p88 = scmp.eq.s32.totalorder %s15, 0
    %p89 = por %p87, %p88
    %s91 = sadd.s32 %s90, 1
    %p94 = scmp.eq.s32.totalorder %s9, 4
    %p95 = scmp.ne.s32.totalorder %s90, %s92
    %p96 = scmp.eq.s32.totalorder %s9, 0
    %p97 = por %p95, %p96
    %p98 = scmp.ne.s32.totalorder %s90, %s92
    %p99 = scmp.eq.s32.totalorder %s14, 4
    %p100 = por %p98, %p99
    %p101 = scmp.ne.s32.totalorder %s92, %s93
    %p102 = scmp.eq.s32.totalorder %s14, 0
    %p103 = por %p101, %p102
    %p104 = scmp.ne.s32.totalorder %s92, %s93
    %p105 = scmp.eq.s32.totalorder %s15, 4
    %p106 = por %p104, %p105
    %p108 = scmp.ne.s32.totalorder %s93, %s107
    %p109 = scmp.eq.s32.totalorder %s15, 0
    %p110 = por %p108, %p109
    %p111 = scmp.le.s32.totalorder 1, %s9
    %p112 = scmp.lt.s32.totalorder %s9, 6
    %p113 = pnand %p111, %p112
    %p114 = pneg %p113
    // Predicated region
    $region9: #{inception_b_res2_forward.6} parent=5 // pred_check
      _
    $region10: #{inception_b_res2_forward.6} parent=5 // pred_check_branch
      %116 = sbr.rel (%p113) target = $region12
    $region11: #{inception_b_res2_forward.6} parent=5 // pred_region
      %s117 = ssub.s32 %s9, 1
      // Predicated region
      $region13: #{inception_b_res2_forward.6} parent=11 // pred_check
        %p118 = pneg %p82
      $region14: #{inception_b_res2_forward.6} parent=11 // pred_check_branch
        %120 = sbr.rel (%p118) target = $region16
      $region15: #{inception_b_res2_forward.6} parent=11 // pred_region
        _
      $region16: #{inception_b_res2_forward.6} parent=11 // pred_fallthru
        _
    $region12: #{inception_b_res2_forward.6} parent=5 // pred_fallthru
      _
    %p121 = scmp.lt.s32.totalorder %s9, 5
    // Predicated region
    $region17: #{inception_b_res2_forward.6} parent=5 // pred_check
      %p122 = pneg %p121
    $region18: #{inception_b_res2_forward.6} parent=5 // pred_check_branch
      %124 = sbr.rel (%p122) target = $region20
    $region19: #{inception_b_res2_forward.6} parent=5 // pred_region
      // Predicated region
      $region21: #{inception_b_res2_forward.6} parent=19 // pred_check
        %p125 = pneg %p29
      $region22: #{inception_b_res2_forward.6} parent=19 // pred_check_branch
        %127 = sbr.rel (%p125) target = $region24
      $region23: #{inception_b_res2_forward.6} parent=19 // pred_region
        %p128 = scmp.lt.s32.totalorder %s9, 4
        %s129 = scalar_select %p128, %s9, 4
        %s130 = smul.addr %s129, 32
        %s131 = smul.addr %s130, 4
        %s132 = scalar_lea.vmem %s0, %s131
      $region24: #{inception_b_res2_forward.6} parent=19 // pred_fallthru
        _
      // Predicated region
      $region25: #{inception_b_res2_forward.6} parent=19 // pred_check
        %p133 = pneg %p55
      $region26: #{inception_b_res2_forward.6} parent=19 // pred_check_branch
        %135 = sbr.rel (%p133) target = $region28
      $region27: #{inception_b_res2_forward.6} parent=19 // pred_region
        %p136 = scmp.lt.s32.totalorder %s9, 4
        %s137 = scalar_select %p136, %s9, 4
        %s138 = smul.addr %s137, 40
        %s139 = smul.addr %s138, 4
        %s140 = scalar_lea.vmem %s1, %s139
      $region28: #{inception_b_res2_forward.6} parent=19 // pred_fallthru
        _
    $region20: #{inception_b_res2_forward.6} parent=5 // pred_fallthru
      _
    %p141 = scmp.le.s32.totalorder 1, %s9
    %p142 = scmp.lt.s32.totalorder %s9, 6
    %p143 = pnand %p141, %p142
    %p144 = pneg %p143
    // Predicated region
    $region29: #{inception_b_res2_forward.6} parent=5 // pred_check
      _
    $region30: #{inception_b_res2_forward.6} parent=5 // pred_check_branch
      %146 = sbr.rel (%p143) target = $region32
    $region31: #{inception_b_res2_forward.6} parent=5 // pred_region
      %s147 = ssub.s32 %s9, 1
      %p148 = scmp.lt.s32.totalorder %s14, 4
      %s149 = scalar_select %p148, %s14, 4
      %s150 = smul.addr %s149, 32
      %s151 = smul.addr %s150, 4
      %s152 = scalar_lea.vmem %s0, %s151
      %p153 = pneg %p35
      %p154 = pneg %p32
      %p155 = scmp.lt.s32.totalorder %s14, 4
      %s156 = scalar_select %p155, %s14, 4
      %s157 = smul.addr %s156, 40
      %s158 = smul.addr %s157, 4
      %s159 = scalar_lea.vmem %s1, %s158
      %p160 = pneg %p61
      %p161 = pneg %p58
      %p162 = pneg %p82
      %p163 = pneg %p79
      %p164 = pneg %p103
      %p165 = pneg %p100
      %p166 = scmp.lt.s32.totalorder %s14, 4
      %s167 = scalar_select %p166, %s14, 4
      %s168 = smul.addr %s167, 32
      %s169 = smul.addr %s168, 4
      %s170 = scalar_lea.vmem %s0, %s169
      %p171 = scmp.lt.s32.totalorder %s14, 4
      %s172 = scalar_select %p171, %s14, 4
      %s173 = smul.addr %s172, 40
      %s174 = smul.addr %s173, 4
      %s175 = scalar_lea.vmem %s1, %s174
      %p177 = scmp.eq.s32.totalorder %s14, 0
      // Predicated region
      $region33: #{inception_b_res2_forward.6} parent=31 // pred_check
        %p178 = pneg %p177
      $region34: #{inception_b_res2_forward.6} parent=31 // pred_check_branch
        %180 = sbr.rel (%p178) target = $region36
      $region35: #{inception_b_res2_forward.6} parent=31 // pred_region
        %181 = vst [vmem:[#allocation2] sm:$0xff] 0.0
        %vm182 = vcmask 523264
        %183 = vst.msk [vmem:[#allocation2 + $0x8] sm:$0xff] %vm182, 0.0
        %184 = vst [vmem:[#allocation2 + $0x10] sm:$0xff] 0.0
        %185 = vst.msk [vmem:[#allocation2 + $0x18] sm:$0xff] %vm182, 0.0
        %186 = vst [vmem:[#allocation2 + $0x20] sm:$0xff] 0.0
        %187 = vst.msk [vmem:[#allocation2 + $0x28] sm:$0xff] %vm182, 0.0
        %188 = vst [vmem:[#allocation2 + $0x30] sm:$0xff] 0.0
        %189 = vst.msk [vmem:[#allocation2 + $0x38] sm:$0xff] %vm182, 0.0
        %190 = vst [vmem:[#allocation2 + $0x40] sm:$0xff] 0.0
        %191 = vst.msk [vmem:[#allocation2 + $0x48] sm:$0xff] %vm182, 0.0
        %192 = vst [vmem:[#allocation2 + $0x50] sm:$0xff] 0.0
        %193 = vst.msk [vmem:[#allocation2 + $0x58] sm:$0xff] %vm182, 0.0
        %194 = vst [vmem:[#allocation2 + $0x60] sm:$0xff] 0.0
        %195 = vst.msk [vmem:[#allocation2 + $0x68] sm:$0xff] %vm182, 0.0
        %196 = vst [vmem:[#allocation2 + $0x70] sm:$0xff] 0.0
        %197 = vst.msk [vmem:[#allocation2 + $0x78] sm:$0xff] %vm182, 0.0
        %198 = vst [vmem:[#allocation2 + $0x80] sm:$0xff] 0.0
        %199 = vst.msk [vmem:[#allocation2 + $0x88] sm:$0xff] %vm182, 0.0
        %200 = vst [vmem:[#allocation2 + $0x90] sm:$0xff] 0.0
        %201 = vst.msk [vmem:[#allocation2 + $0x98] sm:$0xff] %vm182, 0.0
        %202 = vst [vmem:[#allocation2 + $0xa0] sm:$0xff] 0.0
        %203 = vst.msk [vmem:[#allocation2 + $0xa8] sm:$0xff] %vm182, 0.0
        %204 = vst [vmem:[#allocation2 + $0xb0] sm:$0xff] 0.0
        %205 = vst.msk [vmem:[#allocation2 + $0xb8] sm:$0xff] %vm182, 0.0
        %206 = vst [vmem:[#allocation2 + $0xc0] sm:$0xff] 0.0
        %207 = vst.msk [vmem:[#allocation2 + $0xc8] sm:$0xff] %vm182, 0.0
        %208 = vst [vmem:[#allocation2 + $0xd0] sm:$0xff] 0.0
        %209 = vst.msk [vmem:[#allocation2 + $0xd8] sm:$0xff] %vm182, 0.0
        %210 = vst [vmem:[#allocation2 + $0xe0] sm:$0xff] 0.0
        %211 = vst.msk [vmem:[#allocation2 + $0xe8] sm:$0xff] %vm182, 0.0
        %212 = vst [vmem:[#allocation2 + $0xf0] sm:$0xff] 0.0
        %213 = vst.msk [vmem:[#allocation2 + $0xf8] sm:$0xff] %vm182, 0.0
      $region36: #{inception_b_res2_forward.6} parent=31 // pred_fallthru
        _
      %v214 = vld [vmem:[#allocation2] sm:$0xff]
      %v215 = vld [vmem:[#allocation2 + $0x8] sm:$0xff]
      %v216 = vld [vmem:[#allocation2 + $0x10] sm:$0xff]
      %v217 = vld [vmem:[#allocation2 + $0x18] sm:$0xff]
      %v218 = vld [vmem:[#allocation2 + $0x20] sm:$0xff]
      %v219 = vld [vmem:[#allocation2 + $0x28] sm:$0xff]
      %v220 = vld [vmem:[#allocation2 + $0x30] sm:$0xff]
      %v221 = vld [vmem:[#allocation2 + $0x38] sm:$0xff]
      %v222 = vld [vmem:[#allocation2 + $0x40] sm:$0xff]
      %v223 = vld [vmem:[#allocation2 + $0x48] sm:$0xff]
      %v224 = vld [vmem:[#allocation2 + $0x50] sm:$0xff]
      %v225 = vld [vmem:[#allocation2 + $0x58] sm:$0xff]
      %v226 = vld [vmem:[#allocation2 + $0x60] sm:$0xff]
      %v227 = vld [vmem:[#allocation2 + $0x68] sm:$0xff]
      %v228 = vld [vmem:[#allocation2 + $0x70] sm:$0xff]
      %v229 = vld [vmem:[#allocation2 + $0x78] sm:$0xff]
      %v230 = vld [vmem:[#allocation2 + $0x80] sm:$0xff]
      %v231 = vld [vmem:[#allocation2 + $0x88] sm:$0xff]
      %v232 = vld [vmem:[#allocation2 + $0x90] sm:$0xff]
      %v233 = vld [vmem:[#allocation2 + $0x98] sm:$0xff]
      %v234 = vld [vmem:[#allocation2 + $0xa0] sm:$0xff]
      %v235 = vld [vmem:[#allocation2 + $0xa8] sm:$0xff]
      %v236 = vld [vmem:[#allocation2 + $0xb0] sm:$0xff]
      %v237 = vld [vmem:[#allocation2 + $0xb8] sm:$0xff]
      %v238 = vld [vmem:[#allocation2 + $0xc0] sm:$0xff]
      %v239 = vld [vmem:[#allocation2 + $0xc8] sm:$0xff]
      %v240 = vld [vmem:[#allocation2 + $0xd0] sm:$0xff]
      %v241 = vld [vmem:[#allocation2 + $0xd8] sm:$0xff]
      %v242 = vld [vmem:[#allocation2 + $0xe0] sm:$0xff]
      %v243 = vld [vmem:[#allocation2 + $0xe8] sm:$0xff]
      %v244 = vld [vmem:[#allocation2 + $0xf0] sm:$0xff]
      %v245 = vld [vmem:[#allocation2 + $0xf8] sm:$0xff]
      %v246 = vld [vmem:[%s170] sm:$0xff]
      %v247 = vld [vmem:[%s170 + $0x8] sm:$0xff]
      %v248 = vld [vmem:[%s170 + $0x10] sm:$0xff]
      %v249 = vld [vmem:[%s170 + $0x18] sm:$0xff]
      %v250 = vld [vmem:[%s170 + $0x20] sm:$0xff]
      %v251 = vld [vmem:[%s170 + $0x28] sm:$0xff]
      %v252 = vld [vmem:[%s170 + $0x30] sm:$0xff]
      %v253 = vld [vmem:[%s170 + $0x38] sm:$0xff]
      %v254 = vld [vmem:[%s170 + $0x40] sm:$0xff]
      %v255 = vld [vmem:[%s170 + $0x48] sm:$0xff]
      %v256 = vld [vmem:[%s170 + $0x50] sm:$0xff]
      %v257 = vld [vmem:[%s170 + $0x58] sm:$0xff]
      %v258 = vld [vmem:[%s170 + $0x60] sm:$0xff]
      %v259 = vld [vmem:[%s170 + $0x68] sm:$0xff]
      %v260 = vld [vmem:[%s170 + $0x70] sm:$0xff]
      %v261 = vld [vmem:[%s170 + $0x78] sm:$0xff]
      %v262 = vld [vmem:[%s175] sm:$0xff]
      %v263 = vld [vmem:[%s175 + $0x8] sm:$0xff]
      %v264 = vld [vmem:[%s175 + $0x10] sm:$0xff]
      %v265 = vld [vmem:[%s175 + $0x18] sm:$0xff]
      %v266 = vld [vmem:[%s175 + $0x20] sm:$0xff]
      %v267 = vld [vmem:[%s175 + $0x28] sm:$0xff]
      %v268 = vld [vmem:[%s175 + $0x30] sm:$0xff]
      %v269 = vld [vmem:[%s175 + $0x38] sm:$0xff]
      %v270 = vld [vmem:[%s175 + $0x40] sm:$0xff]
      %v271 = vld [vmem:[%s175 + $0x48] sm:$0xff]
      %v272 = vld [vmem:[%s175 + $0x50] sm:$0xff]
      %v273 = vld [vmem:[%s175 + $0x58] sm:$0xff]
      %v274 = vld [vmem:[%s175 + $0x60] sm:$0xff]
      %v275 = vld [vmem:[%s175 + $0x68] sm:$0xff]
      %v276 = vld [vmem:[%s175 + $0x70] sm:$0xff]
      %v277 = vld [vmem:[%s175 + $0x78] sm:$0xff]
      %v278 = vld [vmem:[%s175 + $0x80] sm:$0xff]
      %v279 = vld [vmem:[%s175 + $0x88] sm:$0xff]
      %v280 = vld [vmem:[%s175 + $0x90] sm:$0xff]
      %v281 = vld [vmem:[%s175 + $0x98] sm:$0xff]
      %v298 = vunpack.c.l.b16 %v246
      %v299 = vunpack.c.h.b16 %v246
      %v300 = vunpack.c.l.b16 %v247
      %v301 = vunpack.c.h.b16 %v247
      %v302 = vunpack.c.l.b16 %v248
      %v303 = vunpack.c.h.b16 %v248
      %v304 = vunpack.c.l.b16 %v249
      %v305 = vunpack.c.h.b16 %v249
      %v306 = vunpack.c.l.b16 %v250
      %v307 = vunpack.c.h.b16 %v250
      %v308 = vunpack.c.l.b16 %v251
      %v309 = vunpack.c.h.b16 %v251
      %v310 = vunpack.c.l.b16 %v252
      %v311 = vunpack.c.h.b16 %v252
      %v312 = vunpack.c.l.b16 %v253
      %v313 = vunpack.c.h.b16 %v253
      %v314 = vunpack.c.l.b16 %v254
      %v315 = vunpack.c.h.b16 %v254
      %v316 = vunpack.c.l.b16 %v255
      %v317 = vunpack.c.h.b16 %v255
      %v318 = vunpack.c.l.b16 %v256
      %v319 = vunpack.c.h.b16 %v256
      %v320 = vunpack.c.l.b16 %v257
      %v321 = vunpack.c.h.b16 %v257
      %v322 = vunpack.c.l.b16 %v258
      %v323 = vunpack.c.h.b16 %v258
      %v324 = vunpack.c.l.b16 %v259
      %v325 = vunpack.c.h.b16 %v259
      %v326 = vunpack.c.l.b16 %v260
      %v327 = vunpack.c.h.b16 %v260
      %v328 = vunpack.c.l.b16 %v261
      %v329 = vunpack.c.h.b16 %v261
      %v330 = vpack.c.b16 %v300, %v298
      %v331 = vpack.c.b16 %v301, %v299
      %v332 = vpack.c.b16 %v304, %v302
      %v333 = vpack.c.b16 %v305, %v303
      %v334 = vpack.c.b16 %v308, %v306
      %v335 = vpack.c.b16 %v309, %v307
      %v336 = vpack.c.b16 %v312, %v310
      %v337 = vpack.c.b16 %v313, %v311
      %v338 = vpack.c.b16 %v316, %v314
      %v339 = vpack.c.b16 %v317, %v315
      %v340 = vpack.c.b16 %v320, %v318
      %v341 = vpack.c.b16 %v321, %v319
      %v342 = vpack.c.b16 %v324, %v322
      %v343 = vpack.c.b16 %v325, %v323
      %v344 = vpack.c.b16 %v328, %v326
      %v345 = vpack.c.b16 %v329, %v327
      %v374 = vunpack.c.l.b16 %v262
      %v375 = vunpack.c.h.b16 %v262
      %v376 = vunpack.c.l.b16 %v263
      %v377 = vunpack.c.h.b16 %v263
      %v378 = vunpack.c.l.b16 %v264
      %v379 = vunpack.c.h.b16 %v264
      %v380 = vunpack.c.l.b16 %v265
      %v381 = vunpack.c.h.b16 %v265
      %v382 = vunpack.c.l.b16 %v266
      %v383 = vunpack.c.h.b16 %v266
      %v384 = vunpack.c.l.b16 %v267
      %v385 = vunpack.c.h.b16 %v267
      %v386 = vunpack.c.l.b16 %v268
      %v387 = vunpack.c.h.b16 %v268
      %v388 = vunpack.c.l.b16 %v269
      %v389 = vunpack.c.h.b16 %v269
      %v390 = vunpack.c.l.b16 %v270
      %v391 = vunpack.c.h.b16 %v270
      %v392 = vunpack.c.l.b16 %v271
      %v393 = vunpack.c.h.b16 %v271
      %v394 = vunpack.c.l.b16 %v272
      %v395 = vunpack.c.h.b16 %v272
      %v396 = vunpack.c.l.b16 %v273
      %v397 = vunpack.c.h.b16 %v273
      %v398 = vunpack.c.l.b16 %v274
      %v399 = vunpack.c.h.b16 %v274
      %v400 = vunpack.c.l.b16 %v275
      %v401 = vunpack.c.h.b16 %v275
      %v402 = vunpack.c.l.b16 %v276
      %v403 = vunpack.c.h.b16 %v276
      %v404 = vunpack.c.l.b16 %v277
      %v405 = vunpack.c.h.b16 %v277
      %v406 = vunpack.c.l.b16 %v278
      %v407 = vunpack.c.h.b16 %v278
      %v408 = vunpack.c.l.b16 %v279
      %v409 = vunpack.c.h.b16 %v279
      %v410 = vunpack.c.l.b16 %v280
      %v411 = vunpack.c.h.b16 %v280
      %v412 = vunpack.c.l.b16 %v281
      %v413 = vunpack.c.h.b16 %v281
      %v414 = vpack.c.b16 %v376, %v374
      %v415 = vpack.c.b16 %v377, %v375
      %v416 = vpack.c.b16 %v380, %v378
      %v417 = vpack.c.b16 %v381, %v379
      %v418 = vpack.c.b16 %v384, %v382
      %v419 = vpack.c.b16 %v385, %v383
      %v420 = vpack.c.b16 %v388, %v386
      %v421 = vpack.c.b16 %v389, %v387
      %v422 = vpack.c.b16 %v392, %v390
      %v423 = vpack.c.b16 %v393, %v391
      %v424 = vpack.c.b16 %v396, %v394
      %v425 = vpack.c.b16 %v397, %v395
      %v426 = vpack.c.b16 %v400, %v398
      %v427 = vpack.c.b16 %v401, %v399
      %v428 = vpack.c.b16 %v404, %v402
      %v429 = vpack.c.b16 %v405, %v403
      %v430 = vpack.c.b16 %v408, %v406
      %v431 = vpack.c.b16 %v409, %v407
      %v432 = vpack.c.b16 %v412, %v410
      %v433 = vpack.c.b16 %v413, %v411
      %vm454 = vcmask 261120
      %v456 = vsel %vm454, %v331, 0
      %v459 = vsel %vm454, %v333, 0
      %v462 = vsel %vm454, %v335, 0
      %v465 = vsel %vm454, %v337, 0
      %v468 = vsel %vm454, %v339, 0
      %v471 = vsel %vm454, %v341, 0
      %v474 = vsel %vm454, %v343, 0
      %v477 = vsel %vm454, %v345, 0
      %479 = vmatprep.subr.bf16.mxu0 %v415
      %480 = vmatpush1.bf16.msra.mxu0 %v414
      %481 = vmatprep.subr.bf16.mxu0 %v417
      %482 = vmatpush1.bf16.msra.mxu0 %v416
      %483 = vmatprep.subr.bf16.mxu0 %v419
      %484 = vmatpush1.bf16.msra.mxu0 %v418
      %485 = vmatprep.subr.bf16.mxu0 %v421
      %486 = vmatpush1.bf16.msra.mxu0 %v420
      %487 = vmatprep.subr.bf16.mxu0 %v423
      %488 = vmatpush1.bf16.msra.mxu0 %v422
      %489 = vmatprep.subr.bf16.mxu0 %v425
      %490 = vmatpush1.bf16.msra.mxu0 %v424
      %491 = vmatprep.subr.bf16.mxu0 %v427
      %492 = vmatpush1.bf16.msra.mxu0 %v426
      %493 = vmatprep.subr.bf16.mxu0 %v429
      %494 = vmatpush1.bf16.msra.mxu0 %v428
      %495 = vmatprep.subr.bf16.mxu0 %v431
      %496 = vmatpush1.bf16.msra.mxu0 %v430
      %497 = vmatprep.subr.bf16.mxu0 %v433
      %498 = vmatpush1.bf16.msra.mxu0 %v432
      %499 = vmatprep.subr.bf16.mxu0 0
      %500 = vmatpush1.bf16.msra.mxu0 0
      %501 = vmatprep.subr.bf16.mxu0 0
      %502 = vmatpush1.bf16.msra.mxu0 0
      %503 = vmatprep.subr.bf16.mxu0 0
      %504 = vmatpush1.bf16.msra.mxu0 0
      %505 = vmatprep.subr.bf16.mxu0 0
      %506 = vmatpush1.bf16.msra.mxu0 0
      %507 = vmatprep.subr.bf16.mxu0 0
      %508 = vmatpush1.bf16.msra.mxu0 0
      %509 = vmatprep.subr.bf16.mxu0 0
      %510 = vmatpush1.bf16.msra.mxu0 0
      %511 = vmatprep.mubr.bf16.mxu0 %v456
      %512 = vmatmul.mubr.bf16.gmra.mrb[0].mxu0 %v330
      %v513 = vpop.f32.mrb[0].mxu0
      %v514 = vadd.f32 0.0, %v513
      %v515 = vpop.f32.mrb[0].mxu0
      %v516 = vadd.f32 0.0, %v515
      %v517 = vpop.f32.mrb[0].mxu0
      %v518 = vadd.f32 0.0, %v517
      %v519 = vpop.f32.mrb[0].mxu0
      %v520 = vadd.f32 0.0, %v519
      %521 = vmatprep.mubr.bf16.mxu0 %v459
      %522 = vmatmul.mubr.bf16.gmra.mrb[0].mxu0 %v332
      %v523 = vpop.f32.mrb[0].mxu0
      %v524 = vadd.f32 0.0, %v523
      %v525 = vpop.f32.mrb[0].mxu0
      %v526 = vadd.f32 0.0, %v525
      %v527 = vpop.f32.mrb[0].mxu0
      %v528 = vadd.f32 0.0, %v527
      %v529 = vpop.f32.mrb[0].mxu0
      %v530 = vadd.f32 0.0, %v529
      %531 = vmatprep.mubr.bf16.mxu0 %v462
      %532 = vmatmul.mubr.bf16.gmra.mrb[0].mxu0 %v334
      %v533 = vpop.f32.mrb[0].mxu0
      %v534 = vadd.f32 0.0, %v533
      %v535 = vpop.f32.mrb[0].mxu0
      %v536 = vadd.f32 0.0, %v535
      %v537 = vpop.f32.mrb[0].mxu0
      %v538 = vadd.f32 0.0, %v537
      %v539 = vpop.f32.mrb[0].mxu0
      %v540 = vadd.f32 0.0, %v539
      %541 = vmatprep.mubr.bf16.mxu0 %v465
      %542 = vmatmul.mubr.bf16.gmra.mrb[0].mxu0 %v336
      %v543 = vpop.f32.mrb[0].mxu0
      %v544 = vadd.f32 0.0, %v543
      %v545 = vpop.f32.mrb[0].mxu0
      %v546 = vadd.f32 0.0, %v545
      %v547 = vpop.f32.mrb[0].mxu0
      %v548 = vadd.f32 0.0, %v547
      %v549 = vpop.f32.mrb[0].mxu0
      %v550 = vadd.f32 0.0, %v549
      %551 = vmatprep.mubr.bf16.mxu0 %v468
      %552 = vmatmul.mubr.bf16.gmra.mrb[0].mxu0 %v338
      %v553 = vpop.f32.mrb[0].mxu0
      %v554 = vadd.f32 0.0, %v553
      %v555 = vpop.f32.mrb[0].mxu0
      %v556 = vadd.f32 0.0, %v555
      %v557 = vpop.f32.mrb[0].mxu0
      %v558 = vadd.f32 0.0, %v557
      %v559 = vpop.f32.mrb[0].mxu0
      %v560 = vadd.f32 0.0, %v559
      %561 = vmatprep.mubr.bf16.mxu0 %v471
      %562 = vmatmul.mubr.bf16.gmra.mrb[0].mxu0 %v340
      %v563 = vpop.f32.mrb[0].mxu0
      %v564 = vadd.f32 0.0, %v563
      %v565 = vpop.f32.mrb[0].mxu0
      %v566 = vadd.f32 0.0, %v565
      %v567 = vpop.f32.mrb[0].mxu0
      %v568 = vadd.f32 0.0, %v567
      %v569 = vpop.f32.mrb[0].mxu0
      %v570 = vadd.f32 0.0, %v569
      %571 = vmatprep.mubr.bf16.mxu0 %v474
      %572 = vmatmul.mubr.bf16.gmra.mrb[0].mxu0 %v342
      %v573 = vpop.f32.mrb[0].mxu0
      %v574 = vadd.f32 0.0, %v573
      %v575 = vpop.f32.mrb[0].mxu0
      %v576 = vadd.f32 0.0, %v575
      %v577 = vpop.f32.mrb[0].mxu0
      %v578 = vadd.f32 0.0, %v577
      %v579 = vpop.f32.mrb[0].mxu0
      %v580 = vadd.f32 0.0, %v579
      %581 = vmatprep.mubr.bf16.mxu0 %v477
      %582 = vmatmul.mubr.bf16.gmra.mrb[0].mxu0 %v344
      %v583 = vpop.f32.mrb[0].mxu0
      %v584 = vadd.f32 0.0, %v583
      %v585 = vpop.f32.mrb[0].mxu0
      %v586 = vadd.f32 0.0, %v585
      %v587 = vpop.f32.mrb[0].mxu0
      %v588 = vadd.f32 0.0, %v587
      %v589 = vpop.f32.mrb[0].mxu0
      %v590 = vadd.f32 0.0, %v589
      %591 = vdwg.mxu0
      %v592 = vadd.f32 %v214, %v514
      %v593 = vadd.f32 %v215, %v516
      %v594 = vadd.f32 %v216, %v518
      %v595 = vadd.f32 %v217, %v520
      %v596 = vadd.f32 %v218, %v524
      %v597 = vadd.f32 %v219, %v526
      %v598 = vadd.f32 %v220, %v528
      %v599 = vadd.f32 %v221, %v530
      %v600 = vadd.f32 %v222, %v534
      %v601 = vadd.f32 %v223, %v536
      %v602 = vadd.f32 %v224, %v538
      %v603 = vadd.f32 %v225, %v540
      %v604 = vadd.f32 %v226, %v544
      %v605 = vadd.f32 %v227, %v546
      %v606 = vadd.f32 %v228, %v548
      %v607 = vadd.f32 %v229, %v550
      %v608 = vadd.f32 %v230, %v554
      %v609 = vadd.f32 %v231, %v556
      %v610 = vadd.f32 %v232, %v558
      %v611 = vadd.f32 %v233, %v560
      %v612 = vadd.f32 %v234, %v564
      %v613 = vadd.f32 %v235, %v566
      %v614 = vadd.f32 %v236, %v568
      %v615 = vadd.f32 %v237, %v570
      %v616 = vadd.f32 %v238, %v574
      %v617 = vadd.f32 %v239, %v576
      %v618 = vadd.f32 %v240, %v578
      %v619 = vadd.f32 %v241, %v580
      %v620 = vadd.f32 %v242, %v584
      %v621 = vadd.f32 %v243, %v586
      %v622 = vadd.f32 %v244, %v588
      %v623 = vadd.f32 %v245, %v590
      %624 = vst [vmem:[#allocation2] sm:$0xff] %v592
      %vm625 = vcmask 523264
      %626 = vst.msk [vmem:[#allocation2 + $0x8] sm:$0xff] %vm625, %v593
      %627 = vst [vmem:[#allocation2 + $0x10] sm:$0xff] %v594
      %628 = vst.msk [vmem:[#allocation2 + $0x18] sm:$0xff] %vm625, %v595
      %629 = vst [vmem:[#allocation2 + $0x20] sm:$0xff] %v596
      %630 = vst.msk [vmem:[#allocation2 + $0x28] sm:$0xff] %vm625, %v597
      %631 = vst [vmem:[#allocation2 + $0x30] sm:$0xff] %v598
      %632 = vst.msk [vmem:[#allocation2 + $0x38] sm:$0xff] %vm625, %v599
      %633 = vst [vmem:[#allocation2 + $0x40] sm:$0xff] %v600
      %634 = vst.msk [vmem:[#allocation2 + $0x48] sm:$0xff] %vm625, %v601
      %635 = vst [vmem:[#allocation2 + $0x50] sm:$0xff] %v602
      %636 = vst.msk [vmem:[#allocation2 + $0x58] sm:$0xff] %vm625, %v603
      %637 = vst [vmem:[#allocation2 + $0x60] sm:$0xff] %v604
      %638 = vst.msk [vmem:[#allocation2 + $0x68] sm:$0xff] %vm625, %v605
      %639 = vst [vmem:[#allocation2 + $0x70] sm:$0xff] %v606
      %640 = vst.msk [vmem:[#allocation2 + $0x78] sm:$0xff] %vm625, %v607
      %641 = vst [vmem:[#allocation2 + $0x80] sm:$0xff] %v608
      %642 = vst.msk [vmem:[#allocation2 + $0x88] sm:$0xff] %vm625, %v609
      %643 = vst [vmem:[#allocation2 + $0x90] sm:$0xff] %v610
      %644 = vst.msk [vmem:[#allocation2 + $0x98] sm:$0xff] %vm625, %v611
      %645 = vst [vmem:[#allocation2 + $0xa0] sm:$0xff] %v612
      %646 = vst.msk [vmem:[#allocation2 + $0xa8] sm:$0xff] %vm625, %v613
      %647 = vst [vmem:[#allocation2 + $0xb0] sm:$0xff] %v614
      %648 = vst.msk [vmem:[#allocation2 + $0xb8] sm:$0xff] %vm625, %v615
      %649 = vst [vmem:[#allocation2 + $0xc0] sm:$0xff] %v616
      %650 = vst.msk [vmem:[#allocation2 + $0xc8] sm:$0xff] %vm625, %v617
      %651 = vst [vmem:[#allocation2 + $0xd0] sm:$0xff] %v618
      %652 = vst.msk [vmem:[#allocation2 + $0xd8] sm:$0xff] %vm625, %v619
      %653 = vst [vmem:[#allocation2 + $0xe0] sm:$0xff] %v620
      %654 = vst.msk [vmem:[#allocation2 + $0xe8] sm:$0xff] %vm625, %v621
      %655 = vst [vmem:[#allocation2 + $0xf0] sm:$0xff] %v622
      %656 = vst.msk [vmem:[#allocation2 + $0xf8] sm:$0xff] %vm625, %v623
      %p657 = scmp.eq.s32.totalorder %s14, 4
      // Predicated region
      $region37: #{inception_b_res2_forward.6} parent=31 // pred_check
        %p658 = pneg %p657
      $region38: #{inception_b_res2_forward.6} parent=31 // pred_check_branch
        %660 = sbr.rel (%p658) target = $region40
      $region39: #{inception_b_res2_forward.6} parent=31 // pred_region
        %v661 = vld [vmem:[#allocation2] sm:$0xff]
        %v662 = vld [vmem:[#allocation2 + $0x8] sm:$0xff]
        %v663 = vld [vmem:[#allocation2 + $0x10] sm:$0xff]
        %v664 = vld [vmem:[#allocation2 + $0x18] sm:$0xff]
        %v665 = vld [vmem:[#allocation2 + $0x20] sm:$0xff]
        %v666 = vld [vmem:[#allocation2 + $0x28] sm:$0xff]
        %v667 = vld [vmem:[#allocation2 + $0x30] sm:$0xff]
        %v668 = vld [vmem:[#allocation2 + $0x38] sm:$0xff]
        %v669 = vld [vmem:[#allocation2 + $0x40] sm:$0xff]
        %v670 = vld [vmem:[#allocation2 + $0x48] sm:$0xff]
        %v671 = vld [vmem:[#allocation2 + $0x50] sm:$0xff]
        %v672 = vld [vmem:[#allocation2 + $0x58] sm:$0xff]
        %v673 = vld [vmem:[#allocation2 + $0x60] sm:$0xff]
        %v674 = vld [vmem:[#allocation2 + $0x68] sm:$0xff]
        %v675 = vld [vmem:[#allocation2 + $0x70] sm:$0xff]
        %v676 = vld [vmem:[#allocation2 + $0x78] sm:$0xff]
        %v677 = vld [vmem:[#allocation2 + $0x80] sm:$0xff]
        %v678 = vld [vmem:[#allocation2 + $0x88] sm:$0xff]
        %v679 = vld [vmem:[#allocation2 + $0x90] sm:$0xff]
        %v680 = vld [vmem:[#allocation2 + $0x98] sm:$0xff]
        %v681 = vld [vmem:[#allocation2 + $0xa0] sm:$0xff]
        %v682 = vld [vmem:[#allocation2 + $0xa8] sm:$0xff]
        %v683 = vld [vmem:[#allocation2 + $0xb0] sm:$0xff]
        %v684 = vld [vmem:[#allocation2 + $0xb8] sm:$0xff]
        %v685 = vld [vmem:[#allocation2 + $0xc0] sm:$0xff]
        %v686 = vld [vmem:[#allocation2 + $0xc8] sm:$0xff]
        %v687 = vld [vmem:[#allocation2 + $0xd0] sm:$0xff]
        %v688 = vld [vmem:[#allocation2 + $0xd8] sm:$0xff]
        %v689 = vld [vmem:[#allocation2 + $0xe0] sm:$0xff]
        %v690 = vld [vmem:[#allocation2 + $0xe8] sm:$0xff]
        %v691 = vld [vmem:[#allocation2 + $0xf0] sm:$0xff]
        %v692 = vld [vmem:[#allocation2 + $0xf8] sm:$0xff]
        %v693 = vld [vmem:[%s2] sm:$0x3]
        %v695 = vlaneseq
        %v696 = vshrl.u32 %v695, 7
        %v697 = vsub.s32 0, %v696
        %v698 = vrot.slane %v693, %v697
        %v699 = vlaneseq
        %v700 = vshrl.u32 %v699, 7
        %v701 = vsub.s32 1, %v700
        %v702 = vrot.slane %v693, %v701
        %v705 = vadd.f32 %v661, %v698
        %v706 = vadd.f32 %v662, %v702
        %v707 = vadd.f32 %v663, %v698
        %v708 = vadd.f32 %v664, %v702
        %v709 = vadd.f32 %v665, %v698
        %v710 = vadd.f32 %v666, %v702
        %v711 = vadd.f32 %v667, %v698
        %v712 = vadd.f32 %v668, %v702
        %v713 = vadd.f32 %v669, %v698
        %v714 = vadd.f32 %v670, %v702
        %v715 = vadd.f32 %v671, %v698
        %v716 = vadd.f32 %v672, %v702
        %v717 = vadd.f32 %v673, %v698
        %v718 = vadd.f32 %v674, %v702
        %v719 = vadd.f32 %v675, %v698
        %v720 = vadd.f32 %v676, %v702
        %v721 = vadd.f32 %v677, %v698
        %v722 = vadd.f32 %v678, %v702
        %v723 = vadd.f32 %v679, %v698
        %v724 = vadd.f32 %v680, %v702
        %v725 = vadd.f32 %v681, %v698
        %v726 = vadd.f32 %v682, %v702
        %v727 = vadd.f32 %v683, %v698
        %v728 = vadd.f32 %v684, %v702
        %v729 = vadd.f32 %v685, %v698
        %v730 = vadd.f32 %v686, %v702
        %v731 = vadd.f32 %v687, %v698
        %v732 = vadd.f32 %v688, %v702
        %v733 = vadd.f32 %v689, %v698
        %v734 = vadd.f32 %v690, %v702
        %v735 = vadd.f32 %v691, %v698
        %v736 = vadd.f32 %v692, %v702
        %v737 = vmax.f32 %v705, 0.0
        %v738 = vmax.f32 %v706, 0.0
        %v739 = vmax.f32 %v707, 0.0
        %v740 = vmax.f32 %v708, 0.0
        %v741 = vmax.f32 %v709, 0.0
        %v742 = vmax.f32 %v710, 0.0
        %v743 = vmax.f32 %v711, 0.0
        %v744 = vmax.f32 %v712, 0.0
        %v745 = vmax.f32 %v713, 0.0
        %v746 = vmax.f32 %v714, 0.0
        %v747 = vmax.f32 %v715, 0.0
        %v748 = vmax.f32 %v716, 0.0
        %v749 = vmax.f32 %v717, 0.0
        %v750 = vmax.f32 %v718, 0.0
        %v751 = vmax.f32 %v719, 0.0
        %v752 = vmax.f32 %v720, 0.0
        %v753 = vmax.f32 %v721, 0.0
        %v754 = vmax.f32 %v722, 0.0
        %v755 = vmax.f32 %v723, 0.0
        %v756 = vmax.f32 %v724, 0.0
        %v757 = vmax.f32 %v725, 0.0
        %v758 = vmax.f32 %v726, 0.0
        %v759 = vmax.f32 %v727, 0.0
        %v760 = vmax.f32 %v728, 0.0
        %v761 = vmax.f32 %v729, 0.0
        %v762 = vmax.f32 %v730, 0.0
        %v763 = vmax.f32 %v731, 0.0
        %v764 = vmax.f32 %v732, 0.0
        %v765 = vmax.f32 %v733, 0.0
        %v766 = vmax.f32 %v734, 0.0
        %v767 = vmax.f32 %v735, 0.0
        %v768 = vmax.f32 %v736, 0.0
        %v769 = vpack.c.bf16 %v739, %v737
        %v770 = vpack.c.bf16 %v740, %v738
        %v771 = vpack.c.bf16 %v743, %v741
        %v772 = vpack.c.bf16 %v744, %v742
        %v773 = vpack.c.bf16 %v747, %v745
        %v774 = vpack.c.bf16 %v748, %v746
        %v775 = vpack.c.bf16 %v751, %v749
        %v776 = vpack.c.bf16 %v752, %v750
        %v777 = vpack.c.bf16 %v755, %v753
        %v778 = vpack.c.bf16 %v756, %v754
        %v779 = vpack.c.bf16 %v759, %v757
        %v780 = vpack.c.bf16 %v760, %v758
        %v781 = vpack.c.bf16 %v763, %v761
        %v782 = vpack.c.bf16 %v764, %v762
        %v783 = vpack.c.bf16 %v767, %v765
        %v784 = vpack.c.bf16 %v768, %v766
        %v801 = vunpack.c.l.b16 %v769
        %v802 = vunpack.c.l.b16 %v770
        %v803 = vunpack.c.h.b16 %v769
        %v804 = vunpack.c.h.b16 %v770
        %v805 = vunpack.c.l.b16 %v771
        %v806 = vunpack.c.l.b16 %v772
        %v807 = vunpack.c.h.b16 %v771
        %v808 = vunpack.c.h.b16 %v772
        %v809 = vunpack.c.l.b16 %v773
        %v810 = vunpack.c.l.b16 %v774
        %v811 = vunpack.c.h.b16 %v773
        %v812 = vunpack.c.h.b16 %v774
        %v813 = vunpack.c.l.b16 %v775
        %v814 = vunpack.c.l.b16 %v776
        %v815 = vunpack.c.h.b16 %v775
        %v816 = vunpack.c.h.b16 %v776
        %v817 = vunpack.c.l.b16 %v777
        %v818 = vunpack.c.l.b16 %v778
        %v819 = vunpack.c.h.b16 %v777
        %v820 = vunpack.c.h.b16 %v778
        %v821 = vunpack.c.l.b16 %v779
        %v822 = vunpack.c.l.b16 %v780
        %v823 = vunpack.c.h.b16 %v779
        %v824 = vunpack.c.h.b16 %v780
        %v825 = vunpack.c.l.b16 %v781
        %v826 = vunpack.c.l.b16 %v782
        %v827 = vunpack.c.h.b16 %v781
        %v828 = vunpack.c.h.b16 %v782
        %v829 = vunpack.c.l.b16 %v783
        %v830 = vunpack.c.l.b16 %v784
        %v831 = vunpack.c.h.b16 %v783
        %v832 = vunpack.c.h.b16 %v784
        %v833 = vpack.c.b16 %v802, %v801
        %v834 = vpack.c.b16 %v804, %v803
        %v835 = vpack.c.b16 %v806, %v805
        %v836 = vpack.c.b16 %v808, %v807
        %v837 = vpack.c.b16 %v810, %v809
        %v838 = vpack.c.b16 %v812, %v811
        %v839 = vpack.c.b16 %v814, %v813
        %v840 = vpack.c.b16 %v816, %v815
        %v841 = vpack.c.b16 %v818, %v817
        %v842 = vpack.c.b16 %v820, %v819
        %v843 = vpack.c.b16 %v822, %v821
        %v844 = vpack.c.b16 %v824, %v823
        %v845 = vpack.c.b16 %v826, %v825
        %v846 = vpack.c.b16 %v828, %v827
        %v847 = vpack.c.b16 %v830, %v829
        %v848 = vpack.c.b16 %v832, %v831
        %vm865 = vcmask 1043456
        %vm866 = vcmask 523268
        %vm867 = vmor %vm866, %vm865
        %868 = vst.msk [vmem:[%s3] sm:$0xff] %vm867, %v833
        %869 = vst.msk [vmem:[%s3 + $0x8] sm:$0xff] %vm867, %v834
        %870 = vst.msk [vmem:[%s3 + $0x10] sm:$0xff] %vm867, %v835
        %871 = vst.msk [vmem:[%s3 + $0x18] sm:$0xff] %vm867, %v836
        %872 = vst.msk [vmem:[%s3 + $0x20] sm:$0xff] %vm867, %v837
        %873 = vst.msk [vmem:[%s3 + $0x28] sm:$0xff] %vm867, %v838
        %874 = vst.msk [vmem:[%s3 + $0x30] sm:$0xff] %vm867, %v839
        %875 = vst.msk [vmem:[%s3 + $0x38] sm:$0xff] %vm867, %v840
        %876 = vst.msk [vmem:[%s3 + $0x40] sm:$0xff] %vm867, %v841
        %877 = vst.msk [vmem:[%s3 + $0x48] sm:$0xff] %vm867, %v842
        %878 = vst.msk [vmem:[%s3 + $0x50] sm:$0xff] %vm867, %v843
        %879 = vst.msk [vmem:[%s3 + $0x58] sm:$0xff] %vm867, %v844
        %880 = vst.msk [vmem:[%s3 + $0x60] sm:$0xff] %vm867, %v845
        %881 = vst.msk [vmem:[%s3 + $0x68] sm:$0xff] %vm867, %v846
        %882 = vst.msk [vmem:[%s3 + $0x70] sm:$0xff] %vm867, %v847
        %883 = vst.msk [vmem:[%s3 + $0x78] sm:$0xff] %vm867, %v848
      $region40: #{inception_b_res2_forward.6} parent=31 // pred_fallthru
        _
      // Predicated region
      $region41: #{inception_b_res2_forward.6} parent=31 // pred_check
        %p884 = pneg %p100
      $region42: #{inception_b_res2_forward.6} parent=31 // pred_check_branch
        %886 = sbr.rel (%p884) target = $region44
      $region43: #{inception_b_res2_forward.6} parent=31 // pred_region
        _
      $region44: #{inception_b_res2_forward.6} parent=31 // pred_fallthru
        _
      // Predicated region
      $region45: #{inception_b_res2_forward.6} parent=31 // pred_check
        %p887 = pneg %p100
      $region46: #{inception_b_res2_forward.6} parent=31 // pred_check_branch
        %889 = sbr.rel (%p887) target = $region48
      $region47: #{inception_b_res2_forward.6} parent=31 // pred_region
        _
      $region48: #{inception_b_res2_forward.6} parent=31 // pred_fallthru
        _
    $region32: #{inception_b_res2_forward.6} parent=5 // pred_fallthru
      _
    %p890 = scmp.le.s32.totalorder 2, %s9
    // Predicated region
    $region49: #{inception_b_res2_forward.6} parent=5 // pred_check
      %p891 = pneg %p890
    $region50: #{inception_b_res2_forward.6} parent=5 // pred_check_branch
      %893 = sbr.rel (%p891) target = $region52
    $region51: #{inception_b_res2_forward.6} parent=5 // pred_region
      %s894 = ssub.s32 %s9, 2
    $region52: #{inception_b_res2_forward.6} parent=5 // pred_fallthru
      _
  $region6: #{inception_b_res2_forward.6} parent=0 // loop_footer
    %s13 = sadd.s32 1, %s9
  $region7: #{inception_b_res2_forward.6} parent=0 // loop_footer_branch
    %8 = sbr.rel target = $region3
  $region8: #{inception_b_res2_forward.6} parent=0 // loop_exit
    _

// kernel: inception_b_res2_forward.5
$region0: #{inception_b_res2_forward.5}
  #allocation0 [shape = 'u32[]', space=smem, size = 0x4, offset = 0x4, fixed_abs, tag = 'smem constant byte address 0x4 - core index']
  #allocation1 [shape = 'u32[144,128]{1,0:T(1,128)}', space=vmem, size = 0x12000, scoped, tag = 'internal scratch']
  #allocation2 [shape = 'f32[128,160]{1,0:T(8,128)}', space=vmem, size = 0x20000, scoped, tag = 'scratch operand']
  %s0 = inlined_call_operand.vmem [shape: bf16[5,128,128], index: 0, kind: input, shape index: {}]
  %s1 = inlined_call_operand.vmem [shape: bf16[5,128,160], index: 1, kind: input, shape index: {}]
  %s2 = inlined_call_operand.vmem [shape: f32[1,160], index: 2, kind: input, shape index: {}]
  %s3 = inlined_call_operand.vmem [shape: bf16[128,160], index: 3, kind: output, shape index: {}]
  %s4 = sld [smem:[#allocation0]]
  $region53: #{inception_b_res2_forward.5} parent=0
    _
  %s6 = ssub.s32 1, %s4
  %s7 = scalar_select 0, %s6, %s4
  loop: start=0, step=1, limit=7
  $region2: #{inception_b_res2_forward.5} parent=0 // loop_pre_header
    _
  $region3: #{inception_b_res2_forward.5} parent=0 // loop_header
    %s9 = sphi 0, %s13
    %p10 = scmp.ge.s32.totalorder %s9, 7
    %s19 = sphi 0, %s21
    %s22 = sphi 0, %s19
    %s23 = sphi 0, %s22
    %s39 = sphi 0, %s23
    %s45 = sphi 0, %s47
    %s48 = sphi 0, %s45
    %s49 = sphi 0, %s48
    %s65 = sphi 0, %s49
    %s69 = sphi 0, %s69
    %s71 = sphi 0, %s69
    %s72 = sphi 0, %s71
    %s86 = sphi 0, %s72
    %s90 = sphi 0, %s90
    %s92 = sphi 0, %s90
    %s93 = sphi 0, %s92
    %s107 = sphi 0, %s93
  $region4: #{inception_b_res2_forward.5} parent=0 // loop_header_branch
    %12 = sbr.rel (%p10) target = $region8
  $region5: #{inception_b_res2_forward.5} parent=0 // loop_body
    %s14 = ssub.s32 %s9, 1
    %s15 = ssub.s32 %s9, 2
    %s16 = sadd.s32 %s9, 1
    %s17 = ssub.s32 %s9, %s16
    %p18 = scmp.eq.s32.totalorder %s17, 0
    %s20 = sadd.s32 %s19, 1
    %s21 = scalar_select %p18, %s19, %s20
    %p24 = pneg %p18
    %p25 = scmp.eq.s32.totalorder %s9, 4
    %p26 = por %p24, %p25
    %p27 = scmp.ne.s32.totalorder %s19, %s22
    %p28 = scmp.eq.s32.totalorder %s9, 0
    %p29 = por %p27, %p28
    %p30 = scmp.ne.s32.totalorder %s19, %s22
    %p31 = scmp.eq.s32.totalorder %s14, 4
    %p32 = por %p30, %p31
    %p33 = scmp.ne.s32.totalorder %s22, %s23
    %p34 = scmp.eq.s32.totalorder %s14, 0
    %p35 = por %p33, %p34
    %p36 = scmp.ne.s32.totalorder %s22, %s23
    %p37 = scmp.eq.s32.totalorder %s15, 4
    %p38 = por %p36, %p37
    %p40 = scmp.ne.s32.totalorder %s23, %s39
    %p41 = scmp.eq.s32.totalorder %s15, 0
    %p42 = por %p40, %p41
    %s43 = ssub.s32 %s9, %s16
    %p44 = scmp.eq.s32.totalorder %s43, 0
    %s46 = sadd.s32 %s45, 1
    %s47 = scalar_select %p44, %s45, %s46
    %p50 = pneg %p44
    %p51 = scmp.eq.s32.totalorder %s9, 4
    %p52 = por %p50, %p51
    %p53 = scmp.ne.s32.totalorder %s45, %s48
    %p54 = scmp.eq.s32.totalorder %s9, 0
    %p55 = por %p53, %p54
    %p56 = scmp.ne.s32.totalorder %s45, %s48
    %p57 = scmp.eq.s32.totalorder %s14, 4
    %p58 = por %p56, %p57
    %p59 = scmp.ne.s32.totalorder %s48, %s49
    %p60 = scmp.eq.s32.totalorder %s14, 0
    %p61 = por %p59, %p60
    %p62 = scmp.ne.s32.totalorder %s48, %s49
    %p63 = scmp.eq.s32.totalorder %s15, 4
    %p64 = por %p62, %p63
    %p66 = scmp.ne.s32.totalorder %s49, %s65
    %p67 = scmp.eq.s32.totalorder %s15, 0
    %p68 = por %p66, %p67
    %s70 = sadd.s32 %s69, 1
    %p73 = scmp.eq.s32.totalorder %s9, 4
    %p74 = scmp.ne.s32.totalorder %s69, %s71
    %p75 = scmp.eq.s32.totalorder %s9, 0
    %p76 = por %p74, %p75
    %p77 = scmp.ne.s32.totalorder %s69, %s71
    %p78 = scmp.eq.s32.totalorder %s14, 4
    %p79 = por %p77, %p78
    %p80 = scmp.ne.s32.totalorder %s71, %s72
    %p81 = scmp.eq.s32.totalorder %s14, 0
    %p82 = por %p80, %p81
    %p83 = scmp.ne.s32.totalorder %s71, %s72
    %p84 = scmp.eq.s32.totalorder %s15, 4
    %p85 = por %p83, %p84
    %p87 = scmp.ne.s32.totalorder %s72, %s86
    %p88 = scmp.eq.s32.totalorder %s15, 0
    %p89 = por %p87, %p88
    %s91 = sadd.s32 %s90, 1
    %p94 = scmp.eq.s32.totalorder %s9, 4
    %p95 = scmp.ne.s32.totalorder %s90, %s92
    %p96 = scmp.eq.s32.totalorder %s9, 0
    %p97 = por %p95, %p96
    %p98 = scmp.ne.s32.totalorder %s90, %s92
    %p99 = scmp.eq.s32.totalorder %s14, 4
    %p100 = por %p98, %p99
    %p101 = scmp.ne.s32.totalorder %s92, %s93
    %p102 = scmp.eq.s32.totalorder %s14, 0
    %p103 = por %p101, %p102
    %p104 = scmp.ne.s32.totalorder %s92, %s93
    %p105 = scmp.eq.s32.totalorder %s15, 4
    %p106 = por %p104, %p105
    %p108 = scmp.ne.s32.totalorder %s93, %s107
    %p109 = scmp.eq.s32.totalorder %s15, 0
    %p110 = por %p108, %p109
    %p111 = scmp.le.s32.totalorder 1, %s9
    %p112 = scmp.lt.s32.totalorder %s9, 6
    %p113 = pnand %p111, %p112
    %p114 = pneg %p113
    // Predicated region
    $region9: #{inception_b_res2_forward.5} parent=5 // pred_check
      _
    $region10: #{inception_b_res2_forward.5} parent=5 // pred_check_branch
      %116 = sbr.rel (%p113) target = $region12
    $region11: #{inception_b_res2_forward.5} parent=5 // pred_region
      %s117 = ssub.s32 %s9, 1
      // Predicated region
      $region13: #{inception_b_res2_forward.5} parent=11 // pred_check
        %p118 = pneg %p82
      $region14: #{inception_b_res2_forward.5} parent=11 // pred_check_branch
        %120 = sbr.rel (%p118) target = $region16
      $region15: #{inception_b_res2_forward.5} parent=11 // pred_region
        _
      $region16: #{inception_b_res2_forward.5} parent=11 // pred_fallthru
        _
    $region12: #{inception_b_res2_forward.5} parent=5 // pred_fallthru
      _
    %p121 = scmp.lt.s32.totalorder %s9, 5
    // Predicated region
    $region17: #{inception_b_res2_forward.5} parent=5 // pred_check
      %p122 = pneg %p121
    $region18: #{inception_b_res2_forward.5} parent=5 // pred_check_branch
      %124 = sbr.rel (%p122) target = $region20
    $region19: #{inception_b_res2_forward.5} parent=5 // pred_region
      // Predicated region
      $region21: #{inception_b_res2_forward.5} parent=19 // pred_check
        %p125 = pneg %p29
      $region22: #{inception_b_res2_forward.5} parent=19 // pred_check_branch
        %127 = sbr.rel (%p125) target = $region24
      $region23: #{inception_b_res2_forward.5} parent=19 // pred_region
        %p128 = scmp.lt.s32.totalorder %s9, 4
        %s129 = scalar_select %p128, %s9, 4
        %s130 = smul.addr %s129, 16
        %s131 = smul.addr %s130, 4
        %s132 = scalar_lea.vmem %s0, %s131
      $region24: #{inception_b_res2_forward.5} parent=19 // pred_fallthru
        _
      // Predicated region
      $region25: #{inception_b_res2_forward.5} parent=19 // pred_check
        %p133 = pneg %p55
      $region26: #{inception_b_res2_forward.5} parent=19 // pred_check_branch
        %135 = sbr.rel (%p133) target = $region28
      $region27: #{inception_b_res2_forward.5} parent=19 // pred_region
        %p136 = scmp.lt.s32.totalorder %s9, 4
        %s137 = scalar_select %p136, %s9, 4
        %s138 = smul.addr %s137, 32
        %s139 = smul.addr %s138, 4
        %s140 = scalar_lea.vmem %s1, %s139
      $region28: #{inception_b_res2_forward.5} parent=19 // pred_fallthru
        _
    $region20: #{inception_b_res2_forward.5} parent=5 // pred_fallthru
      _
    %p141 = scmp.le.s32.totalorder 1, %s9
    %p142 = scmp.lt.s32.totalorder %s9, 6
    %p143 = pnand %p141, %p142
    %p144 = pneg %p143
    // Predicated region
    $region29: #{inception_b_res2_forward.5} parent=5 // pred_check
      _
    $region30: #{inception_b_res2_forward.5} parent=5 // pred_check_branch
      %146 = sbr.rel (%p143) target = $region32
    $region31: #{inception_b_res2_forward.5} parent=5 // pred_region
      %s147 = ssub.s32 %s9, 1
      %p148 = scmp.lt.s32.totalorder %s14, 4
      %s149 = scalar_select %p148, %s14, 4
      %s150 = smul.addr %s149, 16
      %s151 = smul.addr %s150, 4
      %s152 = scalar_lea.vmem %s0, %s151
      %p153 = pneg %p35
      %p154 = pneg %p32
      %p155 = scmp.lt.s32.totalorder %s14, 4
      %s156 = scalar_select %p155, %s14, 4
      %s157 = smul.addr %s156, 32
      %s158 = smul.addr %s157, 4
      %s159 = scalar_lea.vmem %s1, %s158
      %p160 = pneg %p61
      %p161 = pneg %p58
      %p162 = pneg %p82
      %p163 = pneg %p79
      %p164 = pneg %p103
      %p165 = pneg %p100
      %p166 = scmp.lt.s32.totalorder %s14, 4
      %s167 = scalar_select %p166, %s14, 4
      %s168 = smul.addr %s167, 16
      %s169 = smul.addr %s168, 4
      %s170 = scalar_lea.vmem %s0, %s169
      %p171 = scmp.lt.s32.totalorder %s14, 4
      %s172 = scalar_select %p171, %s14, 4
      %s173 = smul.addr %s172, 32
      %s174 = smul.addr %s173, 4
      %s175 = scalar_lea.vmem %s1, %s174
      %p177 = scmp.eq.s32.totalorder %s14, 0
      // Predicated region
      $region33: #{inception_b_res2_forward.5} parent=31 // pred_check
        %p178 = pneg %p177
      $region34: #{inception_b_res2_forward.5} parent=31 // pred_check_branch
        %180 = sbr.rel (%p178) target = $region36
      $region35: #{inception_b_res2_forward.5} parent=31 // pred_region
        %181 = vst [vmem:[#allocation2] sm:$0xff] 0.0
        %vm182 = vcmask 261120
        %183 = vst.msk [vmem:[#allocation2 + $0x8] sm:$0xff] %vm182, 0.0
        %184 = vst [vmem:[#allocation2 + $0x10] sm:$0xff] 0.0
        %185 = vst.msk [vmem:[#allocation2 + $0x18] sm:$0xff] %vm182, 0.0
        %186 = vst [vmem:[#allocation2 + $0x20] sm:$0xff] 0.0
        %187 = vst.msk [vmem:[#allocation2 + $0x28] sm:$0xff] %vm182, 0.0
        %188 = vst [vmem:[#allocation2 + $0x30] sm:$0xff] 0.0
        %189 = vst.msk [vmem:[#allocation2 + $0x38] sm:$0xff] %vm182, 0.0
        %190 = vst [vmem:[#allocation2 + $0x40] sm:$0xff] 0.0
        %191 = vst.msk [vmem:[#allocation2 + $0x48] sm:$0xff] %vm182, 0.0
        %192 = vst [vmem:[#allocation2 + $0x50] sm:$0xff] 0.0
        %193 = vst.msk [vmem:[#allocation2 + $0x58] sm:$0xff] %vm182, 0.0
        %194 = vst [vmem:[#allocation2 + $0x60] sm:$0xff] 0.0
        %195 = vst.msk [vmem:[#allocation2 + $0x68] sm:$0xff] %vm182, 0.0
        %196 = vst [vmem:[#allocation2 + $0x70] sm:$0xff] 0.0
        %197 = vst.msk [vmem:[#allocation2 + $0x78] sm:$0xff] %vm182, 0.0
        %198 = vst [vmem:[#allocation2 + $0x80] sm:$0xff] 0.0
        %199 = vst.msk [vmem:[#allocation2 + $0x88] sm:$0xff] %vm182, 0.0
        %200 = vst [vmem:[#allocation2 + $0x90] sm:$0xff] 0.0
        %201 = vst.msk [vmem:[#allocation2 + $0x98] sm:$0xff] %vm182, 0.0
        %202 = vst [vmem:[#allocation2 + $0xa0] sm:$0xff] 0.0
        %203 = vst.msk [vmem:[#allocation2 + $0xa8] sm:$0xff] %vm182, 0.0
        %204 = vst [vmem:[#allocation2 + $0xb0] sm:$0xff] 0.0
        %205 = vst.msk [vmem:[#allocation2 + $0xb8] sm:$0xff] %vm182, 0.0
        %206 = vst [vmem:[#allocation2 + $0xc0] sm:$0xff] 0.0
        %207 = vst.msk [vmem:[#allocation2 + $0xc8] sm:$0xff] %vm182, 0.0
        %208 = vst [vmem:[#allocation2 + $0xd0] sm:$0xff] 0.0
        %209 = vst.msk [vmem:[#allocation2 + $0xd8] sm:$0xff] %vm182, 0.0
        %210 = vst [vmem:[#allocation2 + $0xe0] sm:$0xff] 0.0
        %211 = vst.msk [vmem:[#allocation2 + $0xe8] sm:$0xff] %vm182, 0.0
        %212 = vst [vmem:[#allocation2 + $0xf0] sm:$0xff] 0.0
        %213 = vst.msk [vmem:[#allocation2 + $0xf8] sm:$0xff] %vm182, 0.0
      $region36: #{inception_b_res2_forward.5} parent=31 // pred_fallthru
        _
      %v214 = vld [vmem:[#allocation2] sm:$0xff]
      %v215 = vld [vmem:[#allocation2 + $0x8] sm:$0xff]
      %v216 = vld [vmem:[#allocation2 + $0x10] sm:$0xff]
      %v217 = vld [vmem:[#allocation2 + $0x18] sm:$0xff]
      %v218 = vld [vmem:[#allocation2 + $0x20] sm:$0xff]
      %v219 = vld [vmem:[#allocation2 + $0x28] sm:$0xff]
      %v220 = vld [vmem:[#allocation2 + $0x30] sm:$0xff]
      %v221 = vld [vmem:[#allocation2 + $0x38] sm:$0xff]
      %v222 = vld [vmem:[#allocation2 + $0x40] sm:$0xff]
      %v223 = vld [vmem:[#allocation2 + $0x48] sm:$0xff]
      %v224 = vld [vmem:[#allocation2 + $0x50] sm:$0xff]
      %v225 = vld [vmem:[#allocation2 + $0x58] sm:$0xff]
      %v226 = vld [vmem:[#allocation2 + $0x60] sm:$0xff]
      %v227 = vld [vmem:[#allocation2 + $0x68] sm:$0xff]
      %v228 = vld [vmem:[#allocation2 + $0x70] sm:$0xff]
      %v229 = vld [vmem:[#allocation2 + $0x78] sm:$0xff]
      %v230 = vld [vmem:[#allocation2 + $0x80] sm:$0xff]
      %v231 = vld [vmem:[#allocation2 + $0x88] sm:$0xff]
      %v232 = vld [vmem:[#allocation2 + $0x90] sm:$0xff]
      %v233 = vld [vmem:[#allocation2 + $0x98] sm:$0xff]
      %v234 = vld [vmem:[#allocation2 + $0xa0] sm:$0xff]
      %v235 = vld [vmem:[#allocation2 + $0xa8] sm:$0xff]
      %v236 = vld [vmem:[#allocation2 + $0xb0] sm:$0xff]
      %v237 = vld [vmem:[#allocation2 + $0xb8] sm:$0xff]
      %v238 = vld [vmem:[#allocation2 + $0xc0] sm:$0xff]
      %v239 = vld [vmem:[#allocation2 + $0xc8] sm:$0xff]
      %v240 = vld [vmem:[#allocation2 + $0xd0] sm:$0xff]
      %v241 = vld [vmem:[#allocation2 + $0xd8] sm:$0xff]
      %v242 = vld [vmem:[#allocation2 + $0xe0] sm:$0xff]
      %v243 = vld [vmem:[#allocation2 + $0xe8] sm:$0xff]
      %v244 = vld [vmem:[#allocation2 + $0xf0] sm:$0xff]
      %v245 = vld [vmem:[#allocation2 + $0xf8] sm:$0xff]
      %v246 = vld [vmem:[%s170] sm:$0xf]
      %v247 = vld [vmem:[%s170 + $0x4] sm:$0xf]
      %v248 = vld [vmem:[%s170 + $0x8] sm:$0xf]
      %v249 = vld [vmem:[%s170 + $0xc] sm:$0xf]
      %v250 = vld [vmem:[%s170 + $0x10] sm:$0xf]
      %v251 = vld [vmem:[%s170 + $0x14] sm:$0xf]
      %v252 = vld [vmem:[%s170 + $0x18] sm:$0xf]
      %v253 = vld [vmem:[%s170 + $0x1c] sm:$0xf]
      %v254 = vld [vmem:[%s170 + $0x20] sm:$0xf]
      %v255 = vld [vmem:[%s170 + $0x24] sm:$0xf]
      %v256 = vld [vmem:[%s170 + $0x28] sm:$0xf]
      %v257 = vld [vmem:[%s170 + $0x2c] sm:$0xf]
      %v258 = vld [vmem:[%s170 + $0x30] sm:$0xf]
      %v259 = vld [vmem:[%s170 + $0x34] sm:$0xf]
      %v260 = vld [vmem:[%s170 + $0x38] sm:$0xf]
      %v261 = vld [vmem:[%s170 + $0x3c] sm:$0xf]
      %v262 = vld [vmem:[%s175] sm:$0xff]
      %v263 = vld [vmem:[%s175 + $0x8] sm:$0xff]
      %v264 = vld [vmem:[%s175 + $0x10] sm:$0xff]
      %v265 = vld [vmem:[%s175 + $0x18] sm:$0xff]
      %v266 = vld [vmem:[%s175 + $0x20] sm:$0xff]
      %v267 = vld [vmem:[%s175 + $0x28] sm:$0xff]
      %v268 = vld [vmem:[%s175 + $0x30] sm:$0xff]
      %v269 = vld [vmem:[%s175 + $0x38] sm:$0xff]
      %v270 = vld [vmem:[%s175 + $0x40] sm:$0xff]
      %v271 = vld [vmem:[%s175 + $0x48] sm:$0xff]
      %v272 = vld [vmem:[%s175 + $0x50] sm:$0xff]
      %v273 = vld [vmem:[%s175 + $0x58] sm:$0xff]
      %v274 = vld [vmem:[%s175 + $0x60] sm:$0xff]
      %v275 = vld [vmem:[%s175 + $0x68] sm:$0xff]
      %v276 = vld [vmem:[%s175 + $0x70] sm:$0xff]
      %v277 = vld [vmem:[%s175 + $0x78] sm:$0xff]
      %v294 = vunpack.c.l.b16 %v246
      %v295 = vunpack.c.l.b16 %v247
      %v296 = vunpack.c.l.b16 %v248
      %v297 = vunpack.c.l.b16 %v249
      %v298 = vunpack.c.l.b16 %v250
      %v299 = vunpack.c.l.b16 %v251
      %v300 = vunpack.c.l.b16 %v252
      %v301 = vunpack.c.l.b16 %v253
      %v302 = vunpack.c.l.b16 %v254
      %v303 = vunpack.c.l.b16 %v255
      %v304 = vunpack.c.l.b16 %v256
      %v305 = vunpack.c.l.b16 %v257
      %v306 = vunpack.c.l.b16 %v258
      %v307 = vunpack.c.l.b16 %v259
      %v308 = vunpack.c.l.b16 %v260
      %v309 = vunpack.c.l.b16 %v261
      %v310 = vpack.c.b16 %v295, %v294
      %v311 = vpack.c.b16 %v297, %v296
      %v312 = vpack.c.b16 %v299, %v298
      %v313 = vpack.c.b16 %v301, %v300
      %v314 = vpack.c.b16 %v303, %v302
      %v315 = vpack.c.b16 %v305, %v304
      %v316 = vpack.c.b16 %v307, %v306
      %v317 = vpack.c.b16 %v309, %v308
      %v342 = vunpack.c.l.b16 %v262
      %v343 = vunpack.c.h.b16 %v262
      %v344 = vunpack.c.l.b16 %v263
      %v345 = vunpack.c.h.b16 %v263
      %v346 = vunpack.c.l.b16 %v264
      %v347 = vunpack.c.h.b16 %v264
      %v348 = vunpack.c.l.b16 %v265
      %v349 = vunpack.c.h.b16 %v265
      %v350 = vunpack.c.l.b16 %v266
      %v351 = vunpack.c.h.b16 %v266
      %v352 = vunpack.c.l.b16 %v267
      %v353 = vunpack.c.h.b16 %v267
      %v354 = vunpack.c.l.b16 %v268
      %v355 = vunpack.c.h.b16 %v268
      %v356 = vunpack.c.l.b16 %v269
      %v357 = vunpack.c.h.b16 %v269
      %v358 = vunpack.c.l.b16 %v270
      %v359 = vunpack.c.h.b16 %v270
      %v360 = vunpack.c.l.b16 %v271
      %v361 = vunpack.c.h.b16 %v271
      %v362 = vunpack.c.l.b16 %v272
      %v363 = vunpack.c.h.b16 %v272
      %v364 = vunpack.c.l.b16 %v273
      %v365 = vunpack.c.h.b16 %v273
      %v366 = vunpack.c.l.b16 %v274
      %v367 = vunpack.c.h.b16 %v274
      %v368 = vunpack.c.l.b16 %v275
      %v369 = vunpack.c.h.b16 %v275
      %v370 = vunpack.c.l.b16 %v276
      %v371 = vunpack.c.h.b16 %v276
      %v372 = vunpack.c.l.b16 %v277
      %v373 = vunpack.c.h.b16 %v277
      %v374 = vpack.c.b16 %v344, %v342
      %v375 = vpack.c.b16 %v345, %v343
      %v376 = vpack.c.b16 %v348, %v346
      %v377 = vpack.c.b16 %v349, %v347
      %v378 = vpack.c.b16 %v352, %v350
      %v379 = vpack.c.b16 %v353, %v351
      %v380 = vpack.c.b16 %v356, %v354
      %v381 = vpack.c.b16 %v357, %v355
      %v382 = vpack.c.b16 %v360, %v358
      %v383 = vpack.c.b16 %v361, %v359
      %v384 = vpack.c.b16 %v364, %v362
      %v385 = vpack.c.b16 %v365, %v363
      %v386 = vpack.c.b16 %v368, %v366
      %v387 = vpack.c.b16 %v369, %v367
      %v388 = vpack.c.b16 %v372, %v370
      %v389 = vpack.c.b16 %v373, %v371
      %406 = vmatprep.subr.bf16.mxu0 %v375
      %407 = vmatpush1.bf16.msra.mxu0 %v374
      %408 = vmatprep.subr.bf16.mxu0 %v377
      %409 = vmatpush1.bf16.msra.mxu0 %v376
      %410 = vmatprep.subr.bf16.mxu0 %v379
      %411 = vmatpush1.bf16.msra.mxu0 %v378
      %412 = vmatprep.subr.bf16.mxu0 %v381
      %413 = vmatpush1.bf16.msra.mxu0 %v380
      %414 = vmatprep.subr.bf16.mxu0 %v383
      %415 = vmatpush1.bf16.msra.mxu0 %v382
      %416 = vmatprep.subr.bf16.mxu0 %v385
      %417 = vmatpush1.bf16.msra.mxu0 %v384
      %418 = vmatprep.subr.bf16.mxu0 %v387
      %419 = vmatpush1.bf16.msra.mxu0 %v386
      %420 = vmatprep.subr.bf16.mxu0 %v389
      %421 = vmatpush1.bf16.msra.mxu0 %v388
      %422 = vmatprep.subr.bf16.mxu0 0
      %423 = vmatpush1.bf16.msra.mxu0 0
      %424 = vmatprep.subr.bf16.mxu0 0
      %425 = vmatpush1.bf16.msra.mxu0 0
      %426 = vmatprep.subr.bf16.mxu0 0
      %427 = vmatpush1.bf16.msra.mxu0 0
      %428 = vmatprep.subr.bf16.mxu0 0
      %429 = vmatpush1.bf16.msra.mxu0 0
      %430 = vmatprep.subr.bf16.mxu0 0
      %431 = vmatpush1.bf16.msra.mxu0 0
      %432 = vmatprep.subr.bf16.mxu0 0
      %433 = vmatpush1.bf16.msra.mxu0 0
      %434 = vmatprep.subr.bf16.mxu0 0
      %435 = vmatpush1.bf16.msra.mxu0 0
      %436 = vmatprep.subr.bf16.mxu0 0
      %437 = vmatpush1.bf16.msra.mxu0 0
      %438 = vmatprep.mubr.bf16.mxu0 0
      %439 = vmatmul.mubr.bf16.gmra.mrb[0].mxu0 %v310
      %v440 = vpop.f32.mrb[0].mxu0
      %v441 = vadd.f32 0.0, %v440
      %v442 = vpop.f32.mrb[0].mxu0
      %v443 = vadd.f32 0.0, %v442
      %v444 = vpop.f32.mrb[0].mxu0
      %v445 = vadd.f32 0.0, %v444
      %v446 = vpop.f32.mrb[0].mxu0
      %v447 = vadd.f32 0.0, %v446
      %448 = vmatprep.mubr.bf16.mxu0 0
      %449 = vmatmul.mubr.bf16.gmra.mrb[0].mxu0 %v311
      %v450 = vpop.f32.mrb[0].mxu0
      %v451 = vadd.f32 0.0, %v450
      %v452 = vpop.f32.mrb[0].mxu0
      %v453 = vadd.f32 0.0, %v452
      %v454 = vpop.f32.mrb[0].mxu0
      %v455 = vadd.f32 0.0, %v454
      %v456 = vpop.f32.mrb[0].mxu0
      %v457 = vadd.f32 0.0, %v456
      %458 = vmatprep.mubr.bf16.mxu0 0
      %459 = vmatmul.mubr.bf16.gmra.mrb[0].mxu0 %v312
      %v460 = vpop.f32.mrb[0].mxu0
      %v461 = vadd.f32 0.0, %v460
      %v462 = vpop.f32.mrb[0].mxu0
      %v463 = vadd.f32 0.0, %v462
      %v464 = vpop.f32.mrb[0].mxu0
      %v465 = vadd.f32 0.0, %v464
      %v466 = vpop.f32.mrb[0].mxu0
      %v467 = vadd.f32 0.0, %v466
      %468 = vmatprep.mubr.bf16.mxu0 0
      %469 = vmatmul.mubr.bf16.gmra.mrb[0].mxu0 %v313
      %v470 = vpop.f32.mrb[0].mxu0
      %v471 = vadd.f32 0.0, %v470
      %v472 = vpop.f32.mrb[0].mxu0
      %v473 = vadd.f32 0.0, %v472
      %v474 = vpop.f32.mrb[0].mxu0
      %v475 = vadd.f32 0.0, %v474
      %v476 = vpop.f32.mrb[0].mxu0
      %v477 = vadd.f32 0.0, %v476
      %478 = vmatprep.mubr.bf16.mxu0 0
      %479 = vmatmul.mubr.bf16.gmra.mrb[0].mxu0 %v314
      %v480 = vpop.f32.mrb[0].mxu0
      %v481 = vadd.f32 0.0, %v480
      %v482 = vpop.f32.mrb[0].mxu0
      %v483 = vadd.f32 0.0, %v482
      %v484 = vpop.f32.mrb[0].mxu0
      %v485 = vadd.f32 0.0, %v484
      %v486 = vpop.f32.mrb[0].mxu0
      %v487 = vadd.f32 0.0, %v486
      %488 = vmatprep.mubr.bf16.mxu0 0
      %489 = vmatmul.mubr.bf16.gmra.mrb[0].mxu0 %v315
      %v490 = vpop.f32.mrb[0].mxu0
      %v491 = vadd.f32 0.0, %v490
      %v492 = vpop.f32.mrb[0].mxu0
      %v493 = vadd.f32 0.0, %v492
      %v494 = vpop.f32.mrb[0].mxu0
      %v495 = vadd.f32 0.0, %v494
      %v496 = vpop.f32.mrb[0].mxu0
      %v497 = vadd.f32 0.0, %v496
      %498 = vmatprep.mubr.bf16.mxu0 0
      %499 = vmatmul.mubr.bf16.gmra.mrb[0].mxu0 %v316
      %v500 = vpop.f32.mrb[0].mxu0
      %v501 = vadd.f32 0.0, %v500
      %v502 = vpop.f32.mrb[0].mxu0
      %v503 = vadd.f32 0.0, %v502
      %v504 = vpop.f32.mrb[0].mxu0
      %v505 = vadd.f32 0.0, %v504
      %v506 = vpop.f32.mrb[0].mxu0
      %v507 = vadd.f32 0.0, %v506
      %508 = vmatprep.mubr.bf16.mxu0 0
      %509 = vmatmul.mubr.bf16.gmra.mrb[0].mxu0 %v317
      %v510 = vpop.f32.mrb[0].mxu0
      %v511 = vadd.f32 0.0, %v510
      %v512 = vpop.f32.mrb[0].mxu0
      %v513 = vadd.f32 0.0, %v512
      %v514 = vpop.f32.mrb[0].mxu0
      %v515 = vadd.f32 0.0, %v514
      %v516 = vpop.f32.mrb[0].mxu0
      %v517 = vadd.f32 0.0, %v516
      %518 = vdwg.mxu0
      %v519 = vadd.f32 %v214, %v441
      %v520 = vadd.f32 %v215, %v443
      %v521 = vadd.f32 %v216, %v445
      %v522 = vadd.f32 %v217, %v447
      %v523 = vadd.f32 %v218, %v451
      %v524 = vadd.f32 %v219, %v453
      %v525 = vadd.f32 %v220, %v455
      %v526 = vadd.f32 %v221, %v457
      %v527 = vadd.f32 %v222, %v461
      %v528 = vadd.f32 %v223, %v463
      %v529 = vadd.f32 %v224, %v465
      %v530 = vadd.f32 %v225, %v467
      %v531 = vadd.f32 %v226, %v471
      %v532 = vadd.f32 %v227, %v473
      %v533 = vadd.f32 %v228, %v475
      %v534 = vadd.f32 %v229, %v477
      %v535 = vadd.f32 %v230, %v481
      %v536 = vadd.f32 %v231, %v483
      %v537 = vadd.f32 %v232, %v485
      %v538 = vadd.f32 %v233, %v487
      %v539 = vadd.f32 %v234, %v491
      %v540 = vadd.f32 %v235, %v493
      %v541 = vadd.f32 %v236, %v495
      %v542 = vadd.f32 %v237, %v497
      %v543 = vadd.f32 %v238, %v501
      %v544 = vadd.f32 %v239, %v503
      %v545 = vadd.f32 %v240, %v505
      %v546 = vadd.f32 %v241, %v507
      %v547 = vadd.f32 %v242, %v511
      %v548 = vadd.f32 %v243, %v513
      %v549 = vadd.f32 %v244, %v515
      %v550 = vadd.f32 %v245, %v517
      %551 = vst [vmem:[#allocation2] sm:$0xff] %v519
      %vm552 = vcmask 261120
      %553 = vst.msk [vmem:[#allocation2 + $0x8] sm:$0xff] %vm552, %v520
      %554 = vst [vmem:[#allocation2 + $0x10] sm:$0xff] %v521
      %555 = vst.msk [vmem:[#allocation2 + $0x18] sm:$0xff] %vm552, %v522
      %556 = vst [vmem:[#allocation2 + $0x20] sm:$0xff] %v523
      %557 = vst.msk [vmem:[#allocation2 + $0x28] sm:$0xff] %vm552, %v524
      %558 = vst [vmem:[#allocation2 + $0x30] sm:$0xff] %v525
      %559 = vst.msk [vmem:[#allocation2 + $0x38] sm:$0xff] %vm552, %v526
      %560 = vst [vmem:[#allocation2 + $0x40] sm:$0xff] %v527
      %561 = vst.msk [vmem:[#allocation2 + $0x48] sm:$0xff] %vm552, %v528
      %562 = vst [vmem:[#allocation2 + $0x50] sm:$0xff] %v529
      %563 = vst.msk [vmem:[#allocation2 + $0x58] sm:$0xff] %vm552, %v530
      %564 = vst [vmem:[#allocation2 + $0x60] sm:$0xff] %v531
      %565 = vst.msk [vmem:[#allocation2 + $0x68] sm:$0xff] %vm552, %v532
      %566 = vst [vmem:[#allocation2 + $0x70] sm:$0xff] %v533
      %567 = vst.msk [vmem:[#allocation2 + $0x78] sm:$0xff] %vm552, %v534
      %568 = vst [vmem:[#allocation2 + $0x80] sm:$0xff] %v535
      %569 = vst.msk [vmem:[#allocation2 + $0x88] sm:$0xff] %vm552, %v536
      %570 = vst [vmem:[#allocation2 + $0x90] sm:$0xff] %v537
      %571 = vst.msk [vmem:[#allocation2 + $0x98] sm:$0xff] %vm552, %v538
      %572 = vst [vmem:[#allocation2 + $0xa0] sm:$0xff] %v539
      %573 = vst.msk [vmem:[#allocation2 + $0xa8] sm:$0xff] %vm552, %v540
      %574 = vst [vmem:[#allocation2 + $0xb0] sm:$0xff] %v541
      %575 = vst.msk [vmem:[#allocation2 + $0xb8] sm:$0xff] %vm552, %v542
      %576 = vst [vmem:[#allocation2 + $0xc0] sm:$0xff] %v543
      %577 = vst.msk [vmem:[#allocation2 + $0xc8] sm:$0xff] %vm552, %v544
      %578 = vst [vmem:[#allocation2 + $0xd0] sm:$0xff] %v545
      %579 = vst.msk [vmem:[#allocation2 + $0xd8] sm:$0xff] %vm552, %v546
      %580 = vst [vmem:[#allocation2 + $0xe0] sm:$0xff] %v547
      %581 = vst.msk [vmem:[#allocation2 + $0xe8] sm:$0xff] %vm552, %v548
      %582 = vst [vmem:[#allocation2 + $0xf0] sm:$0xff] %v549
      %583 = vst.msk [vmem:[#allocation2 + $0xf8] sm:$0xff] %vm552, %v550
      %p584 = scmp.eq.s32.totalorder %s14, 4
      // Predicated region
      $region37: #{inception_b_res2_forward.5} parent=31 // pred_check
        %p585 = pneg %p584
      $region38: #{inception_b_res2_forward.5} parent=31 // pred_check_branch
        %587 = sbr.rel (%p585) target = $region40
      $region39: #{inception_b_res2_forward.5} parent=31 // pred_region
        %v588 = vld [vmem:[#allocation2] sm:$0xff]
        %v589 = vld [vmem:[#allocation2 + $0x8] sm:$0xff]
        %v590 = vld [vmem:[#allocation2 + $0x10] sm:$0xff]
        %v591 = vld [vmem:[#allocation2 + $0x18] sm:$0xff]
        %v592 = vld [vmem:[#allocation2 + $0x20] sm:$0xff]
        %v593 = vld [vmem:[#allocation2 + $0x28] sm:$0xff]
        %v594 = vld [vmem:[#allocation2 + $0x30] sm:$0xff]
        %v595 = vld [vmem:[#allocation2 + $0x38] sm:$0xff]
        %v596 = vld [vmem:[#allocation2 + $0x40] sm:$0xff]
        %v597 = vld [vmem:[#allocation2 + $0x48] sm:$0xff]
        %v598 = vld [vmem:[#allocation2 + $0x50] sm:$0xff]
        %v599 = vld [vmem:[#allocation2 + $0x58] sm:$0xff]
        %v600 = vld [vmem:[#allocation2 + $0x60] sm:$0xff]
        %v601 = vld [vmem:[#allocation2 + $0x68] sm:$0xff]
        %v602 = vld [vmem:[#allocation2 + $0x70] sm:$0xff]
        %v603 = vld [vmem:[#allocation2 + $0x78] sm:$0xff]
        %v604 = vld [vmem:[#allocation2 + $0x80] sm:$0xff]
        %v605 = vld [vmem:[#allocation2 + $0x88] sm:$0xff]
        %v606 = vld [vmem:[#allocation2 + $0x90] sm:$0xff]
        %v607 = vld [vmem:[#allocation2 + $0x98] sm:$0xff]
        %v608 = vld [vmem:[#allocation2 + $0xa0] sm:$0xff]
        %v609 = vld [vmem:[#allocation2 + $0xa8] sm:$0xff]
        %v610 = vld [vmem:[#allocation2 + $0xb0] sm:$0xff]
        %v611 = vld [vmem:[#allocation2 + $0xb8] sm:$0xff]
        %v612 = vld [vmem:[#allocation2 + $0xc0] sm:$0xff]
        %v613 = vld [vmem:[#allocation2 + $0xc8] sm:$0xff]
        %v614 = vld [vmem:[#allocation2 + $0xd0] sm:$0xff]
        %v615 = vld [vmem:[#allocation2 + $0xd8] sm:$0xff]
        %v616 = vld [vmem:[#allocation2 + $0xe0] sm:$0xff]
        %v617 = vld [vmem:[#allocation2 + $0xe8] sm:$0xff]
        %v618 = vld [vmem:[#allocation2 + $0xf0] sm:$0xff]
        %v619 = vld [vmem:[#allocation2 + $0xf8] sm:$0xff]
        %v620 = vld [vmem:[%s2] sm:$0x3]
        %v622 = vlaneseq
        %v623 = vshrl.u32 %v622, 7
        %v624 = vsub.s32 0, %v623
        %v625 = vrot.slane %v620, %v624
        %v626 = vlaneseq
        %v627 = vshrl.u32 %v626, 7
        %v628 = vsub.s32 1, %v627
        %v629 = vrot.slane %v620, %v628
        %v632 = vadd.f32 %v588, %v625
        %v633 = vadd.f32 %v589, %v629
        %v634 = vadd.f32 %v590, %v625
        %v635 = vadd.f32 %v591, %v629
        %v636 = vadd.f32 %v592, %v625
        %v637 = vadd.f32 %v593, %v629
        %v638 = vadd.f32 %v594, %v625
        %v639 = vadd.f32 %v595, %v629
        %v640 = vadd.f32 %v596, %v625
        %v641 = vadd.f32 %v597, %v629
        %v642 = vadd.f32 %v598, %v625
        %v643 = vadd.f32 %v599, %v629
        %v644 = vadd.f32 %v600, %v625
        %v645 = vadd.f32 %v601, %v629
        %v646 = vadd.f32 %v602, %v625
        %v647 = vadd.f32 %v603, %v629
        %v648 = vadd.f32 %v604, %v625
        %v649 = vadd.f32 %v605, %v629
        %v650 = vadd.f32 %v606, %v625
        %v651 = vadd.f32 %v607, %v629
        %v652 = vadd.f32 %v608, %v625
        %v653 = vadd.f32 %v609, %v629
        %v654 = vadd.f32 %v610, %v625
        %v655 = vadd.f32 %v611, %v629
        %v656 = vadd.f32 %v612, %v625
        %v657 = vadd.f32 %v613, %v629
        %v658 = vadd.f32 %v614, %v625
        %v659 = vadd.f32 %v615, %v629
        %v660 = vadd.f32 %v616, %v625
        %v661 = vadd.f32 %v617, %v629
        %v662 = vadd.f32 %v618, %v625
        %v663 = vadd.f32 %v619, %v629
        %v664 = vmax.f32 %v632, 0.0
        %v665 = vmax.f32 %v633, 0.0
        %v666 = vmax.f32 %v634, 0.0
        %v667 = vmax.f32 %v635, 0.0
        %v668 = vmax.f32 %v636, 0.0
        %v669 = vmax.f32 %v637, 0.0
        %v670 = vmax.f32 %v638, 0.0
        %v671 = vmax.f32 %v639, 0.0
        %v672 = vmax.f32 %v640, 0.0
        %v673 = vmax.f32 %v641, 0.0
        %v674 = vmax.f32 %v642, 0.0
        %v675 = vmax.f32 %v643, 0.0
        %v676 = vmax.f32 %v644, 0.0
        %v677 = vmax.f32 %v645, 0.0
        %v678 = vmax.f32 %v646, 0.0
        %v679 = vmax.f32 %v647, 0.0
        %v680 = vmax.f32 %v648, 0.0
        %v681 = vmax.f32 %v649, 0.0
        %v682 = vmax.f32 %v650, 0.0
        %v683 = vmax.f32 %v651, 0.0
        %v684 = vmax.f32 %v652, 0.0
        %v685 = vmax.f32 %v653, 0.0
        %v686 = vmax.f32 %v654, 0.0
        %v687 = vmax.f32 %v655, 0.0
        %v688 = vmax.f32 %v656, 0.0
        %v689 = vmax.f32 %v657, 0.0
        %v690 = vmax.f32 %v658, 0.0
        %v691 = vmax.f32 %v659, 0.0
        %v692 = vmax.f32 %v660, 0.0
        %v693 = vmax.f32 %v661, 0.0
        %v694 = vmax.f32 %v662, 0.0
        %v695 = vmax.f32 %v663, 0.0
        %v696 = vpack.c.bf16 %v666, %v664
        %v697 = vpack.c.bf16 %v667, %v665
        %v698 = vpack.c.bf16 %v670, %v668
        %v699 = vpack.c.bf16 %v671, %v669
        %v700 = vpack.c.bf16 %v674, %v672
        %v701 = vpack.c.bf16 %v675, %v673
        %v702 = vpack.c.bf16 %v678, %v676
        %v703 = vpack.c.bf16 %v679, %v677
        %v704 = vpack.c.bf16 %v682, %v680
        %v705 = vpack.c.bf16 %v683, %v681
        %v706 = vpack.c.bf16 %v686, %v684
        %v707 = vpack.c.bf16 %v687, %v685
        %v708 = vpack.c.bf16 %v690, %v688
        %v709 = vpack.c.bf16 %v691, %v689
        %v710 = vpack.c.bf16 %v694, %v692
        %v711 = vpack.c.bf16 %v695, %v693
        %v728 = vunpack.c.l.b16 %v696
        %v729 = vunpack.c.l.b16 %v697
        %v730 = vunpack.c.h.b16 %v696
        %v731 = vunpack.c.h.b16 %v697
        %v732 = vunpack.c.l.b16 %v698
        %v733 = vunpack.c.l.b16 %v699
        %v734 = vunpack.c.h.b16 %v698
        %v735 = vunpack.c.h.b16 %v699
        %v736 = vunpack.c.l.b16 %v700
        %v737 = vunpack.c.l.b16 %v701
        %v738 = vunpack.c.h.b16 %v700
        %v739 = vunpack.c.h.b16 %v701
        %v740 = vunpack.c.l.b16 %v702
        %v741 = vunpack.c.l.b16 %v703
        %v742 = vunpack.c.h.b16 %v702
        %v743 = vunpack.c.h.b16 %v703
        %v744 = vunpack.c.l.b16 %v704
        %v745 = vunpack.c.l.b16 %v705
        %v746 = vunpack.c.h.b16 %v704
        %v747 = vunpack.c.h.b16 %v705
        %v748 = vunpack.c.l.b16 %v706
        %v749 = vunpack.c.l.b16 %v707
        %v750 = vunpack.c.h.b16 %v706
        %v751 = vunpack.c.h.b16 %v707
        %v752 = vunpack.c.l.b16 %v708
        %v753 = vunpack.c.l.b16 %v709
        %v754 = vunpack.c.h.b16 %v708
        %v755 = vunpack.c.h.b16 %v709
        %v756 = vunpack.c.l.b16 %v710
        %v757 = vunpack.c.l.b16 %v711
        %v758 = vunpack.c.h.b16 %v710
        %v759 = vunpack.c.h.b16 %v711
        %v760 = vpack.c.b16 %v729, %v728
        %v761 = vpack.c.b16 %v731, %v730
        %v762 = vpack.c.b16 %v733, %v732
        %v763 = vpack.c.b16 %v735, %v734
        %v764 = vpack.c.b16 %v737, %v736
        %v765 = vpack.c.b16 %v739, %v738
        %v766 = vpack.c.b16 %v741, %v740
        %v767 = vpack.c.b16 %v743, %v742
        %v768 = vpack.c.b16 %v745, %v744
        %v769 = vpack.c.b16 %v747, %v746
        %v770 = vpack.c.b16 %v749, %v748
        %v771 = vpack.c.b16 %v751, %v750
        %v772 = vpack.c.b16 %v753, %v752
        %v773 = vpack.c.b16 %v755, %v754
        %v774 = vpack.c.b16 %v757, %v756
        %v775 = vpack.c.b16 %v759, %v758
        %vm792 = vcmask 1043456
        %vm793 = vcmask 261124
        %vm794 = vmor %vm793, %vm792
        %795 = vst.msk [vmem:[%s3] sm:$0xff] %vm794, %v760
        %796 = vst.msk [vmem:[%s3 + $0x8] sm:$0xff] %vm794, %v761
        %797 = vst.msk [vmem:[%s3 + $0x10] sm:$0xff] %vm794, %v762
        %798 = vst.msk [vmem:[%s3 + $0x18] sm:$0xff] %vm794, %v763
        %799 = vst.msk [vmem:[%s3 + $0x20] sm:$0xff] %vm794, %v764
        %800 = vst.msk [vmem:[%s3 + $0x28] sm:$0xff] %vm794, %v765
        %801 = vst.msk [vmem:[%s3 + $0x30] sm:$0xff] %vm794, %v766
        %802 = vst.msk [vmem:[%s3 + $0x38] sm:$0xff] %vm794, %v767
        %803 = vst.msk [vmem:[%s3 + $0x40] sm:$0xff] %vm794, %v768
        %804 = vst.msk [vmem:[%s3 + $0x48] sm:$0xff] %vm794, %v769
        %805 = vst.msk [vmem:[%s3 + $0x50] sm:$0xff] %vm794, %v770
        %806 = vst.msk [vmem:[%s3 + $0x58] sm:$0xff] %vm794, %v771
        %807 = vst.msk [vmem:[%s3 + $0x60] sm:$0xff] %vm794, %v772
        %808 = vst.msk [vmem:[%s3 + $0x68] sm:$0xff] %vm794, %v773
        %809 = vst.msk [vmem:[%s3 + $0x70] sm:$0xff] %vm794, %v774
        %810 = vst.msk [vmem:[%s3 + $0x78] sm:$0xff] %vm794, %v775
      $region40: #{inception_b_res2_forward.5} parent=31 // pred_fallthru
        _
      // Predicated region
      $region41: #{inception_b_res2_forward.5} parent=31 // pred_check
        %p811 = pneg %p100
      $region42: #{inception_b_res2_forward.5} parent=31 // pred_check_branch
        %813 = sbr.rel (%p811) target = $region44
      $region43: #{inception_b_res2_forward.5} parent=31 // pred_region
        _
      $region44: #{inception_b_res2_forward.5} parent=31 // pred_fallthru
        _
      // Predicated region
      $region45: #{inception_b_res2_forward.5} parent=31 // pred_check
        %p814 = pneg %p100
      $region46: #{inception_b_res2_forward.5} parent=31 // pred_check_branch
        %816 = sbr.rel (%p814) target = $region48
      $region47: #{inception_b_res2_forward.5} parent=31 // pred_region
        _
      $region48: #{inception_b_res2_forward.5} parent=31 // pred_fallthru
        _
    $region32: #{inception_b_res2_forward.5} parent=5 // pred_fallthru
      _
    %p817 = scmp.le.s32.totalorder 2, %s9
    // Predicated region
    $region49: #{inception_b_res2_forward.5} parent=5 // pred_check
      %p818 = pneg %p817
    $region50: #{inception_b_res2_forward.5} parent=5 // pred_check_branch
      %820 = sbr.rel (%p818) target = $region52
    $region51: #{inception_b_res2_forward.5} parent=5 // pred_region
      %s821 = ssub.s32 %s9, 2
    $region52: #{inception_b_res2_forward.5} parent=5 // pred_fallthru
      _
  $region6: #{inception_b_res2_forward.5} parent=0 // loop_footer
    %s13 = sadd.s32 1, %s9
  $region7: #{inception_b_res2_forward.5} parent=0 // loop_footer_branch
    %8 = sbr.rel target = $region3
  $region8: #{inception_b_res2_forward.5} parent=0 // loop_exit
    _

// kernel: inception_b_res2_forward.4
$region0: #{inception_b_res2_forward.4}
  #allocation0 [shape = 'u32[]', space=smem, size = 0x4, offset = 0x4, fixed_abs, tag = 'smem constant byte address 0x4 - core index']
  #allocation1 [shape = 'u32[144,128]{1,0:T(1,128)}', space=vmem, size = 0x12000, scoped, tag = 'internal scratch']
  %s0 = inlined_call_operand.vmem [shape: bf16[128,1152], index: 0, kind: input, shape index: {}]
  %s1 = inlined_call_operand.vmem [shape: bf16[1152,320], index: 1, kind: input, shape index: {}]
  %s2 = inlined_call_operand.vmem [shape: f32[1,320], index: 2, kind: input, shape index: {}]
  %s3 = inlined_call_operand.vmem [shape: bf16[128,320], index: 3, kind: output, shape index: {}]
  %s4 = sld [smem:[#allocation0]]
  $region22: #{inception_b_res2_forward.4} parent=0
    _
  %s6 = ssub.s32 1, %s4
  %s7 = scalar_select 0, %s6, %s4
  // Predicated region
  $region2: #{inception_b_res2_forward.4} parent=0 // pred_check
    _
  $region3: #{inception_b_res2_forward.4} parent=0 // pred_check_branch
    %9 = sbr.rel (0) target = $region5
  $region4: #{inception_b_res2_forward.4} parent=0 // pred_region
    _
  $region5: #{inception_b_res2_forward.4} parent=0 // pred_fallthru
    _
  // Predicated region
  $region6: #{inception_b_res2_forward.4} parent=0 // pred_check
    _
  $region7: #{inception_b_res2_forward.4} parent=0 // pred_check_branch
    %11 = sbr.rel (0) target = $region9
  $region8: #{inception_b_res2_forward.4} parent=0 // pred_region
    _
  $region9: #{inception_b_res2_forward.4} parent=0 // pred_fallthru
    _
  // Predicated region
  $region10: #{inception_b_res2_forward.4} parent=0 // pred_check
    _
  $region11: #{inception_b_res2_forward.4} parent=0 // pred_check_branch
    %13 = sbr.rel (0) target = $region13
  $region12: #{inception_b_res2_forward.4} parent=0 // pred_region
    _
  $region13: #{inception_b_res2_forward.4} parent=0 // pred_fallthru
    _
  %v15 = vld [vmem:[%s0] sm:$0xff]
  %v16 = vld [vmem:[%s0 + $0x8] sm:$0xff]
  %v17 = vld [vmem:[%s0 + $0x10] sm:$0xff]
  %v18 = vld [vmem:[%s0 + $0x18] sm:$0xff]
  %v19 = vld [vmem:[%s0 + $0x20] sm:$0xf]
  %v20 = vld [vmem:[%s0 + $0x24] sm:$0xff]
  %v21 = vld [vmem:[%s0 + $0x2c] sm:$0xff]
  %v22 = vld [vmem:[%s0 + $0x34] sm:$0xff]
  %v23 = vld [vmem:[%s0 + $0x3c] sm:$0xff]
  %v24 = vld [vmem:[%s0 + $0x44] sm:$0xf]
  %v25 = vld [vmem:[%s0 + $0x48] sm:$0xff]
  %v26 = vld [vmem:[%s0 + $0x50] sm:$0xff]
  %v27 = vld [vmem:[%s0 + $0x58] sm:$0xff]
  %v28 = vld [vmem:[%s0 + $0x60] sm:$0xff]
  %v29 = vld [vmem:[%s0 + $0x68] sm:$0xf]
  %v30 = vld [vmem:[%s0 + $0x6c] sm:$0xff]
  %v31 = vld [vmem:[%s0 + $0x74] sm:$0xff]
  %v32 = vld [vmem:[%s0 + $0x7c] sm:$0xff]
  %v33 = vld [vmem:[%s0 + $0x84] sm:$0xff]
  %v34 = vld [vmem:[%s0 + $0x8c] sm:$0xf]
  %v35 = vld [vmem:[%s0 + $0x90] sm:$0xff]
  %v36 = vld [vmem:[%s0 + $0x98] sm:$0xff]
  %v37 = vld [vmem:[%s0 + $0xa0] sm:$0xff]
  %v38 = vld [vmem:[%s0 + $0xa8] sm:$0xff]
  %v39 = vld [vmem:[%s0 + $0xb0] sm:$0xf]
  %v40 = vld [vmem:[%s0 + $0xb4] sm:$0xff]
  %v41 = vld [vmem:[%s0 + $0xbc] sm:$0xff]
  %v42 = vld [vmem:[%s0 + $0xc4] sm:$0xff]
  %v43 = vld [vmem:[%s0 + $0xcc] sm:$0xff]
  %v44 = vld [vmem:[%s0 + $0xd4] sm:$0xf]
  %v45 = vld [vmem:[%s0 + $0xd8] sm:$0xff]
  %v46 = vld [vmem:[%s0 + $0xe0] sm:$0xff]
  %v47 = vld [vmem:[%s0 + $0xe8] sm:$0xff]
  %v48 = vld [vmem:[%s0 + $0xf0] sm:$0xff]
  %v49 = vld [vmem:[%s0 + $0xf8] sm:$0xf]
  %v50 = vld [vmem:[%s0 + $0xfc] sm:$0xff]
  %v51 = vld [vmem:[%s0 + $0x104] sm:$0xff]
  %v52 = vld [vmem:[%s0 + $0x10c] sm:$0xff]
  %v53 = vld [vmem:[%s0 + $0x114] sm:$0xff]
  %v54 = vld [vmem:[%s0 + $0x11c] sm:$0xf]
  %v55 = vld [vmem:[%s0 + $0x120] sm:$0xff]
  %v56 = vld [vmem:[%s0 + $0x128] sm:$0xff]
  %v57 = vld [vmem:[%s0 + $0x130] sm:$0xff]
  %v58 = vld [vmem:[%s0 + $0x138] sm:$0xff]
  %v59 = vld [vmem:[%s0 + $0x140] sm:$0xf]
  %v60 = vld [vmem:[%s0 + $0x144] sm:$0xff]
  %v61 = vld [vmem:[%s0 + $0x14c] sm:$0xff]
  %v62 = vld [vmem:[%s0 + $0x154] sm:$0xff]
  %v63 = vld [vmem:[%s0 + $0x15c] sm:$0xff]
  %v64 = vld [vmem:[%s0 + $0x164] sm:$0xf]
  %v65 = vld [vmem:[%s0 + $0x168] sm:$0xff]
  %v66 = vld [vmem:[%s0 + $0x170] sm:$0xff]
  %v67 = vld [vmem:[%s0 + $0x178] sm:$0xff]
  %v68 = vld [vmem:[%s0 + $0x180] sm:$0xff]
  %v69 = vld [vmem:[%s0 + $0x188] sm:$0xf]
  %v70 = vld [vmem:[%s0 + $0x18c] sm:$0xff]
  %v71 = vld [vmem:[%s0 + $0x194] sm:$0xff]
  %v72 = vld [vmem:[%s0 + $0x19c] sm:$0xff]
  %v73 = vld [vmem:[%s0 + $0x1a4] sm:$0xff]
  %v74 = vld [vmem:[%s0 + $0x1ac] sm:$0xf]
  %v75 = vld [vmem:[%s0 + $0x1b0] sm:$0xff]
  %v76 = vld [vmem:[%s0 + $0x1b8] sm:$0xff]
  %v77 = vld [vmem:[%s0 + $0x1c0] sm:$0xff]
  %v78 = vld [vmem:[%s0 + $0x1c8] sm:$0xff]
  %v79 = vld [vmem:[%s0 + $0x1d0] sm:$0xf]
  %v80 = vld [vmem:[%s0 + $0x1d4] sm:$0xff]
  %v81 = vld [vmem:[%s0 + $0x1dc] sm:$0xff]
  %v82 = vld [vmem:[%s0 + $0x1e4] sm:$0xff]
  %v83 = vld [vmem:[%s0 + $0x1ec] sm:$0xff]
  %v84 = vld [vmem:[%s0 + $0x1f4] sm:$0xf]
  %v85 = vld [vmem:[%s0 + $0x1f8] sm:$0xff]
  %v86 = vld [vmem:[%s0 + $0x200] sm:$0xff]
  %v87 = vld [vmem:[%s0 + $0x208] sm:$0xff]
  %v88 = vld [vmem:[%s0 + $0x210] sm:$0xff]
  %v89 = vld [vmem:[%s0 + $0x218] sm:$0xf]
  %v90 = vld [vmem:[%s0 + $0x21c] sm:$0xff]
  %v91 = vld [vmem:[%s0 + $0x224] sm:$0xff]
  %v92 = vld [vmem:[%s0 + $0x22c] sm:$0xff]
  %v93 = vld [vmem:[%s0 + $0x234] sm:$0xff]
  %v94 = vld [vmem:[%s0 + $0x23c] sm:$0xf]
  %v95 = vld [vmem:[%s1] sm:$0xff]
  %v96 = vld [vmem:[%s1 + $0x8] sm:$0xf]
  %v97 = vld [vmem:[%s1 + $0xc] sm:$0xff]
  %v98 = vld [vmem:[%s1 + $0x14] sm:$0xf]
  %v99 = vld [vmem:[%s1 + $0x18] sm:$0xff]
  %v100 = vld [vmem:[%s1 + $0x20] sm:$0xf]
  %v101 = vld [vmem:[%s1 + $0x24] sm:$0xff]
  %v102 = vld [vmem:[%s1 + $0x2c] sm:$0xf]
  %v103 = vld [vmem:[%s1 + $0x30] sm:$0xff]
  %v104 = vld [vmem:[%s1 + $0x38] sm:$0xf]
  %v105 = vld [vmem:[%s1 + $0x3c] sm:$0xff]
  %v106 = vld [vmem:[%s1 + $0x44] sm:$0xf]
  %v107 = vld [vmem:[%s1 + $0x48] sm:$0xff]
  %v108 = vld [vmem:[%s1 + $0x50] sm:$0xf]
  %v109 = vld [vmem:[%s1 + $0x54] sm:$0xff]
  %v110 = vld [vmem:[%s1 + $0x5c] sm:$0xf]
  %v111 = vld [vmem:[%s1 + $0x60] sm:$0xff]
  %v112 = vld [vmem:[%s1 + $0x68] sm:$0xf]
  %v113 = vld [vmem:[%s1 + $0x6c] sm:$0xff]
  %v114 = vld [vmem:[%s1 + $0x74] sm:$0xf]
  %v115 = vld [vmem:[%s1 + $0x78] sm:$0xff]
  %v116 = vld [vmem:[%s1 + $0x80] sm:$0xf]
  %v117 = vld [vmem:[%s1 + $0x84] sm:$0xff]
  %v118 = vld [vmem:[%s1 + $0x8c] sm:$0xf]
  %v119 = vld [vmem:[%s1 + $0x90] sm:$0xff]
  %v120 = vld [vmem:[%s1 + $0x98] sm:$0xf]
  %v121 = vld [vmem:[%s1 + $0x9c] sm:$0xff]
  %v122 = vld [vmem:[%s1 + $0xa4] sm:$0xf]
  %v123 = vld [vmem:[%s1 + $0xa8] sm:$0xff]
  %v124 = vld [vmem:[%s1 + $0xb0] sm:$0xf]
  %v125 = vld [vmem:[%s1 + $0xb4] sm:$0xff]
  %v126 = vld [vmem:[%s1 + $0xbc] sm:$0xf]
  %v127 = vld [vmem:[%s1 + $0xc0] sm:$0xff]
  %v128 = vld [vmem:[%s1 + $0xc8] sm:$0xf]
  %v129 = vld [vmem:[%s1 + $0xcc] sm:$0xff]
  %v130 = vld [vmem:[%s1 + $0xd4] sm:$0xf]
  %v131 = vld [vmem:[%s1 + $0xd8] sm:$0xff]
  %v132 = vld [vmem:[%s1 + $0xe0] sm:$0xf]
  %v133 = vld [vmem:[%s1 + $0xe4] sm:$0xff]
  %v134 = vld [vmem:[%s1 + $0xec] sm:$0xf]
  %v135 = vld [vmem:[%s1 + $0xf0] sm:$0xff]
  %v136 = vld [vmem:[%s1 + $0xf8] sm:$0xf]
  %v137 = vld [vmem:[%s1 + $0xfc] sm:$0xff]
  %v138 = vld [vmem:[%s1 + $0x104] sm:$0xf]
  %v139 = vld [vmem:[%s1 + $0x108] sm:$0xff]
  %v140 = vld [vmem:[%s1 + $0x110] sm:$0xf]
  %v141 = vld [vmem:[%s1 + $0x114] sm:$0xff]
  %v142 = vld [vmem:[%s1 + $0x11c] sm:$0xf]
  %v143 = vld [vmem:[%s1 + $0x120] sm:$0xff]
  %v144 = vld [vmem:[%s1 + $0x128] sm:$0xf]
  %v145 = vld [vmem:[%s1 + $0x12c] sm:$0xff]
  %v146 = vld [vmem:[%s1 + $0x134] sm:$0xf]
  %v147 = vld [vmem:[%s1 + $0x138] sm:$0xff]
  %v148 = vld [vmem:[%s1 + $0x140] sm:$0xf]
  %v149 = vld [vmem:[%s1 + $0x144] sm:$0xff]
  %v150 = vld [vmem:[%s1 + $0x14c] sm:$0xf]
  %v151 = vld [vmem:[%s1 + $0x150] sm:$0xff]
  %v152 = vld [vmem:[%s1 + $0x158] sm:$0xf]
  %v153 = vld [vmem:[%s1 + $0x15c] sm:$0xff]
  %v154 = vld [vmem:[%s1 + $0x164] sm:$0xf]
  %v155 = vld [vmem:[%s1 + $0x168] sm:$0xff]
  %v156 = vld [vmem:[%s1 + $0x170] sm:$0xf]
  %v157 = vld [vmem:[%s1 + $0x174] sm:$0xff]
  %v158 = vld [vmem:[%s1 + $0x17c] sm:$0xf]
  %v159 = vld [vmem:[%s1 + $0x180] sm:$0xff]
  %v160 = vld [vmem:[%s1 + $0x188] sm:$0xf]
  %v161 = vld [vmem:[%s1 + $0x18c] sm:$0xff]
  %v162 = vld [vmem:[%s1 + $0x194] sm:$0xf]
  %v163 = vld [vmem:[%s1 + $0x198] sm:$0xff]
  %v164 = vld [vmem:[%s1 + $0x1a0] sm:$0xf]
  %v165 = vld [vmem:[%s1 + $0x1a4] sm:$0xff]
  %v166 = vld [vmem:[%s1 + $0x1ac] sm:$0xf]
  %v167 = vld [vmem:[%s1 + $0x1b0] sm:$0xff]
  %v168 = vld [vmem:[%s1 + $0x1b8] sm:$0xf]
  %v169 = vld [vmem:[%s1 + $0x1bc] sm:$0xff]
  %v170 = vld [vmem:[%s1 + $0x1c4] sm:$0xf]
  %v171 = vld [vmem:[%s1 + $0x1c8] sm:$0xff]
  %v172 = vld [vmem:[%s1 + $0x1d0] sm:$0xf]
  %v173 = vld [vmem:[%s1 + $0x1d4] sm:$0xff]
  %v174 = vld [vmem:[%s1 + $0x1dc] sm:$0xf]
  %v175 = vld [vmem:[%s1 + $0x1e0] sm:$0xff]
  %v176 = vld [vmem:[%s1 + $0x1e8] sm:$0xf]
  %v177 = vld [vmem:[%s1 + $0x1ec] sm:$0xff]
  %v178 = vld [vmem:[%s1 + $0x1f4] sm:$0xf]
  %v179 = vld [vmem:[%s1 + $0x1f8] sm:$0xff]
  %v180 = vld [vmem:[%s1 + $0x200] sm:$0xf]
  %v181 = vld [vmem:[%s1 + $0x204] sm:$0xff]
  %v182 = vld [vmem:[%s1 + $0x20c] sm:$0xf]
  %v183 = vld [vmem:[%s1 + $0x210] sm:$0xff]
  %v184 = vld [vmem:[%s1 + $0x218] sm:$0xf]
  %v185 = vld [vmem:[%s1 + $0x21c] sm:$0xff]
  %v186 = vld [vmem:[%s1 + $0x224] sm:$0xf]
  %v187 = vld [vmem:[%s1 + $0x228] sm:$0xff]
  %v188 = vld [vmem:[%s1 + $0x230] sm:$0xf]
  %v189 = vld [vmem:[%s1 + $0x234] sm:$0xff]
  %v190 = vld [vmem:[%s1 + $0x23c] sm:$0xf]
  %v191 = vld [vmem:[%s1 + $0x240] sm:$0xff]
  %v192 = vld [vmem:[%s1 + $0x248] sm:$0xf]
  %v193 = vld [vmem:[%s1 + $0x24c] sm:$0xff]
  %v194 = vld [vmem:[%s1 + $0x254] sm:$0xf]
  %v195 = vld [vmem:[%s1 + $0x258] sm:$0xff]
  %v196 = vld [vmem:[%s1 + $0x260] sm:$0xf]
  %v197 = vld [vmem:[%s1 + $0x264] sm:$0xff]
  %v198 = vld [vmem:[%s1 + $0x26c] sm:$0xf]
  %v199 = vld [vmem:[%s1 + $0x270] sm:$0xff]
  %v200 = vld [vmem:[%s1 + $0x278] sm:$0xf]
  %v201 = vld [vmem:[%s1 + $0x27c] sm:$0xff]
  %v202 = vld [vmem:[%s1 + $0x284] sm:$0xf]
  %v203 = vld [vmem:[%s1 + $0x288] sm:$0xff]
  %v204 = vld [vmem:[%s1 + $0x290] sm:$0xf]
  %v205 = vld [vmem:[%s1 + $0x294] sm:$0xff]
  %v206 = vld [vmem:[%s1 + $0x29c] sm:$0xf]
  %v207 = vld [vmem:[%s1 + $0x2a0] sm:$0xff]
  %v208 = vld [vmem:[%s1 + $0x2a8] sm:$0xf]
  %v209 = vld [vmem:[%s1 + $0x2ac] sm:$0xff]
  %v210 = vld [vmem:[%s1 + $0x2b4] sm:$0xf]
  %v211 = vld [vmem:[%s1 + $0x2b8] sm:$0xff]
  %v212 = vld [vmem:[%s1 + $0x2c0] sm:$0xf]
  %v213 = vld [vmem:[%s1 + $0x2c4] sm:$0xff]
  %v214 = vld [vmem:[%s1 + $0x2cc] sm:$0xf]
  %v215 = vld [vmem:[%s1 + $0x2d0] sm:$0xff]
  %v216 = vld [vmem:[%s1 + $0x2d8] sm:$0xf]
  %v217 = vld [vmem:[%s1 + $0x2dc] sm:$0xff]
  %v218 = vld [vmem:[%s1 + $0x2e4] sm:$0xf]
  %v219 = vld [vmem:[%s1 + $0x2e8] sm:$0xff]
  %v220 = vld [vmem:[%s1 + $0x2f0] sm:$0xf]
  %v221 = vld [vmem:[%s1 + $0x2f4] sm:$0xff]
  %v222 = vld [vmem:[%s1 + $0x2fc] sm:$0xf]
  %v223 = vld [vmem:[%s1 + $0x300] sm:$0xff]
  %v224 = vld [vmem:[%s1 + $0x308] sm:$0xf]
  %v225 = vld [vmem:[%s1 + $0x30c] sm:$0xff]
  %v226 = vld [vmem:[%s1 + $0x314] sm:$0xf]
  %v227 = vld [vmem:[%s1 + $0x318] sm:$0xff]
  %v228 = vld [vmem:[%s1 + $0x320] sm:$0xf]
  %v229 = vld [vmem:[%s1 + $0x324] sm:$0xff]
  %v230 = vld [vmem:[%s1 + $0x32c] sm:$0xf]
  %v231 = vld [vmem:[%s1 + $0x330] sm:$0xff]
  %v232 = vld [vmem:[%s1 + $0x338] sm:$0xf]
  %v233 = vld [vmem:[%s1 + $0x33c] sm:$0xff]
  %v234 = vld [vmem:[%s1 + $0x344] sm:$0xf]
  %v235 = vld [vmem:[%s1 + $0x348] sm:$0xff]
  %v236 = vld [vmem:[%s1 + $0x350] sm:$0xf]
  %v237 = vld [vmem:[%s1 + $0x354] sm:$0xff]
  %v238 = vld [vmem:[%s1 + $0x35c] sm:$0xf]
  %v239 = vld [vmem:[%s1 + $0x360] sm:$0xff]
  %v240 = vld [vmem:[%s1 + $0x368] sm:$0xf]
  %v241 = vld [vmem:[%s1 + $0x36c] sm:$0xff]
  %v242 = vld [vmem:[%s1 + $0x374] sm:$0xf]
  %v243 = vld [vmem:[%s1 + $0x378] sm:$0xff]
  %v244 = vld [vmem:[%s1 + $0x380] sm:$0xf]
  %v245 = vld [vmem:[%s1 + $0x384] sm:$0xff]
  %v246 = vld [vmem:[%s1 + $0x38c] sm:$0xf]
  %v247 = vld [vmem:[%s1 + $0x390] sm:$0xff]
  %v248 = vld [vmem:[%s1 + $0x398] sm:$0xf]
  %v249 = vld [vmem:[%s1 + $0x39c] sm:$0xff]
  %v250 = vld [vmem:[%s1 + $0x3a4] sm:$0xf]
  %v251 = vld [vmem:[%s1 + $0x3a8] sm:$0xff]
  %v252 = vld [vmem:[%s1 + $0x3b0] sm:$0xf]
  %v253 = vld [vmem:[%s1 + $0x3b4] sm:$0xff]
  %v254 = vld [vmem:[%s1 + $0x3bc] sm:$0xf]
  %v255 = vld [vmem:[%s1 + $0x3c0] sm:$0xff]
  %v256 = vld [vmem:[%s1 + $0x3c8] sm:$0xf]
  %v257 = vld [vmem:[%s1 + $0x3cc] sm:$0xff]
  %v258 = vld [vmem:[%s1 + $0x3d4] sm:$0xf]
  %v259 = vld [vmem:[%s1 + $0x3d8] sm:$0xff]
  %v260 = vld [vmem:[%s1 + $0x3e0] sm:$0xf]
  %v261 = vld [vmem:[%s1 + $0x3e4] sm:$0xff]
  %v262 = vld [vmem:[%s1 + $0x3ec] sm:$0xf]
  %v263 = vld [vmem:[%s1 + $0x3f0] sm:$0xff]
  %v264 = vld [vmem:[%s1 + $0x3f8] sm:$0xf]
  %v265 = vld [vmem:[%s1 + $0x3fc] sm:$0xff]
  %v266 = vld [vmem:[%s1 + $0x404] sm:$0xf]
  %v267 = vld [vmem:[%s1 + $0x408] sm:$0xff]
  %v268 = vld [vmem:[%s1 + $0x410] sm:$0xf]
  %v269 = vld [vmem:[%s1 + $0x414] sm:$0xff]
  %v270 = vld [vmem:[%s1 + $0x41c] sm:$0xf]
  %v271 = vld [vmem:[%s1 + $0x420] sm:$0xff]
  %v272 = vld [vmem:[%s1 + $0x428] sm:$0xf]
  %v273 = vld [vmem:[%s1 + $0x42c] sm:$0xff]
  %v274 = vld [vmem:[%s1 + $0x434] sm:$0xf]
  %v275 = vld [vmem:[%s1 + $0x438] sm:$0xff]
  %v276 = vld [vmem:[%s1 + $0x440] sm:$0xf]
  %v277 = vld [vmem:[%s1 + $0x444] sm:$0xff]
  %v278 = vld [vmem:[%s1 + $0x44c] sm:$0xf]
  %v279 = vld [vmem:[%s1 + $0x450] sm:$0xff]
  %v280 = vld [vmem:[%s1 + $0x458] sm:$0xf]
  %v281 = vld [vmem:[%s1 + $0x45c] sm:$0xff]
  %v282 = vld [vmem:[%s1 + $0x464] sm:$0xf]
  %v283 = vld [vmem:[%s1 + $0x468] sm:$0xff]
  %v284 = vld [vmem:[%s1 + $0x470] sm:$0xf]
  %v285 = vld [vmem:[%s1 + $0x474] sm:$0xff]
  %v286 = vld [vmem:[%s1 + $0x47c] sm:$0xf]
  %v287 = vld [vmem:[%s1 + $0x480] sm:$0xff]
  %v288 = vld [vmem:[%s1 + $0x488] sm:$0xf]
  %v289 = vld [vmem:[%s1 + $0x48c] sm:$0xff]
  %v290 = vld [vmem:[%s1 + $0x494] sm:$0xf]
  %v291 = vld [vmem:[%s1 + $0x498] sm:$0xff]
  %v292 = vld [vmem:[%s1 + $0x4a0] sm:$0xf]
  %v293 = vld [vmem:[%s1 + $0x4a4] sm:$0xff]
  %v294 = vld [vmem:[%s1 + $0x4ac] sm:$0xf]
  %v295 = vld [vmem:[%s1 + $0x4b0] sm:$0xff]
  %v296 = vld [vmem:[%s1 + $0x4b8] sm:$0xf]
  %v297 = vld [vmem:[%s1 + $0x4bc] sm:$0xff]
  %v298 = vld [vmem:[%s1 + $0x4c4] sm:$0xf]
  %v299 = vld [vmem:[%s1 + $0x4c8] sm:$0xff]
  %v300 = vld [vmem:[%s1 + $0x4d0] sm:$0xf]
  %v301 = vld [vmem:[%s1 + $0x4d4] sm:$0xff]
  %v302 = vld [vmem:[%s1 + $0x4dc] sm:$0xf]
  %v303 = vld [vmem:[%s1 + $0x4e0] sm:$0xff]
  %v304 = vld [vmem:[%s1 + $0x4e8] sm:$0xf]
  %v305 = vld [vmem:[%s1 + $0x4ec] sm:$0xff]
  %v306 = vld [vmem:[%s1 + $0x4f4] sm:$0xf]
  %v307 = vld [vmem:[%s1 + $0x4f8] sm:$0xff]
  %v308 = vld [vmem:[%s1 + $0x500] sm:$0xf]
  %v309 = vld [vmem:[%s1 + $0x504] sm:$0xff]
  %v310 = vld [vmem:[%s1 + $0x50c] sm:$0xf]
  %v311 = vld [vmem:[%s1 + $0x510] sm:$0xff]
  %v312 = vld [vmem:[%s1 + $0x518] sm:$0xf]
  %v313 = vld [vmem:[%s1 + $0x51c] sm:$0xff]
  %v314 = vld [vmem:[%s1 + $0x524] sm:$0xf]
  %v315 = vld [vmem:[%s1 + $0x528] sm:$0xff]
  %v316 = vld [vmem:[%s1 + $0x530] sm:$0xf]
  %v317 = vld [vmem:[%s1 + $0x534] sm:$0xff]
  %v318 = vld [vmem:[%s1 + $0x53c] sm:$0xf]
  %v319 = vld [vmem:[%s1 + $0x540] sm:$0xff]
  %v320 = vld [vmem:[%s1 + $0x548] sm:$0xf]
  %v321 = vld [vmem:[%s1 + $0x54c] sm:$0xff]
  %v322 = vld [vmem:[%s1 + $0x554] sm:$0xf]
  %v323 = vld [vmem:[%s1 + $0x558] sm:$0xff]
  %v324 = vld [vmem:[%s1 + $0x560] sm:$0xf]
  %v325 = vld [vmem:[%s1 + $0x564] sm:$0xff]
  %v326 = vld [vmem:[%s1 + $0x56c] sm:$0xf]
  %v327 = vld [vmem:[%s1 + $0x570] sm:$0xff]
  %v328 = vld [vmem:[%s1 + $0x578] sm:$0xf]
  %v329 = vld [vmem:[%s1 + $0x57c] sm:$0xff]
  %v330 = vld [vmem:[%s1 + $0x584] sm:$0xf]
  %v331 = vld [vmem:[%s1 + $0x588] sm:$0xff]
  %v332 = vld [vmem:[%s1 + $0x590] sm:$0xf]
  %v333 = vld [vmem:[%s1 + $0x594] sm:$0xff]
  %v334 = vld [vmem:[%s1 + $0x59c] sm:$0xf]
  %v335 = vld [vmem:[%s1 + $0x5a0] sm:$0xff]
  %v336 = vld [vmem:[%s1 + $0x5a8] sm:$0xf]
  %v337 = vld [vmem:[%s1 + $0x5ac] sm:$0xff]
  %v338 = vld [vmem:[%s1 + $0x5b4] sm:$0xf]
  %v339 = vld [vmem:[%s1 + $0x5b8] sm:$0xff]
  %v340 = vld [vmem:[%s1 + $0x5c0] sm:$0xf]
  %v341 = vld [vmem:[%s1 + $0x5c4] sm:$0xff]
  %v342 = vld [vmem:[%s1 + $0x5cc] sm:$0xf]
  %v343 = vld [vmem:[%s1 + $0x5d0] sm:$0xff]
  %v344 = vld [vmem:[%s1 + $0x5d8] sm:$0xf]
  %v345 = vld [vmem:[%s1 + $0x5dc] sm:$0xff]
  %v346 = vld [vmem:[%s1 + $0x5e4] sm:$0xf]
  %v347 = vld [vmem:[%s1 + $0x5e8] sm:$0xff]
  %v348 = vld [vmem:[%s1 + $0x5f0] sm:$0xf]
  %v349 = vld [vmem:[%s1 + $0x5f4] sm:$0xff]
  %v350 = vld [vmem:[%s1 + $0x5fc] sm:$0xf]
  %v351 = vld [vmem:[%s1 + $0x600] sm:$0xff]
  %v352 = vld [vmem:[%s1 + $0x608] sm:$0xf]
  %v353 = vld [vmem:[%s1 + $0x60c] sm:$0xff]
  %v354 = vld [vmem:[%s1 + $0x614] sm:$0xf]
  %v355 = vld [vmem:[%s1 + $0x618] sm:$0xff]
  %v356 = vld [vmem:[%s1 + $0x620] sm:$0xf]
  %v357 = vld [vmem:[%s1 + $0x624] sm:$0xff]
  %v358 = vld [vmem:[%s1 + $0x62c] sm:$0xf]
  %v359 = vld [vmem:[%s1 + $0x630] sm:$0xff]
  %v360 = vld [vmem:[%s1 + $0x638] sm:$0xf]
  %v361 = vld [vmem:[%s1 + $0x63c] sm:$0xff]
  %v362 = vld [vmem:[%s1 + $0x644] sm:$0xf]
  %v363 = vld [vmem:[%s1 + $0x648] sm:$0xff]
  %v364 = vld [vmem:[%s1 + $0x650] sm:$0xf]
  %v365 = vld [vmem:[%s1 + $0x654] sm:$0xff]
  %v366 = vld [vmem:[%s1 + $0x65c] sm:$0xf]
  %v367 = vld [vmem:[%s1 + $0x660] sm:$0xff]
  %v368 = vld [vmem:[%s1 + $0x668] sm:$0xf]
  %v369 = vld [vmem:[%s1 + $0x66c] sm:$0xff]
  %v370 = vld [vmem:[%s1 + $0x674] sm:$0xf]
  %v371 = vld [vmem:[%s1 + $0x678] sm:$0xff]
  %v372 = vld [vmem:[%s1 + $0x680] sm:$0xf]
  %v373 = vld [vmem:[%s1 + $0x684] sm:$0xff]
  %v374 = vld [vmem:[%s1 + $0x68c] sm:$0xf]
  %v375 = vld [vmem:[%s1 + $0x690] sm:$0xff]
  %v376 = vld [vmem:[%s1 + $0x698] sm:$0xf]
  %v377 = vld [vmem:[%s1 + $0x69c] sm:$0xff]
  %v378 = vld [vmem:[%s1 + $0x6a4] sm:$0xf]
  %v379 = vld [vmem:[%s1 + $0x6a8] sm:$0xff]
  %v380 = vld [vmem:[%s1 + $0x6b0] sm:$0xf]
  %v381 = vld [vmem:[%s1 + $0x6b4] sm:$0xff]
  %v382 = vld [vmem:[%s1 + $0x6bc] sm:$0xf]
  %v383 = vld [vmem:[%s2] sm:$0x7]
  %v385 = vlaneseq
  %v386 = vshrl.u32 %v385, 7
  %v387 = vsub.s32 0, %v386
  %v388 = vrot.slane %v383, %v387
  %v389 = vlaneseq
  %v390 = vshrl.u32 %v389, 7
  %v391 = vsub.s32 1, %v390
  %v392 = vrot.slane %v383, %v391
  %v393 = vlaneseq
  %v394 = vshrl.u32 %v393, 7
  %v395 = vsub.s32 2, %v394
  %v396 = vrot.slane %v383, %v395
  %v480 = vunpack.c.l.b16 %v15
  %v481 = vunpack.c.h.b16 %v15
  %v482 = vunpack.c.l.b16 %v16
  %v483 = vunpack.c.h.b16 %v16
  %v484 = vunpack.c.l.b16 %v17
  %v485 = vunpack.c.h.b16 %v17
  %v486 = vunpack.c.l.b16 %v18
  %v487 = vunpack.c.h.b16 %v18
  %v488 = vunpack.c.l.b16 %v19
  %v489 = vunpack.c.l.b16 %v20
  %v490 = vunpack.c.h.b16 %v20
  %v491 = vunpack.c.l.b16 %v21
  %v492 = vunpack.c.h.b16 %v21
  %v493 = vunpack.c.l.b16 %v22
  %v494 = vunpack.c.h.b16 %v22
  %v495 = vunpack.c.l.b16 %v23
  %v496 = vunpack.c.h.b16 %v23
  %v497 = vunpack.c.l.b16 %v24
  %v498 = vunpack.c.l.b16 %v25
  %v499 = vunpack.c.h.b16 %v25
  %v500 = vunpack.c.l.b16 %v26
  %v501 = vunpack.c.h.b16 %v26
  %v502 = vunpack.c.l.b16 %v27
  %v503 = vunpack.c.h.b16 %v27
  %v504 = vunpack.c.l.b16 %v28
  %v505 = vunpack.c.h.b16 %v28
  %v506 = vunpack.c.l.b16 %v29
  %v507 = vunpack.c.l.b16 %v30
  %v508 = vunpack.c.h.b16 %v30
  %v509 = vunpack.c.l.b16 %v31
  %v510 = vunpack.c.h.b16 %v31
  %v511 = vunpack.c.l.b16 %v32
  %v512 = vunpack.c.h.b16 %v32
  %v513 = vunpack.c.l.b16 %v33
  %v514 = vunpack.c.h.b16 %v33
  %v515 = vunpack.c.l.b16 %v34
  %v516 = vunpack.c.l.b16 %v35
  %v517 = vunpack.c.h.b16 %v35
  %v518 = vunpack.c.l.b16 %v36
  %v519 = vunpack.c.h.b16 %v36
  %v520 = vunpack.c.l.b16 %v37
  %v521 = vunpack.c.h.b16 %v37
  %v522 = vunpack.c.l.b16 %v38
  %v523 = vunpack.c.h.b16 %v38
  %v524 = vunpack.c.l.b16 %v39
  %v525 = vunpack.c.l.b16 %v40
  %v526 = vunpack.c.h.b16 %v40
  %v527 = vunpack.c.l.b16 %v41
  %v528 = vunpack.c.h.b16 %v41
  %v529 = vunpack.c.l.b16 %v42
  %v530 = vunpack.c.h.b16 %v42
  %v531 = vunpack.c.l.b16 %v43
  %v532 = vunpack.c.h.b16 %v43
  %v533 = vunpack.c.l.b16 %v44
  %v534 = vunpack.c.l.b16 %v45
  %v535 = vunpack.c.h.b16 %v45
  %v536 = vunpack.c.l.b16 %v46
  %v537 = vunpack.c.h.b16 %v46
  %v538 = vunpack.c.l.b16 %v47
  %v539 = vunpack.c.h.b16 %v47
  %v540 = vunpack.c.l.b16 %v48
  %v541 = vunpack.c.h.b16 %v48
  %v542 = vunpack.c.l.b16 %v49
  %v543 = vunpack.c.l.b16 %v50
  %v544 = vunpack.c.h.b16 %v50
  %v545 = vunpack.c.l.b16 %v51
  %v546 = vunpack.c.h.b16 %v51
  %v547 = vunpack.c.l.b16 %v52
  %v548 = vunpack.c.h.b16 %v52
  %v549 = vunpack.c.l.b16 %v53
  %v550 = vunpack.c.h.b16 %v53
  %v551 = vunpack.c.l.b16 %v54
  %v552 = vunpack.c.l.b16 %v55
  %v553 = vunpack.c.h.b16 %v55
  %v554 = vunpack.c.l.b16 %v56
  %v555 = vunpack.c.h.b16 %v56
  %v556 = vunpack.c.l.b16 %v57
  %v557 = vunpack.c.h.b16 %v57
  %v558 = vunpack.c.l.b16 %v58
  %v559 = vunpack.c.h.b16 %v58
  %v560 = vunpack.c.l.b16 %v59
  %v561 = vunpack.c.l.b16 %v60
  %v562 = vunpack.c.h.b16 %v60
  %v563 = vunpack.c.l.b16 %v61
  %v564 = vunpack.c.h.b16 %v61
  %v565 = vunpack.c.l.b16 %v62
  %v566 = vunpack.c.h.b16 %v62
  %v567 = vunpack.c.l.b16 %v63
  %v568 = vunpack.c.h.b16 %v63
  %v569 = vunpack.c.l.b16 %v64
  %v570 = vunpack.c.l.b16 %v65
  %v571 = vunpack.c.h.b16 %v65
  %v572 = vunpack.c.l.b16 %v66
  %v573 = vunpack.c.h.b16 %v66
  %v574 = vunpack.c.l.b16 %v67
  %v575 = vunpack.c.h.b16 %v67
  %v576 = vunpack.c.l.b16 %v68
  %v577 = vunpack.c.h.b16 %v68
  %v578 = vunpack.c.l.b16 %v69
  %v579 = vunpack.c.l.b16 %v70
  %v580 = vunpack.c.h.b16 %v70
  %v581 = vunpack.c.l.b16 %v71
  %v582 = vunpack.c.h.b16 %v71
  %v583 = vunpack.c.l.b16 %v72
  %v584 = vunpack.c.h.b16 %v72
  %v585 = vunpack.c.l.b16 %v73
  %v586 = vunpack.c.h.b16 %v73
  %v587 = vunpack.c.l.b16 %v74
  %v588 = vunpack.c.l.b16 %v75
  %v589 = vunpack.c.h.b16 %v75
  %v590 = vunpack.c.l.b16 %v76
  %v591 = vunpack.c.h.b16 %v76
  %v592 = vunpack.c.l.b16 %v77
  %v593 = vunpack.c.h.b16 %v77
  %v594 = vunpack.c.l.b16 %v78
  %v595 = vunpack.c.h.b16 %v78
  %v596 = vunpack.c.l.b16 %v79
  %v597 = vunpack.c.l.b16 %v80
  %v598 = vunpack.c.h.b16 %v80
  %v599 = vunpack.c.l.b16 %v81
  %v600 = vunpack.c.h.b16 %v81
  %v601 = vunpack.c.l.b16 %v82
  %v602 = vunpack.c.h.b16 %v82
  %v603 = vunpack.c.l.b16 %v83
  %v604 = vunpack.c.h.b16 %v83
  %v605 = vunpack.c.l.b16 %v84
  %v606 = vunpack.c.l.b16 %v85
  %v607 = vunpack.c.h.b16 %v85
  %v608 = vunpack.c.l.b16 %v86
  %v609 = vunpack.c.h.b16 %v86
  %v610 = vunpack.c.l.b16 %v87
  %v611 = vunpack.c.h.b16 %v87
  %v612 = vunpack.c.l.b16 %v88
  %v613 = vunpack.c.h.b16 %v88
  %v614 = vunpack.c.l.b16 %v89
  %v615 = vunpack.c.l.b16 %v90
  %v616 = vunpack.c.h.b16 %v90
  %v617 = vunpack.c.l.b16 %v91
  %v618 = vunpack.c.h.b16 %v91
  %v619 = vunpack.c.l.b16 %v92
  %v620 = vunpack.c.h.b16 %v92
  %v621 = vunpack.c.l.b16 %v93
  %v622 = vunpack.c.h.b16 %v93
  %v623 = vunpack.c.l.b16 %v94
  %v624 = vpack.c.b16 %v489, %v480
  %v625 = vpack.c.b16 %v490, %v481
  %v626 = vpack.c.b16 %v491, %v482
  %v627 = vpack.c.b16 %v492, %v483
  %v628 = vpack.c.b16 %v493, %v484
  %v629 = vpack.c.b16 %v494, %v485
  %v630 = vpack.c.b16 %v495, %v486
  %v631 = vpack.c.b16 %v496, %v487
  %v632 = vpack.c.b16 %v497, %v488
  %v633 = vpack.c.b16 %v507, %v498
  %v634 = vpack.c.b16 %v508, %v499
  %v635 = vpack.c.b16 %v509, %v500
  %v636 = vpack.c.b16 %v510, %v501
  %v637 = vpack.c.b16 %v511, %v502
  %v638 = vpack.c.b16 %v512, %v503
  %v639 = vpack.c.b16 %v513, %v504
  %v640 = vpack.c.b16 %v514, %v505
  %v641 = vpack.c.b16 %v515, %v506
  %v642 = vpack.c.b16 %v525, %v516
  %v643 = vpack.c.b16 %v526, %v517
  %v644 = vpack.c.b16 %v527, %v518
  %v645 = vpack.c.b16 %v528, %v519
  %v646 = vpack.c.b16 %v529, %v520
  %v647 = vpack.c.b16 %v530, %v521
  %v648 = vpack.c.b16 %v531, %v522
  %v649 = vpack.c.b16 %v532, %v523
  %v650 = vpack.c.b16 %v533, %v524
  %v651 = vpack.c.b16 %v543, %v534
  %v652 = vpack.c.b16 %v544, %v535
  %v653 = vpack.c.b16 %v545, %v536
  %v654 = vpack.c.b16 %v546, %v537
  %v655 = vpack.c.b16 %v547, %v538
  %v656 = vpack.c.b16 %v548, %v539
  %v657 = vpack.c.b16 %v549, %v540
  %v658 = vpack.c.b16 %v550, %v541
  %v659 = vpack.c.b16 %v551, %v542
  %v660 = vpack.c.b16 %v561, %v552
  %v661 = vpack.c.b16 %v562, %v553
  %v662 = vpack.c.b16 %v563, %v554
  %v663 = vpack.c.b16 %v564, %v555
  %v664 = vpack.c.b16 %v565, %v556
  %v665 = vpack.c.b16 %v566, %v557
  %v666 = vpack.c.b16 %v567, %v558
  %v667 = vpack.c.b16 %v568, %v559
  %v668 = vpack.c.b16 %v569, %v560
  %v669 = vpack.c.b16 %v579, %v570
  %v670 = vpack.c.b16 %v580, %v571
  %v671 = vpack.c.b16 %v581, %v572
  %v672 = vpack.c.b16 %v582, %v573
  %v673 = vpack.c.b16 %v583, %v574
  %v674 = vpack.c.b16 %v584, %v575
  %v675 = vpack.c.b16 %v585, %v576
  %v676 = vpack.c.b16 %v586, %v577
  %v677 = vpack.c.b16 %v587, %v578
  %v678 = vpack.c.b16 %v597, %v588
  %v679 = vpack.c.b16 %v598, %v589
  %v680 = vpack.c.b16 %v599, %v590
  %v681 = vpack.c.b16 %v600, %v591
  %v682 = vpack.c.b16 %v601, %v592
  %v683 = vpack.c.b16 %v602, %v593
  %v684 = vpack.c.b16 %v603, %v594
  %v685 = vpack.c.b16 %v604, %v595
  %v686 = vpack.c.b16 %v605, %v596
  %v687 = vpack.c.b16 %v615, %v606
  %v688 = vpack.c.b16 %v616, %v607
  %v689 = vpack.c.b16 %v617, %v608
  %v690 = vpack.c.b16 %v618, %v609
  %v691 = vpack.c.b16 %v619, %v610
  %v692 = vpack.c.b16 %v620, %v611
  %v693 = vpack.c.b16 %v621, %v612
  %v694 = vpack.c.b16 %v622, %v613
  %v695 = vpack.c.b16 %v623, %v614
  %v1056 = vunpack.c.l.b16 %v95
  %v1057 = vunpack.c.h.b16 %v95
  %v1058 = vunpack.c.l.b16 %v96
  %v1059 = vunpack.c.l.b16 %v97
  %v1060 = vunpack.c.h.b16 %v97
  %v1061 = vunpack.c.l.b16 %v98
  %v1062 = vunpack.c.l.b16 %v99
  %v1063 = vunpack.c.h.b16 %v99
  %v1064 = vunpack.c.l.b16 %v100
  %v1065 = vunpack.c.l.b16 %v101
  %v1066 = vunpack.c.h.b16 %v101
  %v1067 = vunpack.c.l.b16 %v102
  %v1068 = vunpack.c.l.b16 %v103
  %v1069 = vunpack.c.h.b16 %v103
  %v1070 = vunpack.c.l.b16 %v104
  %v1071 = vunpack.c.l.b16 %v105
  %v1072 = vunpack.c.h.b16 %v105
  %v1073 = vunpack.c.l.b16 %v106
  %v1074 = vunpack.c.l.b16 %v107
  %v1075 = vunpack.c.h.b16 %v107
  %v1076 = vunpack.c.l.b16 %v108
  %v1077 = vunpack.c.l.b16 %v109
  %v1078 = vunpack.c.h.b16 %v109
  %v1079 = vunpack.c.l.b16 %v110
  %v1080 = vunpack.c.l.b16 %v111
  %v1081 = vunpack.c.h.b16 %v111
  %v1082 = vunpack.c.l.b16 %v112
  %v1083 = vunpack.c.l.b16 %v113
  %v1084 = vunpack.c.h.b16 %v113
  %v1085 = vunpack.c.l.b16 %v114
  %v1086 = vunpack.c.l.b16 %v115
  %v1087 = vunpack.c.h.b16 %v115
  %v1088 = vunpack.c.l.b16 %v116
  %v1089 = vunpack.c.l.b16 %v117
  %v1090 = vunpack.c.h.b16 %v117
  %v1091 = vunpack.c.l.b16 %v118
  %v1092 = vunpack.c.l.b16 %v119
  %v1093 = vunpack.c.h.b16 %v119
  %v1094 = vunpack.c.l.b16 %v120
  %v1095 = vunpack.c.l.b16 %v121
  %v1096 = vunpack.c.h.b16 %v121
  %v1097 = vunpack.c.l.b16 %v122
  %v1098 = vunpack.c.l.b16 %v123
  %v1099 = vunpack.c.h.b16 %v123
  %v1100 = vunpack.c.l.b16 %v124
  %v1101 = vunpack.c.l.b16 %v125
  %v1102 = vunpack.c.h.b16 %v125
  %v1103 = vunpack.c.l.b16 %v126
  %v1104 = vunpack.c.l.b16 %v127
  %v1105 = vunpack.c.h.b16 %v127
  %v1106 = vunpack.c.l.b16 %v128
  %v1107 = vunpack.c.l.b16 %v129
  %v1108 = vunpack.c.h.b16 %v129
  %v1109 = vunpack.c.l.b16 %v130
  %v1110 = vunpack.c.l.b16 %v131
  %v1111 = vunpack.c.h.b16 %v131
  %v1112 = vunpack.c.l.b16 %v132
  %v1113 = vunpack.c.l.b16 %v133
  %v1114 = vunpack.c.h.b16 %v133
  %v1115 = vunpack.c.l.b16 %v134
  %v1116 = vunpack.c.l.b16 %v135
  %v1117 = vunpack.c.h.b16 %v135
  %v1118 = vunpack.c.l.b16 %v136
  %v1119 = vunpack.c.l.b16 %v137
  %v1120 = vunpack.c.h.b16 %v137
  %v1121 = vunpack.c.l.b16 %v138
  %v1122 = vunpack.c.l.b16 %v139
  %v1123 = vunpack.c.h.b16 %v139
  %v1124 = vunpack.c.l.b16 %v140
  %v1125 = vunpack.c.l.b16 %v141
  %v1126 = vunpack.c.h.b16 %v141
  %v1127 = vunpack.c.l.b16 %v142
  %v1128 = vunpack.c.l.b16 %v143
  %v1129 = vunpack.c.h.b16 %v143
  %v1130 = vunpack.c.l.b16 %v144
  %v1131 = vunpack.c.l.b16 %v145
  %v1132 = vunpack.c.h.b16 %v145
  %v1133 = vunpack.c.l.b16 %v146
  %v1134 = vunpack.c.l.b16 %v147
  %v1135 = vunpack.c.h.b16 %v147
  %v1136 = vunpack.c.l.b16 %v148
  %v1137 = vunpack.c.l.b16 %v149
  %v1138 = vunpack.c.h.b16 %v149
  %v1139 = vunpack.c.l.b16 %v150
  %v1140 = vunpack.c.l.b16 %v151
  %v1141 = vunpack.c.h.b16 %v151
  %v1142 = vunpack.c.l.b16 %v152
  %v1143 = vunpack.c.l.b16 %v153
  %v1144 = vunpack.c.h.b16 %v153
  %v1145 = vunpack.c.l.b16 %v154
  %v1146 = vunpack.c.l.b16 %v155
  %v1147 = vunpack.c.h.b16 %v155
  %v1148 = vunpack.c.l.b16 %v156
  %v1149 = vunpack.c.l.b16 %v157
  %v1150 = vunpack.c.h.b16 %v157
  %v1151 = vunpack.c.l.b16 %v158
  %v1152 = vunpack.c.l.b16 %v159
  %v1153 = vunpack.c.h.b16 %v159
  %v1154 = vunpack.c.l.b16 %v160
  %v1155 = vunpack.c.l.b16 %v161
  %v1156 = vunpack.c.h.b16 %v161
  %v1157 = vunpack.c.l.b16 %v162
  %v1158 = vunpack.c.l.b16 %v163
  %v1159 = vunpack.c.h.b16 %v163
  %v1160 = vunpack.c.l.b16 %v164
  %v1161 = vunpack.c.l.b16 %v165
  %v1162 = vunpack.c.h.b16 %v165
  %v1163 = vunpack.c.l.b16 %v166
  %v1164 = vunpack.c.l.b16 %v167
  %v1165 = vunpack.c.h.b16 %v167
  %v1166 = vunpack.c.l.b16 %v168
  %v1167 = vunpack.c.l.b16 %v169
  %v1168 = vunpack.c.h.b16 %v169
  %v1169 = vunpack.c.l.b16 %v170
  %v1170 = vunpack.c.l.b16 %v171
  %v1171 = vunpack.c.h.b16 %v171
  %v1172 = vunpack.c.l.b16 %v172
  %v1173 = vunpack.c.l.b16 %v173
  %v1174 = vunpack.c.h.b16 %v173
  %v1175 = vunpack.c.l.b16 %v174
  %v1176 = vunpack.c.l.b16 %v175
  %v1177 = vunpack.c.h.b16 %v175
  %v1178 = vunpack.c.l.b16 %v176
  %v1179 = vunpack.c.l.b16 %v177
  %v1180 = vunpack.c.h.b16 %v177
  %v1181 = vunpack.c.l.b16 %v178
  %v1182 = vunpack.c.l.b16 %v179
  %v1183 = vunpack.c.h.b16 %v179
  %v1184 = vunpack.c.l.b16 %v180
  %v1185 = vunpack.c.l.b16 %v181
  %v1186 = vunpack.c.h.b16 %v181
  %v1187 = vunpack.c.l.b16 %v182
  %v1188 = vunpack.c.l.b16 %v183
  %v1189 = vunpack.c.h.b16 %v183
  %v1190 = vunpack.c.l.b16 %v184
  %v1191 = vunpack.c.l.b16 %v185
  %v1192 = vunpack.c.h.b16 %v185
  %v1193 = vunpack.c.l.b16 %v186
  %v1194 = vunpack.c.l.b16 %v187
  %v1195 = vunpack.c.h.b16 %v187
  %v1196 = vunpack.c.l.b16 %v188
  %v1197 = vunpack.c.l.b16 %v189
  %v1198 = vunpack.c.h.b16 %v189
  %v1199 = vunpack.c.l.b16 %v190
  %v1200 = vunpack.c.l.b16 %v191
  %v1201 = vunpack.c.h.b16 %v191
  %v1202 = vunpack.c.l.b16 %v192
  %v1203 = vunpack.c.l.b16 %v193
  %v1204 = vunpack.c.h.b16 %v193
  %v1205 = vunpack.c.l.b16 %v194
  %v1206 = vunpack.c.l.b16 %v195
  %v1207 = vunpack.c.h.b16 %v195
  %v1208 = vunpack.c.l.b16 %v196
  %v1209 = vunpack.c.l.b16 %v197
  %v1210 = vunpack.c.h.b16 %v197
  %v1211 = vunpack.c.l.b16 %v198
  %v1212 = vunpack.c.l.b16 %v199
  %v1213 = vunpack.c.h.b16 %v199
  %v1214 = vunpack.c.l.b16 %v200
  %v1215 = vunpack.c.l.b16 %v201
  %v1216 = vunpack.c.h.b16 %v201
  %v1217 = vunpack.c.l.b16 %v202
  %v1218 = vunpack.c.l.b16 %v203
  %v1219 = vunpack.c.h.b16 %v203
  %v1220 = vunpack.c.l.b16 %v204
  %v1221 = vunpack.c.l.b16 %v205
  %v1222 = vunpack.c.h.b16 %v205
  %v1223 = vunpack.c.l.b16 %v206
  %v1224 = vunpack.c.l.b16 %v207
  %v1225 = vunpack.c.h.b16 %v207
  %v1226 = vunpack.c.l.b16 %v208
  %v1227 = vunpack.c.l.b16 %v209
  %v1228 = vunpack.c.h.b16 %v209
  %v1229 = vunpack.c.l.b16 %v210
  %v1230 = vunpack.c.l.b16 %v211
  %v1231 = vunpack.c.h.b16 %v211
  %v1232 = vunpack.c.l.b16 %v212
  %v1233 = vunpack.c.l.b16 %v213
  %v1234 = vunpack.c.h.b16 %v213
  %v1235 = vunpack.c.l.b16 %v214
  %v1236 = vunpack.c.l.b16 %v215
  %v1237 = vunpack.c.h.b16 %v215
  %v1238 = vunpack.c.l.b16 %v216
  %v1239 = vunpack.c.l.b16 %v217
  %v1240 = vunpack.c.h.b16 %v217
  %v1241 = vunpack.c.l.b16 %v218
  %v1242 = vunpack.c.l.b16 %v219
  %v1243 = vunpack.c.h.b16 %v219
  %v1244 = vunpack.c.l.b16 %v220
  %v1245 = vunpack.c.l.b16 %v221
  %v1246 = vunpack.c.h.b16 %v221
  %v1247 = vunpack.c.l.b16 %v222
  %v1248 = vunpack.c.l.b16 %v223
  %v1249 = vunpack.c.h.b16 %v223
  %v1250 = vunpack.c.l.b16 %v224
  %v1251 = vunpack.c.l.b16 %v225
  %v1252 = vunpack.c.h.b16 %v225
  %v1253 = vunpack.c.l.b16 %v226
  %v1254 = vunpack.c.l.b16 %v227
  %v1255 = vunpack.c.h.b16 %v227
  %v1256 = vunpack.c.l.b16 %v228
  %v1257 = vunpack.c.l.b16 %v229
  %v1258 = vunpack.c.h.b16 %v229
  %v1259 = vunpack.c.l.b16 %v230
  %v1260 = vunpack.c.l.b16 %v231
  %v1261 = vunpack.c.h.b16 %v231
  %v1262 = vunpack.c.l.b16 %v232
  %v1263 = vunpack.c.l.b16 %v233
  %v1264 = vunpack.c.h.b16 %v233
  %v1265 = vunpack.c.l.b16 %v234
  %v1266 = vunpack.c.l.b16 %v235
  %v1267 = vunpack.c.h.b16 %v235
  %v1268 = vunpack.c.l.b16 %v236
  %v1269 = vunpack.c.l.b16 %v237
  %v1270 = vunpack.c.h.b16 %v237
  %v1271 = vunpack.c.l.b16 %v238
  %v1272 = vunpack.c.l.b16 %v239
  %v1273 = vunpack.c.h.b16 %v239
  %v1274 = vunpack.c.l.b16 %v240
  %v1275 = vunpack.c.l.b16 %v241
  %v1276 = vunpack.c.h.b16 %v241
  %v1277 = vunpack.c.l.b16 %v242
  %v1278 = vunpack.c.l.b16 %v243
  %v1279 = vunpack.c.h.b16 %v243
  %v1280 = vunpack.c.l.b16 %v244
  %v1281 = vunpack.c.l.b16 %v245
  %v1282 = vunpack.c.h.b16 %v245
  %v1283 = vunpack.c.l.b16 %v246
  %v1284 = vunpack.c.l.b16 %v247
  %v1285 = vunpack.c.h.b16 %v247
  %v1286 = vunpack.c.l.b16 %v248
  %v1287 = vunpack.c.l.b16 %v249
  %v1288 = vunpack.c.h.b16 %v249
  %v1289 = vunpack.c.l.b16 %v250
  %v1290 = vunpack.c.l.b16 %v251
  %v1291 = vunpack.c.h.b16 %v251
  %v1292 = vunpack.c.l.b16 %v252
  %v1293 = vunpack.c.l.b16 %v253
  %v1294 = vunpack.c.h.b16 %v253
  %v1295 = vunpack.c.l.b16 %v254
  %v1296 = vunpack.c.l.b16 %v255
  %v1297 = vunpack.c.h.b16 %v255
  %v1298 = vunpack.c.l.b16 %v256
  %v1299 = vunpack.c.l.b16 %v257
  %v1300 = vunpack.c.h.b16 %v257
  %v1301 = vunpack.c.l.b16 %v258
  %v1302 = vunpack.c.l.b16 %v259
  %v1303 = vunpack.c.h.b16 %v259
  %v1304 = vunpack.c.l.b16 %v260
  %v1305 = vunpack.c.l.b16 %v261
  %v1306 = vunpack.c.h.b16 %v261
  %v1307 = vunpack.c.l.b16 %v262
  %v1308 = vunpack.c.l.b16 %v263
  %v1309 = vunpack.c.h.b16 %v263
  %v1310 = vunpack.c.l.b16 %v264
  %v1311 = vunpack.c.l.b16 %v265
  %v1312 = vunpack.c.h.b16 %v265
  %v1313 = vunpack.c.l.b16 %v266
  %v1314 = vunpack.c.l.b16 %v267
  %v1315 = vunpack.c.h.b16 %v267
  %v1316 = vunpack.c.l.b16 %v268
  %v1317 = vunpack.c.l.b16 %v269
  %v1318 = vunpack.c.h.b16 %v269
  %v1319 = vunpack.c.l.b16 %v270
  %v1320 = vunpack.c.l.b16 %v271
  %v1321 = vunpack.c.h.b16 %v271
  %v1322 = vunpack.c.l.b16 %v272
  %v1323 = vunpack.c.l.b16 %v273
  %v1324 = vunpack.c.h.b16 %v273
  %v1325 = vunpack.c.l.b16 %v274
  %v1326 = vunpack.c.l.b16 %v275
  %v1327 = vunpack.c.h.b16 %v275
  %v1328 = vunpack.c.l.b16 %v276
  %v1329 = vunpack.c.l.b16 %v277
  %v1330 = vunpack.c.h.b16 %v277
  %v1331 = vunpack.c.l.b16 %v278
  %v1332 = vunpack.c.l.b16 %v279
  %v1333 = vunpack.c.h.b16 %v279
  %v1334 = vunpack.c.l.b16 %v280
  %v1335 = vunpack.c.l.b16 %v281
  %v1336 = vunpack.c.h.b16 %v281
  %v1337 = vunpack.c.l.b16 %v282
  %v1338 = vunpack.c.l.b16 %v283
  %v1339 = vunpack.c.h.b16 %v283
  %v1340 = vunpack.c.l.b16 %v284
  %v1341 = vunpack.c.l.b16 %v285
  %v1342 = vunpack.c.h.b16 %v285
  %v1343 = vunpack.c.l.b16 %v286
  %v1344 = vunpack.c.l.b16 %v287
  %v1345 = vunpack.c.h.b16 %v287
  %v1346 = vunpack.c.l.b16 %v288
  %v1347 = vunpack.c.l.b16 %v289
  %v1348 = vunpack.c.h.b16 %v289
  %v1349 = vunpack.c.l.b16 %v290
  %v1350 = vunpack.c.l.b16 %v291
  %v1351 = vunpack.c.h.b16 %v291
  %v1352 = vunpack.c.l.b16 %v292
  %v1353 = vunpack.c.l.b16 %v293
  %v1354 = vunpack.c.h.b16 %v293
  %v1355 = vunpack.c.l.b16 %v294
  %v1356 = vunpack.c.l.b16 %v295
  %v1357 = vunpack.c.h.b16 %v295
  %v1358 = vunpack.c.l.b16 %v296
  %v1359 = vunpack.c.l.b16 %v297
  %v1360 = vunpack.c.h.b16 %v297
  %v1361 = vunpack.c.l.b16 %v298
  %v1362 = vunpack.c.l.b16 %v299
  %v1363 = vunpack.c.h.b16 %v299
  %v1364 = vunpack.c.l.b16 %v300
  %v1365 = vunpack.c.l.b16 %v301
  %v1366 = vunpack.c.h.b16 %v301
  %v1367 = vunpack.c.l.b16 %v302
  %v1368 = vunpack.c.l.b16 %v303
  %v1369 = vunpack.c.h.b16 %v303
  %v1370 = vunpack.c.l.b16 %v304
  %v1371 = vunpack.c.l.b16 %v305
  %v1372 = vunpack.c.h.b16 %v305
  %v1373 = vunpack.c.l.b16 %v306
  %v1374 = vunpack.c.l.b16 %v307
  %v1375 = vunpack.c.h.b16 %v307
  %v1376 = vunpack.c.l.b16 %v308
  %v1377 = vunpack.c.l.b16 %v309
  %v1378 = vunpack.c.h.b16 %v309
  %v1379 = vunpack.c.l.b16 %v310
  %v1380 = vunpack.c.l.b16 %v311
  %v1381 = vunpack.c.h.b16 %v311
  %v1382 = vunpack.c.l.b16 %v312
  %v1383 = vunpack.c.l.b16 %v313
  %v1384 = vunpack.c.h.b16 %v313
  %v1385 = vunpack.c.l.b16 %v314
  %v1386 = vunpack.c.l.b16 %v315
  %v1387 = vunpack.c.h.b16 %v315
  %v1388 = vunpack.c.l.b16 %v316
  %v1389 = vunpack.c.l.b16 %v317
  %v1390 = vunpack.c.h.b16 %v317
  %v1391 = vunpack.c.l.b16 %v318
  %v1392 = vunpack.c.l.b16 %v319
  %v1393 = vunpack.c.h.b16 %v319
  %v1394 = vunpack.c.l.b16 %v320
  %v1395 = vunpack.c.l.b16 %v321
  %v1396 = vunpack.c.h.b16 %v321
  %v1397 = vunpack.c.l.b16 %v322
  %v1398 = vunpack.c.l.b16 %v323
  %v1399 = vunpack.c.h.b16 %v323
  %v1400 = vunpack.c.l.b16 %v324
  %v1401 = vunpack.c.l.b16 %v325
  %v1402 = vunpack.c.h.b16 %v325
  %v1403 = vunpack.c.l.b16 %v326
  %v1404 = vunpack.c.l.b16 %v327
  %v1405 = vunpack.c.h.b16 %v327
  %v1406 = vunpack.c.l.b16 %v328
  %v1407 = vunpack.c.l.b16 %v329
  %v1408 = vunpack.c.h.b16 %v329
  %v1409 = vunpack.c.l.b16 %v330
  %v1410 = vunpack.c.l.b16 %v331
  %v1411 = vunpack.c.h.b16 %v331
  %v1412 = vunpack.c.l.b16 %v332
  %v1413 = vunpack.c.l.b16 %v333
  %v1414 = vunpack.c.h.b16 %v333
  %v1415 = vunpack.c.l.b16 %v334
  %v1416 = vunpack.c.l.b16 %v335
  %v1417 = vunpack.c.h.b16 %v335
  %v1418 = vunpack.c.l.b16 %v336
  %v1419 = vunpack.c.l.b16 %v337
  %v1420 = vunpack.c.h.b16 %v337
  %v1421 = vunpack.c.l.b16 %v338
  %v1422 = vunpack.c.l.b16 %v339
  %v1423 = vunpack.c.h.b16 %v339
  %v1424 = vunpack.c.l.b16 %v340
  %v1425 = vunpack.c.l.b16 %v341
  %v1426 = vunpack.c.h.b16 %v341
  %v1427 = vunpack.c.l.b16 %v342
  %v1428 = vunpack.c.l.b16 %v343
  %v1429 = vunpack.c.h.b16 %v343
  %v1430 = vunpack.c.l.b16 %v344
  %v1431 = vunpack.c.l.b16 %v345
  %v1432 = vunpack.c.h.b16 %v345
  %v1433 = vunpack.c.l.b16 %v346
  %v1434 = vunpack.c.l.b16 %v347
  %v1435 = vunpack.c.h.b16 %v347
  %v1436 = vunpack.c.l.b16 %v348
  %v1437 = vunpack.c.l.b16 %v349
  %v1438 = vunpack.c.h.b16 %v349
  %v1439 = vunpack.c.l.b16 %v350
  %v1440 = vunpack.c.l.b16 %v351
  %v1441 = vunpack.c.h.b16 %v351
  %v1442 = vunpack.c.l.b16 %v352
  %v1443 = vunpack.c.l.b16 %v353
  %v1444 = vunpack.c.h.b16 %v353
  %v1445 = vunpack.c.l.b16 %v354
  %v1446 = vunpack.c.l.b16 %v355
  %v1447 = vunpack.c.h.b16 %v355
  %v1448 = vunpack.c.l.b16 %v356
  %v1449 = vunpack.c.l.b16 %v357
  %v1450 = vunpack.c.h.b16 %v357
  %v1451 = vunpack.c.l.b16 %v358
  %v1452 = vunpack.c.l.b16 %v359
  %v1453 = vunpack.c.h.b16 %v359
  %v1454 = vunpack.c.l.b16 %v360
  %v1455 = vunpack.c.l.b16 %v361
  %v1456 = vunpack.c.h.b16 %v361
  %v1457 = vunpack.c.l.b16 %v362
  %v1458 = vunpack.c.l.b16 %v363
  %v1459 = vunpack.c.h.b16 %v363
  %v1460 = vunpack.c.l.b16 %v364
  %v1461 = vunpack.c.l.b16 %v365
  %v1462 = vunpack.c.h.b16 %v365
  %v1463 = vunpack.c.l.b16 %v366
  %v1464 = vunpack.c.l.b16 %v367
  %v1465 = vunpack.c.h.b16 %v367
  %v1466 = vunpack.c.l.b16 %v368
  %v1467 = vunpack.c.l.b16 %v369
  %v1468 = vunpack.c.h.b16 %v369
  %v1469 = vunpack.c.l.b16 %v370
  %v1470 = vunpack.c.l.b16 %v371
  %v1471 = vunpack.c.h.b16 %v371
  %v1472 = vunpack.c.l.b16 %v372
  %v1473 = vunpack.c.l.b16 %v373
  %v1474 = vunpack.c.h.b16 %v373
  %v1475 = vunpack.c.l.b16 %v374
  %v1476 = vunpack.c.l.b16 %v375
  %v1477 = vunpack.c.h.b16 %v375
  %v1478 = vunpack.c.l.b16 %v376
  %v1479 = vunpack.c.l.b16 %v377
  %v1480 = vunpack.c.h.b16 %v377
  %v1481 = vunpack.c.l.b16 %v378
  %v1482 = vunpack.c.l.b16 %v379
  %v1483 = vunpack.c.h.b16 %v379
  %v1484 = vunpack.c.l.b16 %v380
  %v1485 = vunpack.c.l.b16 %v381
  %v1486 = vunpack.c.h.b16 %v381
  %v1487 = vunpack.c.l.b16 %v382
  %v1488 = vpack.c.b16 %v1059, %v1056
  %v1489 = vpack.c.b16 %v1060, %v1057
  %v1490 = vpack.c.b16 %v1061, %v1058
  %v1491 = vpack.c.b16 %v1065, %v1062
  %v1492 = vpack.c.b16 %v1066, %v1063
  %v1493 = vpack.c.b16 %v1067, %v1064
  %v1494 = vpack.c.b16 %v1071, %v1068
  %v1495 = vpack.c.b16 %v1072, %v1069
  %v1496 = vpack.c.b16 %v1073, %v1070
  %v1497 = vpack.c.b16 %v1077, %v1074
  %v1498 = vpack.c.b16 %v1078, %v1075
  %v1499 = vpack.c.b16 %v1079, %v1076
  %v1500 = vpack.c.b16 %v1083, %v1080
  %v1501 = vpack.c.b16 %v1084, %v1081
  %v1502 = vpack.c.b16 %v1085, %v1082
  %v1503 = vpack.c.b16 %v1089, %v1086
  %v1504 = vpack.c.b16 %v1090, %v1087
  %v1505 = vpack.c.b16 %v1091, %v1088
  %v1506 = vpack.c.b16 %v1095, %v1092
  %v1507 = vpack.c.b16 %v1096, %v1093
  %v1508 = vpack.c.b16 %v1097, %v1094
  %v1509 = vpack.c.b16 %v1101, %v1098
  %v1510 = vpack.c.b16 %v1102, %v1099
  %v1511 = vpack.c.b16 %v1103, %v1100
  %v1512 = vpack.c.b16 %v1107, %v1104
  %v1513 = vpack.c.b16 %v1108, %v1105
  %v1514 = vpack.c.b16 %v1109, %v1106
  %v1515 = vpack.c.b16 %v1113, %v1110
  %v1516 = vpack.c.b16 %v1114, %v1111
  %v1517 = vpack.c.b16 %v1115, %v1112
  %v1518 = vpack.c.b16 %v1119, %v1116
  %v1519 = vpack.c.b16 %v1120, %v1117
  %v1520 = vpack.c.b16 %v1121, %v1118
  %v1521 = vpack.c.b16 %v1125, %v1122
  %v1522 = vpack.c.b16 %v1126, %v1123
  %v1523 = vpack.c.b16 %v1127, %v1124
  %v1524 = vpack.c.b16 %v1131, %v1128
  %v1525 = vpack.c.b16 %v1132, %v1129
  %v1526 = vpack.c.b16 %v1133, %v1130
  %v1527 = vpack.c.b16 %v1137, %v1134
  %v1528 = vpack.c.b16 %v1138, %v1135
  %v1529 = vpack.c.b16 %v1139, %v1136
  %v1530 = vpack.c.b16 %v1143, %v1140
  %v1531 = vpack.c.b16 %v1144, %v1141
  %v1532 = vpack.c.b16 %v1145, %v1142
  %v1533 = vpack.c.b16 %v1149, %v1146
  %v1534 = vpack.c.b16 %v1150, %v1147
  %v1535 = vpack.c.b16 %v1151, %v1148
  %v1536 = vpack.c.b16 %v1155, %v1152
  %v1537 = vpack.c.b16 %v1156, %v1153
  %v1538 = vpack.c.b16 %v1157, %v1154
  %v1539 = vpack.c.b16 %v1161, %v1158
  %v1540 = vpack.c.b16 %v1162, %v1159
  %v1541 = vpack.c.b16 %v1163, %v1160
  %v1542 = vpack.c.b16 %v1167, %v1164
  %v1543 = vpack.c.b16 %v1168, %v1165
  %v1544 = vpack.c.b16 %v1169, %v1166
  %v1545 = vpack.c.b16 %v1173, %v1170
  %v1546 = vpack.c.b16 %v1174, %v1171
  %v1547 = vpack.c.b16 %v1175, %v1172
  %v1548 = vpack.c.b16 %v1179, %v1176
  %v1549 = vpack.c.b16 %v1180, %v1177
  %v1550 = vpack.c.b16 %v1181, %v1178
  %v1551 = vpack.c.b16 %v1185, %v1182
  %v1552 = vpack.c.b16 %v1186, %v1183
  %v1553 = vpack.c.b16 %v1187, %v1184
  %v1554 = vpack.c.b16 %v1191, %v1188
  %v1555 = vpack.c.b16 %v1192, %v1189
  %v1556 = vpack.c.b16 %v1193, %v1190
  %v1557 = vpack.c.b16 %v1197, %v1194
  %v1558 = vpack.c.b16 %v1198, %v1195
  %v1559 = vpack.c.b16 %v1199, %v1196
  %v1560 = vpack.c.b16 %v1203, %v1200
  %v1561 = vpack.c.b16 %v1204, %v1201
  %v1562 = vpack.c.b16 %v1205, %v1202
  %v1563 = vpack.c.b16 %v1209, %v1206
  %v1564 = vpack.c.b16 %v1210, %v1207
  %v1565 = vpack.c.b16 %v1211, %v1208
  %v1566 = vpack.c.b16 %v1215, %v1212
  %v1567 = vpack.c.b16 %v1216, %v1213
  %v1568 = vpack.c.b16 %v1217, %v1214
  %v1569 = vpack.c.b16 %v1221, %v1218
  %v1570 = vpack.c.b16 %v1222, %v1219
  %v1571 = vpack.c.b16 %v1223, %v1220
  %v1572 = vpack.c.b16 %v1227, %v1224
  %v1573 = vpack.c.b16 %v1228, %v1225
  %v1574 = vpack.c.b16 %v1229, %v1226
  %v1575 = vpack.c.b16 %v1233, %v1230
  %v1576 = vpack.c.b16 %v1234, %v1231
  %v1577 = vpack.c.b16 %v1235, %v1232
  %v1578 = vpack.c.b16 %v1239, %v1236
  %v1579 = vpack.c.b16 %v1240, %v1237
  %v1580 = vpack.c.b16 %v1241, %v1238
  %v1581 = vpack.c.b16 %v1245, %v1242
  %v1582 = vpack.c.b16 %v1246, %v1243
  %v1583 = vpack.c.b16 %v1247, %v1244
  %v1584 = vpack.c.b16 %v1251, %v1248
  %v1585 = vpack.c.b16 %v1252, %v1249
  %v1586 = vpack.c.b16 %v1253, %v1250
  %v1587 = vpack.c.b16 %v1257, %v1254
  %v1588 = vpack.c.b16 %v1258, %v1255
  %v1589 = vpack.c.b16 %v1259, %v1256
  %v1590 = vpack.c.b16 %v1263, %v1260
  %v1591 = vpack.c.b16 %v1264, %v1261
  %v1592 = vpack.c.b16 %v1265, %v1262
  %v1593 = vpack.c.b16 %v1269, %v1266
  %v1594 = vpack.c.b16 %v1270, %v1267
  %v1595 = vpack.c.b16 %v1271, %v1268
  %v1596 = vpack.c.b16 %v1275, %v1272
  %v1597 = vpack.c.b16 %v1276, %v1273
  %v1598 = vpack.c.b16 %v1277, %v1274
  %v1599 = vpack.c.b16 %v1281, %v1278
  %v1600 = vpack.c.b16 %v1282, %v1279
  %v1601 = vpack.c.b16 %v1283, %v1280
  %v1602 = vpack.c.b16 %v1287, %v1284
  %v1603 = vpack.c.b16 %v1288, %v1285
  %v1604 = vpack.c.b16 %v1289, %v1286
  %v1605 = vpack.c.b16 %v1293, %v1290
  %v1606 = vpack.c.b16 %v1294, %v1291
  %v1607 = vpack.c.b16 %v1295, %v1292
  %v1608 = vpack.c.b16 %v1299, %v1296
  %v1609 = vpack.c.b16 %v1300, %v1297
  %v1610 = vpack.c.b16 %v1301, %v1298
  %v1611 = vpack.c.b16 %v1305, %v1302
  %v1612 = vpack.c.b16 %v1306, %v1303
  %v1613 = vpack.c.b16 %v1307, %v1304
  %v1614 = vpack.c.b16 %v1311, %v1308
  %v1615 = vpack.c.b16 %v1312, %v1309
  %v1616 = vpack.c.b16 %v1313, %v1310
  %v1617 = vpack.c.b16 %v1317, %v1314
  %v1618 = vpack.c.b16 %v1318, %v1315
  %v1619 = vpack.c.b16 %v1319, %v1316
  %v1620 = vpack.c.b16 %v1323, %v1320
  %v1621 = vpack.c.b16 %v1324, %v1321
  %v1622 = vpack.c.b16 %v1325, %v1322
  %v1623 = vpack.c.b16 %v1329, %v1326
  %v1624 = vpack.c.b16 %v1330, %v1327
  %v1625 = vpack.c.b16 %v1331, %v1328
  %v1626 = vpack.c.b16 %v1335, %v1332
  %v1627 = vpack.c.b16 %v1336, %v1333
  %v1628 = vpack.c.b16 %v1337, %v1334
  %v1629 = vpack.c.b16 %v1341, %v1338
  %v1630 = vpack.c.b16 %v1342, %v1339
  %v1631 = vpack.c.b16 %v1343, %v1340
  %v1632 = vpack.c.b16 %v1347, %v1344
  %v1633 = vpack.c.b16 %v1348, %v1345
  %v1634 = vpack.c.b16 %v1349, %v1346
  %v1635 = vpack.c.b16 %v1353, %v1350
  %v1636 = vpack.c.b16 %v1354, %v1351
  %v1637 = vpack.c.b16 %v1355, %v1352
  %v1638 = vpack.c.b16 %v1359, %v1356
  %v1639 = vpack.c.b16 %v1360, %v1357
  %v1640 = vpack.c.b16 %v1361, %v1358
  %v1641 = vpack.c.b16 %v1365, %v1362
  %v1642 = vpack.c.b16 %v1366, %v1363
  %v1643 = vpack.c.b16 %v1367, %v1364
  %v1644 = vpack.c.b16 %v1371, %v1368
  %v1645 = vpack.c.b16 %v1372, %v1369
  %v1646 = vpack.c.b16 %v1373, %v1370
  %v1647 = vpack.c.b16 %v1377, %v1374
  %v1648 = vpack.c.b16 %v1378, %v1375
  %v1649 = vpack.c.b16 %v1379, %v1376
  %v1650 = vpack.c.b16 %v1383, %v1380
  %v1651 = vpack.c.b16 %v1384, %v1381
  %v1652 = vpack.c.b16 %v1385, %v1382
  %v1653 = vpack.c.b16 %v1389, %v1386
  %v1654 = vpack.c.b16 %v1390, %v1387
  %v1655 = vpack.c.b16 %v1391, %v1388
  %v1656 = vpack.c.b16 %v1395, %v1392
  %v1657 = vpack.c.b16 %v1396, %v1393
  %v1658 = vpack.c.b16 %v1397, %v1394
  %v1659 = vpack.c.b16 %v1401, %v1398
  %v1660 = vpack.c.b16 %v1402, %v1399
  %v1661 = vpack.c.b16 %v1403, %v1400
  %v1662 = vpack.c.b16 %v1407, %v1404
  %v1663 = vpack.c.b16 %v1408, %v1405
  %v1664 = vpack.c.b16 %v1409, %v1406
  %v1665 = vpack.c.b16 %v1413, %v1410
  %v1666 = vpack.c.b16 %v1414, %v1411
  %v1667 = vpack.c.b16 %v1415, %v1412
  %v1668 = vpack.c.b16 %v1419, %v1416
  %v1669 = vpack.c.b16 %v1420, %v1417
  %v1670 = vpack.c.b16 %v1421, %v1418
  %v1671 = vpack.c.b16 %v1425, %v1422
  %v1672 = vpack.c.b16 %v1426, %v1423
  %v1673 = vpack.c.b16 %v1427, %v1424
  %v1674 = vpack.c.b16 %v1431, %v1428
  %v1675 = vpack.c.b16 %v1432, %v1429
  %v1676 = vpack.c.b16 %v1433, %v1430
  %v1677 = vpack.c.b16 %v1437, %v1434
  %v1678 = vpack.c.b16 %v1438, %v1435
  %v1679 = vpack.c.b16 %v1439, %v1436
  %v1680 = vpack.c.b16 %v1443, %v1440
  %v1681 = vpack.c.b16 %v1444, %v1441
  %v1682 = vpack.c.b16 %v1445, %v1442
  %v1683 = vpack.c.b16 %v1449, %v1446
  %v1684 = vpack.c.b16 %v1450, %v1447
  %v1685 = vpack.c.b16 %v1451, %v1448
  %v1686 = vpack.c.b16 %v1455, %v1452
  %v1687 = vpack.c.b16 %v1456, %v1453
  %v1688 = vpack.c.b16 %v1457, %v1454
  %v1689 = vpack.c.b16 %v1461, %v1458
  %v1690 = vpack.c.b16 %v1462, %v1459
  %v1691 = vpack.c.b16 %v1463, %v1460
  %v1692 = vpack.c.b16 %v1467, %v1464
  %v1693 = vpack.c.b16 %v1468, %v1465
  %v1694 = vpack.c.b16 %v1469, %v1466
  %v1695 = vpack.c.b16 %v1473, %v1470
  %v1696 = vpack.c.b16 %v1474, %v1471
  %v1697 = vpack.c.b16 %v1475, %v1472
  %v1698 = vpack.c.b16 %v1479, %v1476
  %v1699 = vpack.c.b16 %v1480, %v1477
  %v1700 = vpack.c.b16 %v1481, %v1478
  %v1701 = vpack.c.b16 %v1485, %v1482
  %v1702 = vpack.c.b16 %v1486, %v1483
  %v1703 = vpack.c.b16 %v1487, %v1484
  %1920 = vmatprep.subr.bf16.mxu0 %v1489
  %1921 = vmatpush1.bf16.msra.mxu0 %v1488
  %1922 = vmatprep.subr.bf16.mxu0 %v1492
  %1923 = vmatpush1.bf16.msra.mxu0 %v1491
  %1924 = vmatprep.subr.bf16.mxu0 %v1495
  %1925 = vmatpush1.bf16.msra.mxu0 %v1494
  %1926 = vmatprep.subr.bf16.mxu0 %v1498
  %1927 = vmatpush1.bf16.msra.mxu0 %v1497
  %1928 = vmatprep.subr.bf16.mxu0 %v1501
  %1929 = vmatpush1.bf16.msra.mxu0 %v1500
  %1930 = vmatprep.subr.bf16.mxu0 %v1504
  %1931 = vmatpush1.bf16.msra.mxu0 %v1503
  %1932 = vmatprep.subr.bf16.mxu0 %v1507
  %1933 = vmatpush1.bf16.msra.mxu0 %v1506
  %1934 = vmatprep.subr.bf16.mxu0 %v1510
  %1935 = vmatpush1.bf16.msra.mxu0 %v1509
  %1936 = vmatprep.subr.bf16.mxu0 %v1513
  %1937 = vmatpush1.bf16.msra.mxu0 %v1512
  %1938 = vmatprep.subr.bf16.mxu0 %v1516
  %1939 = vmatpush1.bf16.msra.mxu0 %v1515
  %1940 = vmatprep.subr.bf16.mxu0 %v1519
  %1941 = vmatpush1.bf16.msra.mxu0 %v1518
  %1942 = vmatprep.subr.bf16.mxu0 %v1522
  %1943 = vmatpush1.bf16.msra.mxu0 %v1521
  %1944 = vmatprep.subr.bf16.mxu0 %v1525
  %1945 = vmatpush1.bf16.msra.mxu0 %v1524
  %1946 = vmatprep.subr.bf16.mxu0 %v1528
  %1947 = vmatpush1.bf16.msra.mxu0 %v1527
  %1948 = vmatprep.subr.bf16.mxu0 %v1531
  %1949 = vmatpush1.bf16.msra.mxu0 %v1530
  %1950 = vmatprep.subr.bf16.mxu0 %v1534
  %1951 = vmatpush1.bf16.msra.mxu0 %v1533
  %1952 = vmatprep.mubr.bf16.mxu0 %v625
  %1953 = vmatmul.mubr.bf16.gmra.mrb[0].mxu0 %v624
  %v1954 = vpop.f32.mrb[0].mxu0
  %v1955 = vadd.f32 %v388, %v1954
  %v1956 = vpop.f32.mrb[0].mxu0
  %v1957 = vadd.f32 %v392, %v1956
  %v1958 = vpop.f32.mrb[0].mxu0
  %v1959 = vadd.f32 %v388, %v1958
  %v1960 = vpop.f32.mrb[0].mxu0
  %v1961 = vadd.f32 %v392, %v1960
  %1962 = vmatprep.mubr.bf16.mxu0 %v634
  %1963 = vmatmul.mubr.bf16.gmra.mrb[0].mxu0 %v633
  %v1964 = vpop.f32.mrb[0].mxu0
  %v1965 = vadd.f32 %v388, %v1964
  %v1966 = vpop.f32.mrb[0].mxu0
  %v1967 = vadd.f32 %v392, %v1966
  %v1968 = vpop.f32.mrb[0].mxu0
  %v1969 = vadd.f32 %v388, %v1968
  %v1970 = vpop.f32.mrb[0].mxu0
  %v1971 = vadd.f32 %v392, %v1970
  %1972 = vmatprep.mubr.bf16.mxu0 %v643
  %1973 = vmatmul.mubr.bf16.gmra.mrb[0].mxu0 %v642
  %v1974 = vpop.f32.mrb[0].mxu0
  %v1975 = vadd.f32 %v388, %v1974
  %v1976 = vpop.f32.mrb[0].mxu0
  %v1977 = vadd.f32 %v392, %v1976
  %v1978 = vpop.f32.mrb[0].mxu0
  %v1979 = vadd.f32 %v388, %v1978
  %v1980 = vpop.f32.mrb[0].mxu0
  %v1981 = vadd.f32 %v392, %v1980
  %1982 = vmatprep.mubr.bf16.mxu0 %v652
  %1983 = vmatmul.mubr.bf16.gmra.mrb[0].mxu0 %v651
  %v1984 = vpop.f32.mrb[0].mxu0
  %v1985 = vadd.f32 %v388, %v1984
  %v1986 = vpop.f32.mrb[0].mxu0
  %v1987 = vadd.f32 %v392, %v1986
  %v1988 = vpop.f32.mrb[0].mxu0
  %v1989 = vadd.f32 %v388, %v1988
  %v1990 = vpop.f32.mrb[0].mxu0
  %v1991 = vadd.f32 %v392, %v1990
  %1992 = vmatprep.mubr.bf16.mxu0 %v661
  %1993 = vmatmul.mubr.bf16.gmra.mrb[0].mxu0 %v660
  %v1994 = vpop.f32.mrb[0].mxu0
  %v1995 = vadd.f32 %v388, %v1994
  %v1996 = vpop.f32.mrb[0].mxu0
  %v1997 = vadd.f32 %v392, %v1996
  %v1998 = vpop.f32.mrb[0].mxu0
  %v1999 = vadd.f32 %v388, %v1998
  %v2000 = vpop.f32.mrb[0].mxu0
  %v2001 = vadd.f32 %v392, %v2000
  %2002 = vmatprep.mubr.bf16.mxu0 %v670
  %2003 = vmatmul.mubr.bf16.gmra.mrb[0].mxu0 %v669
  %v2004 = vpop.f32.mrb[0].mxu0
  %v2005 = vadd.f32 %v388, %v2004
  %v2006 = vpop.f32.mrb[0].mxu0
  %v2007 = vadd.f32 %v392, %v2006
  %v2008 = vpop.f32.mrb[0].mxu0
  %v2009 = vadd.f32 %v388, %v2008
  %v2010 = vpop.f32.mrb[0].mxu0
  %v2011 = vadd.f32 %v392, %v2010
  %2012 = vmatprep.mubr.bf16.mxu0 %v679
  %2013 = vmatmul.mubr.bf16.gmra.mrb[0].mxu0 %v678
  %v2014 = vpop.f32.mrb[0].mxu0
  %v2015 = vadd.f32 %v388, %v2014
  %v2016 = vpop.f32.mrb[0].mxu0
  %v2017 = vadd.f32 %v392, %v2016
  %v2018 = vpop.f32.mrb[0].mxu0
  %v2019 = vadd.f32 %v388, %v2018
  %v2020 = vpop.f32.mrb[0].mxu0
  %v2021 = vadd.f32 %v392, %v2020
  %2022 = vmatprep.mubr.bf16.mxu0 %v688
  %2023 = vmatmul.mubr.bf16.gmra.mrb[0].mxu0 %v687
  %v2024 = vpop.f32.mrb[0].mxu0
  %v2025 = vadd.f32 %v388, %v2024
  %v2026 = vpop.f32.mrb[0].mxu0
  %v2027 = vadd.f32 %v392, %v2026
  %v2028 = vpop.f32.mrb[0].mxu0
  %v2029 = vadd.f32 %v388, %v2028
  %v2030 = vpop.f32.mrb[0].mxu0
  %v2031 = vadd.f32 %v392, %v2030
  %2032 = vdwg.mxu0
  %2033 = vmatprep.subr.bf16.mxu0 %v1537
  %2034 = vmatpush1.bf16.msra.mxu0 %v1536
  %2035 = vmatprep.subr.bf16.mxu0 %v1540
  %2036 = vmatpush1.bf16.msra.mxu0 %v1539
  %2037 = vmatprep.subr.bf16.mxu0 %v1543
  %2038 = vmatpush1.bf16.msra.mxu0 %v1542
  %2039 = vmatprep.subr.bf16.mxu0 %v1546
  %2040 = vmatpush1.bf16.msra.mxu0 %v1545
  %2041 = vmatprep.subr.bf16.mxu0 %v1549
  %2042 = vmatpush1.bf16.msra.mxu0 %v1548
  %2043 = vmatprep.subr.bf16.mxu0 %v1552
  %2044 = vmatpush1.bf16.msra.mxu0 %v1551
  %2045 = vmatprep.subr.bf16.mxu0 %v1555
  %2046 = vmatpush1.bf16.msra.mxu0 %v1554
  %2047 = vmatprep.subr.bf16.mxu0 %v1558
  %2048 = vmatpush1.bf16.msra.mxu0 %v1557
  %2049 = vmatprep.subr.bf16.mxu0 %v1561
  %2050 = vmatpush1.bf16.msra.mxu0 %v1560
  %2051 = vmatprep.subr.bf16.mxu0 %v1564
  %2052 = vmatpush1.bf16.msra.mxu0 %v1563
  %2053 = vmatprep.subr.bf16.mxu0 %v1567
  %2054 = vmatpush1.bf16.msra.mxu0 %v1566
  %2055 = vmatprep.subr.bf16.mxu0 %v1570
  %2056 = vmatpush1.bf16.msra.mxu0 %v1569
  %2057 = vmatprep.subr.bf16.mxu0 %v1573
  %2058 = vmatpush1.bf16.msra.mxu0 %v1572
  %2059 = vmatprep.subr.bf16.mxu0 %v1576
  %2060 = vmatpush1.bf16.msra.mxu0 %v1575
  %2061 = vmatprep.subr.bf16.mxu0 %v1579
  %2062 = vmatpush1.bf16.msra.mxu0 %v1578
  %2063 = vmatprep.subr.bf16.mxu0 %v1582
  %2064 = vmatpush1.bf16.msra.mxu0 %v1581
  %2065 = vmatprep.mubr.bf16.mxu0 %v627
  %2066 = vmatmul.mubr.bf16.gmra.mrb[0].mxu0 %v626
  %v2067 = vpop.f32.mrb[0].mxu0
  %v2068 = vadd.f32 %v1955, %v2067
  %v2069 = vpop.f32.mrb[0].mxu0
  %v2070 = vadd.f32 %v1957, %v2069
  %v2071 = vpop.f32.mrb[0].mxu0
  %v2072 = vadd.f32 %v1959, %v2071
  %v2073 = vpop.f32.mrb[0].mxu0
  %v2074 = vadd.f32 %v1961, %v2073
  %2075 = vmatprep.mubr.bf16.mxu0 %v636
  %2076 = vmatmul.mubr.bf16.gmra.mrb[0].mxu0 %v635
  %v2077 = vpop.f32.mrb[0].mxu0
  %v2078 = vadd.f32 %v1965, %v2077
  %v2079 = vpop.f32.mrb[0].mxu0
  %v2080 = vadd.f32 %v1967, %v2079
  %v2081 = vpop.f32.mrb[0].mxu0
  %v2082 = vadd.f32 %v1969, %v2081
  %v2083 = vpop.f32.mrb[0].mxu0
  %v2084 = vadd.f32 %v1971, %v2083
  %2085 = vmatprep.mubr.bf16.mxu0 %v645
  %2086 = vmatmul.mubr.bf16.gmra.mrb[0].mxu0 %v644
  %v2087 = vpop.f32.mrb[0].mxu0
  %v2088 = vadd.f32 %v1975, %v2087
  %v2089 = vpop.f32.mrb[0].mxu0
  %v2090 = vadd.f32 %v1977, %v2089
  %v2091 = vpop.f32.mrb[0].mxu0
  %v2092 = vadd.f32 %v1979, %v2091
  %v2093 = vpop.f32.mrb[0].mxu0
  %v2094 = vadd.f32 %v1981, %v2093
  %2095 = vmatprep.mubr.bf16.mxu0 %v654
  %2096 = vmatmul.mubr.bf16.gmra.mrb[0].mxu0 %v653
  %v2097 = vpop.f32.mrb[0].mxu0
  %v2098 = vadd.f32 %v1985, %v2097
  %v2099 = vpop.f32.mrb[0].mxu0
  %v2100 = vadd.f32 %v1987, %v2099
  %v2101 = vpop.f32.mrb[0].mxu0
  %v2102 = vadd.f32 %v1989, %v2101
  %v2103 = vpop.f32.mrb[0].mxu0
  %v2104 = vadd.f32 %v1991, %v2103
  %2105 = vmatprep.mubr.bf16.mxu0 %v663
  %2106 = vmatmul.mubr.bf16.gmra.mrb[0].mxu0 %v662
  %v2107 = vpop.f32.mrb[0].mxu0
  %v2108 = vadd.f32 %v1995, %v2107
  %v2109 = vpop.f32.mrb[0].mxu0
  %v2110 = vadd.f32 %v1997, %v2109
  %v2111 = vpop.f32.mrb[0].mxu0
  %v2112 = vadd.f32 %v1999, %v2111
  %v2113 = vpop.f32.mrb[0].mxu0
  %v2114 = vadd.f32 %v2001, %v2113
  %2115 = vmatprep.mubr.bf16.mxu0 %v672
  %2116 = vmatmul.mubr.bf16.gmra.mrb[0].mxu0 %v671
  %v2117 = vpop.f32.mrb[0].mxu0
  %v2118 = vadd.f32 %v2005, %v2117
  %v2119 = vpop.f32.mrb[0].mxu0
  %v2120 = vadd.f32 %v2007, %v2119
  %v2121 = vpop.f32.mrb[0].mxu0
  %v2122 = vadd.f32 %v2009, %v2121
  %v2123 = vpop.f32.mrb[0].mxu0
  %v2124 = vadd.f32 %v2011, %v2123
  %2125 = vmatprep.mubr.bf16.mxu0 %v681
  %2126 = vmatmul.mubr.bf16.gmra.mrb[0].mxu0 %v680
  %v2127 = vpop.f32.mrb[0].mxu0
  %v2128 = vadd.f32 %v2015, %v2127
  %v2129 = vpop.f32.mrb[0].mxu0
  %v2130 = vadd.f32 %v2017, %v2129
  %v2131 = vpop.f32.mrb[0].mxu0
  %v2132 = vadd.f32 %v2019, %v2131
  %v2133 = vpop.f32.mrb[0].mxu0
  %v2134 = vadd.f32 %v2021, %v2133
  %2135 = vmatprep.mubr.bf16.mxu0 %v690
  %2136 = vmatmul.mubr.bf16.gmra.mrb[0].mxu0 %v689
  %v2137 = vpop.f32.mrb[0].mxu0
  %v2138 = vadd.f32 %v2025, %v2137
  %v2139 = vpop.f32.mrb[0].mxu0
  %v2140 = vadd.f32 %v2027, %v2139
  %v2141 = vpop.f32.mrb[0].mxu0
  %v2142 = vadd.f32 %v2029, %v2141
  %v2143 = vpop.f32.mrb[0].mxu0
  %v2144 = vadd.f32 %v2031, %v2143
  %2145 = vdwg.mxu0
  %2146 = vmatprep.subr.bf16.mxu0 %v1585
  %2147 = vmatpush1.bf16.msra.mxu0 %v1584
  %2148 = vmatprep.subr.bf16.mxu0 %v1588
  %2149 = vmatpush1.bf16.msra.mxu0 %v1587
  %2150 = vmatprep.subr.bf16.mxu0 %v1591
  %2151 = vmatpush1.bf16.msra.mxu0 %v1590
  %2152 = vmatprep.subr.bf16.mxu0 %v1594
  %2153 = vmatpush1.bf16.msra.mxu0 %v1593
  %2154 = vmatprep.subr.bf16.mxu0 %v1597
  %2155 = vmatpush1.bf16.msra.mxu0 %v1596
  %2156 = vmatprep.subr.bf16.mxu0 %v1600
  %2157 = vmatpush1.bf16.msra.mxu0 %v1599
  %2158 = vmatprep.subr.bf16.mxu0 %v1603
  %2159 = vmatpush1.bf16.msra.mxu0 %v1602
  %2160 = vmatprep.subr.bf16.mxu0 %v1606
  %2161 = vmatpush1.bf16.msra.mxu0 %v1605
  %2162 = vmatprep.subr.bf16.mxu0 %v1609
  %2163 = vmatpush1.bf16.msra.mxu0 %v1608
  %2164 = vmatprep.subr.bf16.mxu0 %v1612
  %2165 = vmatpush1.bf16.msra.mxu0 %v1611
  %2166 = vmatprep.subr.bf16.mxu0 %v1615
  %2167 = vmatpush1.bf16.msra.mxu0 %v1614
  %2168 = vmatprep.subr.bf16.mxu0 %v1618
  %2169 = vmatpush1.bf16.msra.mxu0 %v1617
  %2170 = vmatprep.subr.bf16.mxu0 %v1621
  %2171 = vmatpush1.bf16.msra.mxu0 %v1620
  %2172 = vmatprep.subr.bf16.mxu0 %v1624
  %2173 = vmatpush1.bf16.msra.mxu0 %v1623
  %2174 = vmatprep.subr.bf16.mxu0 %v1627
  %2175 = vmatpush1.bf16.msra.mxu0 %v1626
  %2176 = vmatprep.subr.bf16.mxu0 %v1630
  %2177 = vmatpush1.bf16.msra.mxu0 %v1629
  %2178 = vmatprep.mubr.bf16.mxu0 %v629
  %2179 = vmatmul.mubr.bf16.gmra.mrb[0].mxu0 %v628
  %v2180 = vpop.f32.mrb[0].mxu0
  %v2181 = vadd.f32 %v2068, %v2180
  %v2182 = vpop.f32.mrb[0].mxu0
  %v2183 = vadd.f32 %v2070, %v2182
  %v2184 = vpop.f32.mrb[0].mxu0
  %v2185 = vadd.f32 %v2072, %v2184
  %v2186 = vpop.f32.mrb[0].mxu0
  %v2187 = vadd.f32 %v2074, %v2186
  %2188 = vmatprep.mubr.bf16.mxu0 %v638
  %2189 = vmatmul.mubr.bf16.gmra.mrb[0].mxu0 %v637
  %v2190 = vpop.f32.mrb[0].mxu0
  %v2191 = vadd.f32 %v2078, %v2190
  %v2192 = vpop.f32.mrb[0].mxu0
  %v2193 = vadd.f32 %v2080, %v2192
  %v2194 = vpop.f32.mrb[0].mxu0
  %v2195 = vadd.f32 %v2082, %v2194
  %v2196 = vpop.f32.mrb[0].mxu0
  %v2197 = vadd.f32 %v2084, %v2196
  %2198 = vmatprep.mubr.bf16.mxu0 %v647
  %2199 = vmatmul.mubr.bf16.gmra.mrb[0].mxu0 %v646
  %v2200 = vpop.f32.mrb[0].mxu0
  %v2201 = vadd.f32 %v2088, %v2200
  %v2202 = vpop.f32.mrb[0].mxu0
  %v2203 = vadd.f32 %v2090, %v2202
  %v2204 = vpop.f32.mrb[0].mxu0
  %v2205 = vadd.f32 %v2092, %v2204
  %v2206 = vpop.f32.mrb[0].mxu0
  %v2207 = vadd.f32 %v2094, %v2206
  %2208 = vmatprep.mubr.bf16.mxu0 %v656
  %2209 = vmatmul.mubr.bf16.gmra.mrb[0].mxu0 %v655
  %v2210 = vpop.f32.mrb[0].mxu0
  %v2211 = vadd.f32 %v2098, %v2210
  %v2212 = vpop.f32.mrb[0].mxu0
  %v2213 = vadd.f32 %v2100, %v2212
  %v2214 = vpop.f32.mrb[0].mxu0
  %v2215 = vadd.f32 %v2102, %v2214
  %v2216 = vpop.f32.mrb[0].mxu0
  %v2217 = vadd.f32 %v2104, %v2216
  %2218 = vmatprep.mubr.bf16.mxu0 %v665
  %2219 = vmatmul.mubr.bf16.gmra.mrb[0].mxu0 %v664
  %v2220 = vpop.f32.mrb[0].mxu0
  %v2221 = vadd.f32 %v2108, %v2220
  %v2222 = vpop.f32.mrb[0].mxu0
  %v2223 = vadd.f32 %v2110, %v2222
  %v2224 = vpop.f32.mrb[0].mxu0
  %v2225 = vadd.f32 %v2112, %v2224
  %v2226 = vpop.f32.mrb[0].mxu0
  %v2227 = vadd.f32 %v2114, %v2226
  %2228 = vmatprep.mubr.bf16.mxu0 %v674
  %2229 = vmatmul.mubr.bf16.gmra.mrb[0].mxu0 %v673
  %v2230 = vpop.f32.mrb[0].mxu0
  %v2231 = vadd.f32 %v2118, %v2230
  %v2232 = vpop.f32.mrb[0].mxu0
  %v2233 = vadd.f32 %v2120, %v2232
  %v2234 = vpop.f32.mrb[0].mxu0
  %v2235 = vadd.f32 %v2122, %v2234
  %v2236 = vpop.f32.mrb[0].mxu0
  %v2237 = vadd.f32 %v2124, %v2236
  %2238 = vmatprep.mubr.bf16.mxu0 %v683
  %2239 = vmatmul.mubr.bf16.gmra.mrb[0].mxu0 %v682
  %v2240 = vpop.f32.mrb[0].mxu0
  %v2241 = vadd.f32 %v2128, %v2240
  %v2242 = vpop.f32.mrb[0].mxu0
  %v2243 = vadd.f32 %v2130, %v2242
  %v2244 = vpop.f32.mrb[0].mxu0
  %v2245 = vadd.f32 %v2132, %v2244
  %v2246 = vpop.f32.mrb[0].mxu0
  %v2247 = vadd.f32 %v2134, %v2246
  %2248 = vmatprep.mubr.bf16.mxu0 %v692
  %2249 = vmatmul.mubr.bf16.gmra.mrb[0].mxu0 %v691
  %v2250 = vpop.f32.mrb[0].mxu0
  %v2251 = vadd.f32 %v2138, %v2250
  %v2252 = vpop.f32.mrb[0].mxu0
  %v2253 = vadd.f32 %v2140, %v2252
  %v2254 = vpop.f32.mrb[0].mxu0
  %v2255 = vadd.f32 %v2142, %v2254
  %v2256 = vpop.f32.mrb[0].mxu0
  %v2257 = vadd.f32 %v2144, %v2256
  %2258 = vdwg.mxu0
  %2259 = vmatprep.subr.bf16.mxu0 %v1633
  %2260 = vmatpush1.bf16.msra.mxu0 %v1632
  %2261 = vmatprep.subr.bf16.mxu0 %v1636
  %2262 = vmatpush1.bf16.msra.mxu0 %v1635
  %2263 = vmatprep.subr.bf16.mxu0 %v1639
  %2264 = vmatpush1.bf16.msra.mxu0 %v1638
  %2265 = vmatprep.subr.bf16.mxu0 %v1642
  %2266 = vmatpush1.bf16.msra.mxu0 %v1641
  %2267 = vmatprep.subr.bf16.mxu0 %v1645
  %2268 = vmatpush1.bf16.msra.mxu0 %v1644
  %2269 = vmatprep.subr.bf16.mxu0 %v1648
  %2270 = vmatpush1.bf16.msra.mxu0 %v1647
  %2271 = vmatprep.subr.bf16.mxu0 %v1651
  %2272 = vmatpush1.bf16.msra.mxu0 %v1650
  %2273 = vmatprep.subr.bf16.mxu0 %v1654
  %2274 = vmatpush1.bf16.msra.mxu0 %v1653
  %2275 = vmatprep.subr.bf16.mxu0 %v1657
  %2276 = vmatpush1.bf16.msra.mxu0 %v1656
  %2277 = vmatprep.subr.bf16.mxu0 %v1660
  %2278 = vmatpush1.bf16.msra.mxu0 %v1659
  %2279 = vmatprep.subr.bf16.mxu0 %v1663
  %2280 = vmatpush1.bf16.msra.mxu0 %v1662
  %2281 = vmatprep.subr.bf16.mxu0 %v1666
  %2282 = vmatpush1.bf16.msra.mxu0 %v1665
  %2283 = vmatprep.subr.bf16.mxu0 %v1669
  %2284 = vmatpush1.bf16.msra.mxu0 %v1668
  %2285 = vmatprep.subr.bf16.mxu0 %v1672
  %2286 = vmatpush1.bf16.msra.mxu0 %v1671
  %2287 = vmatprep.subr.bf16.mxu0 %v1675
  %2288 = vmatpush1.bf16.msra.mxu0 %v1674
  %2289 = vmatprep.subr.bf16.mxu0 %v1678
  %2290 = vmatpush1.bf16.msra.mxu0 %v1677
  %2291 = vmatprep.mubr.bf16.mxu0 %v631
  %2292 = vmatmul.mubr.bf16.gmra.mrb[0].mxu0 %v630
  %v2293 = vpop.f32.mrb[0].mxu0
  %v2294 = vadd.f32 %v2181, %v2293
  %v2295 = vpop.f32.mrb[0].mxu0
  %v2296 = vadd.f32 %v2183, %v2295
  %v2297 = vpop.f32.mrb[0].mxu0
  %v2298 = vadd.f32 %v2185, %v2297
  %v2299 = vpop.f32.mrb[0].mxu0
  %v2300 = vadd.f32 %v2187, %v2299
  %2301 = vmatprep.mubr.bf16.mxu0 %v640
  %2302 = vmatmul.mubr.bf16.gmra.mrb[0].mxu0 %v639
  %v2303 = vpop.f32.mrb[0].mxu0
  %v2304 = vadd.f32 %v2191, %v2303
  %v2305 = vpop.f32.mrb[0].mxu0
  %v2306 = vadd.f32 %v2193, %v2305
  %v2307 = vpop.f32.mrb[0].mxu0
  %v2308 = vadd.f32 %v2195, %v2307
  %v2309 = vpop.f32.mrb[0].mxu0
  %v2310 = vadd.f32 %v2197, %v2309
  %2311 = vmatprep.mubr.bf16.mxu0 %v649
  %2312 = vmatmul.mubr.bf16.gmra.mrb[0].mxu0 %v648
  %v2313 = vpop.f32.mrb[0].mxu0
  %v2314 = vadd.f32 %v2201, %v2313
  %v2315 = vpop.f32.mrb[0].mxu0
  %v2316 = vadd.f32 %v2203, %v2315
  %v2317 = vpop.f32.mrb[0].mxu0
  %v2318 = vadd.f32 %v2205, %v2317
  %v2319 = vpop.f32.mrb[0].mxu0
  %v2320 = vadd.f32 %v2207, %v2319
  %2321 = vmatprep.mubr.bf16.mxu0 %v658
  %2322 = vmatmul.mubr.bf16.gmra.mrb[0].mxu0 %v657
  %v2323 = vpop.f32.mrb[0].mxu0
  %v2324 = vadd.f32 %v2211, %v2323
  %v2325 = vpop.f32.mrb[0].mxu0
  %v2326 = vadd.f32 %v2213, %v2325
  %v2327 = vpop.f32.mrb[0].mxu0
  %v2328 = vadd.f32 %v2215, %v2327
  %v2329 = vpop.f32.mrb[0].mxu0
  %v2330 = vadd.f32 %v2217, %v2329
  %2331 = vmatprep.mubr.bf16.mxu0 %v667
  %2332 = vmatmul.mubr.bf16.gmra.mrb[0].mxu0 %v666
  %v2333 = vpop.f32.mrb[0].mxu0
  %v2334 = vadd.f32 %v2221, %v2333
  %v2335 = vpop.f32.mrb[0].mxu0
  %v2336 = vadd.f32 %v2223, %v2335
  %v2337 = vpop.f32.mrb[0].mxu0
  %v2338 = vadd.f32 %v2225, %v2337
  %v2339 = vpop.f32.mrb[0].mxu0
  %v2340 = vadd.f32 %v2227, %v2339
  %2341 = vmatprep.mubr.bf16.mxu0 %v676
  %2342 = vmatmul.mubr.bf16.gmra.mrb[0].mxu0 %v675
  %v2343 = vpop.f32.mrb[0].mxu0
  %v2344 = vadd.f32 %v2231, %v2343
  %v2345 = vpop.f32.mrb[0].mxu0
  %v2346 = vadd.f32 %v2233, %v2345
  %v2347 = vpop.f32.mrb[0].mxu0
  %v2348 = vadd.f32 %v2235, %v2347
  %v2349 = vpop.f32.mrb[0].mxu0
  %v2350 = vadd.f32 %v2237, %v2349
  %2351 = vmatprep.mubr.bf16.mxu0 %v685
  %2352 = vmatmul.mubr.bf16.gmra.mrb[0].mxu0 %v684
  %v2353 = vpop.f32.mrb[0].mxu0
  %v2354 = vadd.f32 %v2241, %v2353
  %v2355 = vpop.f32.mrb[0].mxu0
  %v2356 = vadd.f32 %v2243, %v2355
  %v2357 = vpop.f32.mrb[0].mxu0
  %v2358 = vadd.f32 %v2245, %v2357
  %v2359 = vpop.f32.mrb[0].mxu0
  %v2360 = vadd.f32 %v2247, %v2359
  %2361 = vmatprep.mubr.bf16.mxu0 %v694
  %2362 = vmatmul.mubr.bf16.gmra.mrb[0].mxu0 %v693
  %v2363 = vpop.f32.mrb[0].mxu0
  %v2364 = vadd.f32 %v2251, %v2363
  %v2365 = vpop.f32.mrb[0].mxu0
  %v2366 = vadd.f32 %v2253, %v2365
  %v2367 = vpop.f32.mrb[0].mxu0
  %v2368 = vadd.f32 %v2255, %v2367
  %v2369 = vpop.f32.mrb[0].mxu0
  %v2370 = vadd.f32 %v2257, %v2369
  %2371 = vdwg.mxu0
  %2372 = vmatprep.subr.bf16.mxu0 %v1681
  %2373 = vmatpush1.bf16.msra.mxu0 %v1680
  %2374 = vmatprep.subr.bf16.mxu0 %v1684
  %2375 = vmatpush1.bf16.msra.mxu0 %v1683
  %2376 = vmatprep.subr.bf16.mxu0 %v1687
  %2377 = vmatpush1.bf16.msra.mxu0 %v1686
  %2378 = vmatprep.subr.bf16.mxu0 %v1690
  %2379 = vmatpush1.bf16.msra.mxu0 %v1689
  %2380 = vmatprep.subr.bf16.mxu0 %v1693
  %2381 = vmatpush1.bf16.msra.mxu0 %v1692
  %2382 = vmatprep.subr.bf16.mxu0 %v1696
  %2383 = vmatpush1.bf16.msra.mxu0 %v1695
  %2384 = vmatprep.subr.bf16.mxu0 %v1699
  %2385 = vmatpush1.bf16.msra.mxu0 %v1698
  %2386 = vmatprep.subr.bf16.mxu0 %v1702
  %2387 = vmatpush1.bf16.msra.mxu0 %v1701
  %2388 = vmatprep.subr.bf16.mxu0 0
  %2389 = vmatpush1.bf16.msra.mxu0 0
  %2390 = vmatprep.subr.bf16.mxu0 0
  %2391 = vmatpush1.bf16.msra.mxu0 0
  %2392 = vmatprep.subr.bf16.mxu0 0
  %2393 = vmatpush1.bf16.msra.mxu0 0
  %2394 = vmatprep.subr.bf16.mxu0 0
  %2395 = vmatpush1.bf16.msra.mxu0 0
  %2396 = vmatprep.subr.bf16.mxu0 0
  %2397 = vmatpush1.bf16.msra.mxu0 0
  %2398 = vmatprep.subr.bf16.mxu0 0
  %2399 = vmatpush1.bf16.msra.mxu0 0
  %2400 = vmatprep.subr.bf16.mxu0 0
  %2401 = vmatpush1.bf16.msra.mxu0 0
  %2402 = vmatprep.subr.bf16.mxu0 0
  %2403 = vmatpush1.bf16.msra.mxu0 0
  %2404 = vmatprep.mubr.bf16.mxu0 0
  %2405 = vmatmul.mubr.bf16.gmra.mrb[0].mxu0 %v632
  %v2406 = vpop.f32.mrb[0].mxu0
  %v2407 = vadd.f32 %v2294, %v2406
  %v2408 = vpop.f32.mrb[0].mxu0
  %v2409 = vadd.f32 %v2296, %v2408
  %v2410 = vpop.f32.mrb[0].mxu0
  %v2411 = vadd.f32 %v2298, %v2410
  %v2412 = vpop.f32.mrb[0].mxu0
  %v2413 = vadd.f32 %v2300, %v2412
  %2414 = vmatprep.mubr.bf16.mxu0 0
  %2415 = vmatmul.mubr.bf16.gmra.mrb[0].mxu0 %v641
  %v2416 = vpop.f32.mrb[0].mxu0
  %v2417 = vadd.f32 %v2304, %v2416
  %v2418 = vpop.f32.mrb[0].mxu0
  %v2419 = vadd.f32 %v2306, %v2418
  %v2420 = vpop.f32.mrb[0].mxu0
  %v2421 = vadd.f32 %v2308, %v2420
  %v2422 = vpop.f32.mrb[0].mxu0
  %v2423 = vadd.f32 %v2310, %v2422
  %2424 = vmatprep.mubr.bf16.mxu0 0
  %2425 = vmatmul.mubr.bf16.gmra.mrb[0].mxu0 %v650
  %v2426 = vpop.f32.mrb[0].mxu0
  %v2427 = vadd.f32 %v2314, %v2426
  %v2428 = vpop.f32.mrb[0].mxu0
  %v2429 = vadd.f32 %v2316, %v2428
  %v2430 = vpop.f32.mrb[0].mxu0
  %v2431 = vadd.f32 %v2318, %v2430
  %v2432 = vpop.f32.mrb[0].mxu0
  %v2433 = vadd.f32 %v2320, %v2432
  %2434 = vmatprep.mubr.bf16.mxu0 0
  %2435 = vmatmul.mubr.bf16.gmra.mrb[0].mxu0 %v659
  %v2436 = vpop.f32.mrb[0].mxu0
  %v2437 = vadd.f32 %v2324, %v2436
  %v2438 = vpop.f32.mrb[0].mxu0
  %v2439 = vadd.f32 %v2326, %v2438
  %v2440 = vpop.f32.mrb[0].mxu0
  %v2441 = vadd.f32 %v2328, %v2440
  %v2442 = vpop.f32.mrb[0].mxu0
  %v2443 = vadd.f32 %v2330, %v2442
  %2444 = vmatprep.mubr.bf16.mxu0 0
  %2445 = vmatmul.mubr.bf16.gmra.mrb[0].mxu0 %v668
  %v2446 = vpop.f32.mrb[0].mxu0
  %v2447 = vadd.f32 %v2334, %v2446
  %v2448 = vpop.f32.mrb[0].mxu0
  %v2449 = vadd.f32 %v2336, %v2448
  %v2450 = vpop.f32.mrb[0].mxu0
  %v2451 = vadd.f32 %v2338, %v2450
  %v2452 = vpop.f32.mrb[0].mxu0
  %v2453 = vadd.f32 %v2340, %v2452
  %2454 = vmatprep.mubr.bf16.mxu0 0
  %2455 = vmatmul.mubr.bf16.gmra.mrb[0].mxu0 %v677
  %v2456 = vpop.f32.mrb[0].mxu0
  %v2457 = vadd.f32 %v2344, %v2456
  %v2458 = vpop.f32.mrb[0].mxu0
  %v2459 = vadd.f32 %v2346, %v2458
  %v2460 = vpop.f32.mrb[0].mxu0
  %v2461 = vadd.f32 %v2348, %v2460
  %v2462 = vpop.f32.mrb[0].mxu0
  %v2463 = vadd.f32 %v2350, %v2462
  %2464 = vmatprep.mubr.bf16.mxu0 0
  %2465 = vmatmul.mubr.bf16.gmra.mrb[0].mxu0 %v686
  %v2466 = vpop.f32.mrb[0].mxu0
  %v2467 = vadd.f32 %v2354, %v2466
  %v2468 = vpop.f32.mrb[0].mxu0
  %v2469 = vadd.f32 %v2356, %v2468
  %v2470 = vpop.f32.mrb[0].mxu0
  %v2471 = vadd.f32 %v2358, %v2470
  %v2472 = vpop.f32.mrb[0].mxu0
  %v2473 = vadd.f32 %v2360, %v2472
  %2474 = vmatprep.mubr.bf16.mxu0 0
  %2475 = vmatmul.mubr.bf16.gmra.mrb[0].mxu0 %v695
  %v2476 = vpop.f32.mrb[0].mxu0
  %v2477 = vadd.f32 %v2364, %v2476
  %v2478 = vpop.f32.mrb[0].mxu0
  %v2479 = vadd.f32 %v2366, %v2478
  %v2480 = vpop.f32.mrb[0].mxu0
  %v2481 = vadd.f32 %v2368, %v2480
  %v2482 = vpop.f32.mrb[0].mxu0
  %v2483 = vadd.f32 %v2370, %v2482
  %2484 = vdwg.mxu0
  %2485 = vmatprep.subr.bf16.mxu0 0
  %2486 = vmatpush1.bf16.msra.mxu0 %v1490
  %2487 = vmatprep.subr.bf16.mxu0 0
  %2488 = vmatpush1.bf16.msra.mxu0 %v1493
  %2489 = vmatprep.subr.bf16.mxu0 0
  %2490 = vmatpush1.bf16.msra.mxu0 %v1496
  %2491 = vmatprep.subr.bf16.mxu0 0
  %2492 = vmatpush1.bf16.msra.mxu0 %v1499
  %2493 = vmatprep.subr.bf16.mxu0 0
  %2494 = vmatpush1.bf16.msra.mxu0 %v1502
  %2495 = vmatprep.subr.bf16.mxu0 0
  %2496 = vmatpush1.bf16.msra.mxu0 %v1505
  %2497 = vmatprep.subr.bf16.mxu0 0
  %2498 = vmatpush1.bf16.msra.mxu0 %v1508
  %2499 = vmatprep.subr.bf16.mxu0 0
  %2500 = vmatpush1.bf16.msra.mxu0 %v1511
  %2501 = vmatprep.subr.bf16.mxu0 0
  %2502 = vmatpush1.bf16.msra.mxu0 %v1514
  %2503 = vmatprep.subr.bf16.mxu0 0
  %2504 = vmatpush1.bf16.msra.mxu0 %v1517
  %2505 = vmatprep.subr.bf16.mxu0 0
  %2506 = vmatpush1.bf16.msra.mxu0 %v1520
  %2507 = vmatprep.subr.bf16.mxu0 0
  %2508 = vmatpush1.bf16.msra.mxu0 %v1523
  %2509 = vmatprep.subr.bf16.mxu0 0
  %2510 = vmatpush1.bf16.msra.mxu0 %v1526
  %2511 = vmatprep.subr.bf16.mxu0 0
  %2512 = vmatpush1.bf16.msra.mxu0 %v1529
  %2513 = vmatprep.subr.bf16.mxu0 0
  %2514 = vmatpush1.bf16.msra.mxu0 %v1532
  %2515 = vmatprep.subr.bf16.mxu0 0
  %2516 = vmatpush1.bf16.msra.mxu0 %v1535
  %2517 = vmatprep.mubr.bf16.mxu0 %v625
  %2518 = vmatmul.mubr.bf16.gmra.mrb[0].mxu0 %v624
  %v2519 = vpop.f32.mrb[0].mxu0
  %v2520 = vadd.f32 %v396, %v2519
  %v2521 = vpop.f32.mrb[0].mxu0
  %v2522 = vpop.f32.mrb[0].mxu0
  %v2523 = vadd.f32 %v396, %v2522
  %v2524 = vpop.f32.mrb[0].mxu0
  %2525 = vmatprep.mubr.bf16.mxu0 %v634
  %2526 = vmatmul.mubr.bf16.gmra.mrb[0].mxu0 %v633
  %v2527 = vpop.f32.mrb[0].mxu0
  %v2528 = vadd.f32 %v396, %v2527
  %v2529 = vpop.f32.mrb[0].mxu0
  %v2530 = vpop.f32.mrb[0].mxu0
  %v2531 = vadd.f32 %v396, %v2530
  %v2532 = vpop.f32.mrb[0].mxu0
  %2533 = vmatprep.mubr.bf16.mxu0 %v643
  %2534 = vmatmul.mubr.bf16.gmra.mrb[0].mxu0 %v642
  %v2535 = vpop.f32.mrb[0].mxu0
  %v2536 = vadd.f32 %v396, %v2535
  %v2537 = vpop.f32.mrb[0].mxu0
  %v2538 = vpop.f32.mrb[0].mxu0
  %v2539 = vadd.f32 %v396, %v2538
  %v2540 = vpop.f32.mrb[0].mxu0
  %2541 = vmatprep.mubr.bf16.mxu0 %v652
  %2542 = vmatmul.mubr.bf16.gmra.mrb[0].mxu0 %v651
  %v2543 = vpop.f32.mrb[0].mxu0
  %v2544 = vadd.f32 %v396, %v2543
  %v2545 = vpop.f32.mrb[0].mxu0
  %v2546 = vpop.f32.mrb[0].mxu0
  %v2547 = vadd.f32 %v396, %v2546
  %v2548 = vpop.f32.mrb[0].mxu0
  %2549 = vmatprep.mubr.bf16.mxu0 %v661
  %2550 = vmatmul.mubr.bf16.gmra.mrb[0].mxu0 %v660
  %v2551 = vpop.f32.mrb[0].mxu0
  %v2552 = vadd.f32 %v396, %v2551
  %v2553 = vpop.f32.mrb[0].mxu0
  %v2554 = vpop.f32.mrb[0].mxu0
  %v2555 = vadd.f32 %v396, %v2554
  %v2556 = vpop.f32.mrb[0].mxu0
  %2557 = vmatprep.mubr.bf16.mxu0 %v670
  %2558 = vmatmul.mubr.bf16.gmra.mrb[0].mxu0 %v669
  %v2559 = vpop.f32.mrb[0].mxu0
  %v2560 = vadd.f32 %v396, %v2559
  %v2561 = vpop.f32.mrb[0].mxu0
  %v2562 = vpop.f32.mrb[0].mxu0
  %v2563 = vadd.f32 %v396, %v2562
  %v2564 = vpop.f32.mrb[0].mxu0
  %2565 = vmatprep.mubr.bf16.mxu0 %v679
  %2566 = vmatmul.mubr.bf16.gmra.mrb[0].mxu0 %v678
  %v2567 = vpop.f32.mrb[0].mxu0
  %v2568 = vadd.f32 %v396, %v2567
  %v2569 = vpop.f32.mrb[0].mxu0
  %v2570 = vpop.f32.mrb[0].mxu0
  %v2571 = vadd.f32 %v396, %v2570
  %v2572 = vpop.f32.mrb[0].mxu0
  %2573 = vmatprep.mubr.bf16.mxu0 %v688
  %2574 = vmatmul.mubr.bf16.gmra.mrb[0].mxu0 %v687
  %v2575 = vpop.f32.mrb[0].mxu0
  %v2576 = vadd.f32 %v396, %v2575
  %v2577 = vpop.f32.mrb[0].mxu0
  %v2578 = vpop.f32.mrb[0].mxu0
  %v2579 = vadd.f32 %v396, %v2578
  %v2580 = vpop.f32.mrb[0].mxu0
  %2581 = vdwg.mxu0
  %2582 = vmatprep.subr.bf16.mxu0 0
  %2583 = vmatpush1.bf16.msra.mxu0 %v1538
  %2584 = vmatprep.subr.bf16.mxu0 0
  %2585 = vmatpush1.bf16.msra.mxu0 %v1541
  %2586 = vmatprep.subr.bf16.mxu0 0
  %2587 = vmatpush1.bf16.msra.mxu0 %v1544
  %2588 = vmatprep.subr.bf16.mxu0 0
  %2589 = vmatpush1.bf16.msra.mxu0 %v1547
  %2590 = vmatprep.subr.bf16.mxu0 0
  %2591 = vmatpush1.bf16.msra.mxu0 %v1550
  %2592 = vmatprep.subr.bf16.mxu0 0
  %2593 = vmatpush1.bf16.msra.mxu0 %v1553
  %2594 = vmatprep.subr.bf16.mxu0 0
  %2595 = vmatpush1.bf16.msra.mxu0 %v1556
  %2596 = vmatprep.subr.bf16.mxu0 0
  %2597 = vmatpush1.bf16.msra.mxu0 %v1559
  %2598 = vmatprep.subr.bf16.mxu0 0
  %2599 = vmatpush1.bf16.msra.mxu0 %v1562
  %2600 = vmatprep.subr.bf16.mxu0 0
  %2601 = vmatpush1.bf16.msra.mxu0 %v1565
  %2602 = vmatprep.subr.bf16.mxu0 0
  %2603 = vmatpush1.bf16.msra.mxu0 %v1568
  %2604 = vmatprep.subr.bf16.mxu0 0
  %2605 = vmatpush1.bf16.msra.mxu0 %v1571
  %2606 = vmatprep.subr.bf16.mxu0 0
  %2607 = vmatpush1.bf16.msra.mxu0 %v1574
  %2608 = vmatprep.subr.bf16.mxu0 0
  %2609 = vmatpush1.bf16.msra.mxu0 %v1577
  %2610 = vmatprep.subr.bf16.mxu0 0
  %2611 = vmatpush1.bf16.msra.mxu0 %v1580
  %2612 = vmatprep.subr.bf16.mxu0 0
  %2613 = vmatpush1.bf16.msra.mxu0 %v1583
  %2614 = vmatprep.mubr.bf16.mxu0 %v627
  %2615 = vmatmul.mubr.bf16.gmra.mrb[0].mxu0 %v626
  %v2616 = vpop.f32.mrb[0].mxu0
  %v2617 = vadd.f32 %v2520, %v2616
  %v2618 = vpop.f32.mrb[0].mxu0
  %v2619 = vpop.f32.mrb[0].mxu0
  %v2620 = vadd.f32 %v2523, %v2619
  %v2621 = vpop.f32.mrb[0].mxu0
  %2622 = vmatprep.mubr.bf16.mxu0 %v636
  %2623 = vmatmul.mubr.bf16.gmra.mrb[0].mxu0 %v635
  %v2624 = vpop.f32.mrb[0].mxu0
  %v2625 = vadd.f32 %v2528, %v2624
  %v2626 = vpop.f32.mrb[0].mxu0
  %v2627 = vpop.f32.mrb[0].mxu0
  %v2628 = vadd.f32 %v2531, %v2627
  %v2629 = vpop.f32.mrb[0].mxu0
  %2630 = vmatprep.mubr.bf16.mxu0 %v645
  %2631 = vmatmul.mubr.bf16.gmra.mrb[0].mxu0 %v644
  %v2632 = vpop.f32.mrb[0].mxu0
  %v2633 = vadd.f32 %v2536, %v2632
  %v2634 = vpop.f32.mrb[0].mxu0
  %v2635 = vpop.f32.mrb[0].mxu0
  %v2636 = vadd.f32 %v2539, %v2635
  %v2637 = vpop.f32.mrb[0].mxu0
  %2638 = vmatprep.mubr.bf16.mxu0 %v654
  %2639 = vmatmul.mubr.bf16.gmra.mrb[0].mxu0 %v653
  %v2640 = vpop.f32.mrb[0].mxu0
  %v2641 = vadd.f32 %v2544, %v2640
  %v2642 = vpop.f32.mrb[0].mxu0
  %v2643 = vpop.f32.mrb[0].mxu0
  %v2644 = vadd.f32 %v2547, %v2643
  %v2645 = vpop.f32.mrb[0].mxu0
  %2646 = vmatprep.mubr.bf16.mxu0 %v663
  %2647 = vmatmul.mubr.bf16.gmra.mrb[0].mxu0 %v662
  %v2648 = vpop.f32.mrb[0].mxu0
  %v2649 = vadd.f32 %v2552, %v2648
  %v2650 = vpop.f32.mrb[0].mxu0
  %v2651 = vpop.f32.mrb[0].mxu0
  %v2652 = vadd.f32 %v2555, %v2651
  %v2653 = vpop.f32.mrb[0].mxu0
  %2654 = vmatprep.mubr.bf16.mxu0 %v672
  %2655 = vmatmul.mubr.bf16.gmra.mrb[0].mxu0 %v671
  %v2656 = vpop.f32.mrb[0].mxu0
  %v2657 = vadd.f32 %v2560, %v2656
  %v2658 = vpop.f32.mrb[0].mxu0
  %v2659 = vpop.f32.mrb[0].mxu0
  %v2660 = vadd.f32 %v2563, %v2659
  %v2661 = vpop.f32.mrb[0].mxu0
  %2662 = vmatprep.mubr.bf16.mxu0 %v681
  %2663 = vmatmul.mubr.bf16.gmra.mrb[0].mxu0 %v680
  %v2664 = vpop.f32.mrb[0].mxu0
  %v2665 = vadd.f32 %v2568, %v2664
  %v2666 = vpop.f32.mrb[0].mxu0
  %v2667 = vpop.f32.mrb[0].mxu0
  %v2668 = vadd.f32 %v2571, %v2667
  %v2669 = vpop.f32.mrb[0].mxu0
  %2670 = vmatprep.mubr.bf16.mxu0 %v690
  %2671 = vmatmul.mubr.bf16.gmra.mrb[0].mxu0 %v689
  %v2672 = vpop.f32.mrb[0].mxu0
  %v2673 = vadd.f32 %v2576, %v2672
  %v2674 = vpop.f32.mrb[0].mxu0
  %v2675 = vpop.f32.mrb[0].mxu0
  %v2676 = vadd.f32 %v2579, %v2675
  %v2677 = vpop.f32.mrb[0].mxu0
  %2678 = vdwg.mxu0
  %2679 = vmatprep.subr.bf16.mxu0 0
  %2680 = vmatpush1.bf16.msra.mxu0 %v1586
  %2681 = vmatprep.subr.bf16.mxu0 0
  %2682 = vmatpush1.bf16.msra.mxu0 %v1589
  %2683 = vmatprep.subr.bf16.mxu0 0
  %2684 = vmatpush1.bf16.msra.mxu0 %v1592
  %2685 = vmatprep.subr.bf16.mxu0 0
  %2686 = vmatpush1.bf16.msra.mxu0 %v1595
  %2687 = vmatprep.subr.bf16.mxu0 0
  %2688 = vmatpush1.bf16.msra.mxu0 %v1598
  %2689 = vmatprep.subr.bf16.mxu0 0
  %2690 = vmatpush1.bf16.msra.mxu0 %v1601
  %2691 = vmatprep.subr.bf16.mxu0 0
  %2692 = vmatpush1.bf16.msra.mxu0 %v1604
  %2693 = vmatprep.subr.bf16.mxu0 0
  %2694 = vmatpush1.bf16.msra.mxu0 %v1607
  %2695 = vmatprep.subr.bf16.mxu0 0
  %2696 = vmatpush1.bf16.msra.mxu0 %v1610
  %2697 = vmatprep.subr.bf16.mxu0 0
  %2698 = vmatpush1.bf16.msra.mxu0 %v1613
  %2699 = vmatprep.subr.bf16.mxu0 0
  %2700 = vmatpush1.bf16.msra.mxu0 %v1616
  %2701 = vmatprep.subr.bf16.mxu0 0
  %2702 = vmatpush1.bf16.msra.mxu0 %v1619
  %2703 = vmatprep.subr.bf16.mxu0 0
  %2704 = vmatpush1.bf16.msra.mxu0 %v1622
  %2705 = vmatprep.subr.bf16.mxu0 0
  %2706 = vmatpush1.bf16.msra.mxu0 %v1625
  %2707 = vmatprep.subr.bf16.mxu0 0
  %2708 = vmatpush1.bf16.msra.mxu0 %v1628
  %2709 = vmatprep.subr.bf16.mxu0 0
  %2710 = vmatpush1.bf16.msra.mxu0 %v1631
  %2711 = vmatprep.mubr.bf16.mxu0 %v629
  %2712 = vmatmul.mubr.bf16.gmra.mrb[0].mxu0 %v628
  %v2713 = vpop.f32.mrb[0].mxu0
  %v2714 = vadd.f32 %v2617, %v2713
  %v2715 = vpop.f32.mrb[0].mxu0
  %v2716 = vpop.f32.mrb[0].mxu0
  %v2717 = vadd.f32 %v2620, %v2716
  %v2718 = vpop.f32.mrb[0].mxu0
  %2719 = vmatprep.mubr.bf16.mxu0 %v638
  %2720 = vmatmul.mubr.bf16.gmra.mrb[0].mxu0 %v637
  %v2721 = vpop.f32.mrb[0].mxu0
  %v2722 = vadd.f32 %v2625, %v2721
  %v2723 = vpop.f32.mrb[0].mxu0
  %v2724 = vpop.f32.mrb[0].mxu0
  %v2725 = vadd.f32 %v2628, %v2724
  %v2726 = vpop.f32.mrb[0].mxu0
  %2727 = vmatprep.mubr.bf16.mxu0 %v647
  %2728 = vmatmul.mubr.bf16.gmra.mrb[0].mxu0 %v646
  %v2729 = vpop.f32.mrb[0].mxu0
  %v2730 = vadd.f32 %v2633, %v2729
  %v2731 = vpop.f32.mrb[0].mxu0
  %v2732 = vpop.f32.mrb[0].mxu0
  %v2733 = vadd.f32 %v2636, %v2732
  %v2734 = vpop.f32.mrb[0].mxu0
  %2735 = vmatprep.mubr.bf16.mxu0 %v656
  %2736 = vmatmul.mubr.bf16.gmra.mrb[0].mxu0 %v655
  %v2737 = vpop.f32.mrb[0].mxu0
  %v2738 = vadd.f32 %v2641, %v2737
  %v2739 = vpop.f32.mrb[0].mxu0
  %v2740 = vpop.f32.mrb[0].mxu0
  %v2741 = vadd.f32 %v2644, %v2740
  %v2742 = vpop.f32.mrb[0].mxu0
  %2743 = vmatprep.mubr.bf16.mxu0 %v665
  %2744 = vmatmul.mubr.bf16.gmra.mrb[0].mxu0 %v664
  %v2745 = vpop.f32.mrb[0].mxu0
  %v2746 = vadd.f32 %v2649, %v2745
  %v2747 = vpop.f32.mrb[0].mxu0
  %v2748 = vpop.f32.mrb[0].mxu0
  %v2749 = vadd.f32 %v2652, %v2748
  %v2750 = vpop.f32.mrb[0].mxu0
  %2751 = vmatprep.mubr.bf16.mxu0 %v674
  %2752 = vmatmul.mubr.bf16.gmra.mrb[0].mxu0 %v673
  %v2753 = vpop.f32.mrb[0].mxu0
  %v2754 = vadd.f32 %v2657, %v2753
  %v2755 = vpop.f32.mrb[0].mxu0
  %v2756 = vpop.f32.mrb[0].mxu0
  %v2757 = vadd.f32 %v2660, %v2756
  %v2758 = vpop.f32.mrb[0].mxu0
  %2759 = vmatprep.mubr.bf16.mxu0 %v683
  %2760 = vmatmul.mubr.bf16.gmra.mrb[0].mxu0 %v682
  %v2761 = vpop.f32.mrb[0].mxu0
  %v2762 = vadd.f32 %v2665, %v2761
  %v2763 = vpop.f32.mrb[0].mxu0
  %v2764 = vpop.f32.mrb[0].mxu0
  %v2765 = vadd.f32 %v2668, %v2764
  %v2766 = vpop.f32.mrb[0].mxu0
  %2767 = vmatprep.mubr.bf16.mxu0 %v692
  %2768 = vmatmul.mubr.bf16.gmra.mrb[0].mxu0 %v691
  %v2769 = vpop.f32.mrb[0].mxu0
  %v2770 = vadd.f32 %v2673, %v2769
  %v2771 = vpop.f32.mrb[0].mxu0
  %v2772 = vpop.f32.mrb[0].mxu0
  %v2773 = vadd.f32 %v2676, %v2772
  %v2774 = vpop.f32.mrb[0].mxu0
  %2775 = vdwg.mxu0
  %2776 = vmatprep.subr.bf16.mxu0 0
  %2777 = vmatpush1.bf16.msra.mxu0 %v1634
  %2778 = vmatprep.subr.bf16.mxu0 0
  %2779 = vmatpush1.bf16.msra.mxu0 %v1637
  %2780 = vmatprep.subr.bf16.mxu0 0
  %2781 = vmatpush1.bf16.msra.mxu0 %v1640
  %2782 = vmatprep.subr.bf16.mxu0 0
  %2783 = vmatpush1.bf16.msra.mxu0 %v1643
  %2784 = vmatprep.subr.bf16.mxu0 0
  %2785 = vmatpush1.bf16.msra.mxu0 %v1646
  %2786 = vmatprep.subr.bf16.mxu0 0
  %2787 = vmatpush1.bf16.msra.mxu0 %v1649
  %2788 = vmatprep.subr.bf16.mxu0 0
  %2789 = vmatpush1.bf16.msra.mxu0 %v1652
  %2790 = vmatprep.subr.bf16.mxu0 0
  %2791 = vmatpush1.bf16.msra.mxu0 %v1655
  %2792 = vmatprep.subr.bf16.mxu0 0
  %2793 = vmatpush1.bf16.msra.mxu0 %v1658
  %2794 = vmatprep.subr.bf16.mxu0 0
  %2795 = vmatpush1.bf16.msra.mxu0 %v1661
  %2796 = vmatprep.subr.bf16.mxu0 0
  %2797 = vmatpush1.bf16.msra.mxu0 %v1664
  %2798 = vmatprep.subr.bf16.mxu0 0
  %2799 = vmatpush1.bf16.msra.mxu0 %v1667
  %2800 = vmatprep.subr.bf16.mxu0 0
  %2801 = vmatpush1.bf16.msra.mxu0 %v1670
  %2802 = vmatprep.subr.bf16.mxu0 0
  %2803 = vmatpush1.bf16.msra.mxu0 %v1673
  %2804 = vmatprep.subr.bf16.mxu0 0
  %2805 = vmatpush1.bf16.msra.mxu0 %v1676
  %2806 = vmatprep.subr.bf16.mxu0 0
  %2807 = vmatpush1.bf16.msra.mxu0 %v1679
  %2808 = vmatprep.mubr.bf16.mxu0 %v631
  %2809 = vmatmul.mubr.bf16.gmra.mrb[0].mxu0 %v630
  %v2810 = vpop.f32.mrb[0].mxu0
  %v2811 = vadd.f32 %v2714, %v2810
  %v2812 = vpop.f32.mrb[0].mxu0
  %v2813 = vpop.f32.mrb[0].mxu0
  %v2814 = vadd.f32 %v2717, %v2813
  %v2815 = vpop.f32.mrb[0].mxu0
  %2816 = vmatprep.mubr.bf16.mxu0 %v640
  %2817 = vmatmul.mubr.bf16.gmra.mrb[0].mxu0 %v639
  %v2818 = vpop.f32.mrb[0].mxu0
  %v2819 = vadd.f32 %v2722, %v2818
  %v2820 = vpop.f32.mrb[0].mxu0
  %v2821 = vpop.f32.mrb[0].mxu0
  %v2822 = vadd.f32 %v2725, %v2821
  %v2823 = vpop.f32.mrb[0].mxu0
  %2824 = vmatprep.mubr.bf16.mxu0 %v649
  %2825 = vmatmul.mubr.bf16.gmra.mrb[0].mxu0 %v648
  %v2826 = vpop.f32.mrb[0].mxu0
  %v2827 = vadd.f32 %v2730, %v2826
  %v2828 = vpop.f32.mrb[0].mxu0
  %v2829 = vpop.f32.mrb[0].mxu0
  %v2830 = vadd.f32 %v2733, %v2829
  %v2831 = vpop.f32.mrb[0].mxu0
  %2832 = vmatprep.mubr.bf16.mxu0 %v658
  %2833 = vmatmul.mubr.bf16.gmra.mrb[0].mxu0 %v657
  %v2834 = vpop.f32.mrb[0].mxu0
  %v2835 = vadd.f32 %v2738, %v2834
  %v2836 = vpop.f32.mrb[0].mxu0
  %v2837 = vpop.f32.mrb[0].mxu0
  %v2838 = vadd.f32 %v2741, %v2837
  %v2839 = vpop.f32.mrb[0].mxu0
  %2840 = vmatprep.mubr.bf16.mxu0 %v667
  %2841 = vmatmul.mubr.bf16.gmra.mrb[0].mxu0 %v666
  %v2842 = vpop.f32.mrb[0].mxu0
  %v2843 = vadd.f32 %v2746, %v2842
  %v2844 = vpop.f32.mrb[0].mxu0
  %v2845 = vpop.f32.mrb[0].mxu0
  %v2846 = vadd.f32 %v2749, %v2845
  %v2847 = vpop.f32.mrb[0].mxu0
  %2848 = vmatprep.mubr.bf16.mxu0 %v676
  %2849 = vmatmul.mubr.bf16.gmra.mrb[0].mxu0 %v675
  %v2850 = vpop.f32.mrb[0].mxu0
  %v2851 = vadd.f32 %v2754, %v2850
  %v2852 = vpop.f32.mrb[0].mxu0
  %v2853 = vpop.f32.mrb[0].mxu0
  %v2854 = vadd.f32 %v2757, %v2853
  %v2855 = vpop.f32.mrb[0].mxu0
  %2856 = vmatprep.mubr.bf16.mxu0 %v685
  %2857 = vmatmul.mubr.bf16.gmra.mrb[0].mxu0 %v684
  %v2858 = vpop.f32.mrb[0].mxu0
  %v2859 = vadd.f32 %v2762, %v2858
  %v2860 = vpop.f32.mrb[0].mxu0
  %v2861 = vpop.f32.mrb[0].mxu0
  %v2862 = vadd.f32 %v2765, %v2861
  %v2863 = vpop.f32.mrb[0].mxu0
  %2864 = vmatprep.mubr.bf16.mxu0 %v694
  %2865 = vmatmul.mubr.bf16.gmra.mrb[0].mxu0 %v693
  %v2866 = vpop.f32.mrb[0].mxu0
  %v2867 = vadd.f32 %v2770, %v2866
  %v2868 = vpop.f32.mrb[0].mxu0
  %v2869 = vpop.f32.mrb[0].mxu0
  %v2870 = vadd.f32 %v2773, %v2869
  %v2871 = vpop.f32.mrb[0].mxu0
  %2872 = vdwg.mxu0
  %2873 = vmatprep.subr.bf16.mxu0 0
  %2874 = vmatpush1.bf16.msra.mxu0 %v1682
  %2875 = vmatprep.subr.bf16.mxu0 0
  %2876 = vmatpush1.bf16.msra.mxu0 %v1685
  %2877 = vmatprep.subr.bf16.mxu0 0
  %2878 = vmatpush1.bf16.msra.mxu0 %v1688
  %2879 = vmatprep.subr.bf16.mxu0 0
  %2880 = vmatpush1.bf16.msra.mxu0 %v1691
  %2881 = vmatprep.subr.bf16.mxu0 0
  %2882 = vmatpush1.bf16.msra.mxu0 %v1694
  %2883 = vmatprep.subr.bf16.mxu0 0
  %2884 = vmatpush1.bf16.msra.mxu0 %v1697
  %2885 = vmatprep.subr.bf16.mxu0 0
  %2886 = vmatpush1.bf16.msra.mxu0 %v1700
  %2887 = vmatprep.subr.bf16.mxu0 0
  %2888 = vmatpush1.bf16.msra.mxu0 %v1703
  %2889 = vmatprep.subr.bf16.mxu0 0
  %2890 = vmatpush1.bf16.msra.mxu0 0
  %2891 = vmatprep.subr.bf16.mxu0 0
  %2892 = vmatpush1.bf16.msra.mxu0 0
  %2893 = vmatprep.subr.bf16.mxu0 0
  %2894 = vmatpush1.bf16.msra.mxu0 0
  %2895 = vmatprep.subr.bf16.mxu0 0
  %2896 = vmatpush1.bf16.msra.mxu0 0
  %2897 = vmatprep.subr.bf16.mxu0 0
  %2898 = vmatpush1.bf16.msra.mxu0 0
  %2899 = vmatprep.subr.bf16.mxu0 0
  %2900 = vmatpush1.bf16.msra.mxu0 0
  %2901 = vmatprep.subr.bf16.mxu0 0
  %2902 = vmatpush1.bf16.msra.mxu0 0
  %2903 = vmatprep.subr.bf16.mxu0 0
  %2904 = vmatpush1.bf16.msra.mxu0 0
  %2905 = vmatprep.mubr.bf16.mxu0 0
  %2906 = vmatmul.mubr.bf16.gmra.mrb[0].mxu0 %v632
  %v2907 = vpop.f32.mrb[0].mxu0
  %v2908 = vadd.f32 %v2811, %v2907
  %v2909 = vpop.f32.mrb[0].mxu0
  %v2910 = vpop.f32.mrb[0].mxu0
  %v2911 = vadd.f32 %v2814, %v2910
  %v2912 = vpop.f32.mrb[0].mxu0
  %2913 = vmatprep.mubr.bf16.mxu0 0
  %2914 = vmatmul.mubr.bf16.gmra.mrb[0].mxu0 %v641
  %v2915 = vpop.f32.mrb[0].mxu0
  %v2916 = vadd.f32 %v2819, %v2915
  %v2917 = vpop.f32.mrb[0].mxu0
  %v2918 = vpop.f32.mrb[0].mxu0
  %v2919 = vadd.f32 %v2822, %v2918
  %v2920 = vpop.f32.mrb[0].mxu0
  %2921 = vmatprep.mubr.bf16.mxu0 0
  %2922 = vmatmul.mubr.bf16.gmra.mrb[0].mxu0 %v650
  %v2923 = vpop.f32.mrb[0].mxu0
  %v2924 = vadd.f32 %v2827, %v2923
  %v2925 = vpop.f32.mrb[0].mxu0
  %v2926 = vpop.f32.mrb[0].mxu0
  %v2927 = vadd.f32 %v2830, %v2926
  %v2928 = vpop.f32.mrb[0].mxu0
  %2929 = vmatprep.mubr.bf16.mxu0 0
  %2930 = vmatmul.mubr.bf16.gmra.mrb[0].mxu0 %v659
  %v2931 = vpop.f32.mrb[0].mxu0
  %v2932 = vadd.f32 %v2835, %v2931
  %v2933 = vpop.f32.mrb[0].mxu0
  %v2934 = vpop.f32.mrb[0].mxu0
  %v2935 = vadd.f32 %v2838, %v2934
  %v2936 = vpop.f32.mrb[0].mxu0
  %2937 = vmatprep.mubr.bf16.mxu0 0
  %2938 = vmatmul.mubr.bf16.gmra.mrb[0].mxu0 %v668
  %v2939 = vpop.f32.mrb[0].mxu0
  %v2940 = vadd.f32 %v2843, %v2939
  %v2941 = vpop.f32.mrb[0].mxu0
  %v2942 = vpop.f32.mrb[0].mxu0
  %v2943 = vadd.f32 %v2846, %v2942
  %v2944 = vpop.f32.mrb[0].mxu0
  %2945 = vmatprep.mubr.bf16.mxu0 0
  %2946 = vmatmul.mubr.bf16.gmra.mrb[0].mxu0 %v677
  %v2947 = vpop.f32.mrb[0].mxu0
  %v2948 = vadd.f32 %v2851, %v2947
  %v2949 = vpop.f32.mrb[0].mxu0
  %v2950 = vpop.f32.mrb[0].mxu0
  %v2951 = vadd.f32 %v2854, %v2950
  %v2952 = vpop.f32.mrb[0].mxu0
  %2953 = vmatprep.mubr.bf16.mxu0 0
  %2954 = vmatmul.mubr.bf16.gmra.mrb[0].mxu0 %v686
  %v2955 = vpop.f32.mrb[0].mxu0
  %v2956 = vadd.f32 %v2859, %v2955
  %v2957 = vpop.f32.mrb[0].mxu0
  %v2958 = vpop.f32.mrb[0].mxu0
  %v2959 = vadd.f32 %v2862, %v2958
  %v2960 = vpop.f32.mrb[0].mxu0
  %2961 = vmatprep.mubr.bf16.mxu0 0
  %2962 = vmatmul.mubr.bf16.gmra.mrb[0].mxu0 %v695
  %v2963 = vpop.f32.mrb[0].mxu0
  %v2964 = vadd.f32 %v2867, %v2963
  %v2965 = vpop.f32.mrb[0].mxu0
  %v2966 = vpop.f32.mrb[0].mxu0
  %v2967 = vadd.f32 %v2870, %v2966
  %v2968 = vpop.f32.mrb[0].mxu0
  %2969 = vdwg.mxu0
  %v2970 = vmax.f32 %v2407, 0.0
  %v2971 = vmax.f32 %v2409, 0.0
  %v2972 = vmax.f32 %v2908, 0.0
  %v2973 = vmax.f32 %v2411, 0.0
  %v2974 = vmax.f32 %v2413, 0.0
  %v2975 = vmax.f32 %v2911, 0.0
  %v2976 = vmax.f32 %v2417, 0.0
  %v2977 = vmax.f32 %v2419, 0.0
  %v2978 = vmax.f32 %v2916, 0.0
  %v2979 = vmax.f32 %v2421, 0.0
  %v2980 = vmax.f32 %v2423, 0.0
  %v2981 = vmax.f32 %v2919, 0.0
  %v2982 = vmax.f32 %v2427, 0.0
  %v2983 = vmax.f32 %v2429, 0.0
  %v2984 = vmax.f32 %v2924, 0.0
  %v2985 = vmax.f32 %v2431, 0.0
  %v2986 = vmax.f32 %v2433, 0.0
  %v2987 = vmax.f32 %v2927, 0.0
  %v2988 = vmax.f32 %v2437, 0.0
  %v2989 = vmax.f32 %v2439, 0.0
  %v2990 = vmax.f32 %v2932, 0.0
  %v2991 = vmax.f32 %v2441, 0.0
  %v2992 = vmax.f32 %v2443, 0.0
  %v2993 = vmax.f32 %v2935, 0.0
  %v2994 = vmax.f32 %v2447, 0.0
  %v2995 = vmax.f32 %v2449, 0.0
  %v2996 = vmax.f32 %v2940, 0.0
  %v2997 = vmax.f32 %v2451, 0.0
  %v2998 = vmax.f32 %v2453, 0.0
  %v2999 = vmax.f32 %v2943, 0.0
  %v3000 = vmax.f32 %v2457, 0.0
  %v3001 = vmax.f32 %v2459, 0.0
  %v3002 = vmax.f32 %v2948, 0.0
  %v3003 = vmax.f32 %v2461, 0.0
  %v3004 = vmax.f32 %v2463, 0.0
  %v3005 = vmax.f32 %v2951, 0.0
  %v3006 = vmax.f32 %v2467, 0.0
  %v3007 = vmax.f32 %v2469, 0.0
  %v3008 = vmax.f32 %v2956, 0.0
  %v3009 = vmax.f32 %v2471, 0.0
  %v3010 = vmax.f32 %v2473, 0.0
  %v3011 = vmax.f32 %v2959, 0.0
  %v3012 = vmax.f32 %v2477, 0.0
  %v3013 = vmax.f32 %v2479, 0.0
  %v3014 = vmax.f32 %v2964, 0.0
  %v3015 = vmax.f32 %v2481, 0.0
  %v3016 = vmax.f32 %v2483, 0.0
  %v3017 = vmax.f32 %v2967, 0.0
  %v3018 = vpack.c.bf16 %v2973, %v2970
  %v3019 = vpack.c.bf16 %v2974, %v2971
  %v3020 = vpack.c.bf16 %v2975, %v2972
  %v3021 = vpack.c.bf16 %v2979, %v2976
  %v3022 = vpack.c.bf16 %v2980, %v2977
  %v3023 = vpack.c.bf16 %v2981, %v2978
  %v3024 = vpack.c.bf16 %v2985, %v2982
  %v3025 = vpack.c.bf16 %v2986, %v2983
  %v3026 = vpack.c.bf16 %v2987, %v2984
  %v3027 = vpack.c.bf16 %v2991, %v2988
  %v3028 = vpack.c.bf16 %v2992, %v2989
  %v3029 = vpack.c.bf16 %v2993, %v2990
  %v3030 = vpack.c.bf16 %v2997, %v2994
  %v3031 = vpack.c.bf16 %v2998, %v2995
  %v3032 = vpack.c.bf16 %v2999, %v2996
  %v3033 = vpack.c.bf16 %v3003, %v3000
  %v3034 = vpack.c.bf16 %v3004, %v3001
  %v3035 = vpack.c.bf16 %v3005, %v3002
  %v3036 = vpack.c.bf16 %v3009, %v3006
  %v3037 = vpack.c.bf16 %v3010, %v3007
  %v3038 = vpack.c.bf16 %v3011, %v3008
  %v3039 = vpack.c.bf16 %v3015, %v3012
  %v3040 = vpack.c.bf16 %v3016, %v3013
  %v3041 = vpack.c.bf16 %v3017, %v3014
  %v3066 = vunpack.c.l.b16 %v3018
  %v3067 = vunpack.c.l.b16 %v3019
  %v3068 = vunpack.c.l.b16 %v3020
  %v3069 = vunpack.c.h.b16 %v3018
  %v3070 = vunpack.c.h.b16 %v3019
  %v3071 = vunpack.c.h.b16 %v3020
  %v3072 = vunpack.c.l.b16 %v3021
  %v3073 = vunpack.c.l.b16 %v3022
  %v3074 = vunpack.c.l.b16 %v3023
  %v3075 = vunpack.c.h.b16 %v3021
  %v3076 = vunpack.c.h.b16 %v3022
  %v3077 = vunpack.c.h.b16 %v3023
  %v3078 = vunpack.c.l.b16 %v3024
  %v3079 = vunpack.c.l.b16 %v3025
  %v3080 = vunpack.c.l.b16 %v3026
  %v3081 = vunpack.c.h.b16 %v3024
  %v3082 = vunpack.c.h.b16 %v3025
  %v3083 = vunpack.c.h.b16 %v3026
  %v3084 = vunpack.c.l.b16 %v3027
  %v3085 = vunpack.c.l.b16 %v3028
  %v3086 = vunpack.c.l.b16 %v3029
  %v3087 = vunpack.c.h.b16 %v3027
  %v3088 = vunpack.c.h.b16 %v3028
  %v3089 = vunpack.c.h.b16 %v3029
  %v3090 = vunpack.c.l.b16 %v3030
  %v3091 = vunpack.c.l.b16 %v3031
  %v3092 = vunpack.c.l.b16 %v3032
  %v3093 = vunpack.c.h.b16 %v3030
  %v3094 = vunpack.c.h.b16 %v3031
  %v3095 = vunpack.c.h.b16 %v3032
  %v3096 = vunpack.c.l.b16 %v3033
  %v3097 = vunpack.c.l.b16 %v3034
  %v3098 = vunpack.c.l.b16 %v3035
  %v3099 = vunpack.c.h.b16 %v3033
  %v3100 = vunpack.c.h.b16 %v3034
  %v3101 = vunpack.c.h.b16 %v3035
  %v3102 = vunpack.c.l.b16 %v3036
  %v3103 = vunpack.c.l.b16 %v3037
  %v3104 = vunpack.c.l.b16 %v3038
  %v3105 = vunpack.c.h.b16 %v3036
  %v3106 = vunpack.c.h.b16 %v3037
  %v3107 = vunpack.c.h.b16 %v3038
  %v3108 = vunpack.c.l.b16 %v3039
  %v3109 = vunpack.c.l.b16 %v3040
  %v3110 = vunpack.c.l.b16 %v3041
  %v3111 = vunpack.c.h.b16 %v3039
  %v3112 = vunpack.c.h.b16 %v3040
  %v3113 = vunpack.c.h.b16 %v3041
  %v3114 = vpack.c.b16 %v3067, %v3066
  %v3115 = vpack.c.b16 %v3068, %v3068
  %v3116 = vpack.c.b16 %v3070, %v3069
  %v3117 = vpack.c.b16 %v3071, %v3071
  %v3118 = vpack.c.b16 %v3073, %v3072
  %v3119 = vpack.c.b16 %v3074, %v3074
  %v3120 = vpack.c.b16 %v3076, %v3075
  %v3121 = vpack.c.b16 %v3077, %v3077
  %v3122 = vpack.c.b16 %v3079, %v3078
  %v3123 = vpack.c.b16 %v3080, %v3080
  %v3124 = vpack.c.b16 %v3082, %v3081
  %v3125 = vpack.c.b16 %v3083, %v3083
  %v3126 = vpack.c.b16 %v3085, %v3084
  %v3127 = vpack.c.b16 %v3086, %v3086
  %v3128 = vpack.c.b16 %v3088, %v3087
  %v3129 = vpack.c.b16 %v3089, %v3089
  %v3130 = vpack.c.b16 %v3091, %v3090
  %v3131 = vpack.c.b16 %v3092, %v3092
  %v3132 = vpack.c.b16 %v3094, %v3093
  %v3133 = vpack.c.b16 %v3095, %v3095
  %v3134 = vpack.c.b16 %v3097, %v3096
  %v3135 = vpack.c.b16 %v3098, %v3098
  %v3136 = vpack.c.b16 %v3100, %v3099
  %v3137 = vpack.c.b16 %v3101, %v3101
  %v3138 = vpack.c.b16 %v3103, %v3102
  %v3139 = vpack.c.b16 %v3104, %v3104
  %v3140 = vpack.c.b16 %v3106, %v3105
  %v3141 = vpack.c.b16 %v3107, %v3107
  %v3142 = vpack.c.b16 %v3109, %v3108
  %v3143 = vpack.c.b16 %v3110, %v3110
  %v3144 = vpack.c.b16 %v3112, %v3111
  %v3145 = vpack.c.b16 %v3113, %v3113
  %3178 = vst [vmem:[%s3] sm:$0xff] %v3114
  %vm3179 = vcmask 519168
  %3180 = vst.msk [vmem:[%s3 + $0x8] sm:$0xf] %vm3179, %v3115
  %3181 = vst [vmem:[%s3 + $0xc] sm:$0xff] %v3116
  %3182 = vst.msk [vmem:[%s3 + $0x14] sm:$0xf] %vm3179, %v3117
  %3183 = vst [vmem:[%s3 + $0x18] sm:$0xff] %v3118
  %3184 = vst.msk [vmem:[%s3 + $0x20] sm:$0xf] %vm3179, %v3119
  %3185 = vst [vmem:[%s3 + $0x24] sm:$0xff] %v3120
  %3186 = vst.msk [vmem:[%s3 + $0x2c] sm:$0xf] %vm3179, %v3121
  %3187 = vst [vmem:[%s3 + $0x30] sm:$0xff] %v3122
  %3188 = vst.msk [vmem:[%s3 + $0x38] sm:$0xf] %vm3179, %v3123
  %3189 = vst [vmem:[%s3 + $0x3c] sm:$0xff] %v3124
  %3190 = vst.msk [vmem:[%s3 + $0x44] sm:$0xf] %vm3179, %v3125
  %3191 = vst [vmem:[%s3 + $0x48] sm:$0xff] %v3126
  %3192 = vst.msk [vmem:[%s3 + $0x50] sm:$0xf] %vm3179, %v3127
  %3193 = vst [vmem:[%s3 + $0x54] sm:$0xff] %v3128
  %3194 = vst.msk [vmem:[%s3 + $0x5c] sm:$0xf] %vm3179, %v3129
  %3195 = vst [vmem:[%s3 + $0x60] sm:$0xff] %v3130
  %3196 = vst.msk [vmem:[%s3 + $0x68] sm:$0xf] %vm3179, %v3131
  %3197 = vst [vmem:[%s3 + $0x6c] sm:$0xff] %v3132
  %3198 = vst.msk [vmem:[%s3 + $0x74] sm:$0xf] %vm3179, %v3133
  %3199 = vst [vmem:[%s3 + $0x78] sm:$0xff] %v3134
  %3200 = vst.msk [vmem:[%s3 + $0x80] sm:$0xf] %vm3179, %v3135
  %3201 = vst [vmem:[%s3 + $0x84] sm:$0xff] %v3136
  %3202 = vst.msk [vmem:[%s3 + $0x8c] sm:$0xf] %vm3179, %v3137
  %3203 = vst [vmem:[%s3 + $0x90] sm:$0xff] %v3138
  %3204 = vst.msk [vmem:[%s3 + $0x98] sm:$0xf] %vm3179, %v3139
  %3205 = vst [vmem:[%s3 + $0x9c] sm:$0xff] %v3140
  %3206 = vst.msk [vmem:[%s3 + $0xa4] sm:$0xf] %vm3179, %v3141
  %3207 = vst [vmem:[%s3 + $0xa8] sm:$0xff] %v3142
  %3208 = vst.msk [vmem:[%s3 + $0xb0] sm:$0xf] %vm3179, %v3143
  %3209 = vst [vmem:[%s3 + $0xb4] sm:$0xff] %v3144
  %3210 = vst.msk [vmem:[%s3 + $0xbc] sm:$0xf] %vm3179, %v3145
  // Predicated region
  $region14: #{inception_b_res2_forward.4} parent=0 // pred_check
    _
  $region15: #{inception_b_res2_forward.4} parent=0 // pred_check_branch
    %3212 = sbr.rel (0) target = $region17
  $region16: #{inception_b_res2_forward.4} parent=0 // pred_region
    _
  $region17: #{inception_b_res2_forward.4} parent=0 // pred_fallthru
    _
  // Predicated region
  $region18: #{inception_b_res2_forward.4} parent=0 // pred_check
    _
  $region19: #{inception_b_res2_forward.4} parent=0 // pred_check_branch
    %3214 = sbr.rel (0) target = $region21
  $region20: #{inception_b_res2_forward.4} parent=0 // pred_region
    _
  $region21: #{inception_b_res2_forward.4} parent=0 // pred_fallthru
    _

// kernel: inception_b_res2_forward.7
$region0: #{inception_b_res2_forward.7}
  #allocation0 [shape = 'u32[]', space=smem, size = 0x4, offset = 0x4, fixed_abs, tag = 'smem constant byte address 0x4 - core index']
  #allocation1 [shape = 'u32[144,128]{1,0:T(1,128)}', space=vmem, size = 0x12000, scoped, tag = 'internal scratch']
  %s0 = inlined_call_operand.vmem [shape: bf16[128,192], index: 0, kind: input, shape index: {}]
  %s1 = inlined_call_operand.vmem [shape: bf16[128,192], index: 1, kind: input, shape index: {}]
  %s2 = inlined_call_operand.vmem [shape: bf16[192,1152], index: 2, kind: input, shape index: {}]
  %s3 = inlined_call_operand.vmem [shape: bf16[192,1152], index: 3, kind: input, shape index: {}]
  %s4 = inlined_call_operand.vmem [shape: f32[1,1152], index: 4, kind: input, shape index: {}]
  %s5 = inlined_call_operand.vmem [shape: f32[128,1152], index: 5, kind: input, shape index: {}]
  %s6 = inlined_call_operand.hbm [shape: f32[128,1152], index: 6, kind: output, shape index: {}]
  %s7 = sld [smem:[#allocation0]]
  $region132: #{inception_b_res2_forward.7} parent=0
    _
  %s9 = ssub.s32 1, %s7
  %s10 = scalar_select 0, %s9, %s7
  $region1: #{inception_b_res2_forward.7} parent=0
    #allocation2 [shape = 'u8[294912]{0}', space=vmem, size = 0x48000, scoped, tag = 'input window, operand 2']
    #allocation3 [shape = 'u8[294912]{0}', space=vmem, size = 0x48000, scoped, tag = 'input window, operand 3']
    #allocation4 [shape = 'u8[393216]{0}', space=vmem, size = 0x60000, scoped, tag = 'input window, operand 5']
    #allocation5 [shape = 'u8[393216]{0}', space=vmem, size = 0x60000, scoped, tag = 'output window, operand 0']
    #allocation6 [shape = 's32[2]{0}', space=sflag, size = 0x8, scoped, tag = 'scoped memory for inception_b_res2_forward.7']
    %11 = vsyncpa [#allocation6], 0
    %s12 = scalar_lea.sflag [#allocation6], 1
    %13 = vsyncpa %s12, 0
    loop: start=0, step=1, limit=5
    $region2: #{inception_b_res2_forward.7} parent=1 // loop_pre_header
      _
    $region3: #{inception_b_res2_forward.7} parent=1 // loop_header
      %s15 = sphi 0, %s19
      %p16 = scmp.ge.s32.totalorder %s15, 5
      %s23 = sphi 0, %s23
      %s25 = sphi 0, %s23
      %s26 = sphi 0, %s25
      %s40 = sphi 0, %s26
      %s44 = sphi 0, %s44
      %s46 = sphi 0, %s44
      %s47 = sphi 0, %s46
      %s61 = sphi 0, %s47
      %s67 = sphi 0, %s69
      %s70 = sphi 0, %s67
      %s71 = sphi 0, %s70
      %s87 = sphi 0, %s71
      %s93 = sphi 0, %s95
      %s96 = sphi 0, %s93
      %s97 = sphi 0, %s96
      %s113 = sphi 0, %s97
      %s119 = sphi 0, %s121
      %s122 = sphi 0, %s119
      %s123 = sphi 0, %s122
      %s139 = sphi 0, %s123
      %s145 = sphi 0, %s147
      %s148 = sphi 0, %s145
      %s149 = sphi 0, %s148
      %s165 = sphi 0, %s149
      %s171 = sphi 0, %s173
      %s174 = sphi 0, %s171
      %s175 = sphi 0, %s174
      %s191 = sphi 0, %s175
    $region4: #{inception_b_res2_forward.7} parent=1 // loop_header_branch
      %18 = sbr.rel (%p16) target = $region8
    $region5: #{inception_b_res2_forward.7} parent=1 // loop_body
      %s20 = ssub.s32 %s15, 1
      %s21 = ssub.s32 %s15, 2
      %s22 = sadd.s32 %s15, 1
      %s24 = sadd.s32 %s23, 1
      %p27 = scmp.eq.s32.totalorder %s15, 2
      %p28 = scmp.ne.s32.totalorder %s23, %s25
      %p29 = scmp.eq.s32.totalorder %s15, 0
      %p30 = por %p28, %p29
      %p31 = scmp.ne.s32.totalorder %s23, %s25
      %p32 = scmp.eq.s32.totalorder %s20, 2
      %p33 = por %p31, %p32
      %p34 = scmp.ne.s32.totalorder %s25, %s26
      %p35 = scmp.eq.s32.totalorder %s20, 0
      %p36 = por %p34, %p35
      %p37 = scmp.ne.s32.totalorder %s25, %s26
      %p38 = scmp.eq.s32.totalorder %s21, 2
      %p39 = por %p37, %p38
      %p41 = scmp.ne.s32.totalorder %s26, %s40
      %p42 = scmp.eq.s32.totalorder %s21, 0
      %p43 = por %p41, %p42
      %s45 = sadd.s32 %s44, 1
      %p48 = scmp.eq.s32.totalorder %s15, 2
      %p49 = scmp.ne.s32.totalorder %s44, %s46
      %p50 = scmp.eq.s32.totalorder %s15, 0
      %p51 = por %p49, %p50
      %p52 = scmp.ne.s32.totalorder %s44, %s46
      %p53 = scmp.eq.s32.totalorder %s20, 2
      %p54 = por %p52, %p53
      %p55 = scmp.ne.s32.totalorder %s46, %s47
      %p56 = scmp.eq.s32.totalorder %s20, 0
      %p57 = por %p55, %p56
      %p58 = scmp.ne.s32.totalorder %s46, %s47
      %p59 = scmp.eq.s32.totalorder %s21, 2
      %p60 = por %p58, %p59
      %p62 = scmp.ne.s32.totalorder %s47, %s61
      %p63 = scmp.eq.s32.totalorder %s21, 0
      %p64 = por %p62, %p63
      %s65 = ssub.s32 %s15, %s22
      %p66 = scmp.eq.s32.totalorder %s65, 0
      %s68 = sadd.s32 %s67, 1
      %s69 = scalar_select %p66, %s67, %s68
      %p72 = pneg %p66
      %p73 = scmp.eq.s32.totalorder %s15, 2
      %p74 = por %p72, %p73
      %p75 = scmp.ne.s32.totalorder %s67, %s70
      %p76 = scmp.eq.s32.totalorder %s15, 0
      %p77 = por %p75, %p76
      %p78 = scmp.ne.s32.totalorder %s67, %s70
      %p79 = scmp.eq.s32.totalorder %s20, 2
      %p80 = por %p78, %p79
      %p81 = scmp.ne.s32.totalorder %s70, %s71
      %p82 = scmp.eq.s32.totalorder %s20, 0
      %p83 = por %p81, %p82
      %p84 = scmp.ne.s32.totalorder %s70, %s71
      %p85 = scmp.eq.s32.totalorder %s21, 2
      %p86 = por %p84, %p85
      %p88 = scmp.ne.s32.totalorder %s71, %s87
      %p89 = scmp.eq.s32.totalorder %s21, 0
      %p90 = por %p88, %p89
      %s91 = ssub.s32 %s15, %s22
      %p92 = scmp.eq.s32.totalorder %s91, 0
      %s94 = sadd.s32 %s93, 1
      %s95 = scalar_select %p92, %s93, %s94
      %p98 = pneg %p92
      %p99 = scmp.eq.s32.totalorder %s15, 2
      %p100 = por %p98, %p99
      %p101 = scmp.ne.s32.totalorder %s93, %s96
      %p102 = scmp.eq.s32.totalorder %s15, 0
      %p103 = por %p101, %p102
      %p104 = scmp.ne.s32.totalorder %s93, %s96
      %p105 = scmp.eq.s32.totalorder %s20, 2
      %p106 = por %p104, %p105
      %p107 = scmp.ne.s32.totalorder %s96, %s97
      %p108 = scmp.eq.s32.totalorder %s20, 0
      %p109 = por %p107, %p108
      %p110 = scmp.ne.s32.totalorder %s96, %s97
      %p111 = scmp.eq.s32.totalorder %s21, 2
      %p112 = por %p110, %p111
      %p114 = scmp.ne.s32.totalorder %s97, %s113
      %p115 = scmp.eq.s32.totalorder %s21, 0
      %p116 = por %p114, %p115
      %s117 = ssub.s32 %s15, %s22
      %p118 = scmp.eq.s32.totalorder %s117, 0
      %s120 = sadd.s32 %s119, 1
      %s121 = scalar_select %p118, %s119, %s120
      %p124 = pneg %p118
      %p125 = scmp.eq.s32.totalorder %s15, 2
      %p126 = por %p124, %p125
      %p127 = scmp.ne.s32.totalorder %s119, %s122
      %p128 = scmp.eq.s32.totalorder %s15, 0
      %p129 = por %p127, %p128
      %p130 = scmp.ne.s32.totalorder %s119, %s122
      %p131 = scmp.eq.s32.totalorder %s20, 2
      %p132 = por %p130, %p131
      %p133 = scmp.ne.s32.totalorder %s122, %s123
      %p134 = scmp.eq.s32.totalorder %s20, 0
      %p135 = por %p133, %p134
      %p136 = scmp.ne.s32.totalorder %s122, %s123
      %p137 = scmp.eq.s32.totalorder %s21, 2
      %p138 = por %p136, %p137
      %p140 = scmp.ne.s32.totalorder %s123, %s139
      %p141 = scmp.eq.s32.totalorder %s21, 0
      %p142 = por %p140, %p141
      %s143 = ssub.s32 %s15, %s22
      %p144 = scmp.eq.s32.totalorder %s143, 0
      %s146 = sadd.s32 %s145, 1
      %s147 = scalar_select %p144, %s145, %s146
      %p150 = pneg %p144
      %p151 = scmp.eq.s32.totalorder %s15, 2
      %p152 = por %p150, %p151
      %p153 = scmp.ne.s32.totalorder %s145, %s148
      %p154 = scmp.eq.s32.totalorder %s15, 0
      %p155 = por %p153, %p154
      %p156 = scmp.ne.s32.totalorder %s145, %s148
      %p157 = scmp.eq.s32.totalorder %s20, 2
      %p158 = por %p156, %p157
      %p159 = scmp.ne.s32.totalorder %s148, %s149
      %p160 = scmp.eq.s32.totalorder %s20, 0
      %p161 = por %p159, %p160
      %p162 = scmp.ne.s32.totalorder %s148, %s149
      %p163 = scmp.eq.s32.totalorder %s21, 2
      %p164 = por %p162, %p163
      %p166 = scmp.ne.s32.totalorder %s149, %s165
      %p167 = scmp.eq.s32.totalorder %s21, 0
      %p168 = por %p166, %p167
      %s169 = ssub.s32 %s15, %s22
      %p170 = scmp.eq.s32.totalorder %s169, 0
      %s172 = sadd.s32 %s171, 1
      %s173 = scalar_select %p170, %s171, %s172
      %p176 = pneg %p170
      %p177 = scmp.eq.s32.totalorder %s15, 2
      %p178 = por %p176, %p177
      %p179 = scmp.ne.s32.totalorder %s171, %s174
      %p180 = scmp.eq.s32.totalorder %s15, 0
      %p181 = por %p179, %p180
      %p182 = scmp.ne.s32.totalorder %s171, %s174
      %p183 = scmp.eq.s32.totalorder %s20, 2
      %p184 = por %p182, %p183
      %p185 = scmp.ne.s32.totalorder %s174, %s175
      %p186 = scmp.eq.s32.totalorder %s20, 0
      %p187 = por %p185, %p186
      %p188 = scmp.ne.s32.totalorder %s174, %s175
      %p189 = scmp.eq.s32.totalorder %s21, 2
      %p190 = por %p188, %p189
      %p192 = scmp.ne.s32.totalorder %s175, %s191
      %p193 = scmp.eq.s32.totalorder %s21, 0
      %p194 = por %p192, %p193
      %p195 = scmp.le.s32.totalorder 1, %s15
      %p196 = scmp.lt.s32.totalorder %s15, 4
      %p197 = pnand %p195, %p196
      %p198 = pneg %p197
      // Predicated region
      $region9: #{inception_b_res2_forward.7} parent=5 // pred_check
        _
      $region10: #{inception_b_res2_forward.7} parent=5 // pred_check_branch
        %200 = sbr.rel (%p197) target = $region12
      $region11: #{inception_b_res2_forward.7} parent=5 // pred_region
        %s201 = ssub.s32 %s15, 1
        // Predicated region
        $region13: #{inception_b_res2_forward.7} parent=11 // pred_check
          %p202 = pneg %p36
        $region14: #{inception_b_res2_forward.7} parent=11 // pred_check_branch
          %204 = sbr.rel (%p202) target = $region16
        $region15: #{inception_b_res2_forward.7} parent=11 // pred_region
          _
        $region16: #{inception_b_res2_forward.7} parent=11 // pred_fallthru
          _
        // Predicated region
        $region17: #{inception_b_res2_forward.7} parent=11 // pred_check
          %p205 = pneg %p57
        $region18: #{inception_b_res2_forward.7} parent=11 // pred_check_branch
          %207 = sbr.rel (%p205) target = $region20
        $region19: #{inception_b_res2_forward.7} parent=11 // pred_region
          _
        $region20: #{inception_b_res2_forward.7} parent=11 // pred_fallthru
          _
      $region12: #{inception_b_res2_forward.7} parent=5 // pred_fallthru
        _
      %p208 = scmp.lt.s32.totalorder %s15, 3
      // Predicated region
      $region21: #{inception_b_res2_forward.7} parent=5 // pred_check
        %p209 = pneg %p208
      $region22: #{inception_b_res2_forward.7} parent=5 // pred_check_branch
        %211 = sbr.rel (%p209) target = $region24
      $region23: #{inception_b_res2_forward.7} parent=5 // pred_region
        // Predicated region
        $region25: #{inception_b_res2_forward.7} parent=23 // pred_check
          %p212 = pneg %p77
        $region26: #{inception_b_res2_forward.7} parent=23 // pred_check_branch
          %214 = sbr.rel (%p212) target = $region28
        $region27: #{inception_b_res2_forward.7} parent=23 // pred_region
          %s215 = sand.u32 %s67, 1
          %s216 = sand.u32 %s67, 1
          %s217 = smul.addr %s216, 288
          %s218 = scalar_lea.vmem [#allocation2], %s217
          %s219 = smul.u32 3, %s15
          %s220 = smul.addr %s219, 4
          %s221 = scalar_lea.vmem %s2, %s220
          // Predicated region
          $region29: #{inception_b_res2_forward.7} parent=27 // pred_check
            _
          $region30: #{inception_b_res2_forward.7} parent=27 // pred_check_branch
            %223 = sbr.rel (0) target = $region32
          $region31: #{inception_b_res2_forward.7} parent=27 // pred_region
            // Predicated region
            $region33: #{inception_b_res2_forward.7} parent=31 // pred_check
              _
            $region34: #{inception_b_res2_forward.7} parent=31 // pred_check_branch
              %225 = sbr.rel (0) target = $region36
            $region35: #{inception_b_res2_forward.7} parent=31 // pred_region
              %s226 = scalar_lea.vmem %s221, 8
              %s227 = scalar_lea.vmem %s218, 8 [#allocation2]
              loop: start=0, step=1, limit=1
              $region37: #{inception_b_res2_forward.7} parent=35 // loop_pre_header
                _
              $region38: #{inception_b_res2_forward.7} parent=35 // loop_header
                %s229 = sphi 0, %s233
                %p230 = scmp.ge.s32.totalorder %s229, 1
                %s234 = sphi %s221, %s221
                %s235 = sphi %s218, %s218
              $region39: #{inception_b_res2_forward.7} parent=35 // loop_header_branch
                %232 = sbr.rel (%p230) target = $region43
              $region40: #{inception_b_res2_forward.7} parent=35 // loop_body
                %v236 = vld [vmem:[%s234] sm:$0xff]
                %237 = vst [vmem:[%s235] sm:$0xff] %v236
                %v238 = vld [vmem:[%s234 + $0x24] sm:$0xff]
                %239 = vst [vmem:[%s235 + $0xc] sm:$0xff] %v238
                %v240 = vld [vmem:[%s234 + $0x48] sm:$0xff]
                %241 = vst [vmem:[%s235 + $0x18] sm:$0xff] %v240
                %v242 = vld [vmem:[%s234 + $0x6c] sm:$0xff]
                %243 = vst [vmem:[%s235 + $0x24] sm:$0xff] %v242
                %v244 = vld [vmem:[%s234 + $0x90] sm:$0xff]
                %245 = vst [vmem:[%s235 + $0x30] sm:$0xff] %v244
                %v246 = vld [vmem:[%s234 + $0xb4] sm:$0xff]
                %247 = vst [vmem:[%s235 + $0x3c] sm:$0xff] %v246
                %v248 = vld [vmem:[%s234 + $0xd8] sm:$0xff]
                %249 = vst [vmem:[%s235 + $0x48] sm:$0xff] %v248
                %v250 = vld [vmem:[%s234 + $0xfc] sm:$0xff]
                %251 = vst [vmem:[%s235 + $0x54] sm:$0xff] %v250
                %v252 = vld [vmem:[%s234 + $0x120] sm:$0xff]
                %253 = vst [vmem:[%s235 + $0x60] sm:$0xff] %v252
                %v254 = vld [vmem:[%s234 + $0x144] sm:$0xff]
                %255 = vst [vmem:[%s235 + $0x6c] sm:$0xff] %v254
                %v256 = vld [vmem:[%s234 + $0x168] sm:$0xff]
                %257 = vst [vmem:[%s235 + $0x78] sm:$0xff] %v256
                %v258 = vld [vmem:[%s234 + $0x18c] sm:$0xff]
                %259 = vst [vmem:[%s235 + $0x84] sm:$0xff] %v258
                %v260 = vld [vmem:[%s234 + $0x1b0] sm:$0xff]
                %261 = vst [vmem:[%s235 + $0x90] sm:$0xff] %v260
                %v262 = vld [vmem:[%s234 + $0x1d4] sm:$0xff]
                %263 = vst [vmem:[%s235 + $0x9c] sm:$0xff] %v262
                %v264 = vld [vmem:[%s234 + $0x1f8] sm:$0xff]
                %265 = vst [vmem:[%s235 + $0xa8] sm:$0xff] %v264
                %v266 = vld [vmem:[%s234 + $0x21c] sm:$0xff]
                %267 = vst [vmem:[%s235 + $0xb4] sm:$0xff] %v266
                %v268 = vld [vmem:[%s234 + $0x240] sm:$0xff]
                %269 = vst [vmem:[%s235 + $0xc0] sm:$0xff] %v268
                %v270 = vld [vmem:[%s234 + $0x264] sm:$0xff]
                %271 = vst [vmem:[%s235 + $0xcc] sm:$0xff] %v270
                %v272 = vld [vmem:[%s234 + $0x288] sm:$0xff]
                %273 = vst [vmem:[%s235 + $0xd8] sm:$0xff] %v272
                %v274 = vld [vmem:[%s234 + $0x2ac] sm:$0xff]
                %275 = vst [vmem:[%s235 + $0xe4] sm:$0xff] %v274
                %v276 = vld [vmem:[%s234 + $0x2d0] sm:$0xff]
                %277 = vst [vmem:[%s235 + $0xf0] sm:$0xff] %v276
                %v278 = vld [vmem:[%s234 + $0x2f4] sm:$0xff]
                %279 = vst [vmem:[%s235 + $0xfc] sm:$0xff] %v278
                %v280 = vld [vmem:[%s234 + $0x318] sm:$0xff]
                %281 = vst [vmem:[%s235 + $0x108] sm:$0xff] %v280
                %v282 = vld [vmem:[%s234 + $0x33c] sm:$0xff]
                %283 = vst [vmem:[%s235 + $0x114] sm:$0xff] %v282
              $region41: #{inception_b_res2_forward.7} parent=35 // loop_footer
                %s233 = sadd.s32 1, %s229
              $region42: #{inception_b_res2_forward.7} parent=35 // loop_footer_branch
                %228 = sbr.rel target = $region38
              $region43: #{inception_b_res2_forward.7} parent=35 // loop_exit
                _
              loop: start=0, step=1, limit=1
              $region44: #{inception_b_res2_forward.7} parent=35 // loop_pre_header
                _
              $region45: #{inception_b_res2_forward.7} parent=35 // loop_header
                %s286 = sphi 0, %s290
                %p287 = scmp.ge.s32.totalorder %s286, 1
                %s291 = sphi %s226, %s226
                %s292 = sphi %s227, %s227
              $region46: #{inception_b_res2_forward.7} parent=35 // loop_header_branch
                %289 = sbr.rel (%p287) target = $region50
              $region47: #{inception_b_res2_forward.7} parent=35 // loop_body
                %v293 = vld [vmem:[%s291] sm:$0xf]
                %294 = vst [vmem:[%s292] sm:$0xf] %v293
                %v295 = vld [vmem:[%s291 + $0x24] sm:$0xf]
                %296 = vst [vmem:[%s292 + $0xc] sm:$0xf] %v295
                %v297 = vld [vmem:[%s291 + $0x48] sm:$0xf]
                %298 = vst [vmem:[%s292 + $0x18] sm:$0xf] %v297
                %v299 = vld [vmem:[%s291 + $0x6c] sm:$0xf]
                %300 = vst [vmem:[%s292 + $0x24] sm:$0xf] %v299
                %v301 = vld [vmem:[%s291 + $0x90] sm:$0xf]
                %302 = vst [vmem:[%s292 + $0x30] sm:$0xf] %v301
                %v303 = vld [vmem:[%s291 + $0xb4] sm:$0xf]
                %304 = vst [vmem:[%s292 + $0x3c] sm:$0xf] %v303
                %v305 = vld [vmem:[%s291 + $0xd8] sm:$0xf]
                %306 = vst [vmem:[%s292 + $0x48] sm:$0xf] %v305
                %v307 = vld [vmem:[%s291 + $0xfc] sm:$0xf]
                %308 = vst [vmem:[%s292 + $0x54] sm:$0xf] %v307
                %v309 = vld [vmem:[%s291 + $0x120] sm:$0xf]
                %310 = vst [vmem:[%s292 + $0x60] sm:$0xf] %v309
                %v311 = vld [vmem:[%s291 + $0x144] sm:$0xf]
                %312 = vst [vmem:[%s292 + $0x6c] sm:$0xf] %v311
                %v313 = vld [vmem:[%s291 + $0x168] sm:$0xf]
                %314 = vst [vmem:[%s292 + $0x78] sm:$0xf] %v313
                %v315 = vld [vmem:[%s291 + $0x18c] sm:$0xf]
                %316 = vst [vmem:[%s292 + $0x84] sm:$0xf] %v315
                %v317 = vld [vmem:[%s291 + $0x1b0] sm:$0xf]
                %318 = vst [vmem:[%s292 + $0x90] sm:$0xf] %v317
                %v319 = vld [vmem:[%s291 + $0x1d4] sm:$0xf]
                %320 = vst [vmem:[%s292 + $0x9c] sm:$0xf] %v319
                %v321 = vld [vmem:[%s291 + $0x1f8] sm:$0xf]
                %322 = vst [vmem:[%s292 + $0xa8] sm:$0xf] %v321
                %v323 = vld [vmem:[%s291 + $0x21c] sm:$0xf]
                %324 = vst [vmem:[%s292 + $0xb4] sm:$0xf] %v323
                %v325 = vld [vmem:[%s291 + $0x240] sm:$0xf]
                %326 = vst [vmem:[%s292 + $0xc0] sm:$0xf] %v325
                %v327 = vld [vmem:[%s291 + $0x264] sm:$0xf]
                %328 = vst [vmem:[%s292 + $0xcc] sm:$0xf] %v327
                %v329 = vld [vmem:[%s291 + $0x288] sm:$0xf]
                %330 = vst [vmem:[%s292 + $0xd8] sm:$0xf] %v329
                %v331 = vld [vmem:[%s291 + $0x2ac] sm:$0xf]
                %332 = vst [vmem:[%s292 + $0xe4] sm:$0xf] %v331
                %v333 = vld [vmem:[%s291 + $0x2d0] sm:$0xf]
                %334 = vst [vmem:[%s292 + $0xf0] sm:$0xf] %v333
                %v335 = vld [vmem:[%s291 + $0x2f4] sm:$0xf]
                %336 = vst [vmem:[%s292 + $0xfc] sm:$0xf] %v335
                %v337 = vld [vmem:[%s291 + $0x318] sm:$0xf]
                %338 = vst [vmem:[%s292 + $0x108] sm:$0xf] %v337
                %v339 = vld [vmem:[%s291 + $0x33c] sm:$0xf]
                %340 = vst [vmem:[%s292 + $0x114] sm:$0xf] %v339
              $region48: #{inception_b_res2_forward.7} parent=35 // loop_footer
                %s290 = sadd.s32 1, %s286
              $region49: #{inception_b_res2_forward.7} parent=35 // loop_footer_branch
                %285 = sbr.rel target = $region45
              $region50: #{inception_b_res2_forward.7} parent=35 // loop_exit
                _
            $region36: #{inception_b_res2_forward.7} parent=31 // pred_fallthru
              _
          $region32: #{inception_b_res2_forward.7} parent=27 // pred_fallthru
            _
          %341 = vnop
        $region28: #{inception_b_res2_forward.7} parent=23 // pred_fallthru
          _
        // Predicated region
        $region51: #{inception_b_res2_forward.7} parent=23 // pred_check
          %p342 = pneg %p103
        $region52: #{inception_b_res2_forward.7} parent=23 // pred_check_branch
          %344 = sbr.rel (%p342) target = $region54
        $region53: #{inception_b_res2_forward.7} parent=23 // pred_region
          %s345 = sand.u32 %s93, 1
          %s346 = sand.u32 %s93, 1
          %s347 = smul.addr %s346, 288
          %s348 = scalar_lea.vmem [#allocation3], %s347
          %s349 = smul.u32 3, %s15
          %s350 = smul.addr %s349, 4
          %s351 = scalar_lea.vmem %s3, %s350
          // Predicated region
          $region55: #{inception_b_res2_forward.7} parent=53 // pred_check
            _
          $region56: #{inception_b_res2_forward.7} parent=53 // pred_check_branch
            %353 = sbr.rel (0) target = $region58
          $region57: #{inception_b_res2_forward.7} parent=53 // pred_region
            // Predicated region
            $region59: #{inception_b_res2_forward.7} parent=57 // pred_check
              _
            $region60: #{inception_b_res2_forward.7} parent=57 // pred_check_branch
              %355 = sbr.rel (0) target = $region62
            $region61: #{inception_b_res2_forward.7} parent=57 // pred_region
              %s356 = scalar_lea.vmem %s351, 8
              %s357 = scalar_lea.vmem %s348, 8 [#allocation3]
              loop: start=0, step=1, limit=1
              $region63: #{inception_b_res2_forward.7} parent=61 // loop_pre_header
                _
              $region64: #{inception_b_res2_forward.7} parent=61 // loop_header
                %s359 = sphi 0, %s363
                %p360 = scmp.ge.s32.totalorder %s359, 1
                %s364 = sphi %s351, %s351
                %s365 = sphi %s348, %s348
              $region65: #{inception_b_res2_forward.7} parent=61 // loop_header_branch
                %362 = sbr.rel (%p360) target = $region69
              $region66: #{inception_b_res2_forward.7} parent=61 // loop_body
                %v366 = vld [vmem:[%s364] sm:$0xff]
                %367 = vst [vmem:[%s365] sm:$0xff] %v366
                %v368 = vld [vmem:[%s364 + $0x24] sm:$0xff]
                %369 = vst [vmem:[%s365 + $0xc] sm:$0xff] %v368
                %v370 = vld [vmem:[%s364 + $0x48] sm:$0xff]
                %371 = vst [vmem:[%s365 + $0x18] sm:$0xff] %v370
                %v372 = vld [vmem:[%s364 + $0x6c] sm:$0xff]
                %373 = vst [vmem:[%s365 + $0x24] sm:$0xff] %v372
                %v374 = vld [vmem:[%s364 + $0x90] sm:$0xff]
                %375 = vst [vmem:[%s365 + $0x30] sm:$0xff] %v374
                %v376 = vld [vmem:[%s364 + $0xb4] sm:$0xff]
                %377 = vst [vmem:[%s365 + $0x3c] sm:$0xff] %v376
                %v378 = vld [vmem:[%s364 + $0xd8] sm:$0xff]
                %379 = vst [vmem:[%s365 + $0x48] sm:$0xff] %v378
                %v380 = vld [vmem:[%s364 + $0xfc] sm:$0xff]
                %381 = vst [vmem:[%s365 + $0x54] sm:$0xff] %v380
                %v382 = vld [vmem:[%s364 + $0x120] sm:$0xff]
                %383 = vst [vmem:[%s365 + $0x60] sm:$0xff] %v382
                %v384 = vld [vmem:[%s364 + $0x144] sm:$0xff]
                %385 = vst [vmem:[%s365 + $0x6c] sm:$0xff] %v384
                %v386 = vld [vmem:[%s364 + $0x168] sm:$0xff]
                %387 = vst [vmem:[%s365 + $0x78] sm:$0xff] %v386
                %v388 = vld [vmem:[%s364 + $0x18c] sm:$0xff]
                %389 = vst [vmem:[%s365 + $0x84] sm:$0xff] %v388
                %v390 = vld [vmem:[%s364 + $0x1b0] sm:$0xff]
                %391 = vst [vmem:[%s365 + $0x90] sm:$0xff] %v390
                %v392 = vld [vmem:[%s364 + $0x1d4] sm:$0xff]
                %393 = vst [vmem:[%s365 + $0x9c] sm:$0xff] %v392
                %v394 = vld [vmem:[%s364 + $0x1f8] sm:$0xff]
                %395 = vst [vmem:[%s365 + $0xa8] sm:$0xff] %v394
                %v396 = vld [vmem:[%s364 + $0x21c] sm:$0xff]
                %397 = vst [vmem:[%s365 + $0xb4] sm:$0xff] %v396
                %v398 = vld [vmem:[%s364 + $0x240] sm:$0xff]
                %399 = vst [vmem:[%s365 + $0xc0] sm:$0xff] %v398
                %v400 = vld [vmem:[%s364 + $0x264] sm:$0xff]
                %401 = vst [vmem:[%s365 + $0xcc] sm:$0xff] %v400
                %v402 = vld [vmem:[%s364 + $0x288] sm:$0xff]
                %403 = vst [vmem:[%s365 + $0xd8] sm:$0xff] %v402
                %v404 = vld [vmem:[%s364 + $0x2ac] sm:$0xff]
                %405 = vst [vmem:[%s365 + $0xe4] sm:$0xff] %v404
                %v406 = vld [vmem:[%s364 + $0x2d0] sm:$0xff]
                %407 = vst [vmem:[%s365 + $0xf0] sm:$0xff] %v406
                %v408 = vld [vmem:[%s364 + $0x2f4] sm:$0xff]
                %409 = vst [vmem:[%s365 + $0xfc] sm:$0xff] %v408
                %v410 = vld [vmem:[%s364 + $0x318] sm:$0xff]
                %411 = vst [vmem:[%s365 + $0x108] sm:$0xff] %v410
                %v412 = vld [vmem:[%s364 + $0x33c] sm:$0xff]
                %413 = vst [vmem:[%s365 + $0x114] sm:$0xff] %v412
              $region67: #{inception_b_res2_forward.7} parent=61 // loop_footer
                %s363 = sadd.s32 1, %s359
              $region68: #{inception_b_res2_forward.7} parent=61 // loop_footer_branch
                %358 = sbr.rel target = $region64
              $region69: #{inception_b_res2_forward.7} parent=61 // loop_exit
                _
              loop: start=0, step=1, limit=1
              $region70: #{inception_b_res2_forward.7} parent=61 // loop_pre_header
                _
              $region71: #{inception_b_res2_forward.7} parent=61 // loop_header
                %s416 = sphi 0, %s420
                %p417 = scmp.ge.s32.totalorder %s416, 1
                %s421 = sphi %s356, %s356
                %s422 = sphi %s357, %s357
              $region72: #{inception_b_res2_forward.7} parent=61 // loop_header_branch
                %419 = sbr.rel (%p417) target = $region76
              $region73: #{inception_b_res2_forward.7} parent=61 // loop_body
                %v423 = vld [vmem:[%s421] sm:$0xf]
                %424 = vst [vmem:[%s422] sm:$0xf] %v423
                %v425 = vld [vmem:[%s421 + $0x24] sm:$0xf]
                %426 = vst [vmem:[%s422 + $0xc] sm:$0xf] %v425
                %v427 = vld [vmem:[%s421 + $0x48] sm:$0xf]
                %428 = vst [vmem:[%s422 + $0x18] sm:$0xf] %v427
                %v429 = vld [vmem:[%s421 + $0x6c] sm:$0xf]
                %430 = vst [vmem:[%s422 + $0x24] sm:$0xf] %v429
                %v431 = vld [vmem:[%s421 + $0x90] sm:$0xf]
                %432 = vst [vmem:[%s422 + $0x30] sm:$0xf] %v431
                %v433 = vld [vmem:[%s421 + $0xb4] sm:$0xf]
                %434 = vst [vmem:[%s422 + $0x3c] sm:$0xf] %v433
                %v435 = vld [vmem:[%s421 + $0xd8] sm:$0xf]
                %436 = vst [vmem:[%s422 + $0x48] sm:$0xf] %v435
                %v437 = vld [vmem:[%s421 + $0xfc] sm:$0xf]
                %438 = vst [vmem:[%s422 + $0x54] sm:$0xf] %v437
                %v439 = vld [vmem:[%s421 + $0x120] sm:$0xf]
                %440 = vst [vmem:[%s422 + $0x60] sm:$0xf] %v439
                %v441 = vld [vmem:[%s421 + $0x144] sm:$0xf]
                %442 = vst [vmem:[%s422 + $0x6c] sm:$0xf] %v441
                %v443 = vld [vmem:[%s421 + $0x168] sm:$0xf]
                %444 = vst [vmem:[%s422 + $0x78] sm:$0xf] %v443
                %v445 = vld [vmem:[%s421 + $0x18c] sm:$0xf]
                %446 = vst [vmem:[%s422 + $0x84] sm:$0xf] %v445
                %v447 = vld [vmem:[%s421 + $0x1b0] sm:$0xf]
                %448 = vst [vmem:[%s422 + $0x90] sm:$0xf] %v447
                %v449 = vld [vmem:[%s421 + $0x1d4] sm:$0xf]
                %450 = vst [vmem:[%s422 + $0x9c] sm:$0xf] %v449
                %v451 = vld [vmem:[%s421 + $0x1f8] sm:$0xf]
                %452 = vst [vmem:[%s422 + $0xa8] sm:$0xf] %v451
                %v453 = vld [vmem:[%s421 + $0x21c] sm:$0xf]
                %454 = vst [vmem:[%s422 + $0xb4] sm:$0xf] %v453
                %v455 = vld [vmem:[%s421 + $0x240] sm:$0xf]
                %456 = vst [vmem:[%s422 + $0xc0] sm:$0xf] %v455
                %v457 = vld [vmem:[%s421 + $0x264] sm:$0xf]
                %458 = vst [vmem:[%s422 + $0xcc] sm:$0xf] %v457
                %v459 = vld [vmem:[%s421 + $0x288] sm:$0xf]
                %460 = vst [vmem:[%s422 + $0xd8] sm:$0xf] %v459
                %v461 = vld [vmem:[%s421 + $0x2ac] sm:$0xf]
                %462 = vst [vmem:[%s422 + $0xe4] sm:$0xf] %v461
                %v463 = vld [vmem:[%s421 + $0x2d0] sm:$0xf]
                %464 = vst [vmem:[%s422 + $0xf0] sm:$0xf] %v463
                %v465 = vld [vmem:[%s421 + $0x2f4] sm:$0xf]
                %466 = vst [vmem:[%s422 + $0xfc] sm:$0xf] %v465
                %v467 = vld [vmem:[%s421 + $0x318] sm:$0xf]
                %468 = vst [vmem:[%s422 + $0x108] sm:$0xf] %v467
                %v469 = vld [vmem:[%s421 + $0x33c] sm:$0xf]
                %470 = vst [vmem:[%s422 + $0x114] sm:$0xf] %v469
              $region74: #{inception_b_res2_forward.7} parent=61 // loop_footer
                %s420 = sadd.s32 1, %s416
              $region75: #{inception_b_res2_forward.7} parent=61 // loop_footer_branch
                %415 = sbr.rel target = $region71
              $region76: #{inception_b_res2_forward.7} parent=61 // loop_exit
                _
            $region62: #{inception_b_res2_forward.7} parent=57 // pred_fallthru
              _
          $region58: #{inception_b_res2_forward.7} parent=53 // pred_fallthru
            _
          %471 = vnop
        $region54: #{inception_b_res2_forward.7} parent=23 // pred_fallthru
          _
        // Predicated region
        $region77: #{inception_b_res2_forward.7} parent=23 // pred_check
          %p472 = pneg %p129
        $region78: #{inception_b_res2_forward.7} parent=23 // pred_check_branch
          %474 = sbr.rel (%p472) target = $region80
        $region79: #{inception_b_res2_forward.7} parent=23 // pred_region
          %s475 = smul.u32 3, %s15
          %p476 = scmp.lt.s32.totalorder %s475, 8
          %s477 = scalar_select %p476, %s475, 8
          %s478 = scalar_lea.vmem %s4, %s477
          %s479 = smul.u32 3, %s15
        $region80: #{inception_b_res2_forward.7} parent=23 // pred_fallthru
          _
        // Predicated region
        $region81: #{inception_b_res2_forward.7} parent=23 // pred_check
          %p480 = pneg %p155
        $region82: #{inception_b_res2_forward.7} parent=23 // pred_check_branch
          %482 = sbr.rel (%p480) target = $region84
        $region83: #{inception_b_res2_forward.7} parent=23 // pred_region
          %s483 = sand.u32 %s145, 1
          %s484 = sand.u32 %s145, 1
          %s485 = smul.addr %s484, 384
          %s486 = scalar_lea.vmem [#allocation4], %s485
          %s487 = smul.u32 3, %s15
          %s488 = smul.addr %s487, 8
          %s489 = scalar_lea.vmem %s5, %s488
          // Predicated region
          $region85: #{inception_b_res2_forward.7} parent=83 // pred_check
            _
          $region86: #{inception_b_res2_forward.7} parent=83 // pred_check_branch
            %491 = sbr.rel (0) target = $region88
          $region87: #{inception_b_res2_forward.7} parent=83 // pred_region
            // Predicated region
            $region89: #{inception_b_res2_forward.7} parent=87 // pred_check
              _
            $region90: #{inception_b_res2_forward.7} parent=87 // pred_check_branch
              %493 = sbr.rel (0) target = $region92
            $region91: #{inception_b_res2_forward.7} parent=87 // pred_region
              loop: start=0, step=1, limit=1
              $region93: #{inception_b_res2_forward.7} parent=91 // loop_pre_header
                _
              $region94: #{inception_b_res2_forward.7} parent=91 // loop_header
                %s495 = sphi 0, %s499
                %p496 = scmp.ge.s32.totalorder %s495, 1
                %s500 = sphi %s489, %s489
                %s501 = sphi %s486, %s486
              $region95: #{inception_b_res2_forward.7} parent=91 // loop_header_branch
                %498 = sbr.rel (%p496) target = $region99
              $region96: #{inception_b_res2_forward.7} parent=91 // loop_body
                %v502 = vld [vmem:[%s500] sm:$0xff]
                %503 = vst [vmem:[%s501] sm:$0xff] %v502
                %v504 = vld [vmem:[%s500 + $0x8] sm:$0xff]
                %505 = vst [vmem:[%s501 + $0x8] sm:$0xff] %v504
                %v506 = vld [vmem:[%s500 + $0x10] sm:$0xff]
                %507 = vst [vmem:[%s501 + $0x10] sm:$0xff] %v506
                %v508 = vld [vmem:[%s500 + $0x48] sm:$0xff]
                %509 = vst [vmem:[%s501 + $0x18] sm:$0xff] %v508
                %v510 = vld [vmem:[%s500 + $0x50] sm:$0xff]
                %511 = vst [vmem:[%s501 + $0x20] sm:$0xff] %v510
                %v512 = vld [vmem:[%s500 + $0x58] sm:$0xff]
                %513 = vst [vmem:[%s501 + $0x28] sm:$0xff] %v512
                %v514 = vld [vmem:[%s500 + $0x90] sm:$0xff]
                %515 = vst [vmem:[%s501 + $0x30] sm:$0xff] %v514
                %v516 = vld [vmem:[%s500 + $0x98] sm:$0xff]
                %517 = vst [vmem:[%s501 + $0x38] sm:$0xff] %v516
                %v518 = vld [vmem:[%s500 + $0xa0] sm:$0xff]
                %519 = vst [vmem:[%s501 + $0x40] sm:$0xff] %v518
                %v520 = vld [vmem:[%s500 + $0xd8] sm:$0xff]
                %521 = vst [vmem:[%s501 + $0x48] sm:$0xff] %v520
                %v522 = vld [vmem:[%s500 + $0xe0] sm:$0xff]
                %523 = vst [vmem:[%s501 + $0x50] sm:$0xff] %v522
                %v524 = vld [vmem:[%s500 + $0xe8] sm:$0xff]
                %525 = vst [vmem:[%s501 + $0x58] sm:$0xff] %v524
                %v526 = vld [vmem:[%s500 + $0x120] sm:$0xff]
                %527 = vst [vmem:[%s501 + $0x60] sm:$0xff] %v526
                %v528 = vld [vmem:[%s500 + $0x128] sm:$0xff]
                %529 = vst [vmem:[%s501 + $0x68] sm:$0xff] %v528
                %v530 = vld [vmem:[%s500 + $0x130] sm:$0xff]
                %531 = vst [vmem:[%s501 + $0x70] sm:$0xff] %v530
                %v532 = vld [vmem:[%s500 + $0x168] sm:$0xff]
                %533 = vst [vmem:[%s501 + $0x78] sm:$0xff] %v532
                %v534 = vld [vmem:[%s500 + $0x170] sm:$0xff]
                %535 = vst [vmem:[%s501 + $0x80] sm:$0xff] %v534
                %v536 = vld [vmem:[%s500 + $0x178] sm:$0xff]
                %537 = vst [vmem:[%s501 + $0x88] sm:$0xff] %v536
                %v538 = vld [vmem:[%s500 + $0x1b0] sm:$0xff]
                %539 = vst [vmem:[%s501 + $0x90] sm:$0xff] %v538
                %v540 = vld [vmem:[%s500 + $0x1b8] sm:$0xff]
                %541 = vst [vmem:[%s501 + $0x98] sm:$0xff] %v540
                %v542 = vld [vmem:[%s500 + $0x1c0] sm:$0xff]
                %543 = vst [vmem:[%s501 + $0xa0] sm:$0xff] %v542
                %v544 = vld [vmem:[%s500 + $0x1f8] sm:$0xff]
                %545 = vst [vmem:[%s501 + $0xa8] sm:$0xff] %v544
                %v546 = vld [vmem:[%s500 + $0x200] sm:$0xff]
                %547 = vst [vmem:[%s501 + $0xb0] sm:$0xff] %v546
                %v548 = vld [vmem:[%s500 + $0x208] sm:$0xff]
                %549 = vst [vmem:[%s501 + $0xb8] sm:$0xff] %v548
                %v550 = vld [vmem:[%s500 + $0x240] sm:$0xff]
                %551 = vst [vmem:[%s501 + $0xc0] sm:$0xff] %v550
                %v552 = vld [vmem:[%s500 + $0x248] sm:$0xff]
                %553 = vst [vmem:[%s501 + $0xc8] sm:$0xff] %v552
                %v554 = vld [vmem:[%s500 + $0x250] sm:$0xff]
                %555 = vst [vmem:[%s501 + $0xd0] sm:$0xff] %v554
                %v556 = vld [vmem:[%s500 + $0x288] sm:$0xff]
                %557 = vst [vmem:[%s501 + $0xd8] sm:$0xff] %v556
                %v558 = vld [vmem:[%s500 + $0x290] sm:$0xff]
                %559 = vst [vmem:[%s501 + $0xe0] sm:$0xff] %v558
                %v560 = vld [vmem:[%s500 + $0x298] sm:$0xff]
                %561 = vst [vmem:[%s501 + $0xe8] sm:$0xff] %v560
                %v562 = vld [vmem:[%s500 + $0x2d0] sm:$0xff]
                %563 = vst [vmem:[%s501 + $0xf0] sm:$0xff] %v562
                %v564 = vld [vmem:[%s500 + $0x2d8] sm:$0xff]
                %565 = vst [vmem:[%s501 + $0xf8] sm:$0xff] %v564
                %v566 = vld [vmem:[%s500 + $0x2e0] sm:$0xff]
                %567 = vst [vmem:[%s501 + $0x100] sm:$0xff] %v566
                %v568 = vld [vmem:[%s500 + $0x318] sm:$0xff]
                %569 = vst [vmem:[%s501 + $0x108] sm:$0xff] %v568
                %v570 = vld [vmem:[%s500 + $0x320] sm:$0xff]
                %571 = vst [vmem:[%s501 + $0x110] sm:$0xff] %v570
                %v572 = vld [vmem:[%s500 + $0x328] sm:$0xff]
                %573 = vst [vmem:[%s501 + $0x118] sm:$0xff] %v572
                %v574 = vld [vmem:[%s500 + $0x360] sm:$0xff]
                %575 = vst [vmem:[%s501 + $0x120] sm:$0xff] %v574
                %v576 = vld [vmem:[%s500 + $0x368] sm:$0xff]
                %577 = vst [vmem:[%s501 + $0x128] sm:$0xff] %v576
                %v578 = vld [vmem:[%s500 + $0x370] sm:$0xff]
                %579 = vst [vmem:[%s501 + $0x130] sm:$0xff] %v578
                %v580 = vld [vmem:[%s500 + $0x3a8] sm:$0xff]
                %581 = vst [vmem:[%s501 + $0x138] sm:$0xff] %v580
                %v582 = vld [vmem:[%s500 + $0x3b0] sm:$0xff]
                %583 = vst [vmem:[%s501 + $0x140] sm:$0xff] %v582
                %v584 = vld [vmem:[%s500 + $0x3b8] sm:$0xff]
                %585 = vst [vmem:[%s501 + $0x148] sm:$0xff] %v584
                %v586 = vld [vmem:[%s500 + $0x3f0] sm:$0xff]
                %587 = vst [vmem:[%s501 + $0x150] sm:$0xff] %v586
                %v588 = vld [vmem:[%s500 + $0x3f8] sm:$0xff]
                %589 = vst [vmem:[%s501 + $0x158] sm:$0xff] %v588
                %v590 = vld [vmem:[%s500 + $0x400] sm:$0xff]
                %591 = vst [vmem:[%s501 + $0x160] sm:$0xff] %v590
                %v592 = vld [vmem:[%s500 + $0x438] sm:$0xff]
                %593 = vst [vmem:[%s501 + $0x168] sm:$0xff] %v592
                %v594 = vld [vmem:[%s500 + $0x440] sm:$0xff]
                %595 = vst [vmem:[%s501 + $0x170] sm:$0xff] %v594
                %v596 = vld [vmem:[%s500 + $0x448] sm:$0xff]
                %597 = vst [vmem:[%s501 + $0x178] sm:$0xff] %v596
              $region97: #{inception_b_res2_forward.7} parent=91 // loop_footer
                %s499 = sadd.s32 1, %s495
              $region98: #{inception_b_res2_forward.7} parent=91 // loop_footer_branch
                %494 = sbr.rel target = $region94
              $region99: #{inception_b_res2_forward.7} parent=91 // loop_exit
                _
            $region92: #{inception_b_res2_forward.7} parent=87 // pred_fallthru
              _
            // Predicated region
            $region100: #{inception_b_res2_forward.7} parent=87 // pred_check
              _
            $region101: #{inception_b_res2_forward.7} parent=87 // pred_check_branch
              %599 = sbr.rel target = $region103
            $region102: #{inception_b_res2_forward.7} parent=87 // pred_region
              _
            $region103: #{inception_b_res2_forward.7} parent=87 // pred_fallthru
              _
          $region88: #{inception_b_res2_forward.7} parent=83 // pred_fallthru
            _
          %600 = vnop
        $region84: #{inception_b_res2_forward.7} parent=23 // pred_fallthru
          _
      $region24: #{inception_b_res2_forward.7} parent=5 // pred_fallthru
        _
      %p601 = scmp.le.s32.totalorder 1, %s15
      %p602 = scmp.lt.s32.totalorder %s15, 4
      %p603 = pnand %p601, %p602
      %p604 = pneg %p603
      // Predicated region
      $region104: #{inception_b_res2_forward.7} parent=5 // pred_check
        _
      $region105: #{inception_b_res2_forward.7} parent=5 // pred_check_branch
        %606 = sbr.rel (%p603) target = $region107
      $region106: #{inception_b_res2_forward.7} parent=5 // pred_region
        %s607 = ssub.s32 %s15, 1
        %s608 = sand.u32 %s70, 1
        %s609 = sand.u32 %s70, 1
        %s610 = smul.addr %s609, 288
        %s611 = scalar_lea.vmem [#allocation2], %s610
        // Predicated region
        $region108: #{inception_b_res2_forward.7} parent=106 // pred_check
          %p612 = pneg %p83
        $region109: #{inception_b_res2_forward.7} parent=106 // pred_check_branch
          %614 = sbr.rel (%p612) target = $region111
        $region110: #{inception_b_res2_forward.7} parent=106 // pred_region
          _
        $region111: #{inception_b_res2_forward.7} parent=106 // pred_fallthru
          _
        %s615 = sand.u32 %s96, 1
        %s616 = sand.u32 %s96, 1
        %s617 = smul.addr %s616, 288
        %s618 = scalar_lea.vmem [#allocation3], %s617
        // Predicated region
        $region112: #{inception_b_res2_forward.7} parent=106 // pred_check
          %p619 = pneg %p109
        $region113: #{inception_b_res2_forward.7} parent=106 // pred_check_branch
          %621 = sbr.rel (%p619) target = $region115
        $region114: #{inception_b_res2_forward.7} parent=106 // pred_region
          _
        $region115: #{inception_b_res2_forward.7} parent=106 // pred_fallthru
          _
        %s622 = sand.u32 %s148, 1
        %s623 = sand.u32 %s148, 1
        %s624 = smul.addr %s623, 384
        %s625 = scalar_lea.vmem [#allocation4], %s624
        // Predicated region
        $region116: #{inception_b_res2_forward.7} parent=106 // pred_check
          %p626 = pneg %p161
        $region117: #{inception_b_res2_forward.7} parent=106 // pred_check_branch
          %628 = sbr.rel (%p626) target = $region119
        $region118: #{inception_b_res2_forward.7} parent=106 // pred_region
          _
        $region119: #{inception_b_res2_forward.7} parent=106 // pred_fallthru
          _
        %p629 = pneg %p36
        %p630 = pneg %p33
        %p631 = pneg %p57
        %p632 = pneg %p54
        %s633 = sand.u32 %s70, 1
        %s634 = sand.u32 %s70, 1
        %s635 = smul.addr %s634, 288
        %s636 = scalar_lea.vmem [#allocation2], %s635
        %p637 = pneg %p83
        %p638 = pneg %p80
        %s639 = sand.u32 %s96, 1
        %s640 = sand.u32 %s96, 1
        %s641 = smul.addr %s640, 288
        %s642 = scalar_lea.vmem [#allocation3], %s641
        %p643 = pneg %p109
        %p644 = pneg %p106
        %s645 = smul.u32 3, %s20
        %p646 = scmp.lt.s32.totalorder %s645, 8
        %s647 = scalar_select %p646, %s645, 8
        %s648 = scalar_lea.vmem %s4, %s647
        %p649 = pneg %p135
        %p650 = pneg %p132
        %s651 = sand.u32 %s148, 1
        %s652 = sand.u32 %s148, 1
        %s653 = smul.addr %s652, 384
        %s654 = scalar_lea.vmem [#allocation4], %s653
        %p655 = pneg %p161
        %p656 = pneg %p158
        %p657 = pneg %p187
        %p658 = pneg %p184
        %s659 = sand.u32 %s174, 1
        %s660 = scalar_lea.sflag [#allocation6], %s659
        %s661 = sand.u32 %s174, 1
        %s662 = smul.addr %s661, 384
        %s663 = scalar_lea.vmem [#allocation5], %s662
        %s664 = smul.u32 3, %s20
        %s665 = smul.u32 3, %s20
        %s666 = smul.u32 3, %s20
        %p667 = scmp.lt.s32.totalorder %s666, 8
        %s668 = scalar_select %p667, %s666, 8
        %s669 = scalar_lea.vmem %s4, %s668
        %s670 = smul.u32 3, %s20
        %s671 = smul.u32 3, %s20
        %s672 = smul.u32 3, %s20
        %v674 = vld [vmem:[%s0] sm:$0xff]
        %v675 = vld [vmem:[%s0 + $0x8] sm:$0xff]
        %v676 = vld [vmem:[%s0 + $0x10] sm:$0xff]
        %v677 = vld [vmem:[%s0 + $0x18] sm:$0xff]
        %v678 = vld [vmem:[%s0 + $0x20] sm:$0xff]
        %v679 = vld [vmem:[%s0 + $0x28] sm:$0xff]
        %v680 = vld [vmem:[%s0 + $0x30] sm:$0xff]
        %v681 = vld [vmem:[%s0 + $0x38] sm:$0xff]
        %v682 = vld [vmem:[%s0 + $0x40] sm:$0xff]
        %v683 = vld [vmem:[%s0 + $0x48] sm:$0xff]
        %v684 = vld [vmem:[%s0 + $0x50] sm:$0xff]
        %v685 = vld [vmem:[%s0 + $0x58] sm:$0xff]
        %v686 = vld [vmem:[%s0 + $0x60] sm:$0xff]
        %v687 = vld [vmem:[%s0 + $0x68] sm:$0xff]
        %v688 = vld [vmem:[%s0 + $0x70] sm:$0xff]
        %v689 = vld [vmem:[%s0 + $0x78] sm:$0xff]
        %v690 = vld [vmem:[%s611] sm:$0xff]
        %v691 = vld [vmem:[%s611 + $0x8] sm:$0xf]
        %v692 = vld [vmem:[%s611 + $0xc] sm:$0xff]
        %v693 = vld [vmem:[%s611 + $0x14] sm:$0xf]
        %v694 = vld [vmem:[%s611 + $0x18] sm:$0xff]
        %v695 = vld [vmem:[%s611 + $0x20] sm:$0xf]
        %v696 = vld [vmem:[%s611 + $0x24] sm:$0xff]
        %v697 = vld [vmem:[%s611 + $0x2c] sm:$0xf]
        %v698 = vld [vmem:[%s611 + $0x30] sm:$0xff]
        %v699 = vld [vmem:[%s611 + $0x38] sm:$0xf]
        %v700 = vld [vmem:[%s611 + $0x3c] sm:$0xff]
        %v701 = vld [vmem:[%s611 + $0x44] sm:$0xf]
        %v702 = vld [vmem:[%s611 + $0x48] sm:$0xff]
        %v703 = vld [vmem:[%s611 + $0x50] sm:$0xf]
        %v704 = vld [vmem:[%s611 + $0x54] sm:$0xff]
        %v705 = vld [vmem:[%s611 + $0x5c] sm:$0xf]
        %v706 = vld [vmem:[%s611 + $0x60] sm:$0xff]
        %v707 = vld [vmem:[%s611 + $0x68] sm:$0xf]
        %v708 = vld [vmem:[%s611 + $0x6c] sm:$0xff]
        %v709 = vld [vmem:[%s611 + $0x74] sm:$0xf]
        %v710 = vld [vmem:[%s611 + $0x78] sm:$0xff]
        %v711 = vld [vmem:[%s611 + $0x80] sm:$0xf]
        %v712 = vld [vmem:[%s611 + $0x84] sm:$0xff]
        %v713 = vld [vmem:[%s611 + $0x8c] sm:$0xf]
        %v714 = vld [vmem:[%s611 + $0x90] sm:$0xff]
        %v715 = vld [vmem:[%s611 + $0x98] sm:$0xf]
        %v716 = vld [vmem:[%s611 + $0x9c] sm:$0xff]
        %v717 = vld [vmem:[%s611 + $0xa4] sm:$0xf]
        %v718 = vld [vmem:[%s611 + $0xa8] sm:$0xff]
        %v719 = vld [vmem:[%s611 + $0xb0] sm:$0xf]
        %v720 = vld [vmem:[%s611 + $0xb4] sm:$0xff]
        %v721 = vld [vmem:[%s611 + $0xbc] sm:$0xf]
        %v722 = vld [vmem:[%s611 + $0xc0] sm:$0xff]
        %v723 = vld [vmem:[%s611 + $0xc8] sm:$0xf]
        %v724 = vld [vmem:[%s611 + $0xcc] sm:$0xff]
        %v725 = vld [vmem:[%s611 + $0xd4] sm:$0xf]
        %v726 = vld [vmem:[%s611 + $0xd8] sm:$0xff]
        %v727 = vld [vmem:[%s611 + $0xe0] sm:$0xf]
        %v728 = vld [vmem:[%s611 + $0xe4] sm:$0xff]
        %v729 = vld [vmem:[%s611 + $0xec] sm:$0xf]
        %v730 = vld [vmem:[%s611 + $0xf0] sm:$0xff]
        %v731 = vld [vmem:[%s611 + $0xf8] sm:$0xf]
        %v732 = vld [vmem:[%s611 + $0xfc] sm:$0xff]
        %v733 = vld [vmem:[%s611 + $0x104] sm:$0xf]
        %v734 = vld [vmem:[%s611 + $0x108] sm:$0xff]
        %v735 = vld [vmem:[%s611 + $0x110] sm:$0xf]
        %v736 = vld [vmem:[%s611 + $0x114] sm:$0xff]
        %v737 = vld [vmem:[%s611 + $0x11c] sm:$0xf]
        %v738 = vld [vmem:[%s1] sm:$0xff]
        %v739 = vld [vmem:[%s1 + $0x8] sm:$0xff]
        %v740 = vld [vmem:[%s1 + $0x10] sm:$0xff]
        %v741 = vld [vmem:[%s1 + $0x18] sm:$0xff]
        %v742 = vld [vmem:[%s1 + $0x20] sm:$0xff]
        %v743 = vld [vmem:[%s1 + $0x28] sm:$0xff]
        %v744 = vld [vmem:[%s1 + $0x30] sm:$0xff]
        %v745 = vld [vmem:[%s1 + $0x38] sm:$0xff]
        %v746 = vld [vmem:[%s1 + $0x40] sm:$0xff]
        %v747 = vld [vmem:[%s1 + $0x48] sm:$0xff]
        %v748 = vld [vmem:[%s1 + $0x50] sm:$0xff]
        %v749 = vld [vmem:[%s1 + $0x58] sm:$0xff]
        %v750 = vld [vmem:[%s1 + $0x60] sm:$0xff]
        %v751 = vld [vmem:[%s1 + $0x68] sm:$0xff]
        %v752 = vld [vmem:[%s1 + $0x70] sm:$0xff]
        %v753 = vld [vmem:[%s1 + $0x78] sm:$0xff]
        %v754 = vld [vmem:[%s618] sm:$0xff]
        %v755 = vld [vmem:[%s618 + $0x8] sm:$0xf]
        %v756 = vld [vmem:[%s618 + $0xc] sm:$0xff]
        %v757 = vld [vmem:[%s618 + $0x14] sm:$0xf]
        %v758 = vld [vmem:[%s618 + $0x18] sm:$0xff]
        %v759 = vld [vmem:[%s618 + $0x20] sm:$0xf]
        %v760 = vld [vmem:[%s618 + $0x24] sm:$0xff]
        %v761 = vld [vmem:[%s618 + $0x2c] sm:$0xf]
        %v762 = vld [vmem:[%s618 + $0x30] sm:$0xff]
        %v763 = vld [vmem:[%s618 + $0x38] sm:$0xf]
        %v764 = vld [vmem:[%s618 + $0x3c] sm:$0xff]
        %v765 = vld [vmem:[%s618 + $0x44] sm:$0xf]
        %v766 = vld [vmem:[%s618 + $0x48] sm:$0xff]
        %v767 = vld [vmem:[%s618 + $0x50] sm:$0xf]
        %v768 = vld [vmem:[%s618 + $0x54] sm:$0xff]
        %v769 = vld [vmem:[%s618 + $0x5c] sm:$0xf]
        %v770 = vld [vmem:[%s618 + $0x60] sm:$0xff]
        %v771 = vld [vmem:[%s618 + $0x68] sm:$0xf]
        %v772 = vld [vmem:[%s618 + $0x6c] sm:$0xff]
        %v773 = vld [vmem:[%s618 + $0x74] sm:$0xf]
        %v774 = vld [vmem:[%s618 + $0x78] sm:$0xff]
        %v775 = vld [vmem:[%s618 + $0x80] sm:$0xf]
        %v776 = vld [vmem:[%s618 + $0x84] sm:$0xff]
        %v777 = vld [vmem:[%s618 + $0x8c] sm:$0xf]
        %v778 = vld [vmem:[%s618 + $0x90] sm:$0xff]
        %v779 = vld [vmem:[%s618 + $0x98] sm:$0xf]
        %v780 = vld [vmem:[%s618 + $0x9c] sm:$0xff]
        %v781 = vld [vmem:[%s618 + $0xa4] sm:$0xf]
        %v782 = vld [vmem:[%s618 + $0xa8] sm:$0xff]
        %v783 = vld [vmem:[%s618 + $0xb0] sm:$0xf]
        %v784 = vld [vmem:[%s618 + $0xb4] sm:$0xff]
        %v785 = vld [vmem:[%s618 + $0xbc] sm:$0xf]
        %v786 = vld [vmem:[%s618 + $0xc0] sm:$0xff]
        %v787 = vld [vmem:[%s618 + $0xc8] sm:$0xf]
        %v788 = vld [vmem:[%s618 + $0xcc] sm:$0xff]
        %v789 = vld [vmem:[%s618 + $0xd4] sm:$0xf]
        %v790 = vld [vmem:[%s618 + $0xd8] sm:$0xff]
        %v791 = vld [vmem:[%s618 + $0xe0] sm:$0xf]
        %v792 = vld [vmem:[%s618 + $0xe4] sm:$0xff]
        %v793 = vld [vmem:[%s618 + $0xec] sm:$0xf]
        %v794 = vld [vmem:[%s618 + $0xf0] sm:$0xff]
        %v795 = vld [vmem:[%s618 + $0xf8] sm:$0xf]
        %v796 = vld [vmem:[%s618 + $0xfc] sm:$0xff]
        %v797 = vld [vmem:[%s618 + $0x104] sm:$0xf]
        %v798 = vld [vmem:[%s618 + $0x108] sm:$0xff]
        %v799 = vld [vmem:[%s618 + $0x110] sm:$0xf]
        %v800 = vld [vmem:[%s618 + $0x114] sm:$0xff]
        %v801 = vld [vmem:[%s618 + $0x11c] sm:$0xf]
        %v818 = vunpack.c.l.b16 %v738
        %v819 = vunpack.c.h.b16 %v738
        %v820 = vunpack.c.l.b16 %v739
        %v821 = vunpack.c.h.b16 %v739
        %v822 = vunpack.c.l.b16 %v740
        %v823 = vunpack.c.h.b16 %v740
        %v824 = vunpack.c.l.b16 %v741
        %v825 = vunpack.c.h.b16 %v741
        %v826 = vunpack.c.l.b16 %v742
        %v827 = vunpack.c.h.b16 %v742
        %v828 = vunpack.c.l.b16 %v743
        %v829 = vunpack.c.h.b16 %v743
        %v830 = vunpack.c.l.b16 %v744
        %v831 = vunpack.c.h.b16 %v744
        %v832 = vunpack.c.l.b16 %v745
        %v833 = vunpack.c.h.b16 %v745
        %v834 = vunpack.c.l.b16 %v746
        %v835 = vunpack.c.h.b16 %v746
        %v836 = vunpack.c.l.b16 %v747
        %v837 = vunpack.c.h.b16 %v747
        %v838 = vunpack.c.l.b16 %v748
        %v839 = vunpack.c.h.b16 %v748
        %v840 = vunpack.c.l.b16 %v749
        %v841 = vunpack.c.h.b16 %v749
        %v842 = vunpack.c.l.b16 %v750
        %v843 = vunpack.c.h.b16 %v750
        %v844 = vunpack.c.l.b16 %v751
        %v845 = vunpack.c.h.b16 %v751
        %v846 = vunpack.c.l.b16 %v752
        %v847 = vunpack.c.h.b16 %v752
        %v848 = vunpack.c.l.b16 %v753
        %v849 = vunpack.c.h.b16 %v753
        %v850 = vpack.c.b16 %v820, %v818
        %v851 = vpack.c.b16 %v821, %v819
        %v852 = vpack.c.b16 %v824, %v822
        %v853 = vpack.c.b16 %v825, %v823
        %v854 = vpack.c.b16 %v828, %v826
        %v855 = vpack.c.b16 %v829, %v827
        %v856 = vpack.c.b16 %v832, %v830
        %v857 = vpack.c.b16 %v833, %v831
        %v858 = vpack.c.b16 %v836, %v834
        %v859 = vpack.c.b16 %v837, %v835
        %v860 = vpack.c.b16 %v840, %v838
        %v861 = vpack.c.b16 %v841, %v839
        %v862 = vpack.c.b16 %v844, %v842
        %v863 = vpack.c.b16 %v845, %v843
        %v864 = vpack.c.b16 %v848, %v846
        %v865 = vpack.c.b16 %v849, %v847
        %v922 = vunpack.c.l.b16 %v754
        %v923 = vunpack.c.h.b16 %v754
        %v924 = vunpack.c.l.b16 %v755
        %v925 = vunpack.c.l.b16 %v756
        %v926 = vunpack.c.h.b16 %v756
        %v927 = vunpack.c.l.b16 %v757
        %v928 = vunpack.c.l.b16 %v758
        %v929 = vunpack.c.h.b16 %v758
        %v930 = vunpack.c.l.b16 %v759
        %v931 = vunpack.c.l.b16 %v760
        %v932 = vunpack.c.h.b16 %v760
        %v933 = vunpack.c.l.b16 %v761
        %v934 = vunpack.c.l.b16 %v762
        %v935 = vunpack.c.h.b16 %v762
        %v936 = vunpack.c.l.b16 %v763
        %v937 = vunpack.c.l.b16 %v764
        %v938 = vunpack.c.h.b16 %v764
        %v939 = vunpack.c.l.b16 %v765
        %v940 = vunpack.c.l.b16 %v766
        %v941 = vunpack.c.h.b16 %v766
        %v942 = vunpack.c.l.b16 %v767
        %v943 = vunpack.c.l.b16 %v768
        %v944 = vunpack.c.h.b16 %v768
        %v945 = vunpack.c.l.b16 %v769
        %v946 = vunpack.c.l.b16 %v770
        %v947 = vunpack.c.h.b16 %v770
        %v948 = vunpack.c.l.b16 %v771
        %v949 = vunpack.c.l.b16 %v772
        %v950 = vunpack.c.h.b16 %v772
        %v951 = vunpack.c.l.b16 %v773
        %v952 = vunpack.c.l.b16 %v774
        %v953 = vunpack.c.h.b16 %v774
        %v954 = vunpack.c.l.b16 %v775
        %v955 = vunpack.c.l.b16 %v776
        %v956 = vunpack.c.h.b16 %v776
        %v957 = vunpack.c.l.b16 %v777
        %v958 = vunpack.c.l.b16 %v778
        %v959 = vunpack.c.h.b16 %v778
        %v960 = vunpack.c.l.b16 %v779
        %v961 = vunpack.c.l.b16 %v780
        %v962 = vunpack.c.h.b16 %v780
        %v963 = vunpack.c.l.b16 %v781
        %v964 = vunpack.c.l.b16 %v782
        %v965 = vunpack.c.h.b16 %v782
        %v966 = vunpack.c.l.b16 %v783
        %v967 = vunpack.c.l.b16 %v784
        %v968 = vunpack.c.h.b16 %v784
        %v969 = vunpack.c.l.b16 %v785
        %v970 = vunpack.c.l.b16 %v786
        %v971 = vunpack.c.h.b16 %v786
        %v972 = vunpack.c.l.b16 %v787
        %v973 = vunpack.c.l.b16 %v788
        %v974 = vunpack.c.h.b16 %v788
        %v975 = vunpack.c.l.b16 %v789
        %v976 = vunpack.c.l.b16 %v790
        %v977 = vunpack.c.h.b16 %v790
        %v978 = vunpack.c.l.b16 %v791
        %v979 = vunpack.c.l.b16 %v792
        %v980 = vunpack.c.h.b16 %v792
        %v981 = vunpack.c.l.b16 %v793
        %v982 = vunpack.c.l.b16 %v794
        %v983 = vunpack.c.h.b16 %v794
        %v984 = vunpack.c.l.b16 %v795
        %v985 = vunpack.c.l.b16 %v796
        %v986 = vunpack.c.h.b16 %v796
        %v987 = vunpack.c.l.b16 %v797
        %v988 = vunpack.c.l.b16 %v798
        %v989 = vunpack.c.h.b16 %v798
        %v990 = vunpack.c.l.b16 %v799
        %v991 = vunpack.c.l.b16 %v800
        %v992 = vunpack.c.h.b16 %v800
        %v993 = vunpack.c.l.b16 %v801
        %v994 = vpack.c.b16 %v925, %v922
        %v995 = vpack.c.b16 %v926, %v923
        %v996 = vpack.c.b16 %v927, %v924
        %v997 = vpack.c.b16 %v931, %v928
        %v998 = vpack.c.b16 %v932, %v929
        %v999 = vpack.c.b16 %v933, %v930
        %v1000 = vpack.c.b16 %v937, %v934
        %v1001 = vpack.c.b16 %v938, %v935
        %v1002 = vpack.c.b16 %v939, %v936
        %v1003 = vpack.c.b16 %v943, %v940
        %v1004 = vpack.c.b16 %v944, %v941
        %v1005 = vpack.c.b16 %v945, %v942
        %v1006 = vpack.c.b16 %v949, %v946
        %v1007 = vpack.c.b16 %v950, %v947
        %v1008 = vpack.c.b16 %v951, %v948
        %v1009 = vpack.c.b16 %v955, %v952
        %v1010 = vpack.c.b16 %v956, %v953
        %v1011 = vpack.c.b16 %v957, %v954
        %v1012 = vpack.c.b16 %v961, %v958
        %v1013 = vpack.c.b16 %v962, %v959
        %v1014 = vpack.c.b16 %v963, %v960
        %v1015 = vpack.c.b16 %v967, %v964
        %v1016 = vpack.c.b16 %v968, %v965
        %v1017 = vpack.c.b16 %v969, %v966
        %v1018 = vpack.c.b16 %v973, %v970
        %v1019 = vpack.c.b16 %v974, %v971
        %v1020 = vpack.c.b16 %v975, %v972
        %v1021 = vpack.c.b16 %v979, %v976
        %v1022 = vpack.c.b16 %v980, %v977
        %v1023 = vpack.c.b16 %v981, %v978
        %v1024 = vpack.c.b16 %v985, %v982
        %v1025 = vpack.c.b16 %v986, %v983
        %v1026 = vpack.c.b16 %v987, %v984
        %v1027 = vpack.c.b16 %v991, %v988
        %v1028 = vpack.c.b16 %v992, %v989
        %v1029 = vpack.c.b16 %v993, %v990
        %vm1066 = vcmask 523264
        %v1068 = vsel %vm1066, %v851, 0
        %v1071 = vsel %vm1066, %v853, 0
        %v1074 = vsel %vm1066, %v855, 0
        %v1077 = vsel %vm1066, %v857, 0
        %v1080 = vsel %vm1066, %v859, 0
        %v1083 = vsel %vm1066, %v861, 0
        %v1086 = vsel %vm1066, %v863, 0
        %v1089 = vsel %vm1066, %v865, 0
        %1091 = vmatprep.subr.bf16.mxu0 %v995
        %1092 = vmatpush1.bf16.msra.mxu0 %v994
        %1093 = vmatprep.subr.bf16.mxu0 %v998
        %1094 = vmatpush1.bf16.msra.mxu0 %v997
        %1095 = vmatprep.subr.bf16.mxu0 %v1001
        %1096 = vmatpush1.bf16.msra.mxu0 %v1000
        %1097 = vmatprep.subr.bf16.mxu0 %v1004
        %1098 = vmatpush1.bf16.msra.mxu0 %v1003
        %1099 = vmatprep.subr.bf16.mxu0 %v1007
        %1100 = vmatpush1.bf16.msra.mxu0 %v1006
        %1101 = vmatprep.subr.bf16.mxu0 %v1010
        %1102 = vmatpush1.bf16.msra.mxu0 %v1009
        %1103 = vmatprep.subr.bf16.mxu0 %v1013
        %1104 = vmatpush1.bf16.msra.mxu0 %v1012
        %1105 = vmatprep.subr.bf16.mxu0 %v1016
        %1106 = vmatpush1.bf16.msra.mxu0 %v1015
        %1107 = vmatprep.subr.bf16.mxu0 %v1019
        %1108 = vmatpush1.bf16.msra.mxu0 %v1018
        %1109 = vmatprep.subr.bf16.mxu0 %v1022
        %1110 = vmatpush1.bf16.msra.mxu0 %v1021
        %1111 = vmatprep.subr.bf16.mxu0 %v1025
        %1112 = vmatpush1.bf16.msra.mxu0 %v1024
        %1113 = vmatprep.subr.bf16.mxu0 %v1028
        %1114 = vmatpush1.bf16.msra.mxu0 %v1027
        %1115 = vmatprep.subr.bf16.mxu0 0
        %1116 = vmatpush1.bf16.msra.mxu0 0
        %1117 = vmatprep.subr.bf16.mxu0 0
        %1118 = vmatpush1.bf16.msra.mxu0 0
        %1119 = vmatprep.subr.bf16.mxu0 0
        %1120 = vmatpush1.bf16.msra.mxu0 0
        %1121 = vmatprep.subr.bf16.mxu0 0
        %1122 = vmatpush1.bf16.msra.mxu0 0
        %1123 = vmatprep.mubr.bf16.mxu0 %v1068
        %1124 = vmatmul.mubr.bf16.gmra.mrb[0].mxu0 %v850
        %v1125 = vpop.f32.mrb[0].mxu0
        %v1126 = vadd.f32 0.0, %v1125
        %v1127 = vpop.f32.mrb[0].mxu0
        %v1128 = vadd.f32 0.0, %v1127
        %v1129 = vpop.f32.mrb[0].mxu0
        %v1130 = vadd.f32 0.0, %v1129
        %v1131 = vpop.f32.mrb[0].mxu0
        %v1132 = vadd.f32 0.0, %v1131
        %1133 = vmatprep.mubr.bf16.mxu0 %v1071
        %1134 = vmatmul.mubr.bf16.gmra.mrb[0].mxu0 %v852
        %v1135 = vpop.f32.mrb[0].mxu0
        %v1136 = vadd.f32 0.0, %v1135
        %v1137 = vpop.f32.mrb[0].mxu0
        %v1138 = vadd.f32 0.0, %v1137
        %v1139 = vpop.f32.mrb[0].mxu0
        %v1140 = vadd.f32 0.0, %v1139
        %v1141 = vpop.f32.mrb[0].mxu0
        %v1142 = vadd.f32 0.0, %v1141
        %1143 = vmatprep.mubr.bf16.mxu0 %v1074
        %1144 = vmatmul.mubr.bf16.gmra.mrb[0].mxu0 %v854
        %v1145 = vpop.f32.mrb[0].mxu0
        %v1146 = vadd.f32 0.0, %v1145
        %v1147 = vpop.f32.mrb[0].mxu0
        %v1148 = vadd.f32 0.0, %v1147
        %v1149 = vpop.f32.mrb[0].mxu0
        %v1150 = vadd.f32 0.0, %v1149
        %v1151 = vpop.f32.mrb[0].mxu0
        %v1152 = vadd.f32 0.0, %v1151
        %1153 = vmatprep.mubr.bf16.mxu0 %v1077
        %1154 = vmatmul.mubr.bf16.gmra.mrb[0].mxu0 %v856
        %v1155 = vpop.f32.mrb[0].mxu0
        %v1156 = vadd.f32 0.0, %v1155
        %v1157 = vpop.f32.mrb[0].mxu0
        %v1158 = vadd.f32 0.0, %v1157
        %v1159 = vpop.f32.mrb[0].mxu0
        %v1160 = vadd.f32 0.0, %v1159
        %v1161 = vpop.f32.mrb[0].mxu0
        %v1162 = vadd.f32 0.0, %v1161
        %1163 = vmatprep.mubr.bf16.mxu0 %v1080
        %1164 = vmatmul.mubr.bf16.gmra.mrb[0].mxu0 %v858
        %v1165 = vpop.f32.mrb[0].mxu0
        %v1166 = vadd.f32 0.0, %v1165
        %v1167 = vpop.f32.mrb[0].mxu0
        %v1168 = vadd.f32 0.0, %v1167
        %v1169 = vpop.f32.mrb[0].mxu0
        %v1170 = vadd.f32 0.0, %v1169
        %v1171 = vpop.f32.mrb[0].mxu0
        %v1172 = vadd.f32 0.0, %v1171
        %1173 = vmatprep.mubr.bf16.mxu0 %v1083
        %1174 = vmatmul.mubr.bf16.gmra.mrb[0].mxu0 %v860
        %v1175 = vpop.f32.mrb[0].mxu0
        %v1176 = vadd.f32 0.0, %v1175
        %v1177 = vpop.f32.mrb[0].mxu0
        %v1178 = vadd.f32 0.0, %v1177
        %v1179 = vpop.f32.mrb[0].mxu0
        %v1180 = vadd.f32 0.0, %v1179
        %v1181 = vpop.f32.mrb[0].mxu0
        %v1182 = vadd.f32 0.0, %v1181
        %1183 = vmatprep.mubr.bf16.mxu0 %v1086
        %1184 = vmatmul.mubr.bf16.gmra.mrb[0].mxu0 %v862
        %v1185 = vpop.f32.mrb[0].mxu0
        %v1186 = vadd.f32 0.0, %v1185
        %v1187 = vpop.f32.mrb[0].mxu0
        %v1188 = vadd.f32 0.0, %v1187
        %v1189 = vpop.f32.mrb[0].mxu0
        %v1190 = vadd.f32 0.0, %v1189
        %v1191 = vpop.f32.mrb[0].mxu0
        %v1192 = vadd.f32 0.0, %v1191
        %1193 = vmatprep.mubr.bf16.mxu0 %v1089
        %1194 = vmatmul.mubr.bf16.gmra.mrb[0].mxu0 %v864
        %v1195 = vpop.f32.mrb[0].mxu0
        %v1196 = vadd.f32 0.0, %v1195
        %v1197 = vpop.f32.mrb[0].mxu0
        %v1198 = vadd.f32 0.0, %v1197
        %v1199 = vpop.f32.mrb[0].mxu0
        %v1200 = vadd.f32 0.0, %v1199
        %v1201 = vpop.f32.mrb[0].mxu0
        %v1202 = vadd.f32 0.0, %v1201
        %1203 = vdwg.mxu0
        %1204 = vmatprep.subr.bf16.mxu0 0
        %1205 = vmatpush1.bf16.msra.mxu0 %v996
        %1206 = vmatprep.subr.bf16.mxu0 0
        %1207 = vmatpush1.bf16.msra.mxu0 %v999
        %1208 = vmatprep.subr.bf16.mxu0 0
        %1209 = vmatpush1.bf16.msra.mxu0 %v1002
        %1210 = vmatprep.subr.bf16.mxu0 0
        %1211 = vmatpush1.bf16.msra.mxu0 %v1005
        %1212 = vmatprep.subr.bf16.mxu0 0
        %1213 = vmatpush1.bf16.msra.mxu0 %v1008
        %1214 = vmatprep.subr.bf16.mxu0 0
        %1215 = vmatpush1.bf16.msra.mxu0 %v1011
        %1216 = vmatprep.subr.bf16.mxu0 0
        %1217 = vmatpush1.bf16.msra.mxu0 %v1014
        %1218 = vmatprep.subr.bf16.mxu0 0
        %1219 = vmatpush1.bf16.msra.mxu0 %v1017
        %1220 = vmatprep.subr.bf16.mxu0 0
        %1221 = vmatpush1.bf16.msra.mxu0 %v1020
        %1222 = vmatprep.subr.bf16.mxu0 0
        %1223 = vmatpush1.bf16.msra.mxu0 %v1023
        %1224 = vmatprep.subr.bf16.mxu0 0
        %1225 = vmatpush1.bf16.msra.mxu0 %v1026
        %1226 = vmatprep.subr.bf16.mxu0 0
        %1227 = vmatpush1.bf16.msra.mxu0 %v1029
        %1228 = vmatprep.subr.bf16.mxu0 0
        %1229 = vmatpush1.bf16.msra.mxu0 0
        %1230 = vmatprep.subr.bf16.mxu0 0
        %1231 = vmatpush1.bf16.msra.mxu0 0
        %1232 = vmatprep.subr.bf16.mxu0 0
        %1233 = vmatpush1.bf16.msra.mxu0 0
        %1234 = vmatprep.subr.bf16.mxu0 0
        %1235 = vmatpush1.bf16.msra.mxu0 0
        %1236 = vmatprep.mubr.bf16.mxu0 %v1068
        %1237 = vmatmul.mubr.bf16.gmra.mrb[0].mxu0 %v850
        %v1238 = vpop.f32.mrb[0].mxu0
        %v1239 = vadd.f32 0.0, %v1238
        %v1240 = vpop.f32.mrb[0].mxu0
        %v1241 = vpop.f32.mrb[0].mxu0
        %v1242 = vadd.f32 0.0, %v1241
        %v1243 = vpop.f32.mrb[0].mxu0
        %1244 = vmatprep.mubr.bf16.mxu0 %v1071
        %1245 = vmatmul.mubr.bf16.gmra.mrb[0].mxu0 %v852
        %v1246 = vpop.f32.mrb[0].mxu0
        %v1247 = vadd.f32 0.0, %v1246
        %v1248 = vpop.f32.mrb[0].mxu0
        %v1249 = vpop.f32.mrb[0].mxu0
        %v1250 = vadd.f32 0.0, %v1249
        %v1251 = vpop.f32.mrb[0].mxu0
        %1252 = vmatprep.mubr.bf16.mxu0 %v1074
        %1253 = vmatmul.mubr.bf16.gmra.mrb[0].mxu0 %v854
        %v1254 = vpop.f32.mrb[0].mxu0
        %v1255 = vadd.f32 0.0, %v1254
        %v1256 = vpop.f32.mrb[0].mxu0
        %v1257 = vpop.f32.mrb[0].mxu0
        %v1258 = vadd.f32 0.0, %v1257
        %v1259 = vpop.f32.mrb[0].mxu0
        %1260 = vmatprep.mubr.bf16.mxu0 %v1077
        %1261 = vmatmul.mubr.bf16.gmra.mrb[0].mxu0 %v856
        %v1262 = vpop.f32.mrb[0].mxu0
        %v1263 = vadd.f32 0.0, %v1262
        %v1264 = vpop.f32.mrb[0].mxu0
        %v1265 = vpop.f32.mrb[0].mxu0
        %v1266 = vadd.f32 0.0, %v1265
        %v1267 = vpop.f32.mrb[0].mxu0
        %1268 = vmatprep.mubr.bf16.mxu0 %v1080
        %1269 = vmatmul.mubr.bf16.gmra.mrb[0].mxu0 %v858
        %v1270 = vpop.f32.mrb[0].mxu0
        %v1271 = vadd.f32 0.0, %v1270
        %v1272 = vpop.f32.mrb[0].mxu0
        %v1273 = vpop.f32.mrb[0].mxu0
        %v1274 = vadd.f32 0.0, %v1273
        %v1275 = vpop.f32.mrb[0].mxu0
        %1276 = vmatprep.mubr.bf16.mxu0 %v1083
        %1277 = vmatmul.mubr.bf16.gmra.mrb[0].mxu0 %v860
        %v1278 = vpop.f32.mrb[0].mxu0
        %v1279 = vadd.f32 0.0, %v1278
        %v1280 = vpop.f32.mrb[0].mxu0
        %v1281 = vpop.f32.mrb[0].mxu0
        %v1282 = vadd.f32 0.0, %v1281
        %v1283 = vpop.f32.mrb[0].mxu0
        %1284 = vmatprep.mubr.bf16.mxu0 %v1086
        %1285 = vmatmul.mubr.bf16.gmra.mrb[0].mxu0 %v862
        %v1286 = vpop.f32.mrb[0].mxu0
        %v1287 = vadd.f32 0.0, %v1286
        %v1288 = vpop.f32.mrb[0].mxu0
        %v1289 = vpop.f32.mrb[0].mxu0
        %v1290 = vadd.f32 0.0, %v1289
        %v1291 = vpop.f32.mrb[0].mxu0
        %1292 = vmatprep.mubr.bf16.mxu0 %v1089
        %1293 = vmatmul.mubr.bf16.gmra.mrb[0].mxu0 %v864
        %v1294 = vpop.f32.mrb[0].mxu0
        %v1295 = vadd.f32 0.0, %v1294
        %v1296 = vpop.f32.mrb[0].mxu0
        %v1297 = vpop.f32.mrb[0].mxu0
        %v1298 = vadd.f32 0.0, %v1297
        %v1299 = vpop.f32.mrb[0].mxu0
        %1300 = vdwg.mxu0
        %v1317 = vunpack.c.l.b16 %v674
        %v1318 = vunpack.c.h.b16 %v674
        %v1319 = vunpack.c.l.b16 %v675
        %v1320 = vunpack.c.h.b16 %v675
        %v1321 = vunpack.c.l.b16 %v676
        %v1322 = vunpack.c.h.b16 %v676
        %v1323 = vunpack.c.l.b16 %v677
        %v1324 = vunpack.c.h.b16 %v677
        %v1325 = vunpack.c.l.b16 %v678
        %v1326 = vunpack.c.h.b16 %v678
        %v1327 = vunpack.c.l.b16 %v679
        %v1328 = vunpack.c.h.b16 %v679
        %v1329 = vunpack.c.l.b16 %v680
        %v1330 = vunpack.c.h.b16 %v680
        %v1331 = vunpack.c.l.b16 %v681
        %v1332 = vunpack.c.h.b16 %v681
        %v1333 = vunpack.c.l.b16 %v682
        %v1334 = vunpack.c.h.b16 %v682
        %v1335 = vunpack.c.l.b16 %v683
        %v1336 = vunpack.c.h.b16 %v683
        %v1337 = vunpack.c.l.b16 %v684
        %v1338 = vunpack.c.h.b16 %v684
        %v1339 = vunpack.c.l.b16 %v685
        %v1340 = vunpack.c.h.b16 %v685
        %v1341 = vunpack.c.l.b16 %v686
        %v1342 = vunpack.c.h.b16 %v686
        %v1343 = vunpack.c.l.b16 %v687
        %v1344 = vunpack.c.h.b16 %v687
        %v1345 = vunpack.c.l.b16 %v688
        %v1346 = vunpack.c.h.b16 %v688
        %v1347 = vunpack.c.l.b16 %v689
        %v1348 = vunpack.c.h.b16 %v689
        %v1349 = vpack.c.b16 %v1319, %v1317
        %v1350 = vpack.c.b16 %v1320, %v1318
        %v1351 = vpack.c.b16 %v1323, %v1321
        %v1352 = vpack.c.b16 %v1324, %v1322
        %v1353 = vpack.c.b16 %v1327, %v1325
        %v1354 = vpack.c.b16 %v1328, %v1326
        %v1355 = vpack.c.b16 %v1331, %v1329
        %v1356 = vpack.c.b16 %v1332, %v1330
        %v1357 = vpack.c.b16 %v1335, %v1333
        %v1358 = vpack.c.b16 %v1336, %v1334
        %v1359 = vpack.c.b16 %v1339, %v1337
        %v1360 = vpack.c.b16 %v1340, %v1338
        %v1361 = vpack.c.b16 %v1343, %v1341
        %v1362 = vpack.c.b16 %v1344, %v1342
        %v1363 = vpack.c.b16 %v1347, %v1345
        %v1364 = vpack.c.b16 %v1348, %v1346
        %v1421 = vunpack.c.l.b16 %v690
        %v1422 = vunpack.c.h.b16 %v690
        %v1423 = vunpack.c.l.b16 %v691
        %v1424 = vunpack.c.l.b16 %v692
        %v1425 = vunpack.c.h.b16 %v692
        %v1426 = vunpack.c.l.b16 %v693
        %v1427 = vunpack.c.l.b16 %v694
        %v1428 = vunpack.c.h.b16 %v694
        %v1429 = vunpack.c.l.b16 %v695
        %v1430 = vunpack.c.l.b16 %v696
        %v1431 = vunpack.c.h.b16 %v696
        %v1432 = vunpack.c.l.b16 %v697
        %v1433 = vunpack.c.l.b16 %v698
        %v1434 = vunpack.c.h.b16 %v698
        %v1435 = vunpack.c.l.b16 %v699
        %v1436 = vunpack.c.l.b16 %v700
        %v1437 = vunpack.c.h.b16 %v700
        %v1438 = vunpack.c.l.b16 %v701
        %v1439 = vunpack.c.l.b16 %v702
        %v1440 = vunpack.c.h.b16 %v702
        %v1441 = vunpack.c.l.b16 %v703
        %v1442 = vunpack.c.l.b16 %v704
        %v1443 = vunpack.c.h.b16 %v704
        %v1444 = vunpack.c.l.b16 %v705
        %v1445 = vunpack.c.l.b16 %v706
        %v1446 = vunpack.c.h.b16 %v706
        %v1447 = vunpack.c.l.b16 %v707
        %v1448 = vunpack.c.l.b16 %v708
        %v1449 = vunpack.c.h.b16 %v708
        %v1450 = vunpack.c.l.b16 %v709
        %v1451 = vunpack.c.l.b16 %v710
        %v1452 = vunpack.c.h.b16 %v710
        %v1453 = vunpack.c.l.b16 %v711
        %v1454 = vunpack.c.l.b16 %v712
        %v1455 = vunpack.c.h.b16 %v712
        %v1456 = vunpack.c.l.b16 %v713
        %v1457 = vunpack.c.l.b16 %v714
        %v1458 = vunpack.c.h.b16 %v714
        %v1459 = vunpack.c.l.b16 %v715
        %v1460 = vunpack.c.l.b16 %v716
        %v1461 = vunpack.c.h.b16 %v716
        %v1462 = vunpack.c.l.b16 %v717
        %v1463 = vunpack.c.l.b16 %v718
        %v1464 = vunpack.c.h.b16 %v718
        %v1465 = vunpack.c.l.b16 %v719
        %v1466 = vunpack.c.l.b16 %v720
        %v1467 = vunpack.c.h.b16 %v720
        %v1468 = vunpack.c.l.b16 %v721
        %v1469 = vunpack.c.l.b16 %v722
        %v1470 = vunpack.c.h.b16 %v722
        %v1471 = vunpack.c.l.b16 %v723
        %v1472 = vunpack.c.l.b16 %v724
        %v1473 = vunpack.c.h.b16 %v724
        %v1474 = vunpack.c.l.b16 %v725
        %v1475 = vunpack.c.l.b16 %v726
        %v1476 = vunpack.c.h.b16 %v726
        %v1477 = vunpack.c.l.b16 %v727
        %v1478 = vunpack.c.l.b16 %v728
        %v1479 = vunpack.c.h.b16 %v728
        %v1480 = vunpack.c.l.b16 %v729
        %v1481 = vunpack.c.l.b16 %v730
        %v1482 = vunpack.c.h.b16 %v730
        %v1483 = vunpack.c.l.b16 %v731
        %v1484 = vunpack.c.l.b16 %v732
        %v1485 = vunpack.c.h.b16 %v732
        %v1486 = vunpack.c.l.b16 %v733
        %v1487 = vunpack.c.l.b16 %v734
        %v1488 = vunpack.c.h.b16 %v734
        %v1489 = vunpack.c.l.b16 %v735
        %v1490 = vunpack.c.l.b16 %v736
        %v1491 = vunpack.c.h.b16 %v736
        %v1492 = vunpack.c.l.b16 %v737
        %v1493 = vpack.c.b16 %v1424, %v1421
        %v1494 = vpack.c.b16 %v1425, %v1422
        %v1495 = vpack.c.b16 %v1426, %v1423
        %v1496 = vpack.c.b16 %v1430, %v1427
        %v1497 = vpack.c.b16 %v1431, %v1428
        %v1498 = vpack.c.b16 %v1432, %v1429
        %v1499 = vpack.c.b16 %v1436, %v1433
        %v1500 = vpack.c.b16 %v1437, %v1434
        %v1501 = vpack.c.b16 %v1438, %v1435
        %v1502 = vpack.c.b16 %v1442, %v1439
        %v1503 = vpack.c.b16 %v1443, %v1440
        %v1504 = vpack.c.b16 %v1444, %v1441
        %v1505 = vpack.c.b16 %v1448, %v1445
        %v1506 = vpack.c.b16 %v1449, %v1446
        %v1507 = vpack.c.b16 %v1450, %v1447
        %v1508 = vpack.c.b16 %v1454, %v1451
        %v1509 = vpack.c.b16 %v1455, %v1452
        %v1510 = vpack.c.b16 %v1456, %v1453
        %v1511 = vpack.c.b16 %v1460, %v1457
        %v1512 = vpack.c.b16 %v1461, %v1458
        %v1513 = vpack.c.b16 %v1462, %v1459
        %v1514 = vpack.c.b16 %v1466, %v1463
        %v1515 = vpack.c.b16 %v1467, %v1464
        %v1516 = vpack.c.b16 %v1468, %v1465
        %v1517 = vpack.c.b16 %v1472, %v1469
        %v1518 = vpack.c.b16 %v1473, %v1470
        %v1519 = vpack.c.b16 %v1474, %v1471
        %v1520 = vpack.c.b16 %v1478, %v1475
        %v1521 = vpack.c.b16 %v1479, %v1476
        %v1522 = vpack.c.b16 %v1480, %v1477
        %v1523 = vpack.c.b16 %v1484, %v1481
        %v1524 = vpack.c.b16 %v1485, %v1482
        %v1525 = vpack.c.b16 %v1486, %v1483
        %v1526 = vpack.c.b16 %v1490, %v1487
        %v1527 = vpack.c.b16 %v1491, %v1488
        %v1528 = vpack.c.b16 %v1492, %v1489
        %v1566 = vsel %vm1066, %v1350, 0
        %v1569 = vsel %vm1066, %v1352, 0
        %v1572 = vsel %vm1066, %v1354, 0
        %v1575 = vsel %vm1066, %v1356, 0
        %v1578 = vsel %vm1066, %v1358, 0
        %v1581 = vsel %vm1066, %v1360, 0
        %v1584 = vsel %vm1066, %v1362, 0
        %v1587 = vsel %vm1066, %v1364, 0
        %1589 = vmatprep.subr.bf16.mxu0 %v1494
        %1590 = vmatpush1.bf16.msra.mxu0 %v1493
        %1591 = vmatprep.subr.bf16.mxu0 %v1497
        %1592 = vmatpush1.bf16.msra.mxu0 %v1496
        %1593 = vmatprep.subr.bf16.mxu0 %v1500
        %1594 = vmatpush1.bf16.msra.mxu0 %v1499
        %1595 = vmatprep.subr.bf16.mxu0 %v1503
        %1596 = vmatpush1.bf16.msra.mxu0 %v1502
        %1597 = vmatprep.subr.bf16.mxu0 %v1506
        %1598 = vmatpush1.bf16.msra.mxu0 %v1505
        %1599 = vmatprep.subr.bf16.mxu0 %v1509
        %1600 = vmatpush1.bf16.msra.mxu0 %v1508
        %1601 = vmatprep.subr.bf16.mxu0 %v1512
        %1602 = vmatpush1.bf16.msra.mxu0 %v1511
        %1603 = vmatprep.subr.bf16.mxu0 %v1515
        %1604 = vmatpush1.bf16.msra.mxu0 %v1514
        %1605 = vmatprep.subr.bf16.mxu0 %v1518
        %1606 = vmatpush1.bf16.msra.mxu0 %v1517
        %1607 = vmatprep.subr.bf16.mxu0 %v1521
        %1608 = vmatpush1.bf16.msra.mxu0 %v1520
        %1609 = vmatprep.subr.bf16.mxu0 %v1524
        %1610 = vmatpush1.bf16.msra.mxu0 %v1523
        %1611 = vmatprep.subr.bf16.mxu0 %v1527
        %1612 = vmatpush1.bf16.msra.mxu0 %v1526
        %1613 = vmatprep.subr.bf16.mxu0 0
        %1614 = vmatpush1.bf16.msra.mxu0 0
        %1615 = vmatprep.subr.bf16.mxu0 0
        %1616 = vmatpush1.bf16.msra.mxu0 0
        %1617 = vmatprep.subr.bf16.mxu0 0
        %1618 = vmatpush1.bf16.msra.mxu0 0
        %1619 = vmatprep.subr.bf16.mxu0 0
        %1620 = vmatpush1.bf16.msra.mxu0 0
        %1621 = vmatprep.mubr.bf16.mxu0 %v1566
        %1622 = vmatmul.mubr.bf16.gmra.mrb[0].mxu0 %v1349
        %v1623 = vpop.f32.mrb[0].mxu0
        %v1624 = vadd.f32 %v1126, %v1623
        %v1625 = vpop.f32.mrb[0].mxu0
        %v1626 = vadd.f32 %v1128, %v1625
        %v1627 = vpop.f32.mrb[0].mxu0
        %v1628 = vadd.f32 %v1130, %v1627
        %v1629 = vpop.f32.mrb[0].mxu0
        %v1630 = vadd.f32 %v1132, %v1629
        %1631 = vmatprep.mubr.bf16.mxu0 %v1569
        %1632 = vmatmul.mubr.bf16.gmra.mrb[0].mxu0 %v1351
        %v1633 = vpop.f32.mrb[0].mxu0
        %v1634 = vadd.f32 %v1136, %v1633
        %v1635 = vpop.f32.mrb[0].mxu0
        %v1636 = vadd.f32 %v1138, %v1635
        %v1637 = vpop.f32.mrb[0].mxu0
        %v1638 = vadd.f32 %v1140, %v1637
        %v1639 = vpop.f32.mrb[0].mxu0
        %v1640 = vadd.f32 %v1142, %v1639
        %1641 = vmatprep.mubr.bf16.mxu0 %v1572
        %1642 = vmatmul.mubr.bf16.gmra.mrb[0].mxu0 %v1353
        %v1643 = vpop.f32.mrb[0].mxu0
        %v1644 = vadd.f32 %v1146, %v1643
        %v1645 = vpop.f32.mrb[0].mxu0
        %v1646 = vadd.f32 %v1148, %v1645
        %v1647 = vpop.f32.mrb[0].mxu0
        %v1648 = vadd.f32 %v1150, %v1647
        %v1649 = vpop.f32.mrb[0].mxu0
        %v1650 = vadd.f32 %v1152, %v1649
        %1651 = vmatprep.mubr.bf16.mxu0 %v1575
        %1652 = vmatmul.mubr.bf16.gmra.mrb[0].mxu0 %v1355
        %v1653 = vpop.f32.mrb[0].mxu0
        %v1654 = vadd.f32 %v1156, %v1653
        %v1655 = vpop.f32.mrb[0].mxu0
        %v1656 = vadd.f32 %v1158, %v1655
        %v1657 = vpop.f32.mrb[0].mxu0
        %v1658 = vadd.f32 %v1160, %v1657
        %v1659 = vpop.f32.mrb[0].mxu0
        %v1660 = vadd.f32 %v1162, %v1659
        %1661 = vmatprep.mubr.bf16.mxu0 %v1578
        %1662 = vmatmul.mubr.bf16.gmra.mrb[0].mxu0 %v1357
        %v1663 = vpop.f32.mrb[0].mxu0
        %v1664 = vadd.f32 %v1166, %v1663
        %v1665 = vpop.f32.mrb[0].mxu0
        %v1666 = vadd.f32 %v1168, %v1665
        %v1667 = vpop.f32.mrb[0].mxu0
        %v1668 = vadd.f32 %v1170, %v1667
        %v1669 = vpop.f32.mrb[0].mxu0
        %v1670 = vadd.f32 %v1172, %v1669
        %1671 = vmatprep.mubr.bf16.mxu0 %v1581
        %1672 = vmatmul.mubr.bf16.gmra.mrb[0].mxu0 %v1359
        %v1673 = vpop.f32.mrb[0].mxu0
        %v1674 = vadd.f32 %v1176, %v1673
        %v1675 = vpop.f32.mrb[0].mxu0
        %v1676 = vadd.f32 %v1178, %v1675
        %v1677 = vpop.f32.mrb[0].mxu0
        %v1678 = vadd.f32 %v1180, %v1677
        %v1679 = vpop.f32.mrb[0].mxu0
        %v1680 = vadd.f32 %v1182, %v1679
        %1681 = vmatprep.mubr.bf16.mxu0 %v1584
        %1682 = vmatmul.mubr.bf16.gmra.mrb[0].mxu0 %v1361
        %v1683 = vpop.f32.mrb[0].mxu0
        %v1684 = vadd.f32 %v1186, %v1683
        %v1685 = vpop.f32.mrb[0].mxu0
        %v1686 = vadd.f32 %v1188, %v1685
        %v1687 = vpop.f32.mrb[0].mxu0
        %v1688 = vadd.f32 %v1190, %v1687
        %v1689 = vpop.f32.mrb[0].mxu0
        %v1690 = vadd.f32 %v1192, %v1689
        %1691 = vmatprep.mubr.bf16.mxu0 %v1587
        %1692 = vmatmul.mubr.bf16.gmra.mrb[0].mxu0 %v1363
        %v1693 = vpop.f32.mrb[0].mxu0
        %v1694 = vadd.f32 %v1196, %v1693
        %v1695 = vpop.f32.mrb[0].mxu0
        %v1696 = vadd.f32 %v1198, %v1695
        %v1697 = vpop.f32.mrb[0].mxu0
        %v1698 = vadd.f32 %v1200, %v1697
        %v1699 = vpop.f32.mrb[0].mxu0
        %v1700 = vadd.f32 %v1202, %v1699
        %1701 = vdwg.mxu0
        %1702 = vmatprep.subr.bf16.mxu0 0
        %1703 = vmatpush1.bf16.msra.mxu0 %v1495
        %1704 = vmatprep.subr.bf16.mxu0 0
        %1705 = vmatpush1.bf16.msra.mxu0 %v1498
        %1706 = vmatprep.subr.bf16.mxu0 0
        %1707 = vmatpush1.bf16.msra.mxu0 %v1501
        %1708 = vmatprep.subr.bf16.mxu0 0
        %1709 = vmatpush1.bf16.msra.mxu0 %v1504
        %1710 = vmatprep.subr.bf16.mxu0 0
        %1711 = vmatpush1.bf16.msra.mxu0 %v1507
        %1712 = vmatprep.subr.bf16.mxu0 0
        %1713 = vmatpush1.bf16.msra.mxu0 %v1510
        %1714 = vmatprep.subr.bf16.mxu0 0
        %1715 = vmatpush1.bf16.msra.mxu0 %v1513
        %1716 = vmatprep.subr.bf16.mxu0 0
        %1717 = vmatpush1.bf16.msra.mxu0 %v1516
        %1718 = vmatprep.subr.bf16.mxu0 0
        %1719 = vmatpush1.bf16.msra.mxu0 %v1519
        %1720 = vmatprep.subr.bf16.mxu0 0
        %1721 = vmatpush1.bf16.msra.mxu0 %v1522
        %1722 = vmatprep.subr.bf16.mxu0 0
        %1723 = vmatpush1.bf16.msra.mxu0 %v1525
        %1724 = vmatprep.subr.bf16.mxu0 0
        %1725 = vmatpush1.bf16.msra.mxu0 %v1528
        %1726 = vmatprep.subr.bf16.mxu0 0
        %1727 = vmatpush1.bf16.msra.mxu0 0
        %1728 = vmatprep.subr.bf16.mxu0 0
        %1729 = vmatpush1.bf16.msra.mxu0 0
        %1730 = vmatprep.subr.bf16.mxu0 0
        %1731 = vmatpush1.bf16.msra.mxu0 0
        %1732 = vmatprep.subr.bf16.mxu0 0
        %1733 = vmatpush1.bf16.msra.mxu0 0
        %1734 = vmatprep.mubr.bf16.mxu0 %v1566
        %1735 = vmatmul.mubr.bf16.gmra.mrb[0].mxu0 %v1349
        %v1736 = vpop.f32.mrb[0].mxu0
        %v1737 = vadd.f32 %v1239, %v1736
        %v1738 = vpop.f32.mrb[0].mxu0
        %v1739 = vpop.f32.mrb[0].mxu0
        %v1740 = vadd.f32 %v1242, %v1739
        %v1741 = vpop.f32.mrb[0].mxu0
        %1742 = vmatprep.mubr.bf16.mxu0 %v1569
        %1743 = vmatmul.mubr.bf16.gmra.mrb[0].mxu0 %v1351
        %v1744 = vpop.f32.mrb[0].mxu0
        %v1745 = vadd.f32 %v1247, %v1744
        %v1746 = vpop.f32.mrb[0].mxu0
        %v1747 = vpop.f32.mrb[0].mxu0
        %v1748 = vadd.f32 %v1250, %v1747
        %v1749 = vpop.f32.mrb[0].mxu0
        %1750 = vmatprep.mubr.bf16.mxu0 %v1572
        %1751 = vmatmul.mubr.bf16.gmra.mrb[0].mxu0 %v1353
        %v1752 = vpop.f32.mrb[0].mxu0
        %v1753 = vadd.f32 %v1255, %v1752
        %v1754 = vpop.f32.mrb[0].mxu0
        %v1755 = vpop.f32.mrb[0].mxu0
        %v1756 = vadd.f32 %v1258, %v1755
        %v1757 = vpop.f32.mrb[0].mxu0
        %1758 = vmatprep.mubr.bf16.mxu0 %v1575
        %1759 = vmatmul.mubr.bf16.gmra.mrb[0].mxu0 %v1355
        %v1760 = vpop.f32.mrb[0].mxu0
        %v1761 = vadd.f32 %v1263, %v1760
        %v1762 = vpop.f32.mrb[0].mxu0
        %v1763 = vpop.f32.mrb[0].mxu0
        %v1764 = vadd.f32 %v1266, %v1763
        %v1765 = vpop.f32.mrb[0].mxu0
        %1766 = vmatprep.mubr.bf16.mxu0 %v1578
        %1767 = vmatmul.mubr.bf16.gmra.mrb[0].mxu0 %v1357
        %v1768 = vpop.f32.mrb[0].mxu0
        %v1769 = vadd.f32 %v1271, %v1768
        %v1770 = vpop.f32.mrb[0].mxu0
        %v1771 = vpop.f32.mrb[0].mxu0
        %v1772 = vadd.f32 %v1274, %v1771
        %v1773 = vpop.f32.mrb[0].mxu0
        %1774 = vmatprep.mubr.bf16.mxu0 %v1581
        %1775 = vmatmul.mubr.bf16.gmra.mrb[0].mxu0 %v1359
        %v1776 = vpop.f32.mrb[0].mxu0
        %v1777 = vadd.f32 %v1279, %v1776
        %v1778 = vpop.f32.mrb[0].mxu0
        %v1779 = vpop.f32.mrb[0].mxu0
        %v1780 = vadd.f32 %v1282, %v1779
        %v1781 = vpop.f32.mrb[0].mxu0
        %1782 = vmatprep.mubr.bf16.mxu0 %v1584
        %1783 = vmatmul.mubr.bf16.gmra.mrb[0].mxu0 %v1361
        %v1784 = vpop.f32.mrb[0].mxu0
        %v1785 = vadd.f32 %v1287, %v1784
        %v1786 = vpop.f32.mrb[0].mxu0
        %v1787 = vpop.f32.mrb[0].mxu0
        %v1788 = vadd.f32 %v1290, %v1787
        %v1789 = vpop.f32.mrb[0].mxu0
        %1790 = vmatprep.mubr.bf16.mxu0 %v1587
        %1791 = vmatmul.mubr.bf16.gmra.mrb[0].mxu0 %v1363
        %v1792 = vpop.f32.mrb[0].mxu0
        %v1793 = vadd.f32 %v1295, %v1792
        %v1794 = vpop.f32.mrb[0].mxu0
        %v1795 = vpop.f32.mrb[0].mxu0
        %v1796 = vadd.f32 %v1298, %v1795
        %v1797 = vpop.f32.mrb[0].mxu0
        %1798 = vdwg.mxu0
        %v1799 = vld [vmem:[%s669] sm:$0x7]
        %v1801 = vlaneseq
        %v1802 = vshrl.u32 %v1801, 7
        %v1803 = vsub.s32 0, %v1802
        %v1804 = vrot.slane %v1799, %v1803
        %v1805 = vlaneseq
        %v1806 = vshrl.u32 %v1805, 7
        %v1807 = vsub.s32 1, %v1806
        %v1808 = vrot.slane %v1799, %v1807
        %v1809 = vlaneseq
        %v1810 = vshrl.u32 %v1809, 7
        %v1811 = vsub.s32 2, %v1810
        %v1812 = vrot.slane %v1799, %v1811
        %v1816 = vadd.f32 %v1624, %v1804
        %v1817 = vadd.f32 %v1626, %v1808
        %v1818 = vadd.f32 %v1737, %v1812
        %v1819 = vadd.f32 %v1628, %v1804
        %v1820 = vadd.f32 %v1630, %v1808
        %v1821 = vadd.f32 %v1740, %v1812
        %v1822 = vadd.f32 %v1634, %v1804
        %v1823 = vadd.f32 %v1636, %v1808
        %v1824 = vadd.f32 %v1745, %v1812
        %v1825 = vadd.f32 %v1638, %v1804
        %v1826 = vadd.f32 %v1640, %v1808
        %v1827 = vadd.f32 %v1748, %v1812
        %v1828 = vadd.f32 %v1644, %v1804
        %v1829 = vadd.f32 %v1646, %v1808
        %v1830 = vadd.f32 %v1753, %v1812
        %v1831 = vadd.f32 %v1648, %v1804
        %v1832 = vadd.f32 %v1650, %v1808
        %v1833 = vadd.f32 %v1756, %v1812
        %v1834 = vadd.f32 %v1654, %v1804
        %v1835 = vadd.f32 %v1656, %v1808
        %v1836 = vadd.f32 %v1761, %v1812
        %v1837 = vadd.f32 %v1658, %v1804
        %v1838 = vadd.f32 %v1660, %v1808
        %v1839 = vadd.f32 %v1764, %v1812
        %v1840 = vadd.f32 %v1664, %v1804
        %v1841 = vadd.f32 %v1666, %v1808
        %v1842 = vadd.f32 %v1769, %v1812
        %v1843 = vadd.f32 %v1668, %v1804
        %v1844 = vadd.f32 %v1670, %v1808
        %v1845 = vadd.f32 %v1772, %v1812
        %v1846 = vadd.f32 %v1674, %v1804
        %v1847 = vadd.f32 %v1676, %v1808
        %v1848 = vadd.f32 %v1777, %v1812
        %v1849 = vadd.f32 %v1678, %v1804
        %v1850 = vadd.f32 %v1680, %v1808
        %v1851 = vadd.f32 %v1780, %v1812
        %v1852 = vadd.f32 %v1684, %v1804
        %v1853 = vadd.f32 %v1686, %v1808
        %v1854 = vadd.f32 %v1785, %v1812
        %v1855 = vadd.f32 %v1688, %v1804
        %v1856 = vadd.f32 %v1690, %v1808
        %v1857 = vadd.f32 %v1788, %v1812
        %v1858 = vadd.f32 %v1694, %v1804
        %v1859 = vadd.f32 %v1696, %v1808
        %v1860 = vadd.f32 %v1793, %v1812
        %v1861 = vadd.f32 %v1698, %v1804
        %v1862 = vadd.f32 %v1700, %v1808
        %v1863 = vadd.f32 %v1796, %v1812
        %v1864 = vmax.f32 %v1816, 0.0
        %v1865 = vmax.f32 %v1817, 0.0
        %v1866 = vmax.f32 %v1818, 0.0
        %v1867 = vmax.f32 %v1819, 0.0
        %v1868 = vmax.f32 %v1820, 0.0
        %v1869 = vmax.f32 %v1821, 0.0
        %v1870 = vmax.f32 %v1822, 0.0
        %v1871 = vmax.f32 %v1823, 0.0
        %v1872 = vmax.f32 %v1824, 0.0
        %v1873 = vmax.f32 %v1825, 0.0
        %v1874 = vmax.f32 %v1826, 0.0
        %v1875 = vmax.f32 %v1827, 0.0
        %v1876 = vmax.f32 %v1828, 0.0
        %v1877 = vmax.f32 %v1829, 0.0
        %v1878 = vmax.f32 %v1830, 0.0
        %v1879 = vmax.f32 %v1831, 0.0
        %v1880 = vmax.f32 %v1832, 0.0
        %v1881 = vmax.f32 %v1833, 0.0
        %v1882 = vmax.f32 %v1834, 0.0
        %v1883 = vmax.f32 %v1835, 0.0
        %v1884 = vmax.f32 %v1836, 0.0
        %v1885 = vmax.f32 %v1837, 0.0
        %v1886 = vmax.f32 %v1838, 0.0
        %v1887 = vmax.f32 %v1839, 0.0
        %v1888 = vmax.f32 %v1840, 0.0
        %v1889 = vmax.f32 %v1841, 0.0
        %v1890 = vmax.f32 %v1842, 0.0
        %v1891 = vmax.f32 %v1843, 0.0
        %v1892 = vmax.f32 %v1844, 0.0
        %v1893 = vmax.f32 %v1845, 0.0
        %v1894 = vmax.f32 %v1846, 0.0
        %v1895 = vmax.f32 %v1847, 0.0
        %v1896 = vmax.f32 %v1848, 0.0
        %v1897 = vmax.f32 %v1849, 0.0
        %v1898 = vmax.f32 %v1850, 0.0
        %v1899 = vmax.f32 %v1851, 0.0
        %v1900 = vmax.f32 %v1852, 0.0
        %v1901 = vmax.f32 %v1853, 0.0
        %v1902 = vmax.f32 %v1854, 0.0
        %v1903 = vmax.f32 %v1855, 0.0
        %v1904 = vmax.f32 %v1856, 0.0
        %v1905 = vmax.f32 %v1857, 0.0
        %v1906 = vmax.f32 %v1858, 0.0
        %v1907 = vmax.f32 %v1859, 0.0
        %v1908 = vmax.f32 %v1860, 0.0
        %v1909 = vmax.f32 %v1861, 0.0
        %v1910 = vmax.f32 %v1862, 0.0
        %v1911 = vmax.f32 %v1863, 0.0
        %v1912 = vld [vmem:[%s625] sm:$0xff]
        %v1913 = vld [vmem:[%s625 + $0x8] sm:$0xff]
        %v1914 = vld [vmem:[%s625 + $0x10] sm:$0xff]
        %v1915 = vld [vmem:[%s625 + $0x18] sm:$0xff]
        %v1916 = vld [vmem:[%s625 + $0x20] sm:$0xff]
        %v1917 = vld [vmem:[%s625 + $0x28] sm:$0xff]
        %v1918 = vld [vmem:[%s625 + $0x30] sm:$0xff]
        %v1919 = vld [vmem:[%s625 + $0x38] sm:$0xff]
        %v1920 = vld [vmem:[%s625 + $0x40] sm:$0xff]
        %v1921 = vld [vmem:[%s625 + $0x48] sm:$0xff]
        %v1922 = vld [vmem:[%s625 + $0x50] sm:$0xff]
        %v1923 = vld [vmem:[%s625 + $0x58] sm:$0xff]
        %v1924 = vld [vmem:[%s625 + $0x60] sm:$0xff]
        %v1925 = vld [vmem:[%s625 + $0x68] sm:$0xff]
        %v1926 = vld [vmem:[%s625 + $0x70] sm:$0xff]
        %v1927 = vld [vmem:[%s625 + $0x78] sm:$0xff]
        %v1928 = vld [vmem:[%s625 + $0x80] sm:$0xff]
        %v1929 = vld [vmem:[%s625 + $0x88] sm:$0xff]
        %v1930 = vld [vmem:[%s625 + $0x90] sm:$0xff]
        %v1931 = vld [vmem:[%s625 + $0x98] sm:$0xff]
        %v1932 = vld [vmem:[%s625 + $0xa0] sm:$0xff]
        %v1933 = vld [vmem:[%s625 + $0xa8] sm:$0xff]
        %v1934 = vld [vmem:[%s625 + $0xb0] sm:$0xff]
        %v1935 = vld [vmem:[%s625 + $0xb8] sm:$0xff]
        %v1936 = vld [vmem:[%s625 + $0xc0] sm:$0xff]
        %v1937 = vld [vmem:[%s625 + $0xc8] sm:$0xff]
        %v1938 = vld [vmem:[%s625 + $0xd0] sm:$0xff]
        %v1939 = vld [vmem:[%s625 + $0xd8] sm:$0xff]
        %v1940 = vld [vmem:[%s625 + $0xe0] sm:$0xff]
        %v1941 = vld [vmem:[%s625 + $0xe8] sm:$0xff]
        %v1942 = vld [vmem:[%s625 + $0xf0] sm:$0xff]
        %v1943 = vld [vmem:[%s625 + $0xf8] sm:$0xff]
        %v1944 = vld [vmem:[%s625 + $0x100] sm:$0xff]
        %v1945 = vld [vmem:[%s625 + $0x108] sm:$0xff]
        %v1946 = vld [vmem:[%s625 + $0x110] sm:$0xff]
        %v1947 = vld [vmem:[%s625 + $0x118] sm:$0xff]
        %v1948 = vld [vmem:[%s625 + $0x120] sm:$0xff]
        %v1949 = vld [vmem:[%s625 + $0x128] sm:$0xff]
        %v1950 = vld [vmem:[%s625 + $0x130] sm:$0xff]
        %v1951 = vld [vmem:[%s625 + $0x138] sm:$0xff]
        %v1952 = vld [vmem:[%s625 + $0x140] sm:$0xff]
        %v1953 = vld [vmem:[%s625 + $0x148] sm:$0xff]
        %v1954 = vld [vmem:[%s625 + $0x150] sm:$0xff]
        %v1955 = vld [vmem:[%s625 + $0x158] sm:$0xff]
        %v1956 = vld [vmem:[%s625 + $0x160] sm:$0xff]
        %v1957 = vld [vmem:[%s625 + $0x168] sm:$0xff]
        %v1958 = vld [vmem:[%s625 + $0x170] sm:$0xff]
        %v1959 = vld [vmem:[%s625 + $0x178] sm:$0xff]
        %v1960 = vadd.f32 %v1864, %v1912
        %v1961 = vadd.f32 %v1865, %v1913
        %v1962 = vadd.f32 %v1866, %v1914
        %v1963 = vadd.f32 %v1867, %v1915
        %v1964 = vadd.f32 %v1868, %v1916
        %v1965 = vadd.f32 %v1869, %v1917
        %v1966 = vadd.f32 %v1870, %v1918
        %v1967 = vadd.f32 %v1871, %v1919
        %v1968 = vadd.f32 %v1872, %v1920
        %v1969 = vadd.f32 %v1873, %v1921
        %v1970 = vadd.f32 %v1874, %v1922
        %v1971 = vadd.f32 %v1875, %v1923
        %v1972 = vadd.f32 %v1876, %v1924
        %v1973 = vadd.f32 %v1877, %v1925
        %v1974 = vadd.f32 %v1878, %v1926
        %v1975 = vadd.f32 %v1879, %v1927
        %v1976 = vadd.f32 %v1880, %v1928
        %v1977 = vadd.f32 %v1881, %v1929
        %v1978 = vadd.f32 %v1882, %v1930
        %v1979 = vadd.f32 %v1883, %v1931
        %v1980 = vadd.f32 %v1884, %v1932
        %v1981 = vadd.f32 %v1885, %v1933
        %v1982 = vadd.f32 %v1886, %v1934
        %v1983 = vadd.f32 %v1887, %v1935
        %v1984 = vadd.f32 %v1888, %v1936
        %v1985 = vadd.f32 %v1889, %v1937
        %v1986 = vadd.f32 %v1890, %v1938
        %v1987 = vadd.f32 %v1891, %v1939
        %v1988 = vadd.f32 %v1892, %v1940
        %v1989 = vadd.f32 %v1893, %v1941
        %v1990 = vadd.f32 %v1894, %v1942
        %v1991 = vadd.f32 %v1895, %v1943
        %v1992 = vadd.f32 %v1896, %v1944
        %v1993 = vadd.f32 %v1897, %v1945
        %v1994 = vadd.f32 %v1898, %v1946
        %v1995 = vadd.f32 %v1899, %v1947
        %v1996 = vadd.f32 %v1900, %v1948
        %v1997 = vadd.f32 %v1901, %v1949
        %v1998 = vadd.f32 %v1902, %v1950
        %v1999 = vadd.f32 %v1903, %v1951
        %v2000 = vadd.f32 %v1904, %v1952
        %v2001 = vadd.f32 %v1905, %v1953
        %v2002 = vadd.f32 %v1906, %v1954
        %v2003 = vadd.f32 %v1907, %v1955
        %v2004 = vadd.f32 %v1908, %v1956
        %v2005 = vadd.f32 %v1909, %v1957
        %v2006 = vadd.f32 %v1910, %v1958
        %v2007 = vadd.f32 %v1911, %v1959
        %v2008 = vmax.f32 %v1960, 0.0
        %v2009 = vmax.f32 %v1961, 0.0
        %v2010 = vmax.f32 %v1962, 0.0
        %v2011 = vmax.f32 %v1963, 0.0
        %v2012 = vmax.f32 %v1964, 0.0
        %v2013 = vmax.f32 %v1965, 0.0
        %v2014 = vmax.f32 %v1966, 0.0
        %v2015 = vmax.f32 %v1967, 0.0
        %v2016 = vmax.f32 %v1968, 0.0
        %v2017 = vmax.f32 %v1969, 0.0
        %v2018 = vmax.f32 %v1970, 0.0
        %v2019 = vmax.f32 %v1971, 0.0
        %v2020 = vmax.f32 %v1972, 0.0
        %v2021 = vmax.f32 %v1973, 0.0
        %v2022 = vmax.f32 %v1974, 0.0
        %v2023 = vmax.f32 %v1975, 0.0
        %v2024 = vmax.f32 %v1976, 0.0
        %v2025 = vmax.f32 %v1977, 0.0
        %v2026 = vmax.f32 %v1978, 0.0
        %v2027 = vmax.f32 %v1979, 0.0
        %v2028 = vmax.f32 %v1980, 0.0
        %v2029 = vmax.f32 %v1981, 0.0
        %v2030 = vmax.f32 %v1982, 0.0
        %v2031 = vmax.f32 %v1983, 0.0
        %v2032 = vmax.f32 %v1984, 0.0
        %v2033 = vmax.f32 %v1985, 0.0
        %v2034 = vmax.f32 %v1986, 0.0
        %v2035 = vmax.f32 %v1987, 0.0
        %v2036 = vmax.f32 %v1988, 0.0
        %v2037 = vmax.f32 %v1989, 0.0
        %v2038 = vmax.f32 %v1990, 0.0
        %v2039 = vmax.f32 %v1991, 0.0
        %v2040 = vmax.f32 %v1992, 0.0
        %v2041 = vmax.f32 %v1993, 0.0
        %v2042 = vmax.f32 %v1994, 0.0
        %v2043 = vmax.f32 %v1995, 0.0
        %v2044 = vmax.f32 %v1996, 0.0
        %v2045 = vmax.f32 %v1997, 0.0
        %v2046 = vmax.f32 %v1998, 0.0
        %v2047 = vmax.f32 %v1999, 0.0
        %v2048 = vmax.f32 %v2000, 0.0
        %v2049 = vmax.f32 %v2001, 0.0
        %v2050 = vmax.f32 %v2002, 0.0
        %v2051 = vmax.f32 %v2003, 0.0
        %v2052 = vmax.f32 %v2004, 0.0
        %v2053 = vmax.f32 %v2005, 0.0
        %v2054 = vmax.f32 %v2006, 0.0
        %v2055 = vmax.f32 %v2007, 0.0
        %2056 = vst [vmem:[%s663] sm:$0xff] %v2008
        %2057 = vst [vmem:[%s663 + $0x8] sm:$0xff] %v2009
        %2058 = vst [vmem:[%s663 + $0x10] sm:$0xff] %v2010
        %2059 = vst [vmem:[%s663 + $0x18] sm:$0xff] %v2011
        %2060 = vst [vmem:[%s663 + $0x20] sm:$0xff] %v2012
        %2061 = vst [vmem:[%s663 + $0x28] sm:$0xff] %v2013
        %2062 = vst [vmem:[%s663 + $0x30] sm:$0xff] %v2014
        %2063 = vst [vmem:[%s663 + $0x38] sm:$0xff] %v2015
        %2064 = vst [vmem:[%s663 + $0x40] sm:$0xff] %v2016
        %2065 = vst [vmem:[%s663 + $0x48] sm:$0xff] %v2017
        %2066 = vst [vmem:[%s663 + $0x50] sm:$0xff] %v2018
        %2067 = vst [vmem:[%s663 + $0x58] sm:$0xff] %v2019
        %2068 = vst [vmem:[%s663 + $0x60] sm:$0xff] %v2020
        %2069 = vst [vmem:[%s663 + $0x68] sm:$0xff] %v2021
        %2070 = vst [vmem:[%s663 + $0x70] sm:$0xff] %v2022
        %2071 = vst [vmem:[%s663 + $0x78] sm:$0xff] %v2023
        %2072 = vst [vmem:[%s663 + $0x80] sm:$0xff] %v2024
        %2073 = vst [vmem:[%s663 + $0x88] sm:$0xff] %v2025
        %2074 = vst [vmem:[%s663 + $0x90] sm:$0xff] %v2026
        %2075 = vst [vmem:[%s663 + $0x98] sm:$0xff] %v2027
        %2076 = vst [vmem:[%s663 + $0xa0] sm:$0xff] %v2028
        %2077 = vst [vmem:[%s663 + $0xa8] sm:$0xff] %v2029
        %2078 = vst [vmem:[%s663 + $0xb0] sm:$0xff] %v2030
        %2079 = vst [vmem:[%s663 + $0xb8] sm:$0xff] %v2031
        %2080 = vst [vmem:[%s663 + $0xc0] sm:$0xff] %v2032
        %2081 = vst [vmem:[%s663 + $0xc8] sm:$0xff] %v2033
        %2082 = vst [vmem:[%s663 + $0xd0] sm:$0xff] %v2034
        %2083 = vst [vmem:[%s663 + $0xd8] sm:$0xff] %v2035
        %2084 = vst [vmem:[%s663 + $0xe0] sm:$0xff] %v2036
        %2085 = vst [vmem:[%s663 + $0xe8] sm:$0xff] %v2037
        %2086 = vst [vmem:[%s663 + $0xf0] sm:$0xff] %v2038
        %2087 = vst [vmem:[%s663 + $0xf8] sm:$0xff] %v2039
        %2088 = vst [vmem:[%s663 + $0x100] sm:$0xff] %v2040
        %2089 = vst [vmem:[%s663 + $0x108] sm:$0xff] %v2041
        %2090 = vst [vmem:[%s663 + $0x110] sm:$0xff] %v2042
        %2091 = vst [vmem:[%s663 + $0x118] sm:$0xff] %v2043
        %2092 = vst [vmem:[%s663 + $0x120] sm:$0xff] %v2044
        %2093 = vst [vmem:[%s663 + $0x128] sm:$0xff] %v2045
        %2094 = vst [vmem:[%s663 + $0x130] sm:$0xff] %v2046
        %2095 = vst [vmem:[%s663 + $0x138] sm:$0xff] %v2047
        %2096 = vst [vmem:[%s663 + $0x140] sm:$0xff] %v2048
        %2097 = vst [vmem:[%s663 + $0x148] sm:$0xff] %v2049
        %2098 = vst [vmem:[%s663 + $0x150] sm:$0xff] %v2050
        %2099 = vst [vmem:[%s663 + $0x158] sm:$0xff] %v2051
        %2100 = vst [vmem:[%s663 + $0x160] sm:$0xff] %v2052
        %2101 = vst [vmem:[%s663 + $0x168] sm:$0xff] %v2053
        %2102 = vst [vmem:[%s663 + $0x170] sm:$0xff] %v2054
        %2103 = vst [vmem:[%s663 + $0x178] sm:$0xff] %v2055
        %s2104 = sand.u32 %s174, 1
        %s2105 = scalar_lea.sflag [#allocation6], %s2104
        %s2106 = sand.u32 %s174, 1
        %s2107 = smul.addr %s2106, 384
        %s2108 = scalar_lea.vmem [#allocation5], %s2107
        // Predicated region
        $region120: #{inception_b_res2_forward.7} parent=106 // pred_check
          %p2109 = pneg %p184
        $region121: #{inception_b_res2_forward.7} parent=106 // pred_check_branch
          %2111 = sbr.rel (%p2109) target = $region123
        $region122: #{inception_b_res2_forward.7} parent=106 // pred_region
          %s2112 = smul.u32 3, %s20
          %s2114 = ssub.s32 6144, 6144
          %2115 = vsyncadd %s2105, %s2114
          %s2116 = smul.addr %s2112, 128
          %s2117 = scalar_lea.hbm %s6, %s2116
          %s2118 = sshll.u32 %s2108, 4
          %s2119 = int_to_ptr.vmem [resolvable:$true] %s2118
          %2124 = dma.vmem_to_hbm [thread:$0]  %s2119, 6144, %s2117, %s2105, 384, 1152, 24
        $region123: #{inception_b_res2_forward.7} parent=106 // pred_fallthru
          _
      $region107: #{inception_b_res2_forward.7} parent=5 // pred_fallthru
        _
      %p2125 = scmp.le.s32.totalorder 2, %s15
      // Predicated region
      $region124: #{inception_b_res2_forward.7} parent=5 // pred_check
        %p2126 = pneg %p2125
      $region125: #{inception_b_res2_forward.7} parent=5 // pred_check_branch
        %2128 = sbr.rel (%p2126) target = $region127
      $region126: #{inception_b_res2_forward.7} parent=5 // pred_region
        %s2129 = ssub.s32 %s15, 2
        // Predicated region
        $region128: #{inception_b_res2_forward.7} parent=126 // pred_check
          %p2130 = pneg %p190
        $region129: #{inception_b_res2_forward.7} parent=126 // pred_check_branch
          %2132 = sbr.rel (%p2130) target = $region131
        $region130: #{inception_b_res2_forward.7} parent=126 // pred_region
          %s2133 = sand.u32 %s175, 1
          %s2134 = scalar_lea.sflag [#allocation6], %s2133
          %s2135 = sand.u32 %s175, 1
          %s2136 = smul.addr %s2135, 384
          %s2137 = scalar_lea.vmem [#allocation5], %s2136
          %2138 = dma.done %s2134, 6144
        $region131: #{inception_b_res2_forward.7} parent=126 // pred_fallthru
          _
      $region127: #{inception_b_res2_forward.7} parent=5 // pred_fallthru
        _
    $region6: #{inception_b_res2_forward.7} parent=1 // loop_footer
      %s19 = sadd.s32 1, %s15
    $region7: #{inception_b_res2_forward.7} parent=1 // loop_footer_branch
      %14 = sbr.rel target = $region3
    $region8: #{inception_b_res2_forward.7} parent=1 // loop_exit
      _
    %2139 = vsyncpa [#allocation6], 1
    %s2140 = scalar_lea.sflag [#allocation6], 1
    %2141 = vsyncpa %s2140, 1

</llo_original>
